<compile_context>
chip_gen: v7x
topology: tpu7x:2x2x1
jax: 0.10.0
libtpu: 0.0.40
codegen_flags: <defaults>
</compile_context>

<pallas_src>
import functools

import jax
import jax.numpy as jnp
from jax.experimental import pallas as pl
from jax.experimental.pallas import tpu as pltpu


# ------------------------------------------------------------------------
# Model hyper-parameters (scaled-down stand-ins for VGGish + nn.Transformer()
# defaults of d_model=512 / nhead=8 / 6+6 layers / ffn=2048).
# ------------------------------------------------------------------------
D_MODEL = 32
NHEAD = 4
FFN = 64
N_ENC_LAYERS = 1
N_DEC_LAYERS = 1

VMEM_LIMIT_BYTES = 32 * 1024 * 1024


# ------------------------------------------------------------------------
# Small in-kernel helpers (pure jnp on values).
# ------------------------------------------------------------------------
def _bf16_matmul(a, b):
    """MXU-friendly matmul: bf16 operands, f32 accumulation."""
    return jnp.dot(a.astype(jnp.bfloat16), b.astype(jnp.bfloat16),
                   preferred_element_type=jnp.float32)


def _layernorm(x, g, b, eps=1e-5):
    mu = jnp.mean(x, axis=-1, keepdims=True)
    var = jnp.mean(jnp.square(x - mu), axis=-1, keepdims=True)
    return (x - mu) * jax.lax.rsqrt(var + eps) * g + b


def _attention(q, k, v, wo, bo, B, Sq, Skv, nhead):
    """Per-head SDPA + output projection, fully in-register/VMEM.

    q: [B*Sq, D], k/v: [B*Skv, D] (rows are batch-major).  Returns [B*Sq, D].
    The head loop is a static Python loop; the output projection is folded
    into the loop as sum_h (o_h @ wo[h*Dh:(h+1)*Dh, :]) so no concat is needed.
    """
    D = q.shape[-1]
    Dh = D // nhead
    scale = 1.0 / float(Dh) ** 0.5
    out = jnp.zeros((q.shape[0], D), jnp.float32) + bo
    for h in range(nhead):
        sl = slice(h * Dh, (h + 1) * Dh)
        qh = q[:, sl].reshape(B, Sq, Dh)
        kh = k[:, sl].reshape(B, Skv, Dh)
        vh = v[:, sl].reshape(B, Skv, Dh)
        s = jnp.einsum("bqd,bkd->bqk",
                       qh.astype(jnp.bfloat16), kh.astype(jnp.bfloat16),
                       preferred_element_type=jnp.float32) * scale
        m = jnp.max(s, axis=-1, keepdims=True)
        e = jnp.exp(s - m)
        p = e * pl.reciprocal(jnp.sum(e, axis=-1, keepdims=True), approx=True)
        oh = jnp.einsum("bqk,bkd->bqd",
                        p.astype(jnp.bfloat16), vh.astype(jnp.bfloat16),
                        preferred_element_type=jnp.float32)
        out = out + _bf16_matmul(oh.reshape(B * Sq, Dh), wo[sl, :])
    return out


# ------------------------------------------------------------------------
# Pallas kernel 1: 3x3 'same' conv + bias + ReLU.
#
# The wrapper flattens (W, Cin) into one axis and expands the conv weight into
# three banded GEMM operands (one per kernel row dy), so in-kernel the conv is
# just 3 accumulated GEMMs with a lane-dense [rows, W*Cout] output.
# ------------------------------------------------------------------------
def _conv3x3_relu_kernel(x_ref, w_ref, b_ref, o_ref, *, H):
    # x_ref: [nb, H+2, (W+2)*Cin]; w_ref: [3, (W+2)*Cin, W*Cout]
    # b_ref: [1, W*Cout];          o_ref: [nb*H, W*Cout]
    nb, _, K = x_ref.shape
    N = w_ref.shape[-1]
    acc = jnp.zeros((nb * H, N), jnp.float32)
    for dy in range(3):
        xs = x_ref[:, dy:dy + H, :].reshape(nb * H, K)
        acc = acc + _bf16_matmul(xs, w_ref[dy])
    o_ref[...] = jnp.maximum(acc + b_ref[...], 0.0)


def conv3x3_relu(x_nhwc, w, b):
    """x: [Nf, H, W, Cin] f32; w: [3, 3, Cin, Cout]; b: [Cout]. 'same' conv."""
    Nf, H, W, Cin = x_nhwc.shape
    Cout = w.shape[-1]
    Hp, Wp = H + 2, W + 2

    xp = jnp.pad(x_nhwc, ((0, 0), (1, 1), (1, 1), (0, 0)))
    x2 = xp.reshape(Nf, Hp, Wp * Cin)                        # free XLA reshape

    # Expanded banded weight: Wbig_dy[p*Cin+c, j*Cout+co] = w[dy, p-j, c, co].
    d_idx = jnp.arange(3)[:, None, None]
    j_idx = jnp.arange(W)[None, :, None]
    p_idx = jnp.arange(Wp)[None, None, :]
    onehot = (p_idx == j_idx + d_idx).astype(w.dtype)        # [3, W, Wp]
    wbig = jnp.stack(
        [jnp.einsum("djp,dco->pcjo", onehot, w[dy]).reshape(Wp * Cin, W * Cout)
         for dy in range(3)], axis=0)                        # [3, Wp*Cin, W*Cout]
    bias = jnp.tile(b, W).reshape(1, W * Cout)

    nb = 2 if Nf % 2 == 0 else 1                             # 2 TCs on v7x
    blk = Nf // nb

    out = pl.pallas_call(
        functools.partial(_conv3x3_relu_kernel, H=H),
        out_shape=jax.ShapeDtypeStruct((Nf * H, W * Cout), jnp.float32),
        grid=(nb,),
        in_specs=[
            pl.BlockSpec((blk, Hp, Wp * Cin), lambda i: (i, 0, 0)),
            pl.BlockSpec((3, Wp * Cin, W * Cout), lambda i: (0, 0, 0)),
            pl.BlockSpec((1, W * Cout), lambda i: (0, 0)),
        ],
        out_specs=pl.BlockSpec((blk * H, W * Cout), lambda i: (i, 0)),
        compiler_params=pltpu.CompilerParams(
            dimension_semantics=("parallel",),
            vmem_limit_bytes=VMEM_LIMIT_BYTES),
    )(x2, wbig, bias)
    return out.reshape(Nf, H, W, Cout)


def _maxpool2x2(x):
    # 2x2 max-pool kept in plain-JAX glue (cheap reshape+reduce on tiny data).
    N, H, W, C = x.shape
    return x.reshape(N, H // 2, 2, W // 2, 2, C).max(axis=(2, 4))


# ------------------------------------------------------------------------
# Pallas kernel 2: fused VGGish FC head  (fc1 + ReLU + fc2 + ReLU).
# ------------------------------------------------------------------------
def _mlp_head_kernel(x_ref, w1_ref, b1_ref, w2_ref, b2_ref, o_ref):
    h = jnp.maximum(_bf16_matmul(x_ref[...], w1_ref[...]) + b1_ref[...], 0.0)
    y = jnp.maximum(_bf16_matmul(h, w2_ref[...]) + b2_ref[...], 0.0)
    o_ref[...] = y


def mlp_head(x, w1, b1, w2, b2):
    M = x.shape[0]
    N = w2.shape[1]
    vmem = pl.BlockSpec(memory_space=pltpu.MemorySpace.VMEM)
    return pl.pallas_call(
        _mlp_head_kernel,
        out_shape=jax.ShapeDtypeStruct((M, N), jnp.float32),
        in_specs=[vmem] * 5,
        out_specs=vmem,
        compiler_params=pltpu.CompilerParams(vmem_limit_bytes=VMEM_LIMIT_BYTES),
    )(x, w1, b1.reshape(1, -1), w2, b2.reshape(1, -1))


def vggish_forward(p, x_nhwc):
    """x: [Nf, 16, 16, 1] -> embeddings [Nf, D_MODEL]."""
    h = conv3x3_relu(x_nhwc, p["conv1_w"], p["conv1_b"])      # [Nf, 16, 16, 8]
    h = _maxpool2x2(h)                                        # [Nf, 8, 8, 8]
    h = conv3x3_relu(h, p["conv2_w"], p["conv2_b"])           # [Nf, 8, 8, 16]
    h = _maxpool2x2(h)                                        # [Nf, 4, 4, 16]
    h = h.reshape(h.shape[0], -1)                             # [Nf, 256]
    return mlp_head(h, p["fc1_w"], p["fc1_b"], p["fc2_w"], p["fc2_b"])


# ------------------------------------------------------------------------
# Pallas kernel 3: fused Transformer ENCODER layer
#   (fused-QKV proj -> per-head SDPA -> out-proj -> add&LN -> FFN -> add&LN
#    [-> final encoder norm when it is the last layer]).
# Post-LN ordering, dropout omitted (eval mode), like nn.Transformer defaults.
# ------------------------------------------------------------------------
def _encoder_layer_kernel(x_ref, wqkv_ref, bqkv_ref, wo_ref, bo_ref,
                          ln1g_ref, ln1b_ref, w1_ref, b1_ref, w2_ref, b2_ref,
                          ln2g_ref, ln2b_ref, fng_ref, fnb_ref, o_ref,
                          *, B, S, nhead, apply_final):
    x = x_ref[...]                                            # [B*S, D] f32
    D = x.shape[-1]

    qkv = _bf16_matmul(x, wqkv_ref[...]) + bqkv_ref[...]      # [B*S, 3D]
    q, k, v = qkv[:, :D], qkv[:, D:2 * D], qkv[:, 2 * D:]
    attn = _attention(q, k, v, wo_ref[...], bo_ref[...], B, S, S, nhead)
    h = _layernorm(x + attn, ln1g_ref[...], ln1b_ref[...])

    ff = jnp.maximum(_bf16_matmul(h, w1_ref[...]) + b1_ref[...], 0.0)
    ff = _bf16_matmul(ff, w2_ref[...]) + b2_ref[...]
    y = _layernorm(h + ff, ln2g_ref[...], ln2b_ref[...])
    if apply_final:
        y = _layernorm(y, fng_ref[...], fnb_ref[...])
    o_ref[...] = y


def _encoder_layer(lp, x, B, S, nhead, final_g, final_b, apply_final):
    N, D = x.shape
    sa = lp["self_attn"]
    args = [x,
            sa["wqkv"], sa["bqkv"].reshape(1, -1),
            sa["wo"], sa["bo"].reshape(1, -1),
            lp["ln1_g"].reshape(1, -1), lp["ln1_b"].reshape(1, -1),
            lp["w1"], lp["b1"].reshape(1, -1),
            lp["w2"], lp["b2"].reshape(1, -1),
            lp["ln2_g"].reshape(1, -1), lp["ln2_b"].reshape(1, -1),
            final_g.reshape(1, -1), final_b.reshape(1, -1)]
    vmem = pl.BlockSpec(memory_space=pltpu.MemorySpace.VMEM)
    kernel = functools.partial(_encoder_layer_kernel, B=B, S=S,
                               nhead=nhead, apply_final=apply_final)
    return pl.pallas_call(
        kernel,
        out_shape=jax.ShapeDtypeStruct((N, D), jnp.float32),
        in_specs=[vmem] * len(args),
        out_specs=vmem,
        compiler_params=pltpu.CompilerParams(vmem_limit_bytes=VMEM_LIMIT_BYTES),
    )(*args)


# ------------------------------------------------------------------------
# Pallas kernel 4: fused Transformer DECODER layer
#   (self-attn -> add&LN -> cross-attn -> add&LN -> FFN -> add&LN
#    [-> final decoder norm when it is the last layer]).
# TODO(synk): no causal mask on decoder self-attention — matches
#             nn.Transformer().forward(src, tgt) with tgt_mask=None.
# ------------------------------------------------------------------------
def _decoder_layer_kernel(x_ref, mem_ref,
                          swqkv_ref, sbqkv_ref, swo_ref, sbo_ref,
                          ln1g_ref, ln1b_ref,
                          cwq_ref, cbq_ref, cwkv_ref, cbkv_ref, cwo_ref, cbo_ref,
                          ln2g_ref, ln2b_ref,
                          w1_ref, b1_ref, w2_ref, b2_ref,
                          ln3g_ref, ln3b_ref,
                          fng_ref, fnb_ref, o_ref,
                          *, B, St, Sm, nhead, apply_final):
    x = x_ref[...]                                            # [B*St, D]
    mem = mem_ref[...]                                        # [B*Sm, D]
    D = x.shape[-1]

    # self-attention (fused QKV)
    qkv = _bf16_matmul(x, swqkv_ref[...]) + sbqkv_ref[...]
    q, k, v = qkv[:, :D], qkv[:, D:2 * D], qkv[:, 2 * D:]
    sa = _attention(q, k, v, swo_ref[...], sbo_ref[...], B, St, St, nhead)
    h = _layernorm(x + sa, ln1g_ref[...], ln1b_ref[...])

    # cross-attention (fused KV)
    qc = _bf16_matmul(h, cwq_ref[...]) + cbq_ref[...]
    kvc = _bf16_matmul(mem, cwkv_ref[...]) + cbkv_ref[...]
    kc, vc = kvc[:, :D], kvc[:, D:]
    ca = _attention(qc, kc, vc, cwo_ref[...], cbo_ref[...], B, St, Sm, nhead)
    h2 = _layernorm(h + ca, ln2g_ref[...], ln2b_ref[...])

    # FFN
    ff = jnp.maximum(_bf16_matmul(h2, w1_ref[...]) + b1_ref[...], 0.0)
    ff = _bf16_matmul(ff, w2_ref[...]) + b2_ref[...]
    y = _layernorm(h2 + ff, ln3g_ref[...], ln3b_ref[...])
    if apply_final:
        y = _layernorm(y, fng_ref[...], fnb_ref[...])
    o_ref[...] = y


def _decoder_layer(lp, x, mem, B, St, Sm, nhead, final_g, final_b, apply_final):
    N, D = x.shape
    sa, ca = lp["self_attn"], lp["cross_attn"]
    args = [x, mem,
            sa["wqkv"], sa["bqkv"].reshape(1, -1),
            sa["wo"], sa["bo"].reshape(1, -1),
            lp["ln1_g"].reshape(1, -1), lp["ln1_b"].reshape(1, -1),
            ca["wq"], ca["bq"].reshape(1, -1),
            ca["wkv"], ca["bkv"].reshape(1, -1),
            ca["wo"], ca["bo"].reshape(1, -1),
            lp["ln2_g"].reshape(1, -1), lp["ln2_b"].reshape(1, -1),
            lp["w1"], lp["b1"].reshape(1, -1),
            lp["w2"], lp["b2"].reshape(1, -1),
            lp["ln3_g"].reshape(1, -1), lp["ln3_b"].reshape(1, -1),
            final_g.reshape(1, -1), final_b.reshape(1, -1)]
    vmem = pl.BlockSpec(memory_space=pltpu.MemorySpace.VMEM)
    kernel = functools.partial(_decoder_layer_kernel, B=B, St=St, Sm=Sm,
                               nhead=nhead, apply_final=apply_final)
    return pl.pallas_call(
        kernel,
        out_shape=jax.ShapeDtypeStruct((N, D), jnp.float32),
        in_specs=[vmem] * len(args),
        out_specs=vmem,
        compiler_params=pltpu.CompilerParams(vmem_limit_bytes=VMEM_LIMIT_BYTES),
    )(*args)


def transformer_forward(p, src, tgt, B, S, nhead):
    """src/tgt: [B*S, D] batch-major token rows -> [B*S, D]."""
    mem = src
    enc_layers = p["encoder_layers"]
    for li, lp in enumerate(enc_layers):
        mem = _encoder_layer(lp, mem, B, S, nhead,
                             p["enc_norm_g"], p["enc_norm_b"],
                             apply_final=(li == len(enc_layers) - 1))
    out = tgt
    dec_layers = p["decoder_layers"]
    for li, lp in enumerate(dec_layers):
        out = _decoder_layer(lp, out, mem, B, S, S, nhead,
                             p["dec_norm_g"], p["dec_norm_b"],
                             apply_final=(li == len(dec_layers) - 1))
    return out


# ------------------------------------------------------------------------
# Full forward: mel frames -> VGGish embeddings -> Transformer.
# ------------------------------------------------------------------------
def vggish_transformer_forward(params, x):
    """x: [B, T, 1, Hmel, Wmel] -> [T, B, D_MODEL]."""
    B, T, C, H, W = x.shape
    frames = x.reshape(B * T, C, H, W).transpose(0, 2, 3, 1)   # NHWC, batch-major
    emb = vggish_forward(params["vggish"], frames)             # [B*T, D]
    # VGGish embeddings serve as both src and tgt of the Transformer.
    out = transformer_forward(params["transformer"], emb, emb, B, T, NHEAD)
    # return in nn.Transformer's default [S, B, D] layout.
    return out.reshape(B, T, D_MODEL).transpose(1, 0, 2)


# ------------------------------------------------------------------------
# Deterministic parameter init.
# ------------------------------------------------------------------------
def init_params(key):
    keys = iter(jax.random.split(key, 256))
    D = D_MODEL

    def w(shape, scale=0.05):
        return scale * jax.random.normal(next(keys), shape, dtype=jnp.float32)

    zeros = lambda s: jnp.zeros(s, jnp.float32)
    ones = lambda s: jnp.ones(s, jnp.float32)

    def mha_self():
        return dict(wqkv=w((D, 3 * D)), bqkv=zeros((3 * D,)),
                    wo=w((D, D)), bo=zeros((D,)))

    def mha_cross():
        return dict(wq=w((D, D)), bq=zeros((D,)),
                    wkv=w((D, 2 * D)), bkv=zeros((2 * D,)),
                    wo=w((D, D)), bo=zeros((D,)))

    def enc_layer():
        return dict(self_attn=mha_self(),
                    ln1_g=ones((D,)), ln1_b=zeros((D,)),
                    w1=w((D, FFN)), b1=zeros((FFN,)),
                    w2=w((FFN, D)), b2=zeros((D,)),
                    ln2_g=ones((D,)), ln2_b=zeros((D,)))

    def dec_layer():
        return dict(self_attn=mha_self(), cross_attn=mha_cross(),
                    ln1_g=ones((D,)), ln1_b=zeros((D,)),
                    ln2_g=ones((D,)), ln2_b=zeros((D,)),
                    w1=w((D, FFN)), b1=zeros((FFN,)),
                    w2=w((FFN, D)), b2=zeros((D,)),
                    ln3_g=ones((D,)), ln3_b=zeros((D,)))

    vggish = dict(
        conv1_w=w((3, 3, 1, 8)), conv1_b=zeros((8,)),
        conv2_w=w((3, 3, 8, 16)), conv2_b=zeros((16,)),
        fc1_w=w((16 * 4 * 4, 64)), fc1_b=zeros((64,)),
        fc2_w=w((64, D)), fc2_b=zeros((D,)),
    )
    transformer = dict(
        encoder_layers=[enc_layer() for _ in range(N_ENC_LAYERS)],
        decoder_layers=[dec_layer() for _ in range(N_DEC_LAYERS)],
        enc_norm_g=ones((D,)), enc_norm_b=zeros((D,)),
        dec_norm_g=ones((D,)), dec_norm_b=zeros((D,)),
    )
    return dict(vggish=vggish, transformer=transformer)


if __name__ == "__main__":
    key = jax.random.PRNGKey(0)
    pkey, xkey = jax.random.split(key)
    params = init_params(pkey)

    # x: [batch=2, frames(seq)=8, channel=1, mel_time=16, mel_bins=16]
    x = jax.random.normal(xkey, (2, 8, 1, 16, 16), dtype=jnp.float32)

    fwd = jax.jit(vggish_transformer_forward)
    out = fwd(params, x)
    out = jax.block_until_ready(out)

    assert out.shape == (8, 2, D_MODEL), out.shape
    assert bool(jnp.all(jnp.isfinite(out)))
    print("KERNEL_OK")
</pallas_src>

<mosaic_0001>
module attributes {stable_mosaic.version = 11 : i64} {
  func.func @_conv3x3_relu_kernel(%arg0: i32, %arg1: memref<8x18x18xf32, #tpu.memory_space<vmem>>, %arg2: memref<3x18x128xf32, #tpu.memory_space<vmem>>, %arg3: memref<1x128xf32, #tpu.memory_space<vmem>>, %arg4: memref<128x128xf32, #tpu.memory_space<vmem>>) attributes {dimension_semantics = [#tpu.dimension_semantics<parallel>], iteration_bounds = array<i64: 2>, scalar_prefetch = 0 : i64, scratch_operands = 0 : i64, tpu.core_type = #tpu.core_type<tc>, window_params = [{transform_indices = @transform_0, window_bounds = array<i64: 8, 18, 18>}, {pipeline_mode = #tpu.pipeline_mode<synchronous>, transform_indices = @transform_1, window_bounds = array<i64: 3, 18, 128>}, {pipeline_mode = #tpu.pipeline_mode<synchronous>, transform_indices = @transform_2, window_bounds = array<i64: 1, 128>}, {transform_indices = @transform_3, window_bounds = array<i64: 128, 128>}]} {
    %cst = arith.constant 0.000000e+00 : f32
    %0 = vector.broadcast %cst : f32 to vector<128x128xf32>
    %c0 = arith.constant 0 : index
    %c0_0 = arith.constant 0 : index
    %c0_1 = arith.constant 0 : index
    %1 = vector.load %arg1[%c0, %c0_0, %c0_1] : memref<8x18x18xf32, #tpu.memory_space<vmem>>, vector<8x16x18xf32>
    %2 = vector.shape_cast %1 : vector<8x16x18xf32> to vector<128x18xf32>
    %c0_2 = arith.constant 0 : index
    %c0_3 = arith.constant 0 : index
    %c0_4 = arith.constant 0 : index
    %3 = vector.load %arg2[%c0_2, %c0_3, %c0_4] : memref<3x18x128xf32, #tpu.memory_space<vmem>>, vector<1x18x128xf32>
    %4 = vector.shape_cast %3 : vector<1x18x128xf32> to vector<18x128xf32>
    %5 = arith.truncf %2 : vector<128x18xf32> to vector<128x18xbf16>
    %6 = arith.truncf %4 : vector<18x128xf32> to vector<18x128xbf16>
    %cst_5 = arith.constant dense<0.000000e+00> : vector<128x128xf32>
    %7 = tpu.matmul %5, %6, %cst_5 {dimension_numbers = #tpu.dot_dimension_numbers<[1], [0], [0], [1], [0, 0, 1, 1], [], []>} : vector<128x18xbf16>, vector<18x128xbf16>, vector<128x128xf32> -> vector<128x128xf32>
    %8 = arith.addf %0, %7 : vector<128x128xf32>
    %c0_6 = arith.constant 0 : index
    %c1 = arith.constant 1 : index
    %c0_7 = arith.constant 0 : index
    %9 = vector.load %arg1[%c0_6, %c1, %c0_7] : memref<8x18x18xf32, #tpu.memory_space<vmem>>, vector<8x16x18xf32>
    %10 = vector.shape_cast %9 : vector<8x16x18xf32> to vector<128x18xf32>
    %c1_8 = arith.constant 1 : index
    %c0_9 = arith.constant 0 : index
    %c0_10 = arith.constant 0 : index
    %11 = vector.load %arg2[%c1_8, %c0_9, %c0_10] : memref<3x18x128xf32, #tpu.memory_space<vmem>>, vector<1x18x128xf32>
    %12 = vector.shape_cast %11 : vector<1x18x128xf32> to vector<18x128xf32>
    %13 = arith.truncf %10 : vector<128x18xf32> to vector<128x18xbf16>
    %14 = arith.truncf %12 : vector<18x128xf32> to vector<18x128xbf16>
    %cst_11 = arith.constant dense<0.000000e+00> : vector<128x128xf32>
    %15 = tpu.matmul %13, %14, %cst_11 {dimension_numbers = #tpu.dot_dimension_numbers<[1], [0], [0], [1], [0, 0, 1, 1], [], []>} : vector<128x18xbf16>, vector<18x128xbf16>, vector<128x128xf32> -> vector<128x128xf32>
    %16 = arith.addf %8, %15 : vector<128x128xf32>
    %c0_12 = arith.constant 0 : index
    %c2 = arith.constant 2 : index
    %c0_13 = arith.constant 0 : index
    %17 = vector.load %arg1[%c0_12, %c2, %c0_13] : memref<8x18x18xf32, #tpu.memory_space<vmem>>, vector<8x16x18xf32>
    %18 = vector.shape_cast %17 : vector<8x16x18xf32> to vector<128x18xf32>
    %c2_14 = arith.constant 2 : index
    %c0_15 = arith.constant 0 : index
    %c0_16 = arith.constant 0 : index
    %19 = vector.load %arg2[%c2_14, %c0_15, %c0_16] : memref<3x18x128xf32, #tpu.memory_space<vmem>>, vector<1x18x128xf32>
    %20 = vector.shape_cast %19 : vector<1x18x128xf32> to vector<18x128xf32>
    %21 = arith.truncf %18 : vector<128x18xf32> to vector<128x18xbf16>
    %22 = arith.truncf %20 : vector<18x128xf32> to vector<18x128xbf16>
    %cst_17 = arith.constant dense<0.000000e+00> : vector<128x128xf32>
    %23 = tpu.matmul %21, %22, %cst_17 {dimension_numbers = #tpu.dot_dimension_numbers<[1], [0], [0], [1], [0, 0, 1, 1], [], []>} : vector<128x18xbf16>, vector<18x128xbf16>, vector<128x128xf32> -> vector<128x128xf32>
    %24 = arith.addf %16, %23 : vector<128x128xf32>
    %c0_18 = arith.constant 0 : index
    %c0_19 = arith.constant 0 : index
    %25 = vector.load %arg3[%c0_18, %c0_19] : memref<1x128xf32, #tpu.memory_space<vmem>>, vector<1x128xf32>
    %26 = vector.broadcast %25 : vector<1x128xf32> to vector<128x128xf32>
    %27 = arith.addf %24, %26 : vector<128x128xf32>
    %cst_20 = arith.constant 0.000000e+00 : f32
    %28 = vector.broadcast %cst_20 : f32 to vector<128x128xf32>
    %29 = arith.maximumf %27, %28 : vector<128x128xf32>
    %c0_21 = arith.constant 0 : index
    %c0_22 = arith.constant 0 : index
    %30 = vector.load %arg4[%c0_21, %c0_22] : memref<128x128xf32, #tpu.memory_space<vmem>>, vector<128x128xf32>
    tpu.vector_store %arg4[%c0_21, %c0_22], %29 {strides = array<i32>} : memref<128x128xf32, #tpu.memory_space<vmem>>, vector<128x128xf32>,
    return
  }
  func.func @transform_0(%arg0: i32) -> (i32, i32, i32) {
    %c0_i32 = arith.constant 0 : i32
    %c0_i32_0 = arith.constant 0 : i32
    %c0_i32_1 = arith.constant 0 : i32
    return %arg0, %c0_i32, %c0_i32_0 : i32, i32, i32
  }
  func.func @transform_1(%arg0: i32) -> (i32, i32, i32) {
    %c0_i32 = arith.constant 0 : i32
    %c0_i32_0 = arith.constant 0 : i32
    %c0_i32_1 = arith.constant 0 : i32
    %c0_i32_2 = arith.constant 0 : i32
    return %c0_i32, %c0_i32_0, %c0_i32_1 : i32, i32, i32
  }
  func.func @transform_2(%arg0: i32) -> (i32, i32) {
    %c0_i32 = arith.constant 0 : i32
    %c0_i32_0 = arith.constant 0 : i32
    %c0_i32_1 = arith.constant 0 : i32
    return %c0_i32, %c0_i32_0 : i32, i32
  }
  func.func @transform_3(%arg0: i32) -> (i32, i32) {
    %c0_i32 = arith.constant 0 : i32
    %c0_i32_0 = arith.constant 0 : i32
    return %arg0, %c0_i32 : i32, i32
  }
}

module attributes {stable_mosaic.version = 11 : i64} {
  func.func @_conv3x3_relu_kernel(%arg0: i32, %arg1: memref<8x10x80xf32, #tpu.memory_space<vmem>>, %arg2: memref<3x80x128xf32, #tpu.memory_space<vmem>>, %arg3: memref<1x128xf32, #tpu.memory_space<vmem>>, %arg4: memref<64x128xf32, #tpu.memory_space<vmem>>) attributes {dimension_semantics = [#tpu.dimension_semantics<parallel>], iteration_bounds = array<i64: 2>, scalar_prefetch = 0 : i64, scratch_operands = 0 : i64, tpu.core_type = #tpu.core_type<tc>, window_params = [{transform_indices = @transform_0, window_bounds = array<i64: 8, 10, 80>}, {pipeline_mode = #tpu.pipeline_mode<synchronous>, transform_indices = @transform_1, window_bounds = array<i64: 3, 80, 128>}, {pipeline_mode = #tpu.pipeline_mode<synchronous>, transform_indices = @transform_2, window_bounds = array<i64: 1, 128>}, {transform_indices = @transform_3, window_bounds = array<i64: 64, 128>}]} {
    %cst = arith.constant 0.000000e+00 : f32
    %0 = vector.broadcast %cst : f32 to vector<64x128xf32>
    %c0 = arith.constant 0 : index
    %c0_0 = arith.constant 0 : index
    %c0_1 = arith.constant 0 : index
    %1 = vector.load %arg1[%c0, %c0_0, %c0_1] : memref<8x10x80xf32, #tpu.memory_space<vmem>>, vector<8x8x80xf32>
    %2 = vector.shape_cast %1 : vector<8x8x80xf32> to vector<64x80xf32>
    %c0_2 = arith.constant 0 : index
    %c0_3 = arith.constant 0 : index
    %c0_4 = arith.constant 0 : index
    %3 = vector.load %arg2[%c0_2, %c0_3, %c0_4] : memref<3x80x128xf32, #tpu.memory_space<vmem>>, vector<1x80x128xf32>
    %4 = vector.shape_cast %3 : vector<1x80x128xf32> to vector<80x128xf32>
    %5 = arith.truncf %2 : vector<64x80xf32> to vector<64x80xbf16>
    %6 = arith.truncf %4 : vector<80x128xf32> to vector<80x128xbf16>
    %cst_5 = arith.constant dense<0.000000e+00> : vector<64x128xf32>
    %7 = tpu.matmul %5, %6, %cst_5 {dimension_numbers = #tpu.dot_dimension_numbers<[1], [0], [0], [1], [0, 0, 1, 1], [], []>} : vector<64x80xbf16>, vector<80x128xbf16>, vector<64x128xf32> -> vector<64x128xf32>
    %8 = arith.addf %0, %7 : vector<64x128xf32>
    %c0_6 = arith.constant 0 : index
    %c1 = arith.constant 1 : index
    %c0_7 = arith.constant 0 : index
    %9 = vector.load %arg1[%c0_6, %c1, %c0_7] : memref<8x10x80xf32, #tpu.memory_space<vmem>>, vector<8x8x80xf32>
    %10 = vector.shape_cast %9 : vector<8x8x80xf32> to vector<64x80xf32>
    %c1_8 = arith.constant 1 : index
    %c0_9 = arith.constant 0 : index
    %c0_10 = arith.constant 0 : index
    %11 = vector.load %arg2[%c1_8, %c0_9, %c0_10] : memref<3x80x128xf32, #tpu.memory_space<vmem>>, vector<1x80x128xf32>
    %12 = vector.shape_cast %11 : vector<1x80x128xf32> to vector<80x128xf32>
    %13 = arith.truncf %10 : vector<64x80xf32> to vector<64x80xbf16>
    %14 = arith.truncf %12 : vector<80x128xf32> to vector<80x128xbf16>
    %cst_11 = arith.constant dense<0.000000e+00> : vector<64x128xf32>
    %15 = tpu.matmul %13, %14, %cst_11 {dimension_numbers = #tpu.dot_dimension_numbers<[1], [0], [0], [1], [0, 0, 1, 1], [], []>} : vector<64x80xbf16>, vector<80x128xbf16>, vector<64x128xf32> -> vector<64x128xf32>
    %16 = arith.addf %8, %15 : vector<64x128xf32>
    %c0_12 = arith.constant 0 : index
    %c2 = arith.constant 2 : index
    %c0_13 = arith.constant 0 : index
    %17 = vector.load %arg1[%c0_12, %c2, %c0_13] : memref<8x10x80xf32, #tpu.memory_space<vmem>>, vector<8x8x80xf32>
    %18 = vector.shape_cast %17 : vector<8x8x80xf32> to vector<64x80xf32>
    %c2_14 = arith.constant 2 : index
    %c0_15 = arith.constant 0 : index
    %c0_16 = arith.constant 0 : index
    %19 = vector.load %arg2[%c2_14, %c0_15, %c0_16] : memref<3x80x128xf32, #tpu.memory_space<vmem>>, vector<1x80x128xf32>
    %20 = vector.shape_cast %19 : vector<1x80x128xf32> to vector<80x128xf32>
    %21 = arith.truncf %18 : vector<64x80xf32> to vector<64x80xbf16>
    %22 = arith.truncf %20 : vector<80x128xf32> to vector<80x128xbf16>
    %cst_17 = arith.constant dense<0.000000e+00> : vector<64x128xf32>
    %23 = tpu.matmul %21, %22, %cst_17 {dimension_numbers = #tpu.dot_dimension_numbers<[1], [0], [0], [1], [0, 0, 1, 1], [], []>} : vector<64x80xbf16>, vector<80x128xbf16>, vector<64x128xf32> -> vector<64x128xf32>
    %24 = arith.addf %16, %23 : vector<64x128xf32>
    %c0_18 = arith.constant 0 : index
    %c0_19 = arith.constant 0 : index
    %25 = vector.load %arg3[%c0_18, %c0_19] : memref<1x128xf32, #tpu.memory_space<vmem>>, vector<1x128xf32>
    %26 = vector.broadcast %25 : vector<1x128xf32> to vector<64x128xf32>
    %27 = arith.addf %24, %26 : vector<64x128xf32>
    %cst_20 = arith.constant 0.000000e+00 : f32
    %28 = vector.broadcast %cst_20 : f32 to vector<64x128xf32>
    %29 = arith.maximumf %27, %28 : vector<64x128xf32>
    %c0_21 = arith.constant 0 : index
    %c0_22 = arith.constant 0 : index
    %30 = vector.load %arg4[%c0_21, %c0_22] : memref<64x128xf32, #tpu.memory_space<vmem>>, vector<64x128xf32>
    tpu.vector_store %arg4[%c0_21, %c0_22], %29 {strides = array<i32>} : memref<64x128xf32, #tpu.memory_space<vmem>>, vector<64x128xf32>,
    return
  }
  func.func @transform_0(%arg0: i32) -> (i32, i32, i32) {
    %c0_i32 = arith.constant 0 : i32
    %c0_i32_0 = arith.constant 0 : i32
    %c0_i32_1 = arith.constant 0 : i32
    return %arg0, %c0_i32, %c0_i32_0 : i32, i32, i32
  }
  func.func @transform_1(%arg0: i32) -> (i32, i32, i32) {
    %c0_i32 = arith.constant 0 : i32
    %c0_i32_0 = arith.constant 0 : i32
    %c0_i32_1 = arith.constant 0 : i32
    %c0_i32_2 = arith.constant 0 : i32
    return %c0_i32, %c0_i32_0, %c0_i32_1 : i32, i32, i32
  }
  func.func @transform_2(%arg0: i32) -> (i32, i32) {
    %c0_i32 = arith.constant 0 : i32
    %c0_i32_0 = arith.constant 0 : i32
    %c0_i32_1 = arith.constant 0 : i32
    return %c0_i32, %c0_i32_0 : i32, i32
  }
  func.func @transform_3(%arg0: i32) -> (i32, i32) {
    %c0_i32 = arith.constant 0 : i32
    %c0_i32_0 = arith.constant 0 : i32
    return %arg0, %c0_i32 : i32, i32
  }
}

module attributes {stable_mosaic.version = 11 : i64} {
  func.func @_mlp_head_kernel(%arg0: memref<16x256xf32, #tpu.memory_space<vmem>>, %arg1: memref<256x64xf32, #tpu.memory_space<vmem>>, %arg2: memref<1x64xf32, #tpu.memory_space<vmem>>, %arg3: memref<64x32xf32, #tpu.memory_space<vmem>>, %arg4: memref<1x32xf32, #tpu.memory_space<vmem>>, %arg5: memref<16x32xf32, #tpu.memory_space<vmem>>) attributes {dimension_semantics = [], scalar_prefetch = 0 : i64, scratch_operands = 0 : i64, tpu.core_type = #tpu.core_type<tc>} {
    %c0 = arith.constant 0 : index
    %c0_0 = arith.constant 0 : index
    %0 = vector.load %arg0[%c0, %c0_0] : memref<16x256xf32, #tpu.memory_space<vmem>>, vector<16x256xf32>
    %c0_1 = arith.constant 0 : index
    %c0_2 = arith.constant 0 : index
    %1 = vector.load %arg1[%c0_1, %c0_2] : memref<256x64xf32, #tpu.memory_space<vmem>>, vector<256x64xf32>
    %2 = arith.truncf %0 : vector<16x256xf32> to vector<16x256xbf16>
    %3 = arith.truncf %1 : vector<256x64xf32> to vector<256x64xbf16>
    %cst = arith.constant dense<0.000000e+00> : vector<16x64xf32>
    %4 = tpu.matmul %2, %3, %cst {dimension_numbers = #tpu.dot_dimension_numbers<[1], [0], [0], [1], [0, 0, 1, 1], [], []>} : vector<16x256xbf16>, vector<256x64xbf16>, vector<16x64xf32> -> vector<16x64xf32>
    %c0_3 = arith.constant 0 : index
    %c0_4 = arith.constant 0 : index
    %5 = vector.load %arg2[%c0_3, %c0_4] : memref<1x64xf32, #tpu.memory_space<vmem>>, vector<1x64xf32>
    %6 = vector.broadcast %5 : vector<1x64xf32> to vector<16x64xf32>
    %7 = arith.addf %4, %6 : vector<16x64xf32>
    %cst_5 = arith.constant 0.000000e+00 : f32
    %8 = vector.broadcast %cst_5 : f32 to vector<16x64xf32>
    %9 = arith.maximumf %7, %8 : vector<16x64xf32>
    %c0_6 = arith.constant 0 : index
    %c0_7 = arith.constant 0 : index
    %10 = vector.load %arg3[%c0_6, %c0_7] : memref<64x32xf32, #tpu.memory_space<vmem>>, vector<64x32xf32>
    %11 = arith.truncf %9 : vector<16x64xf32> to vector<16x64xbf16>
    %12 = arith.truncf %10 : vector<64x32xf32> to vector<64x32xbf16>
    %cst_8 = arith.constant dense<0.000000e+00> : vector<16x32xf32>
    %13 = tpu.matmul %11, %12, %cst_8 {dimension_numbers = #tpu.dot_dimension_numbers<[1], [0], [0], [1], [0, 0, 1, 1], [], []>} : vector<16x64xbf16>, vector<64x32xbf16>, vector<16x32xf32> -> vector<16x32xf32>
    %c0_9 = arith.constant 0 : index
    %c0_10 = arith.constant 0 : index
    %14 = vector.load %arg4[%c0_9, %c0_10] : memref<1x32xf32, #tpu.memory_space<vmem>>, vector<1x32xf32>
    %15 = vector.broadcast %14 : vector<1x32xf32> to vector<16x32xf32>
    %16 = arith.addf %13, %15 : vector<16x32xf32>
    %cst_11 = arith.constant 0.000000e+00 : f32
    %17 = vector.broadcast %cst_11 : f32 to vector<16x32xf32>
    %18 = arith.maximumf %16, %17 : vector<16x32xf32>
    %c0_12 = arith.constant 0 : index
    %c0_13 = arith.constant 0 : index
    %19 = vector.load %arg5[%c0_12, %c0_13] : memref<16x32xf32, #tpu.memory_space<vmem>>, vector<16x32xf32>
    tpu.vector_store %arg5[%c0_12, %c0_13], %18 {strides = array<i32>} : memref<16x32xf32, #tpu.memory_space<vmem>>, vector<16x32xf32>,
    return
  }
}

module attributes {stable_mosaic.version = 11 : i64} {
  func.func @_encoder_layer_kernel(%arg0: memref<16x32xf32, #tpu.memory_space<vmem>>, %arg1: memref<32x96xf32, #tpu.memory_space<vmem>>, %arg2: memref<1x96xf32, #tpu.memory_space<vmem>>, %arg3: memref<32x32xf32, #tpu.memory_space<vmem>>, %arg4: memref<1x32xf32, #tpu.memory_space<vmem>>, %arg5: memref<1x32xf32, #tpu.memory_space<vmem>>, %arg6: memref<1x32xf32, #tpu.memory_space<vmem>>, %arg7: memref<32x64xf32, #tpu.memory_space<vmem>>, %arg8: memref<1x64xf32, #tpu.memory_space<vmem>>, %arg9: memref<64x32xf32, #tpu.memory_space<vmem>>, %arg10: memref<1x32xf32, #tpu.memory_space<vmem>>, %arg11: memref<1x32xf32, #tpu.memory_space<vmem>>, %arg12: memref<1x32xf32, #tpu.memory_space<vmem>>, %arg13: memref<1x32xf32, #tpu.memory_space<vmem>>, %arg14: memref<1x32xf32, #tpu.memory_space<vmem>>, %arg15: memref<16x32xf32, #tpu.memory_space<vmem>>) attributes {dimension_semantics = [], scalar_prefetch = 0 : i64, scratch_operands = 0 : i64, tpu.core_type = #tpu.core_type<tc>} {
    %c0 = arith.constant 0 : index
    %c0_0 = arith.constant 0 : index
    %0 = vector.load %arg0[%c0, %c0_0] : memref<16x32xf32, #tpu.memory_space<vmem>>, vector<16x32xf32>
    %c0_1 = arith.constant 0 : index
    %c0_2 = arith.constant 0 : index
    %1 = vector.load %arg1[%c0_1, %c0_2] : memref<32x96xf32, #tpu.memory_space<vmem>>, vector<32x96xf32>
    %2 = arith.truncf %0 : vector<16x32xf32> to vector<16x32xbf16>
    %3 = arith.truncf %1 : vector<32x96xf32> to vector<32x96xbf16>
    %cst = arith.constant dense<0.000000e+00> : vector<16x96xf32>
    %4 = tpu.matmul %2, %3, %cst {dimension_numbers = #tpu.dot_dimension_numbers<[1], [0], [0], [1], [0, 0, 1, 1], [], []>} : vector<16x32xbf16>, vector<32x96xbf16>, vector<16x96xf32> -> vector<16x96xf32>
    %c0_3 = arith.constant 0 : index
    %c0_4 = arith.constant 0 : index
    %5 = vector.load %arg2[%c0_3, %c0_4] : memref<1x96xf32, #tpu.memory_space<vmem>>, vector<1x96xf32>
    %6 = vector.broadcast %5 : vector<1x96xf32> to vector<16x96xf32>
    %7 = arith.addf %4, %6 : vector<16x96xf32>
    %8 = vector.extract_strided_slice %7 {offsets = [0, 0], sizes = [16, 32], strides = [1, 1]} : vector<16x96xf32> to vector<16x32xf32>
    %9 = vector.extract_strided_slice %7 {offsets = [0, 32], sizes = [16, 32], strides = [1, 1]} : vector<16x96xf32> to vector<16x32xf32>
    %10 = vector.extract_strided_slice %7 {offsets = [0, 64], sizes = [16, 32], strides = [1, 1]} : vector<16x96xf32> to vector<16x32xf32>
    %c0_5 = arith.constant 0 : index
    %c0_6 = arith.constant 0 : index
    %11 = vector.load %arg3[%c0_5, %c0_6] : memref<32x32xf32, #tpu.memory_space<vmem>>, vector<32x32xf32>
    %c0_7 = arith.constant 0 : index
    %c0_8 = arith.constant 0 : index
    %12 = vector.load %arg4[%c0_7, %c0_8] : memref<1x32xf32, #tpu.memory_space<vmem>>, vector<1x32xf32>
    %cst_9 = arith.constant 0.000000e+00 : f32
    %13 = vector.broadcast %cst_9 : f32 to vector<16x32xf32>
    %14 = vector.broadcast %12 : vector<1x32xf32> to vector<16x32xf32>
    %15 = arith.addf %13, %14 : vector<16x32xf32>
    %16 = vector.extract_strided_slice %8 {offsets = [0, 0], sizes = [16, 8], strides = [1, 1]} : vector<16x32xf32> to vector<16x8xf32>
    %17 = vector.shape_cast %16 : vector<16x8xf32> to vector<2x8x8xf32>
    %18 = vector.extract_strided_slice %9 {offsets = [0, 0], sizes = [16, 8], strides = [1, 1]} : vector<16x32xf32> to vector<16x8xf32>
    %19 = vector.shape_cast %18 : vector<16x8xf32> to vector<2x8x8xf32>
    %20 = vector.extract_strided_slice %10 {offsets = [0, 0], sizes = [16, 8], strides = [1, 1]} : vector<16x32xf32> to vector<16x8xf32>
    %21 = vector.shape_cast %20 : vector<16x8xf32> to vector<2x8x8xf32>
    %22 = arith.truncf %17 : vector<2x8x8xf32> to vector<2x8x8xbf16>
    %23 = arith.truncf %19 : vector<2x8x8xf32> to vector<2x8x8xbf16>
    "tpu.trace_start"() <{level = 10 : i32, message = "bqd,bkd->bqk"}> : () -> ()
    %cst_10 = arith.constant dense<0.000000e+00> : vector<2x8x8xf32>
    %24 = tpu.matmul %22, %23, %cst_10 {dimension_numbers = #tpu.dot_dimension_numbers<[2], [2], [1], [1], [0, 0, 0, 1, 1, 1], [0], [0]>} : vector<2x8x8xbf16>, vector<2x8x8xbf16>, vector<2x8x8xf32> -> vector<2x8x8xf32>
    "tpu.trace_stop"() : () -> ()
    %cst_11 = arith.constant 0.353553385 : f32
    %25 = vector.broadcast %cst_11 : f32 to vector<2x8x8xf32>
    %26 = arith.mulf %24, %25 : vector<2x8x8xf32>
    %cst_12 = arith.constant dense<0xFF800000> : vector<2x8xf32>
    %27 = vector.multi_reduction <maximumf>, %26, %cst_12 [2] : vector<2x8x8xf32> to vector<2x8xf32>
    %28 = vector.shape_cast %27 : vector<2x8xf32> to vector<2x8x1xf32>
    %29 = vector.broadcast %28 : vector<2x8x1xf32> to vector<2x8x8xf32>
    %30 = arith.subf %26, %29 : vector<2x8x8xf32>
    %31 = math.exp %30 : vector<2x8x8xf32>
    %cst_13 = arith.constant dense<0.000000e+00> : vector<2x8xf32>
    %32 = vector.multi_reduction <add>, %31, %cst_13 [2] : vector<2x8x8xf32> to vector<2x8xf32>
    %33 = vector.shape_cast %32 : vector<2x8xf32> to vector<2x8x1xf32>
    %34 = tpu.reciprocal %33 {approx = true} : vector<2x8x1xf32> -> vector<2x8x1xf32>
    %35 = vector.broadcast %34 : vector<2x8x1xf32> to vector<2x8x8xf32>
    %36 = arith.mulf %31, %35 : vector<2x8x8xf32>
    %37 = arith.truncf %36 : vector<2x8x8xf32> to vector<2x8x8xbf16>
    %38 = arith.truncf %21 : vector<2x8x8xf32> to vector<2x8x8xbf16>
    "tpu.trace_start"() <{level = 10 : i32, message = "bqk,bkd->bqd"}> : () -> ()
    %cst_14 = arith.constant dense<0.000000e+00> : vector<2x8x8xf32>
    %39 = tpu.matmul %37, %38, %cst_14 {dimension_numbers = #tpu.dot_dimension_numbers<[2], [1], [1], [2], [0, 0, 0, 1, 1, 2], [0], [0]>} : vector<2x8x8xbf16>, vector<2x8x8xbf16>, vector<2x8x8xf32> -> vector<2x8x8xf32>
    "tpu.trace_stop"() : () -> ()
    %40 = vector.shape_cast %39 : vector<2x8x8xf32> to vector<16x8xf32>
    %41 = vector.extract_strided_slice %11 {offsets = [0, 0], sizes = [8, 32], strides = [1, 1]} : vector<32x32xf32> to vector<8x32xf32>
    %42 = arith.truncf %40 : vector<16x8xf32> to vector<16x8xbf16>
    %43 = arith.truncf %41 : vector<8x32xf32> to vector<8x32xbf16>
    %cst_15 = arith.constant dense<0.000000e+00> : vector<16x32xf32>
    %44 = tpu.matmul %42, %43, %cst_15 {dimension_numbers = #tpu.dot_dimension_numbers<[1], [0], [0], [1], [0, 0, 1, 1], [], []>} : vector<16x8xbf16>, vector<8x32xbf16>, vector<16x32xf32> -> vector<16x32xf32>
    %45 = arith.addf %15, %44 : vector<16x32xf32>
    %46 = vector.extract_strided_slice %8 {offsets = [0, 8], sizes = [16, 8], strides = [1, 1]} : vector<16x32xf32> to vector<16x8xf32>
    %47 = vector.shape_cast %46 : vector<16x8xf32> to vector<2x8x8xf32>
    %48 = vector.extract_strided_slice %9 {offsets = [0, 8], sizes = [16, 8], strides = [1, 1]} : vector<16x32xf32> to vector<16x8xf32>
    %49 = vector.shape_cast %48 : vector<16x8xf32> to vector<2x8x8xf32>
    %50 = vector.extract_strided_slice %10 {offsets = [0, 8], sizes = [16, 8], strides = [1, 1]} : vector<16x32xf32> to vector<16x8xf32>
    %51 = vector.shape_cast %50 : vector<16x8xf32> to vector<2x8x8xf32>
    %52 = arith.truncf %47 : vector<2x8x8xf32> to vector<2x8x8xbf16>
    %53 = arith.truncf %49 : vector<2x8x8xf32> to vector<2x8x8xbf16>
    "tpu.trace_start"() <{level = 10 : i32, message = "bqd,bkd->bqk"}> : () -> ()
    %cst_16 = arith.constant dense<0.000000e+00> : vector<2x8x8xf32>
    %54 = tpu.matmul %52, %53, %cst_16 {dimension_numbers = #tpu.dot_dimension_numbers<[2], [2], [1], [1], [0, 0, 0, 1, 1, 1], [0], [0]>} : vector<2x8x8xbf16>, vector<2x8x8xbf16>, vector<2x8x8xf32> -> vector<2x8x8xf32>
    "tpu.trace_stop"() : () -> ()
    %cst_17 = arith.constant 0.353553385 : f32
    %55 = vector.broadcast %cst_17 : f32 to vector<2x8x8xf32>
    %56 = arith.mulf %54, %55 : vector<2x8x8xf32>
    %cst_18 = arith.constant dense<0xFF800000> : vector<2x8xf32>
    %57 = vector.multi_reduction <maximumf>, %56, %cst_18 [2] : vector<2x8x8xf32> to vector<2x8xf32>
    %58 = vector.shape_cast %57 : vector<2x8xf32> to vector<2x8x1xf32>
    %59 = vector.broadcast %58 : vector<2x8x1xf32> to vector<2x8x8xf32>
    %60 = arith.subf %56, %59 : vector<2x8x8xf32>
    %61 = math.exp %60 : vector<2x8x8xf32>
    %cst_19 = arith.constant dense<0.000000e+00> : vector<2x8xf32>
    %62 = vector.multi_reduction <add>, %61, %cst_19 [2] : vector<2x8x8xf32> to vector<2x8xf32>
    %63 = vector.shape_cast %62 : vector<2x8xf32> to vector<2x8x1xf32>
    %64 = tpu.reciprocal %63 {approx = true} : vector<2x8x1xf32> -> vector<2x8x1xf32>
    %65 = vector.broadcast %64 : vector<2x8x1xf32> to vector<2x8x8xf32>
    %66 = arith.mulf %61, %65 : vector<2x8x8xf32>
    %67 = arith.truncf %66 : vector<2x8x8xf32> to vector<2x8x8xbf16>
    %68 = arith.truncf %51 : vector<2x8x8xf32> to vector<2x8x8xbf16>
    "tpu.trace_start"() <{level = 10 : i32, message = "bqk,bkd->bqd"}> : () -> ()
    %cst_20 = arith.constant dense<0.000000e+00> : vector<2x8x8xf32>
    %69 = tpu.matmul %67, %68, %cst_20 {dimension_numbers = #tpu.dot_dimension_numbers<[2], [1], [1], [2], [0, 0, 0, 1, 1, 2], [0], [0]>} : vector<2x8x8xbf16>, vector<2x8x8xbf16>, vector<2x8x8xf32> -> vector<2x8x8xf32>
    "tpu.trace_stop"() : () -> ()
    %70 = vector.shape_cast %69 : vector<2x8x8xf32> to vector<16x8xf32>
    %71 = vector.extract_strided_slice %11 {offsets = [8, 0], sizes = [8, 32], strides = [1, 1]} : vector<32x32xf32> to vector<8x32xf32>
    %72 = arith.truncf %70 : vector<16x8xf32> to vector<16x8xbf16>
    %73 = arith.truncf %71 : vector<8x32xf32> to vector<8x32xbf16>
    %cst_21 = arith.constant dense<0.000000e+00> : vector<16x32xf32>
    %74 = tpu.matmul %72, %73, %cst_21 {dimension_numbers = #tpu.dot_dimension_numbers<[1], [0], [0], [1], [0, 0, 1, 1], [], []>} : vector<16x8xbf16>, vector<8x32xbf16>, vector<16x32xf32> -> vector<16x32xf32>
    %75 = arith.addf %45, %74 : vector<16x32xf32>
    %76 = vector.extract_strided_slice %8 {offsets = [0, 16], sizes = [16, 8], strides = [1, 1]} : vector<16x32xf32> to vector<16x8xf32>
    %77 = vector.shape_cast %76 : vector<16x8xf32> to vector<2x8x8xf32>
    %78 = vector.extract_strided_slice %9 {offsets = [0, 16], sizes = [16, 8], strides = [1, 1]} : vector<16x32xf32> to vector<16x8xf32>
    %79 = vector.shape_cast %78 : vector<16x8xf32> to vector<2x8x8xf32>
    %80 = vector.extract_strided_slice %10 {offsets = [0, 16], sizes = [16, 8], strides = [1, 1]} : vector<16x32xf32> to vector<16x8xf32>
    %81 = vector.shape_cast %80 : vector<16x8xf32> to vector<2x8x8xf32>
    %82 = arith.truncf %77 : vector<2x8x8xf32> to vector<2x8x8xbf16>
    %83 = arith.truncf %79 : vector<2x8x8xf32> to vector<2x8x8xbf16>
    "tpu.trace_start"() <{level = 10 : i32, message = "bqd,bkd->bqk"}> : () -> ()
    %cst_22 = arith.constant dense<0.000000e+00> : vector<2x8x8xf32>
    %84 = tpu.matmul %82, %83, %cst_22 {dimension_numbers = #tpu.dot_dimension_numbers<[2], [2], [1], [1], [0, 0, 0, 1, 1, 1], [0], [0]>} : vector<2x8x8xbf16>, vector<2x8x8xbf16>, vector<2x8x8xf32> -> vector<2x8x8xf32>
    "tpu.trace_stop"() : () -> ()
    %cst_23 = arith.constant 0.353553385 : f32
    %85 = vector.broadcast %cst_23 : f32 to vector<2x8x8xf32>
    %86 = arith.mulf %84, %85 : vector<2x8x8xf32>
    %cst_24 = arith.constant dense<0xFF800000> : vector<2x8xf32>
    %87 = vector.multi_reduction <maximumf>, %86, %cst_24 [2] : vector<2x8x8xf32> to vector<2x8xf32>
    %88 = vector.shape_cast %87 : vector<2x8xf32> to vector<2x8x1xf32>
    %89 = vector.broadcast %88 : vector<2x8x1xf32> to vector<2x8x8xf32>
    %90 = arith.subf %86, %89 : vector<2x8x8xf32>
    %91 = math.exp %90 : vector<2x8x8xf32>
    %cst_25 = arith.constant dense<0.000000e+00> : vector<2x8xf32>
    %92 = vector.multi_reduction <add>, %91, %cst_25 [2] : vector<2x8x8xf32> to vector<2x8xf32>
    %93 = vector.shape_cast %92 : vector<2x8xf32> to vector<2x8x1xf32>
    %94 = tpu.reciprocal %93 {approx = true} : vector<2x8x1xf32> -> vector<2x8x1xf32>
    %95 = vector.broadcast %94 : vector<2x8x1xf32> to vector<2x8x8xf32>
    %96 = arith.mulf %91, %95 : vector<2x8x8xf32>
    %97 = arith.truncf %96 : vector<2x8x8xf32> to vector<2x8x8xbf16>
    %98 = arith.truncf %81 : vector<2x8x8xf32> to vector<2x8x8xbf16>
    "tpu.trace_start"() <{level = 10 : i32, message = "bqk,bkd->bqd"}> : () -> ()
    %cst_26 = arith.constant dense<0.000000e+00> : vector<2x8x8xf32>
    %99 = tpu.matmul %97, %98, %cst_26 {dimension_numbers = #tpu.dot_dimension_numbers<[2], [1], [1], [2], [0, 0, 0, 1, 1, 2], [0], [0]>} : vector<2x8x8xbf16>, vector<2x8x8xbf16>, vector<2x8x8xf32> -> vector<2x8x8xf32>
    "tpu.trace_stop"() : () -> ()
    %100 = vector.shape_cast %99 : vector<2x8x8xf32> to vector<16x8xf32>
    %101 = vector.extract_strided_slice %11 {offsets = [16, 0], sizes = [8, 32], strides = [1, 1]} : vector<32x32xf32> to vector<8x32xf32>
    %102 = arith.truncf %100 : vector<16x8xf32> to vector<16x8xbf16>
    %103 = arith.truncf %101 : vector<8x32xf32> to vector<8x32xbf16>
    %cst_27 = arith.constant dense<0.000000e+00> : vector<16x32xf32>
    %104 = tpu.matmul %102, %103, %cst_27 {dimension_numbers = #tpu.dot_dimension_numbers<[1], [0], [0], [1], [0, 0, 1, 1], [], []>} : vector<16x8xbf16>, vector<8x32xbf16>, vector<16x32xf32> -> vector<16x32xf32>
    %105 = arith.addf %75, %104 : vector<16x32xf32>
    %106 = vector.extract_strided_slice %8 {offsets = [0, 24], sizes = [16, 8], strides = [1, 1]} : vector<16x32xf32> to vector<16x8xf32>
    %107 = vector.shape_cast %106 : vector<16x8xf32> to vector<2x8x8xf32>
    %108 = vector.extract_strided_slice %9 {offsets = [0, 24], sizes = [16, 8], strides = [1, 1]} : vector<16x32xf32> to vector<16x8xf32>
    %109 = vector.shape_cast %108 : vector<16x8xf32> to vector<2x8x8xf32>
    %110 = vector.extract_strided_slice %10 {offsets = [0, 24], sizes = [16, 8], strides = [1, 1]} : vector<16x32xf32> to vector<16x8xf32>
    %111 = vector.shape_cast %110 : vector<16x8xf32> to vector<2x8x8xf32>
    %112 = arith.truncf %107 : vector<2x8x8xf32> to vector<2x8x8xbf16>
    %113 = arith.truncf %109 : vector<2x8x8xf32> to vector<2x8x8xbf16>
    "tpu.trace_start"() <{level = 10 : i32, message = "bqd,bkd->bqk"}> : () -> ()
    %cst_28 = arith.constant dense<0.000000e+00> : vector<2x8x8xf32>
    %114 = tpu.matmul %112, %113, %cst_28 {dimension_numbers = #tpu.dot_dimension_numbers<[2], [2], [1], [1], [0, 0, 0, 1, 1, 1], [0], [0]>} : vector<2x8x8xbf16>, vector<2x8x8xbf16>, vector<2x8x8xf32> -> vector<2x8x8xf32>
    "tpu.trace_stop"() : () -> ()
    %cst_29 = arith.constant 0.353553385 : f32
    %115 = vector.broadcast %cst_29 : f32 to vector<2x8x8xf32>
    %116 = arith.mulf %114, %115 : vector<2x8x8xf32>
    %cst_30 = arith.constant dense<0xFF800000> : vector<2x8xf32>
    %117 = vector.multi_reduction <maximumf>, %116, %cst_30 [2] : vector<2x8x8xf32> to vector<2x8xf32>
    %118 = vector.shape_cast %117 : vector<2x8xf32> to vector<2x8x1xf32>
    %119 = vector.broadcast %118 : vector<2x8x1xf32> to vector<2x8x8xf32>
    %120 = arith.subf %116, %119 : vector<2x8x8xf32>
    %121 = math.exp %120 : vector<2x8x8xf32>
    %cst_31 = arith.constant dense<0.000000e+00> : vector<2x8xf32>
    %122 = vector.multi_reduction <add>, %121, %cst_31 [2] : vector<2x8x8xf32> to vector<2x8xf32>
    %123 = vector.shape_cast %122 : vector<2x8xf32> to vector<2x8x1xf32>
    %124 = tpu.reciprocal %123 {approx = true} : vector<2x8x1xf32> -> vector<2x8x1xf32>
    %125 = vector.broadcast %124 : vector<2x8x1xf32> to vector<2x8x8xf32>
    %126 = arith.mulf %121, %125 : vector<2x8x8xf32>
    %127 = arith.truncf %126 : vector<2x8x8xf32> to vector<2x8x8xbf16>
    %128 = arith.truncf %111 : vector<2x8x8xf32> to vector<2x8x8xbf16>
    "tpu.trace_start"() <{level = 10 : i32, message = "bqk,bkd->bqd"}> : () -> ()
    %cst_32 = arith.constant dense<0.000000e+00> : vector<2x8x8xf32>
    %129 = tpu.matmul %127, %128, %cst_32 {dimension_numbers = #tpu.dot_dimension_numbers<[2], [1], [1], [2], [0, 0, 0, 1, 1, 2], [0], [0]>} : vector<2x8x8xbf16>, vector<2x8x8xbf16>, vector<2x8x8xf32> -> vector<2x8x8xf32>
    "tpu.trace_stop"() : () -> ()
    %130 = vector.shape_cast %129 : vector<2x8x8xf32> to vector<16x8xf32>
    %131 = vector.extract_strided_slice %11 {offsets = [24, 0], sizes = [8, 32], strides = [1, 1]} : vector<32x32xf32> to vector<8x32xf32>
    %132 = arith.truncf %130 : vector<16x8xf32> to vector<16x8xbf16>
    %133 = arith.truncf %131 : vector<8x32xf32> to vector<8x32xbf16>
    %cst_33 = arith.constant dense<0.000000e+00> : vector<16x32xf32>
    %134 = tpu.matmul %132, %133, %cst_33 {dimension_numbers = #tpu.dot_dimension_numbers<[1], [0], [0], [1], [0, 0, 1, 1], [], []>} : vector<16x8xbf16>, vector<8x32xbf16>, vector<16x32xf32> -> vector<16x32xf32>
    %135 = arith.addf %105, %134 : vector<16x32xf32>
    %136 = arith.addf %0, %135 : vector<16x32xf32>
    %c0_34 = arith.constant 0 : index
    %c0_35 = arith.constant 0 : index
    %137 = vector.load %arg5[%c0_34, %c0_35] : memref<1x32xf32, #tpu.memory_space<vmem>>, vector<1x32xf32>
    %c0_36 = arith.constant 0 : index
    %c0_37 = arith.constant 0 : index
    %138 = vector.load %arg6[%c0_36, %c0_37] : memref<1x32xf32, #tpu.memory_space<vmem>>, vector<1x32xf32>
    %cst_38 = arith.constant dense<0.000000e+00> : vector<16xf32>
    %139 = vector.multi_reduction <add>, %136, %cst_38 [1] : vector<16x32xf32> to vector<16xf32>
    %140 = vector.shape_cast %139 : vector<16xf32> to vector<16x1xf32>
    %cst_39 = arith.constant 3.200000e+01 : f32
    %141 = vector.broadcast %cst_39 : f32 to vector<16x1xf32>
    %142 = arith.divf %140, %141 : vector<16x1xf32>
    %143 = vector.broadcast %142 : vector<16x1xf32> to vector<16x32xf32>
    %144 = arith.subf %136, %143 : vector<16x32xf32>
    %145 = arith.mulf %144, %144 : vector<16x32xf32>
    %cst_40 = arith.constant dense<0.000000e+00> : vector<16xf32>
    %146 = vector.multi_reduction <add>, %145, %cst_40 [1] : vector<16x32xf32> to vector<16xf32>
    %147 = vector.shape_cast %146 : vector<16xf32> to vector<16x1xf32>
    %cst_41 = arith.constant 3.200000e+01 : f32
    %148 = vector.broadcast %cst_41 : f32 to vector<16x1xf32>
    %149 = arith.divf %147, %148 : vector<16x1xf32>
    %150 = vector.broadcast %142 : vector<16x1xf32> to vector<16x32xf32>
    %151 = arith.subf %136, %150 : vector<16x32xf32>
    %cst_42 = arith.constant 9.99999974E-6 : f32
    %152 = vector.broadcast %cst_42 : f32 to vector<16x1xf32>
    %153 = arith.addf %149, %152 : vector<16x1xf32>
    %154 = math.rsqrt %153 : vector<16x1xf32>
    %155 = vector.broadcast %154 : vector<16x1xf32> to vector<16x32xf32>
    %156 = arith.mulf %151, %155 : vector<16x32xf32>
    %157 = vector.broadcast %137 : vector<1x32xf32> to vector<16x32xf32>
    %158 = arith.mulf %156, %157 : vector<16x32xf32>
    %159 = vector.broadcast %138 : vector<1x32xf32> to vector<16x32xf32>
    %160 = arith.addf %158, %159 : vector<16x32xf32>
    %c0_43 = arith.constant 0 : index
    %c0_44 = arith.constant 0 : index
    %161 = vector.load %arg7[%c0_43, %c0_44] : memref<32x64xf32, #tpu.memory_space<vmem>>, vector<32x64xf32>
    %162 = arith.truncf %160 : vector<16x32xf32> to vector<16x32xbf16>
    %163 = arith.truncf %161 : vector<32x64xf32> to vector<32x64xbf16>
    %cst_45 = arith.constant dense<0.000000e+00> : vector<16x64xf32>
    %164 = tpu.matmul %162, %163, %cst_45 {dimension_numbers = #tpu.dot_dimension_numbers<[1], [0], [0], [1], [0, 0, 1, 1], [], []>} : vector<16x32xbf16>, vector<32x64xbf16>, vector<16x64xf32> -> vector<16x64xf32>
    %c0_46 = arith.constant 0 : index
    %c0_47 = arith.constant 0 : index
    %165 = vector.load %arg8[%c0_46, %c0_47] : memref<1x64xf32, #tpu.memory_space<vmem>>, vector<1x64xf32>
    %166 = vector.broadcast %165 : vector<1x64xf32> to vector<16x64xf32>
    %167 = arith.addf %164, %166 : vector<16x64xf32>
    %cst_48 = arith.constant 0.000000e+00 : f32
    %168 = vector.broadcast %cst_48 : f32 to vector<16x64xf32>
    %169 = arith.maximumf %167, %168 : vector<16x64xf32>
    %c0_49 = arith.constant 0 : index
    %c0_50 = arith.constant 0 : index
    %170 = vector.load %arg9[%c0_49, %c0_50] : memref<64x32xf32, #tpu.memory_space<vmem>>, vector<64x32xf32>
    %171 = arith.truncf %169 : vector<16x64xf32> to vector<16x64xbf16>
    %172 = arith.truncf %170 : vector<64x32xf32> to vector<64x32xbf16>
    %cst_51 = arith.constant dense<0.000000e+00> : vector<16x32xf32>
    %173 = tpu.matmul %171, %172, %cst_51 {dimension_numbers = #tpu.dot_dimension_numbers<[1], [0], [0], [1], [0, 0, 1, 1], [], []>} : vector<16x64xbf16>, vector<64x32xbf16>, vector<16x32xf32> -> vector<16x32xf32>
    %c0_52 = arith.constant 0 : index
    %c0_53 = arith.constant 0 : index
    %174 = vector.load %arg10[%c0_52, %c0_53] : memref<1x32xf32, #tpu.memory_space<vmem>>, vector<1x32xf32>
    %175 = vector.broadcast %174 : vector<1x32xf32> to vector<16x32xf32>
    %176 = arith.addf %173, %175 : vector<16x32xf32>
    %177 = arith.addf %160, %176 : vector<16x32xf32>
    %c0_54 = arith.constant 0 : index
    %c0_55 = arith.constant 0 : index
    %178 = vector.load %arg11[%c0_54, %c0_55] : memref<1x32xf32, #tpu.memory_space<vmem>>, vector<1x32xf32>
    %c0_56 = arith.constant 0 : index
    %c0_57 = arith.constant 0 : index
    %179 = vector.load %arg12[%c0_56, %c0_57] : memref<1x32xf32, #tpu.memory_space<vmem>>, vector<1x32xf32>
    %cst_58 = arith.constant dense<0.000000e+00> : vector<16xf32>
    %180 = vector.multi_reduction <add>, %177, %cst_58 [1] : vector<16x32xf32> to vector<16xf32>
    %181 = vector.shape_cast %180 : vector<16xf32> to vector<16x1xf32>
    %cst_59 = arith.constant 3.200000e+01 : f32
    %182 = vector.broadcast %cst_59 : f32 to vector<16x1xf32>
    %183 = arith.divf %181, %182 : vector<16x1xf32>
    %184 = vector.broadcast %183 : vector<16x1xf32> to vector<16x32xf32>
    %185 = arith.subf %177, %184 : vector<16x32xf32>
    %186 = arith.mulf %185, %185 : vector<16x32xf32>
    %cst_60 = arith.constant dense<0.000000e+00> : vector<16xf32>
    %187 = vector.multi_reduction <add>, %186, %cst_60 [1] : vector<16x32xf32> to vector<16xf32>
    %188 = vector.shape_cast %187 : vector<16xf32> to vector<16x1xf32>
    %cst_61 = arith.constant 3.200000e+01 : f32
    %189 = vector.broadcast %cst_61 : f32 to vector<16x1xf32>
    %190 = arith.divf %188, %189 : vector<16x1xf32>
    %191 = vector.broadcast %183 : vector<16x1xf32> to vector<16x32xf32>
    %192 = arith.subf %177, %191 : vector<16x32xf32>
    %cst_62 = arith.constant 9.99999974E-6 : f32
    %193 = vector.broadcast %cst_62 : f32 to vector<16x1xf32>
    %194 = arith.addf %190, %193 : vector<16x1xf32>
    %195 = math.rsqrt %194 : vector<16x1xf32>
    %196 = vector.broadcast %195 : vector<16x1xf32> to vector<16x32xf32>
    %197 = arith.mulf %192, %196 : vector<16x32xf32>
    %198 = vector.broadcast %178 : vector<1x32xf32> to vector<16x32xf32>
    %199 = arith.mulf %197, %198 : vector<16x32xf32>
    %200 = vector.broadcast %179 : vector<1x32xf32> to vector<16x32xf32>
    %201 = arith.addf %199, %200 : vector<16x32xf32>
    %c0_63 = arith.constant 0 : index
    %c0_64 = arith.constant 0 : index
    %202 = vector.load %arg13[%c0_63, %c0_64] : memref<1x32xf32, #tpu.memory_space<vmem>>, vector<1x32xf32>
    %c0_65 = arith.constant 0 : index
    %c0_66 = arith.constant 0 : index
    %203 = vector.load %arg14[%c0_65, %c0_66] : memref<1x32xf32, #tpu.memory_space<vmem>>, vector<1x32xf32>
    %cst_67 = arith.constant dense<0.000000e+00> : vector<16xf32>
    %204 = vector.multi_reduction <add>, %201, %cst_67 [1] : vector<16x32xf32> to vector<16xf32>
    %205 = vector.shape_cast %204 : vector<16xf32> to vector<16x1xf32>
    %cst_68 = arith.constant 3.200000e+01 : f32
    %206 = vector.broadcast %cst_68 : f32 to vector<16x1xf32>
    %207 = arith.divf %205, %206 : vector<16x1xf32>
    %208 = vector.broadcast %207 : vector<16x1xf32> to vector<16x32xf32>
    %209 = arith.subf %201, %208 : vector<16x32xf32>
    %210 = arith.mulf %209, %209 : vector<16x32xf32>
    %cst_69 = arith.constant dense<0.000000e+00> : vector<16xf32>
    %211 = vector.multi_reduction <add>, %210, %cst_69 [1] : vector<16x32xf32> to vector<16xf32>
    %212 = vector.shape_cast %211 : vector<16xf32> to vector<16x1xf32>
    %cst_70 = arith.constant 3.200000e+01 : f32
    %213 = vector.broadcast %cst_70 : f32 to vector<16x1xf32>
    %214 = arith.divf %212, %213 : vector<16x1xf32>
    %215 = vector.broadcast %207 : vector<16x1xf32> to vector<16x32xf32>
    %216 = arith.subf %201, %215 : vector<16x32xf32>
    %cst_71 = arith.constant 9.99999974E-6 : f32
    %217 = vector.broadcast %cst_71 : f32 to vector<16x1xf32>
    %218 = arith.addf %214, %217 : vector<16x1xf32>
    %219 = math.rsqrt %218 : vector<16x1xf32>
    %220 = vector.broadcast %219 : vector<16x1xf32> to vector<16x32xf32>
    %221 = arith.mulf %216, %220 : vector<16x32xf32>
    %222 = vector.broadcast %202 : vector<1x32xf32> to vector<16x32xf32>
    %223 = arith.mulf %221, %222 : vector<16x32xf32>
    %224 = vector.broadcast %203 : vector<1x32xf32> to vector<16x32xf32>
    %225 = arith.addf %223, %224 : vector<16x32xf32>
    %c0_72 = arith.constant 0 : index
    %c0_73 = arith.constant 0 : index
    %226 = vector.load %arg15[%c0_72, %c0_73] : memref<16x32xf32, #tpu.memory_space<vmem>>, vector<16x32xf32>
    tpu.vector_store %arg15[%c0_72, %c0_73], %225 {strides = array<i32>} : memref<16x32xf32, #tpu.memory_space<vmem>>, vector<16x32xf32>,
    return
  }
}

module attributes {stable_mosaic.version = 11 : i64} {
  func.func @_decoder_layer_kernel(%arg0: memref<16x32xf32, #tpu.memory_space<vmem>>, %arg1: memref<16x32xf32, #tpu.memory_space<vmem>>, %arg2: memref<32x96xf32, #tpu.memory_space<vmem>>, %arg3: memref<1x96xf32, #tpu.memory_space<vmem>>, %arg4: memref<32x32xf32, #tpu.memory_space<vmem>>, %arg5: memref<1x32xf32, #tpu.memory_space<vmem>>, %arg6: memref<1x32xf32, #tpu.memory_space<vmem>>, %arg7: memref<1x32xf32, #tpu.memory_space<vmem>>, %arg8: memref<32x32xf32, #tpu.memory_space<vmem>>, %arg9: memref<1x32xf32, #tpu.memory_space<vmem>>, %arg10: memref<32x64xf32, #tpu.memory_space<vmem>>, %arg11: memref<1x64xf32, #tpu.memory_space<vmem>>, %arg12: memref<32x32xf32, #tpu.memory_space<vmem>>, %arg13: memref<1x32xf32, #tpu.memory_space<vmem>>, %arg14: memref<1x32xf32, #tpu.memory_space<vmem>>, %arg15: memref<1x32xf32, #tpu.memory_space<vmem>>, %arg16: memref<32x64xf32, #tpu.memory_space<vmem>>, %arg17: memref<1x64xf32, #tpu.memory_space<vmem>>, %arg18: memref<64x32xf32, #tpu.memory_space<vmem>>, %arg19: memref<1x32xf32, #tpu.memory_space<vmem>>, %arg20: memref<1x32xf32, #tpu.memory_space<vmem>>, %arg21: memref<1x32xf32, #tpu.memory_space<vmem>>, %arg22: memref<1x32xf32, #tpu.memory_space<vmem>>, %arg23: memref<1x32xf32, #tpu.memory_space<vmem>>, %arg24: memref<16x32xf32, #tpu.memory_space<vmem>>) attributes {dimension_semantics = [], scalar_prefetch = 0 : i64, scratch_operands = 0 : i64, tpu.core_type = #tpu.core_type<tc>} {
    %c0 = arith.constant 0 : index
    %c0_0 = arith.constant 0 : index
    %0 = vector.load %arg0[%c0, %c0_0] : memref<16x32xf32, #tpu.memory_space<vmem>>, vector<16x32xf32>
    %c0_1 = arith.constant 0 : index
    %c0_2 = arith.constant 0 : index
    %1 = vector.load %arg1[%c0_1, %c0_2] : memref<16x32xf32, #tpu.memory_space<vmem>>, vector<16x32xf32>
    %c0_3 = arith.constant 0 : index
    %c0_4 = arith.constant 0 : index
    %2 = vector.load %arg2[%c0_3, %c0_4] : memref<32x96xf32, #tpu.memory_space<vmem>>, vector<32x96xf32>
    %3 = arith.truncf %0 : vector<16x32xf32> to vector<16x32xbf16>
    %4 = arith.truncf %2 : vector<32x96xf32> to vector<32x96xbf16>
    %cst = arith.constant dense<0.000000e+00> : vector<16x96xf32>
    %5 = tpu.matmul %3, %4, %cst {dimension_numbers = #tpu.dot_dimension_numbers<[1], [0], [0], [1], [0, 0, 1, 1], [], []>} : vector<16x32xbf16>, vector<32x96xbf16>, vector<16x96xf32> -> vector<16x96xf32>
    %c0_5 = arith.constant 0 : index
    %c0_6 = arith.constant 0 : index
    %6 = vector.load %arg3[%c0_5, %c0_6] : memref<1x96xf32, #tpu.memory_space<vmem>>, vector<1x96xf32>
    %7 = vector.broadcast %6 : vector<1x96xf32> to vector<16x96xf32>
    %8 = arith.addf %5, %7 : vector<16x96xf32>
    %9 = vector.extract_strided_slice %8 {offsets = [0, 0], sizes = [16, 32], strides = [1, 1]} : vector<16x96xf32> to vector<16x32xf32>
    %10 = vector.extract_strided_slice %8 {offsets = [0, 32], sizes = [16, 32], strides = [1, 1]} : vector<16x96xf32> to vector<16x32xf32>
    %11 = vector.extract_strided_slice %8 {offsets = [0, 64], sizes = [16, 32], strides = [1, 1]} : vector<16x96xf32> to vector<16x32xf32>
    %c0_7 = arith.constant 0 : index
    %c0_8 = arith.constant 0 : index
    %12 = vector.load %arg4[%c0_7, %c0_8] : memref<32x32xf32, #tpu.memory_space<vmem>>, vector<32x32xf32>
    %c0_9 = arith.constant 0 : index
    %c0_10 = arith.constant 0 : index
    %13 = vector.load %arg5[%c0_9, %c0_10] : memref<1x32xf32, #tpu.memory_space<vmem>>, vector<1x32xf32>
    %cst_11 = arith.constant 0.000000e+00 : f32
    %14 = vector.broadcast %cst_11 : f32 to vector<16x32xf32>
    %15 = vector.broadcast %13 : vector<1x32xf32> to vector<16x32xf32>
    %16 = arith.addf %14, %15 : vector<16x32xf32>
    %17 = vector.extract_strided_slice %9 {offsets = [0, 0], sizes = [16, 8], strides = [1, 1]} : vector<16x32xf32> to vector<16x8xf32>
    %18 = vector.shape_cast %17 : vector<16x8xf32> to vector<2x8x8xf32>
    %19 = vector.extract_strided_slice %10 {offsets = [0, 0], sizes = [16, 8], strides = [1, 1]} : vector<16x32xf32> to vector<16x8xf32>
    %20 = vector.shape_cast %19 : vector<16x8xf32> to vector<2x8x8xf32>
    %21 = vector.extract_strided_slice %11 {offsets = [0, 0], sizes = [16, 8], strides = [1, 1]} : vector<16x32xf32> to vector<16x8xf32>
    %22 = vector.shape_cast %21 : vector<16x8xf32> to vector<2x8x8xf32>
    %23 = arith.truncf %18 : vector<2x8x8xf32> to vector<2x8x8xbf16>
    %24 = arith.truncf %20 : vector<2x8x8xf32> to vector<2x8x8xbf16>
    "tpu.trace_start"() <{level = 10 : i32, message = "bqd,bkd->bqk"}> : () -> ()
    %cst_12 = arith.constant dense<0.000000e+00> : vector<2x8x8xf32>
    %25 = tpu.matmul %23, %24, %cst_12 {dimension_numbers = #tpu.dot_dimension_numbers<[2], [2], [1], [1], [0, 0, 0, 1, 1, 1], [0], [0]>} : vector<2x8x8xbf16>, vector<2x8x8xbf16>, vector<2x8x8xf32> -> vector<2x8x8xf32>
    "tpu.trace_stop"() : () -> ()
    %cst_13 = arith.constant 0.353553385 : f32
    %26 = vector.broadcast %cst_13 : f32 to vector<2x8x8xf32>
    %27 = arith.mulf %25, %26 : vector<2x8x8xf32>
    %cst_14 = arith.constant dense<0xFF800000> : vector<2x8xf32>
    %28 = vector.multi_reduction <maximumf>, %27, %cst_14 [2] : vector<2x8x8xf32> to vector<2x8xf32>
    %29 = vector.shape_cast %28 : vector<2x8xf32> to vector<2x8x1xf32>
    %30 = vector.broadcast %29 : vector<2x8x1xf32> to vector<2x8x8xf32>
    %31 = arith.subf %27, %30 : vector<2x8x8xf32>
    %32 = math.exp %31 : vector<2x8x8xf32>
    %cst_15 = arith.constant dense<0.000000e+00> : vector<2x8xf32>
    %33 = vector.multi_reduction <add>, %32, %cst_15 [2] : vector<2x8x8xf32> to vector<2x8xf32>
    %34 = vector.shape_cast %33 : vector<2x8xf32> to vector<2x8x1xf32>
    %35 = tpu.reciprocal %34 {approx = true} : vector<2x8x1xf32> -> vector<2x8x1xf32>
    %36 = vector.broadcast %35 : vector<2x8x1xf32> to vector<2x8x8xf32>
    %37 = arith.mulf %32, %36 : vector<2x8x8xf32>
    %38 = arith.truncf %37 : vector<2x8x8xf32> to vector<2x8x8xbf16>
    %39 = arith.truncf %22 : vector<2x8x8xf32> to vector<2x8x8xbf16>
    "tpu.trace_start"() <{level = 10 : i32, message = "bqk,bkd->bqd"}> : () -> ()
    %cst_16 = arith.constant dense<0.000000e+00> : vector<2x8x8xf32>
    %40 = tpu.matmul %38, %39, %cst_16 {dimension_numbers = #tpu.dot_dimension_numbers<[2], [1], [1], [2], [0, 0, 0, 1, 1, 2], [0], [0]>} : vector<2x8x8xbf16>, vector<2x8x8xbf16>, vector<2x8x8xf32> -> vector<2x8x8xf32>
    "tpu.trace_stop"() : () -> ()
    %41 = vector.shape_cast %40 : vector<2x8x8xf32> to vector<16x8xf32>
    %42 = vector.extract_strided_slice %12 {offsets = [0, 0], sizes = [8, 32], strides = [1, 1]} : vector<32x32xf32> to vector<8x32xf32>
    %43 = arith.truncf %41 : vector<16x8xf32> to vector<16x8xbf16>
    %44 = arith.truncf %42 : vector<8x32xf32> to vector<8x32xbf16>
    %cst_17 = arith.constant dense<0.000000e+00> : vector<16x32xf32>
    %45 = tpu.matmul %43, %44, %cst_17 {dimension_numbers = #tpu.dot_dimension_numbers<[1], [0], [0], [1], [0, 0, 1, 1], [], []>} : vector<16x8xbf16>, vector<8x32xbf16>, vector<16x32xf32> -> vector<16x32xf32>
    %46 = arith.addf %16, %45 : vector<16x32xf32>
    %47 = vector.extract_strided_slice %9 {offsets = [0, 8], sizes = [16, 8], strides = [1, 1]} : vector<16x32xf32> to vector<16x8xf32>
    %48 = vector.shape_cast %47 : vector<16x8xf32> to vector<2x8x8xf32>
    %49 = vector.extract_strided_slice %10 {offsets = [0, 8], sizes = [16, 8], strides = [1, 1]} : vector<16x32xf32> to vector<16x8xf32>
    %50 = vector.shape_cast %49 : vector<16x8xf32> to vector<2x8x8xf32>
    %51 = vector.extract_strided_slice %11 {offsets = [0, 8], sizes = [16, 8], strides = [1, 1]} : vector<16x32xf32> to vector<16x8xf32>
    %52 = vector.shape_cast %51 : vector<16x8xf32> to vector<2x8x8xf32>
    %53 = arith.truncf %48 : vector<2x8x8xf32> to vector<2x8x8xbf16>
    %54 = arith.truncf %50 : vector<2x8x8xf32> to vector<2x8x8xbf16>
    "tpu.trace_start"() <{level = 10 : i32, message = "bqd,bkd->bqk"}> : () -> ()
    %cst_18 = arith.constant dense<0.000000e+00> : vector<2x8x8xf32>
    %55 = tpu.matmul %53, %54, %cst_18 {dimension_numbers = #tpu.dot_dimension_numbers<[2], [2], [1], [1], [0, 0, 0, 1, 1, 1], [0], [0]>} : vector<2x8x8xbf16>, vector<2x8x8xbf16>, vector<2x8x8xf32> -> vector<2x8x8xf32>
    "tpu.trace_stop"() : () -> ()
    %cst_19 = arith.constant 0.353553385 : f32
    %56 = vector.broadcast %cst_19 : f32 to vector<2x8x8xf32>
    %57 = arith.mulf %55, %56 : vector<2x8x8xf32>
    %cst_20 = arith.constant dense<0xFF800000> : vector<2x8xf32>
    %58 = vector.multi_reduction <maximumf>, %57, %cst_20 [2] : vector<2x8x8xf32> to vector<2x8xf32>
    %59 = vector.shape_cast %58 : vector<2x8xf32> to vector<2x8x1xf32>
    %60 = vector.broadcast %59 : vector<2x8x1xf32> to vector<2x8x8xf32>
    %61 = arith.subf %57, %60 : vector<2x8x8xf32>
    %62 = math.exp %61 : vector<2x8x8xf32>
    %cst_21 = arith.constant dense<0.000000e+00> : vector<2x8xf32>
    %63 = vector.multi_reduction <add>, %62, %cst_21 [2] : vector<2x8x8xf32> to vector<2x8xf32>
    %64 = vector.shape_cast %63 : vector<2x8xf32> to vector<2x8x1xf32>
    %65 = tpu.reciprocal %64 {approx = true} : vector<2x8x1xf32> -> vector<2x8x1xf32>
    %66 = vector.broadcast %65 : vector<2x8x1xf32> to vector<2x8x8xf32>
    %67 = arith.mulf %62, %66 : vector<2x8x8xf32>
    %68 = arith.truncf %67 : vector<2x8x8xf32> to vector<2x8x8xbf16>
    %69 = arith.truncf %52 : vector<2x8x8xf32> to vector<2x8x8xbf16>
    "tpu.trace_start"() <{level = 10 : i32, message = "bqk,bkd->bqd"}> : () -> ()
    %cst_22 = arith.constant dense<0.000000e+00> : vector<2x8x8xf32>
    %70 = tpu.matmul %68, %69, %cst_22 {dimension_numbers = #tpu.dot_dimension_numbers<[2], [1], [1], [2], [0, 0, 0, 1, 1, 2], [0], [0]>} : vector<2x8x8xbf16>, vector<2x8x8xbf16>, vector<2x8x8xf32> -> vector<2x8x8xf32>
    "tpu.trace_stop"() : () -> ()
    %71 = vector.shape_cast %70 : vector<2x8x8xf32> to vector<16x8xf32>
    %72 = vector.extract_strided_slice %12 {offsets = [8, 0], sizes = [8, 32], strides = [1, 1]} : vector<32x32xf32> to vector<8x32xf32>
    %73 = arith.truncf %71 : vector<16x8xf32> to vector<16x8xbf16>
    %74 = arith.truncf %72 : vector<8x32xf32> to vector<8x32xbf16>
    %cst_23 = arith.constant dense<0.000000e+00> : vector<16x32xf32>
    %75 = tpu.matmul %73, %74, %cst_23 {dimension_numbers = #tpu.dot_dimension_numbers<[1], [0], [0], [1], [0, 0, 1, 1], [], []>} : vector<16x8xbf16>, vector<8x32xbf16>, vector<16x32xf32> -> vector<16x32xf32>
    %76 = arith.addf %46, %75 : vector<16x32xf32>
    %77 = vector.extract_strided_slice %9 {offsets = [0, 16], sizes = [16, 8], strides = [1, 1]} : vector<16x32xf32> to vector<16x8xf32>
    %78 = vector.shape_cast %77 : vector<16x8xf32> to vector<2x8x8xf32>
    %79 = vector.extract_strided_slice %10 {offsets = [0, 16], sizes = [16, 8], strides = [1, 1]} : vector<16x32xf32> to vector<16x8xf32>
    %80 = vector.shape_cast %79 : vector<16x8xf32> to vector<2x8x8xf32>
    %81 = vector.extract_strided_slice %11 {offsets = [0, 16], sizes = [16, 8], strides = [1, 1]} : vector<16x32xf32> to vector<16x8xf32>
    %82 = vector.shape_cast %81 : vector<16x8xf32> to vector<2x8x8xf32>
    %83 = arith.truncf %78 : vector<2x8x8xf32> to vector<2x8x8xbf16>
    %84 = arith.truncf %80 : vector<2x8x8xf32> to vector<2x8x8xbf16>
    "tpu.trace_start"() <{level = 10 : i32, message = "bqd,bkd->bqk"}> : () -> ()
    %cst_24 = arith.constant dense<0.000000e+00> : vector<2x8x8xf32>
    %85 = tpu.matmul %83, %84, %cst_24 {dimension_numbers = #tpu.dot_dimension_numbers<[2], [2], [1], [1], [0, 0, 0, 1, 1, 1], [0], [0]>} : vector<2x8x8xbf16>, vector<2x8x8xbf16>, vector<2x8x8xf32> -> vector<2x8x8xf32>
    "tpu.trace_stop"() : () -> ()
    %cst_25 = arith.constant 0.353553385 : f32
    %86 = vector.broadcast %cst_25 : f32 to vector<2x8x8xf32>
    %87 = arith.mulf %85, %86 : vector<2x8x8xf32>
    %cst_26 = arith.constant dense<0xFF800000> : vector<2x8xf32>
    %88 = vector.multi_reduction <maximumf>, %87, %cst_26 [2] : vector<2x8x8xf32> to vector<2x8xf32>
    %89 = vector.shape_cast %88 : vector<2x8xf32> to vector<2x8x1xf32>
    %90 = vector.broadcast %89 : vector<2x8x1xf32> to vector<2x8x8xf32>
    %91 = arith.subf %87, %90 : vector<2x8x8xf32>
    %92 = math.exp %91 : vector<2x8x8xf32>
    %cst_27 = arith.constant dense<0.000000e+00> : vector<2x8xf32>
    %93 = vector.multi_reduction <add>, %92, %cst_27 [2] : vector<2x8x8xf32> to vector<2x8xf32>
    %94 = vector.shape_cast %93 : vector<2x8xf32> to vector<2x8x1xf32>
    %95 = tpu.reciprocal %94 {approx = true} : vector<2x8x1xf32> -> vector<2x8x1xf32>
    %96 = vector.broadcast %95 : vector<2x8x1xf32> to vector<2x8x8xf32>
    %97 = arith.mulf %92, %96 : vector<2x8x8xf32>
    %98 = arith.truncf %97 : vector<2x8x8xf32> to vector<2x8x8xbf16>
    %99 = arith.truncf %82 : vector<2x8x8xf32> to vector<2x8x8xbf16>
    "tpu.trace_start"() <{level = 10 : i32, message = "bqk,bkd->bqd"}> : () -> ()
    %cst_28 = arith.constant dense<0.000000e+00> : vector<2x8x8xf32>
    %100 = tpu.matmul %98, %99, %cst_28 {dimension_numbers = #tpu.dot_dimension_numbers<[2], [1], [1], [2], [0, 0, 0, 1, 1, 2], [0], [0]>} : vector<2x8x8xbf16>, vector<2x8x8xbf16>, vector<2x8x8xf32> -> vector<2x8x8xf32>
    "tpu.trace_stop"() : () -> ()
    %101 = vector.shape_cast %100 : vector<2x8x8xf32> to vector<16x8xf32>
    %102 = vector.extract_strided_slice %12 {offsets = [16, 0], sizes = [8, 32], strides = [1, 1]} : vector<32x32xf32> to vector<8x32xf32>
    %103 = arith.truncf %101 : vector<16x8xf32> to vector<16x8xbf16>
    %104 = arith.truncf %102 : vector<8x32xf32> to vector<8x32xbf16>
    %cst_29 = arith.constant dense<0.000000e+00> : vector<16x32xf32>
    %105 = tpu.matmul %103, %104, %cst_29 {dimension_numbers = #tpu.dot_dimension_numbers<[1], [0], [0], [1], [0, 0, 1, 1], [], []>} : vector<16x8xbf16>, vector<8x32xbf16>, vector<16x32xf32> -> vector<16x32xf32>
    %106 = arith.addf %76, %105 : vector<16x32xf32>
    %107 = vector.extract_strided_slice %9 {offsets = [0, 24], sizes = [16, 8], strides = [1, 1]} : vector<16x32xf32> to vector<16x8xf32>
    %108 = vector.shape_cast %107 : vector<16x8xf32> to vector<2x8x8xf32>
    %109 = vector.extract_strided_slice %10 {offsets = [0, 24], sizes = [16, 8], strides = [1, 1]} : vector<16x32xf32> to vector<16x8xf32>
    %110 = vector.shape_cast %109 : vector<16x8xf32> to vector<2x8x8xf32>
    %111 = vector.extract_strided_slice %11 {offsets = [0, 24], sizes = [16, 8], strides = [1, 1]} : vector<16x32xf32> to vector<16x8xf32>
    %112 = vector.shape_cast %111 : vector<16x8xf32> to vector<2x8x8xf32>
    %113 = arith.truncf %108 : vector<2x8x8xf32> to vector<2x8x8xbf16>
    %114 = arith.truncf %110 : vector<2x8x8xf32> to vector<2x8x8xbf16>
    "tpu.trace_start"() <{level = 10 : i32, message = "bqd,bkd->bqk"}> : () -> ()
    %cst_30 = arith.constant dense<0.000000e+00> : vector<2x8x8xf32>
    %115 = tpu.matmul %113, %114, %cst_30 {dimension_numbers = #tpu.dot_dimension_numbers<[2], [2], [1], [1], [0, 0, 0, 1, 1, 1], [0], [0]>} : vector<2x8x8xbf16>, vector<2x8x8xbf16>, vector<2x8x8xf32> -> vector<2x8x8xf32>
    "tpu.trace_stop"() : () -> ()
    %cst_31 = arith.constant 0.353553385 : f32
    %116 = vector.broadcast %cst_31 : f32 to vector<2x8x8xf32>
    %117 = arith.mulf %115, %116 : vector<2x8x8xf32>
    %cst_32 = arith.constant dense<0xFF800000> : vector<2x8xf32>
    %118 = vector.multi_reduction <maximumf>, %117, %cst_32 [2] : vector<2x8x8xf32> to vector<2x8xf32>
    %119 = vector.shape_cast %118 : vector<2x8xf32> to vector<2x8x1xf32>
    %120 = vector.broadcast %119 : vector<2x8x1xf32> to vector<2x8x8xf32>
    %121 = arith.subf %117, %120 : vector<2x8x8xf32>
    %122 = math.exp %121 : vector<2x8x8xf32>
    %cst_33 = arith.constant dense<0.000000e+00> : vector<2x8xf32>
    %123 = vector.multi_reduction <add>, %122, %cst_33 [2] : vector<2x8x8xf32> to vector<2x8xf32>
    %124 = vector.shape_cast %123 : vector<2x8xf32> to vector<2x8x1xf32>
    %125 = tpu.reciprocal %124 {approx = true} : vector<2x8x1xf32> -> vector<2x8x1xf32>
    %126 = vector.broadcast %125 : vector<2x8x1xf32> to vector<2x8x8xf32>
    %127 = arith.mulf %122, %126 : vector<2x8x8xf32>
    %128 = arith.truncf %127 : vector<2x8x8xf32> to vector<2x8x8xbf16>
    %129 = arith.truncf %112 : vector<2x8x8xf32> to vector<2x8x8xbf16>
    "tpu.trace_start"() <{level = 10 : i32, message = "bqk,bkd->bqd"}> : () -> ()
    %cst_34 = arith.constant dense<0.000000e+00> : vector<2x8x8xf32>
    %130 = tpu.matmul %128, %129, %cst_34 {dimension_numbers = #tpu.dot_dimension_numbers<[2], [1], [1], [2], [0, 0, 0, 1, 1, 2], [0], [0]>} : vector<2x8x8xbf16>, vector<2x8x8xbf16>, vector<2x8x8xf32> -> vector<2x8x8xf32>
    "tpu.trace_stop"() : () -> ()
    %131 = vector.shape_cast %130 : vector<2x8x8xf32> to vector<16x8xf32>
    %132 = vector.extract_strided_slice %12 {offsets = [24, 0], sizes = [8, 32], strides = [1, 1]} : vector<32x32xf32> to vector<8x32xf32>
    %133 = arith.truncf %131 : vector<16x8xf32> to vector<16x8xbf16>
    %134 = arith.truncf %132 : vector<8x32xf32> to vector<8x32xbf16>
    %cst_35 = arith.constant dense<0.000000e+00> : vector<16x32xf32>
    %135 = tpu.matmul %133, %134, %cst_35 {dimension_numbers = #tpu.dot_dimension_numbers<[1], [0], [0], [1], [0, 0, 1, 1], [], []>} : vector<16x8xbf16>, vector<8x32xbf16>, vector<16x32xf32> -> vector<16x32xf32>
    %136 = arith.addf %106, %135 : vector<16x32xf32>
    %137 = arith.addf %0, %136 : vector<16x32xf32>
    %c0_36 = arith.constant 0 : index
    %c0_37 = arith.constant 0 : index
    %138 = vector.load %arg6[%c0_36, %c0_37] : memref<1x32xf32, #tpu.memory_space<vmem>>, vector<1x32xf32>
    %c0_38 = arith.constant 0 : index
    %c0_39 = arith.constant 0 : index
    %139 = vector.load %arg7[%c0_38, %c0_39] : memref<1x32xf32, #tpu.memory_space<vmem>>, vector<1x32xf32>
    %cst_40 = arith.constant dense<0.000000e+00> : vector<16xf32>
    %140 = vector.multi_reduction <add>, %137, %cst_40 [1] : vector<16x32xf32> to vector<16xf32>
    %141 = vector.shape_cast %140 : vector<16xf32> to vector<16x1xf32>
    %cst_41 = arith.constant 3.200000e+01 : f32
    %142 = vector.broadcast %cst_41 : f32 to vector<16x1xf32>
    %143 = arith.divf %141, %142 : vector<16x1xf32>
    %144 = vector.broadcast %143 : vector<16x1xf32> to vector<16x32xf32>
    %145 = arith.subf %137, %144 : vector<16x32xf32>
    %146 = arith.mulf %145, %145 : vector<16x32xf32>
    %cst_42 = arith.constant dense<0.000000e+00> : vector<16xf32>
    %147 = vector.multi_reduction <add>, %146, %cst_42 [1] : vector<16x32xf32> to vector<16xf32>
    %148 = vector.shape_cast %147 : vector<16xf32> to vector<16x1xf32>
    %cst_43 = arith.constant 3.200000e+01 : f32
    %149 = vector.broadcast %cst_43 : f32 to vector<16x1xf32>
    %150 = arith.divf %148, %149 : vector<16x1xf32>
    %151 = vector.broadcast %143 : vector<16x1xf32> to vector<16x32xf32>
    %152 = arith.subf %137, %151 : vector<16x32xf32>
    %cst_44 = arith.constant 9.99999974E-6 : f32
    %153 = vector.broadcast %cst_44 : f32 to vector<16x1xf32>
    %154 = arith.addf %150, %153 : vector<16x1xf32>
    %155 = math.rsqrt %154 : vector<16x1xf32>
    %156 = vector.broadcast %155 : vector<16x1xf32> to vector<16x32xf32>
    %157 = arith.mulf %152, %156 : vector<16x32xf32>
    %158 = vector.broadcast %138 : vector<1x32xf32> to vector<16x32xf32>
    %159 = arith.mulf %157, %158 : vector<16x32xf32>
    %160 = vector.broadcast %139 : vector<1x32xf32> to vector<16x32xf32>
    %161 = arith.addf %159, %160 : vector<16x32xf32>
    %c0_45 = arith.constant 0 : index
    %c0_46 = arith.constant 0 : index
    %162 = vector.load %arg8[%c0_45, %c0_46] : memref<32x32xf32, #tpu.memory_space<vmem>>, vector<32x32xf32>
    %163 = arith.truncf %161 : vector<16x32xf32> to vector<16x32xbf16>
    %164 = arith.truncf %162 : vector<32x32xf32> to vector<32x32xbf16>
    %cst_47 = arith.constant dense<0.000000e+00> : vector<16x32xf32>
    %165 = tpu.matmul %163, %164, %cst_47 {dimension_numbers = #tpu.dot_dimension_numbers<[1], [0], [0], [1], [0, 0, 1, 1], [], []>} : vector<16x32xbf16>, vector<32x32xbf16>, vector<16x32xf32> -> vector<16x32xf32>
    %c0_48 = arith.constant 0 : index
    %c0_49 = arith.constant 0 : index
    %166 = vector.load %arg9[%c0_48, %c0_49] : memref<1x32xf32, #tpu.memory_space<vmem>>, vector<1x32xf32>
    %167 = vector.broadcast %166 : vector<1x32xf32> to vector<16x32xf32>
    %168 = arith.addf %165, %167 : vector<16x32xf32>
    %c0_50 = arith.constant 0 : index
    %c0_51 = arith.constant 0 : index
    %169 = vector.load %arg10[%c0_50, %c0_51] : memref<32x64xf32, #tpu.memory_space<vmem>>, vector<32x64xf32>
    %170 = arith.truncf %1 : vector<16x32xf32> to vector<16x32xbf16>
    %171 = arith.truncf %169 : vector<32x64xf32> to vector<32x64xbf16>
    %cst_52 = arith.constant dense<0.000000e+00> : vector<16x64xf32>
    %172 = tpu.matmul %170, %171, %cst_52 {dimension_numbers = #tpu.dot_dimension_numbers<[1], [0], [0], [1], [0, 0, 1, 1], [], []>} : vector<16x32xbf16>, vector<32x64xbf16>, vector<16x64xf32> -> vector<16x64xf32>
    %c0_53 = arith.constant 0 : index
    %c0_54 = arith.constant 0 : index
    %173 = vector.load %arg11[%c0_53, %c0_54] : memref<1x64xf32, #tpu.memory_space<vmem>>, vector<1x64xf32>
    %174 = vector.broadcast %173 : vector<1x64xf32> to vector<16x64xf32>
    %175 = arith.addf %172, %174 : vector<16x64xf32>
    %176 = vector.extract_strided_slice %175 {offsets = [0, 0], sizes = [16, 32], strides = [1, 1]} : vector<16x64xf32> to vector<16x32xf32>
    %177 = vector.extract_strided_slice %175 {offsets = [0, 32], sizes = [16, 32], strides = [1, 1]} : vector<16x64xf32> to vector<16x32xf32>
    %c0_55 = arith.constant 0 : index
    %c0_56 = arith.constant 0 : index
    %178 = vector.load %arg12[%c0_55, %c0_56] : memref<32x32xf32, #tpu.memory_space<vmem>>, vector<32x32xf32>
    %c0_57 = arith.constant 0 : index
    %c0_58 = arith.constant 0 : index
    %179 = vector.load %arg13[%c0_57, %c0_58] : memref<1x32xf32, #tpu.memory_space<vmem>>, vector<1x32xf32>
    %cst_59 = arith.constant 0.000000e+00 : f32
    %180 = vector.broadcast %cst_59 : f32 to vector<16x32xf32>
    %181 = vector.broadcast %179 : vector<1x32xf32> to vector<16x32xf32>
    %182 = arith.addf %180, %181 : vector<16x32xf32>
    %183 = vector.extract_strided_slice %168 {offsets = [0, 0], sizes = [16, 8], strides = [1, 1]} : vector<16x32xf32> to vector<16x8xf32>
    %184 = vector.shape_cast %183 : vector<16x8xf32> to vector<2x8x8xf32>
    %185 = vector.extract_strided_slice %176 {offsets = [0, 0], sizes = [16, 8], strides = [1, 1]} : vector<16x32xf32> to vector<16x8xf32>
    %186 = vector.shape_cast %185 : vector<16x8xf32> to vector<2x8x8xf32>
    %187 = vector.extract_strided_slice %177 {offsets = [0, 0], sizes = [16, 8], strides = [1, 1]} : vector<16x32xf32> to vector<16x8xf32>
    %188 = vector.shape_cast %187 : vector<16x8xf32> to vector<2x8x8xf32>
    %189 = arith.truncf %184 : vector<2x8x8xf32> to vector<2x8x8xbf16>
    %190 = arith.truncf %186 : vector<2x8x8xf32> to vector<2x8x8xbf16>
    "tpu.trace_start"() <{level = 10 : i32, message = "bqd,bkd->bqk"}> : () -> ()
    %cst_60 = arith.constant dense<0.000000e+00> : vector<2x8x8xf32>
    %191 = tpu.matmul %189, %190, %cst_60 {dimension_numbers = #tpu.dot_dimension_numbers<[2], [2], [1], [1], [0, 0, 0, 1, 1, 1], [0], [0]>} : vector<2x8x8xbf16>, vector<2x8x8xbf16>, vector<2x8x8xf32> -> vector<2x8x8xf32>
    "tpu.trace_stop"() : () -> ()
    %cst_61 = arith.constant 0.353553385 : f32
    %192 = vector.broadcast %cst_61 : f32 to vector<2x8x8xf32>
    %193 = arith.mulf %191, %192 : vector<2x8x8xf32>
    %cst_62 = arith.constant dense<0xFF800000> : vector<2x8xf32>
    %194 = vector.multi_reduction <maximumf>, %193, %cst_62 [2] : vector<2x8x8xf32> to vector<2x8xf32>
    %195 = vector.shape_cast %194 : vector<2x8xf32> to vector<2x8x1xf32>
    %196 = vector.broadcast %195 : vector<2x8x1xf32> to vector<2x8x8xf32>
    %197 = arith.subf %193, %196 : vector<2x8x8xf32>
    %198 = math.exp %197 : vector<2x8x8xf32>
    %cst_63 = arith.constant dense<0.000000e+00> : vector<2x8xf32>
    %199 = vector.multi_reduction <add>, %198, %cst_63 [2] : vector<2x8x8xf32> to vector<2x8xf32>
    %200 = vector.shape_cast %199 : vector<2x8xf32> to vector<2x8x1xf32>
    %201 = tpu.reciprocal %200 {approx = true} : vector<2x8x1xf32> -> vector<2x8x1xf32>
    %202 = vector.broadcast %201 : vector<2x8x1xf32> to vector<2x8x8xf32>
    %203 = arith.mulf %198, %202 : vector<2x8x8xf32>
    %204 = arith.truncf %203 : vector<2x8x8xf32> to vector<2x8x8xbf16>
    %205 = arith.truncf %188 : vector<2x8x8xf32> to vector<2x8x8xbf16>
    "tpu.trace_start"() <{level = 10 : i32, message = "bqk,bkd->bqd"}> : () -> ()
    %cst_64 = arith.constant dense<0.000000e+00> : vector<2x8x8xf32>
    %206 = tpu.matmul %204, %205, %cst_64 {dimension_numbers = #tpu.dot_dimension_numbers<[2], [1], [1], [2], [0, 0, 0, 1, 1, 2], [0], [0]>} : vector<2x8x8xbf16>, vector<2x8x8xbf16>, vector<2x8x8xf32> -> vector<2x8x8xf32>
    "tpu.trace_stop"() : () -> ()
    %207 = vector.shape_cast %206 : vector<2x8x8xf32> to vector<16x8xf32>
    %208 = vector.extract_strided_slice %178 {offsets = [0, 0], sizes = [8, 32], strides = [1, 1]} : vector<32x32xf32> to vector<8x32xf32>
    %209 = arith.truncf %207 : vector<16x8xf32> to vector<16x8xbf16>
    %210 = arith.truncf %208 : vector<8x32xf32> to vector<8x32xbf16>
    %cst_65 = arith.constant dense<0.000000e+00> : vector<16x32xf32>
    %211 = tpu.matmul %209, %210, %cst_65 {dimension_numbers = #tpu.dot_dimension_numbers<[1], [0], [0], [1], [0, 0, 1, 1], [], []>} : vector<16x8xbf16>, vector<8x32xbf16>, vector<16x32xf32> -> vector<16x32xf32>
    %212 = arith.addf %182, %211 : vector<16x32xf32>
    %213 = vector.extract_strided_slice %168 {offsets = [0, 8], sizes = [16, 8], strides = [1, 1]} : vector<16x32xf32> to vector<16x8xf32>
    %214 = vector.shape_cast %213 : vector<16x8xf32> to vector<2x8x8xf32>
    %215 = vector.extract_strided_slice %176 {offsets = [0, 8], sizes = [16, 8], strides = [1, 1]} : vector<16x32xf32> to vector<16x8xf32>
    %216 = vector.shape_cast %215 : vector<16x8xf32> to vector<2x8x8xf32>
    %217 = vector.extract_strided_slice %177 {offsets = [0, 8], sizes = [16, 8], strides = [1, 1]} : vector<16x32xf32> to vector<16x8xf32>
    %218 = vector.shape_cast %217 : vector<16x8xf32> to vector<2x8x8xf32>
    %219 = arith.truncf %214 : vector<2x8x8xf32> to vector<2x8x8xbf16>
    %220 = arith.truncf %216 : vector<2x8x8xf32> to vector<2x8x8xbf16>
    "tpu.trace_start"() <{level = 10 : i32, message = "bqd,bkd->bqk"}> : () -> ()
    %cst_66 = arith.constant dense<0.000000e+00> : vector<2x8x8xf32>
    %221 = tpu.matmul %219, %220, %cst_66 {dimension_numbers = #tpu.dot_dimension_numbers<[2], [2], [1], [1], [0, 0, 0, 1, 1, 1], [0], [0]>} : vector<2x8x8xbf16>, vector<2x8x8xbf16>, vector<2x8x8xf32> -> vector<2x8x8xf32>
    "tpu.trace_stop"() : () -> ()
    %cst_67 = arith.constant 0.353553385 : f32
    %222 = vector.broadcast %cst_67 : f32 to vector<2x8x8xf32>
    %223 = arith.mulf %221, %222 : vector<2x8x8xf32>
    %cst_68 = arith.constant dense<0xFF800000> : vector<2x8xf32>
    %224 = vector.multi_reduction <maximumf>, %223, %cst_68 [2] : vector<2x8x8xf32> to vector<2x8xf32>
    %225 = vector.shape_cast %224 : vector<2x8xf32> to vector<2x8x1xf32>
    %226 = vector.broadcast %225 : vector<2x8x1xf32> to vector<2x8x8xf32>
    %227 = arith.subf %223, %226 : vector<2x8x8xf32>
    %228 = math.exp %227 : vector<2x8x8xf32>
    %cst_69 = arith.constant dense<0.000000e+00> : vector<2x8xf32>
    %229 = vector.multi_reduction <add>, %228, %cst_69 [2] : vector<2x8x8xf32> to vector<2x8xf32>
    %230 = vector.shape_cast %229 : vector<2x8xf32> to vector<2x8x1xf32>
    %231 = tpu.reciprocal %230 {approx = true} : vector<2x8x1xf32> -> vector<2x8x1xf32>
    %232 = vector.broadcast %231 : vector<2x8x1xf32> to vector<2x8x8xf32>
    %233 = arith.mulf %228, %232 : vector<2x8x8xf32>
    %234 = arith.truncf %233 : vector<2x8x8xf32> to vector<2x8x8xbf16>
    %235 = arith.truncf %218 : vector<2x8x8xf32> to vector<2x8x8xbf16>
    "tpu.trace_start"() <{level = 10 : i32, message = "bqk,bkd->bqd"}> : () -> ()
    %cst_70 = arith.constant dense<0.000000e+00> : vector<2x8x8xf32>
    %236 = tpu.matmul %234, %235, %cst_70 {dimension_numbers = #tpu.dot_dimension_numbers<[2], [1], [1], [2], [0, 0, 0, 1, 1, 2], [0], [0]>} : vector<2x8x8xbf16>, vector<2x8x8xbf16>, vector<2x8x8xf32> -> vector<2x8x8xf32>
    "tpu.trace_stop"() : () -> ()
    %237 = vector.shape_cast %236 : vector<2x8x8xf32> to vector<16x8xf32>
    %238 = vector.extract_strided_slice %178 {offsets = [8, 0], sizes = [8, 32], strides = [1, 1]} : vector<32x32xf32> to vector<8x32xf32>
    %239 = arith.truncf %237 : vector<16x8xf32> to vector<16x8xbf16>
    %240 = arith.truncf %238 : vector<8x32xf32> to vector<8x32xbf16>
    %cst_71 = arith.constant dense<0.000000e+00> : vector<16x32xf32>
    %241 = tpu.matmul %239, %240, %cst_71 {dimension_numbers = #tpu.dot_dimension_numbers<[1], [0], [0], [1], [0, 0, 1, 1], [], []>} : vector<16x8xbf16>, vector<8x32xbf16>, vector<16x32xf32> -> vector<16x32xf32>
    %242 = arith.addf %212, %241 : vector<16x32xf32>
    %243 = vector.extract_strided_slice %168 {offsets = [0, 16], sizes = [16, 8], strides = [1, 1]} : vector<16x32xf32> to vector<16x8xf32>
    %244 = vector.shape_cast %243 : vector<16x8xf32> to vector<2x8x8xf32>
    %245 = vector.extract_strided_slice %176 {offsets = [0, 16], sizes = [16, 8], strides = [1, 1]} : vector<16x32xf32> to vector<16x8xf32>
    %246 = vector.shape_cast %245 : vector<16x8xf32> to vector<2x8x8xf32>
    %247 = vector.extract_strided_slice %177 {offsets = [0, 16], sizes = [16, 8], strides = [1, 1]} : vector<16x32xf32> to vector<16x8xf32>
    %248 = vector.shape_cast %247 : vector<16x8xf32> to vector<2x8x8xf32>
    %249 = arith.truncf %244 : vector<2x8x8xf32> to vector<2x8x8xbf16>
    %250 = arith.truncf %246 : vector<2x8x8xf32> to vector<2x8x8xbf16>
    "tpu.trace_start"() <{level = 10 : i32, message = "bqd,bkd->bqk"}> : () -> ()
    %cst_72 = arith.constant dense<0.000000e+00> : vector<2x8x8xf32>
    %251 = tpu.matmul %249, %250, %cst_72 {dimension_numbers = #tpu.dot_dimension_numbers<[2], [2], [1], [1], [0, 0, 0, 1, 1, 1], [0], [0]>} : vector<2x8x8xbf16>, vector<2x8x8xbf16>, vector<2x8x8xf32> -> vector<2x8x8xf32>
    "tpu.trace_stop"() : () -> ()
    %cst_73 = arith.constant 0.353553385 : f32
    %252 = vector.broadcast %cst_73 : f32 to vector<2x8x8xf32>
    %253 = arith.mulf %251, %252 : vector<2x8x8xf32>
    %cst_74 = arith.constant dense<0xFF800000> : vector<2x8xf32>
    %254 = vector.multi_reduction <maximumf>, %253, %cst_74 [2] : vector<2x8x8xf32> to vector<2x8xf32>
    %255 = vector.shape_cast %254 : vector<2x8xf32> to vector<2x8x1xf32>
    %256 = vector.broadcast %255 : vector<2x8x1xf32> to vector<2x8x8xf32>
    %257 = arith.subf %253, %256 : vector<2x8x8xf32>
    %258 = math.exp %257 : vector<2x8x8xf32>
    %cst_75 = arith.constant dense<0.000000e+00> : vector<2x8xf32>
    %259 = vector.multi_reduction <add>, %258, %cst_75 [2] : vector<2x8x8xf32> to vector<2x8xf32>
    %260 = vector.shape_cast %259 : vector<2x8xf32> to vector<2x8x1xf32>
    %261 = tpu.reciprocal %260 {approx = true} : vector<2x8x1xf32> -> vector<2x8x1xf32>
    %262 = vector.broadcast %261 : vector<2x8x1xf32> to vector<2x8x8xf32>
    %263 = arith.mulf %258, %262 : vector<2x8x8xf32>
    %264 = arith.truncf %263 : vector<2x8x8xf32> to vector<2x8x8xbf16>
    %265 = arith.truncf %248 : vector<2x8x8xf32> to vector<2x8x8xbf16>
    "tpu.trace_start"() <{level = 10 : i32, message = "bqk,bkd->bqd"}> : () -> ()
    %cst_76 = arith.constant dense<0.000000e+00> : vector<2x8x8xf32>
    %266 = tpu.matmul %264, %265, %cst_76 {dimension_numbers = #tpu.dot_dimension_numbers<[2], [1], [1], [2], [0, 0, 0, 1, 1, 2], [0], [0]>} : vector<2x8x8xbf16>, vector<2x8x8xbf16>, vector<2x8x8xf32> -> vector<2x8x8xf32>
    "tpu.trace_stop"() : () -> ()
    %267 = vector.shape_cast %266 : vector<2x8x8xf32> to vector<16x8xf32>
    %268 = vector.extract_strided_slice %178 {offsets = [16, 0], sizes = [8, 32], strides = [1, 1]} : vector<32x32xf32> to vector<8x32xf32>
    %269 = arith.truncf %267 : vector<16x8xf32> to vector<16x8xbf16>
    %270 = arith.truncf %268 : vector<8x32xf32> to vector<8x32xbf16>
    %cst_77 = arith.constant dense<0.000000e+00> : vector<16x32xf32>
    %271 = tpu.matmul %269, %270, %cst_77 {dimension_numbers = #tpu.dot_dimension_numbers<[1], [0], [0], [1], [0, 0, 1, 1], [], []>} : vector<16x8xbf16>, vector<8x32xbf16>, vector<16x32xf32> -> vector<16x32xf32>
    %272 = arith.addf %242, %271 : vector<16x32xf32>
    %273 = vector.extract_strided_slice %168 {offsets = [0, 24], sizes = [16, 8], strides = [1, 1]} : vector<16x32xf32> to vector<16x8xf32>
    %274 = vector.shape_cast %273 : vector<16x8xf32> to vector<2x8x8xf32>
    %275 = vector.extract_strided_slice %176 {offsets = [0, 24], sizes = [16, 8], strides = [1, 1]} : vector<16x32xf32> to vector<16x8xf32>
    %276 = vector.shape_cast %275 : vector<16x8xf32> to vector<2x8x8xf32>
    %277 = vector.extract_strided_slice %177 {offsets = [0, 24], sizes = [16, 8], strides = [1, 1]} : vector<16x32xf32> to vector<16x8xf32>
    %278 = vector.shape_cast %277 : vector<16x8xf32> to vector<2x8x8xf32>
    %279 = arith.truncf %274 : vector<2x8x8xf32> to vector<2x8x8xbf16>
    %280 = arith.truncf %276 : vector<2x8x8xf32> to vector<2x8x8xbf16>
    "tpu.trace_start"() <{level = 10 : i32, message = "bqd,bkd->bqk"}> : () -> ()
    %cst_78 = arith.constant dense<0.000000e+00> : vector<2x8x8xf32>
    %281 = tpu.matmul %279, %280, %cst_78 {dimension_numbers = #tpu.dot_dimension_numbers<[2], [2], [1], [1], [0, 0, 0, 1, 1, 1], [0], [0]>} : vector<2x8x8xbf16>, vector<2x8x8xbf16>, vector<2x8x8xf32> -> vector<2x8x8xf32>
    "tpu.trace_stop"() : () -> ()
    %cst_79 = arith.constant 0.353553385 : f32
    %282 = vector.broadcast %cst_79 : f32 to vector<2x8x8xf32>
    %283 = arith.mulf %281, %282 : vector<2x8x8xf32>
    %cst_80 = arith.constant dense<0xFF800000> : vector<2x8xf32>
    %284 = vector.multi_reduction <maximumf>, %283, %cst_80 [2] : vector<2x8x8xf32> to vector<2x8xf32>
    %285 = vector.shape_cast %284 : vector<2x8xf32> to vector<2x8x1xf32>
    %286 = vector.broadcast %285 : vector<2x8x1xf32> to vector<2x8x8xf32>
    %287 = arith.subf %283, %286 : vector<2x8x8xf32>
    %288 = math.exp %287 : vector<2x8x8xf32>
    %cst_81 = arith.constant dense<0.000000e+00> : vector<2x8xf32>
    %289 = vector.multi_reduction <add>, %288, %cst_81 [2] : vector<2x8x8xf32> to vector<2x8xf32>
    %290 = vector.shape_cast %289 : vector<2x8xf32> to vector<2x8x1xf32>
    %291 = tpu.reciprocal %290 {approx = true} : vector<2x8x1xf32> -> vector<2x8x1xf32>
    %292 = vector.broadcast %291 : vector<2x8x1xf32> to vector<2x8x8xf32>
    %293 = arith.mulf %288, %292 : vector<2x8x8xf32>
    %294 = arith.truncf %293 : vector<2x8x8xf32> to vector<2x8x8xbf16>
    %295 = arith.truncf %278 : vector<2x8x8xf32> to vector<2x8x8xbf16>
    "tpu.trace_start"() <{level = 10 : i32, message = "bqk,bkd->bqd"}> : () -> ()
    %cst_82 = arith.constant dense<0.000000e+00> : vector<2x8x8xf32>
    %296 = tpu.matmul %294, %295, %cst_82 {dimension_numbers = #tpu.dot_dimension_numbers<[2], [1], [1], [2], [0, 0, 0, 1, 1, 2], [0], [0]>} : vector<2x8x8xbf16>, vector<2x8x8xbf16>, vector<2x8x8xf32> -> vector<2x8x8xf32>
    "tpu.trace_stop"() : () -> ()
    %297 = vector.shape_cast %296 : vector<2x8x8xf32> to vector<16x8xf32>
    %298 = vector.extract_strided_slice %178 {offsets = [24, 0], sizes = [8, 32], strides = [1, 1]} : vector<32x32xf32> to vector<8x32xf32>
    %299 = arith.truncf %297 : vector<16x8xf32> to vector<16x8xbf16>
    %300 = arith.truncf %298 : vector<8x32xf32> to vector<8x32xbf16>
    %cst_83 = arith.constant dense<0.000000e+00> : vector<16x32xf32>
    %301 = tpu.matmul %299, %300, %cst_83 {dimension_numbers = #tpu.dot_dimension_numbers<[1], [0], [0], [1], [0, 0, 1, 1], [], []>} : vector<16x8xbf16>, vector<8x32xbf16>, vector<16x32xf32> -> vector<16x32xf32>
    %302 = arith.addf %272, %301 : vector<16x32xf32>
    %303 = arith.addf %161, %302 : vector<16x32xf32>
    %c0_84 = arith.constant 0 : index
    %c0_85 = arith.constant 0 : index
    %304 = vector.load %arg14[%c0_84, %c0_85] : memref<1x32xf32, #tpu.memory_space<vmem>>, vector<1x32xf32>
    %c0_86 = arith.constant 0 : index
    %c0_87 = arith.constant 0 : index
    %305 = vector.load %arg15[%c0_86, %c0_87] : memref<1x32xf32, #tpu.memory_space<vmem>>, vector<1x32xf32>
    %cst_88 = arith.constant dense<0.000000e+00> : vector<16xf32>
    %306 = vector.multi_reduction <add>, %303, %cst_88 [1] : vector<16x32xf32> to vector<16xf32>
    %307 = vector.shape_cast %306 : vector<16xf32> to vector<16x1xf32>
    %cst_89 = arith.constant 3.200000e+01 : f32
    %308 = vector.broadcast %cst_89 : f32 to vector<16x1xf32>
    %309 = arith.divf %307, %308 : vector<16x1xf32>
    %310 = vector.broadcast %309 : vector<16x1xf32> to vector<16x32xf32>
    %311 = arith.subf %303, %310 : vector<16x32xf32>
    %312 = arith.mulf %311, %311 : vector<16x32xf32>
    %cst_90 = arith.constant dense<0.000000e+00> : vector<16xf32>
    %313 = vector.multi_reduction <add>, %312, %cst_90 [1] : vector<16x32xf32> to vector<16xf32>
    %314 = vector.shape_cast %313 : vector<16xf32> to vector<16x1xf32>
    %cst_91 = arith.constant 3.200000e+01 : f32
    %315 = vector.broadcast %cst_91 : f32 to vector<16x1xf32>
    %316 = arith.divf %314, %315 : vector<16x1xf32>
    %317 = vector.broadcast %309 : vector<16x1xf32> to vector<16x32xf32>
    %318 = arith.subf %303, %317 : vector<16x32xf32>
    %cst_92 = arith.constant 9.99999974E-6 : f32
    %319 = vector.broadcast %cst_92 : f32 to vector<16x1xf32>
    %320 = arith.addf %316, %319 : vector<16x1xf32>
    %321 = math.rsqrt %320 : vector<16x1xf32>
    %322 = vector.broadcast %321 : vector<16x1xf32> to vector<16x32xf32>
    %323 = arith.mulf %318, %322 : vector<16x32xf32>
    %324 = vector.broadcast %304 : vector<1x32xf32> to vector<16x32xf32>
    %325 = arith.mulf %323, %324 : vector<16x32xf32>
    %326 = vector.broadcast %305 : vector<1x32xf32> to vector<16x32xf32>
    %327 = arith.addf %325, %326 : vector<16x32xf32>
    %c0_93 = arith.constant 0 : index
    %c0_94 = arith.constant 0 : index
    %328 = vector.load %arg16[%c0_93, %c0_94] : memref<32x64xf32, #tpu.memory_space<vmem>>, vector<32x64xf32>
    %329 = arith.truncf %327 : vector<16x32xf32> to vector<16x32xbf16>
    %330 = arith.truncf %328 : vector<32x64xf32> to vector<32x64xbf16>
    %cst_95 = arith.constant dense<0.000000e+00> : vector<16x64xf32>
    %331 = tpu.matmul %329, %330, %cst_95 {dimension_numbers = #tpu.dot_dimension_numbers<[1], [0], [0], [1], [0, 0, 1, 1], [], []>} : vector<16x32xbf16>, vector<32x64xbf16>, vector<16x64xf32> -> vector<16x64xf32>
    %c0_96 = arith.constant 0 : index
    %c0_97 = arith.constant 0 : index
    %332 = vector.load %arg17[%c0_96, %c0_97] : memref<1x64xf32, #tpu.memory_space<vmem>>, vector<1x64xf32>
    %333 = vector.broadcast %332 : vector<1x64xf32> to vector<16x64xf32>
    %334 = arith.addf %331, %333 : vector<16x64xf32>
    %cst_98 = arith.constant 0.000000e+00 : f32
    %335 = vector.broadcast %cst_98 : f32 to vector<16x64xf32>
    %336 = arith.maximumf %334, %335 : vector<16x64xf32>
    %c0_99 = arith.constant 0 : index
    %c0_100 = arith.constant 0 : index
    %337 = vector.load %arg18[%c0_99, %c0_100] : memref<64x32xf32, #tpu.memory_space<vmem>>, vector<64x32xf32>
    %338 = arith.truncf %336 : vector<16x64xf32> to vector<16x64xbf16>
    %339 = arith.truncf %337 : vector<64x32xf32> to vector<64x32xbf16>
    %cst_101 = arith.constant dense<0.000000e+00> : vector<16x32xf32>
    %340 = tpu.matmul %338, %339, %cst_101 {dimension_numbers = #tpu.dot_dimension_numbers<[1], [0], [0], [1], [0, 0, 1, 1], [], []>} : vector<16x64xbf16>, vector<64x32xbf16>, vector<16x32xf32> -> vector<16x32xf32>
    %c0_102 = arith.constant 0 : index
    %c0_103 = arith.constant 0 : index
    %341 = vector.load %arg19[%c0_102, %c0_103] : memref<1x32xf32, #tpu.memory_space<vmem>>, vector<1x32xf32>
    %342 = vector.broadcast %341 : vector<1x32xf32> to vector<16x32xf32>
    %343 = arith.addf %340, %342 : vector<16x32xf32>
    %344 = arith.addf %327, %343 : vector<16x32xf32>
    %c0_104 = arith.constant 0 : index
    %c0_105 = arith.constant 0 : index
    %345 = vector.load %arg20[%c0_104, %c0_105] : memref<1x32xf32, #tpu.memory_space<vmem>>, vector<1x32xf32>
    %c0_106 = arith.constant 0 : index
    %c0_107 = arith.constant 0 : index
    %346 = vector.load %arg21[%c0_106, %c0_107] : memref<1x32xf32, #tpu.memory_space<vmem>>, vector<1x32xf32>
    %cst_108 = arith.constant dense<0.000000e+00> : vector<16xf32>
    %347 = vector.multi_reduction <add>, %344, %cst_108 [1] : vector<16x32xf32> to vector<16xf32>
    %348 = vector.shape_cast %347 : vector<16xf32> to vector<16x1xf32>
    %cst_109 = arith.constant 3.200000e+01 : f32
    %349 = vector.broadcast %cst_109 : f32 to vector<16x1xf32>
    %350 = arith.divf %348, %349 : vector<16x1xf32>
    %351 = vector.broadcast %350 : vector<16x1xf32> to vector<16x32xf32>
    %352 = arith.subf %344, %351 : vector<16x32xf32>
    %353 = arith.mulf %352, %352 : vector<16x32xf32>
    %cst_110 = arith.constant dense<0.000000e+00> : vector<16xf32>
    %354 = vector.multi_reduction <add>, %353, %cst_110 [1] : vector<16x32xf32> to vector<16xf32>
    %355 = vector.shape_cast %354 : vector<16xf32> to vector<16x1xf32>
    %cst_111 = arith.constant 3.200000e+01 : f32
    %356 = vector.broadcast %cst_111 : f32 to vector<16x1xf32>
    %357 = arith.divf %355, %356 : vector<16x1xf32>
    %358 = vector.broadcast %350 : vector<16x1xf32> to vector<16x32xf32>
    %359 = arith.subf %344, %358 : vector<16x32xf32>
    %cst_112 = arith.constant 9.99999974E-6 : f32
    %360 = vector.broadcast %cst_112 : f32 to vector<16x1xf32>
    %361 = arith.addf %357, %360 : vector<16x1xf32>
    %362 = math.rsqrt %361 : vector<16x1xf32>
    %363 = vector.broadcast %362 : vector<16x1xf32> to vector<16x32xf32>
    %364 = arith.mulf %359, %363 : vector<16x32xf32>
    %365 = vector.broadcast %345 : vector<1x32xf32> to vector<16x32xf32>
    %366 = arith.mulf %364, %365 : vector<16x32xf32>
    %367 = vector.broadcast %346 : vector<1x32xf32> to vector<16x32xf32>
    %368 = arith.addf %366, %367 : vector<16x32xf32>
    %c0_113 = arith.constant 0 : index
    %c0_114 = arith.constant 0 : index
    %369 = vector.load %arg22[%c0_113, %c0_114] : memref<1x32xf32, #tpu.memory_space<vmem>>, vector<1x32xf32>
    %c0_115 = arith.constant 0 : index
    %c0_116 = arith.constant 0 : index
    %370 = vector.load %arg23[%c0_115, %c0_116] : memref<1x32xf32, #tpu.memory_space<vmem>>, vector<1x32xf32>
    %cst_117 = arith.constant dense<0.000000e+00> : vector<16xf32>
    %371 = vector.multi_reduction <add>, %368, %cst_117 [1] : vector<16x32xf32> to vector<16xf32>
    %372 = vector.shape_cast %371 : vector<16xf32> to vector<16x1xf32>
    %cst_118 = arith.constant 3.200000e+01 : f32
    %373 = vector.broadcast %cst_118 : f32 to vector<16x1xf32>
    %374 = arith.divf %372, %373 : vector<16x1xf32>
    %375 = vector.broadcast %374 : vector<16x1xf32> to vector<16x32xf32>
    %376 = arith.subf %368, %375 : vector<16x32xf32>
    %377 = arith.mulf %376, %376 : vector<16x32xf32>
    %cst_119 = arith.constant dense<0.000000e+00> : vector<16xf32>
    %378 = vector.multi_reduction <add>, %377, %cst_119 [1] : vector<16x32xf32> to vector<16xf32>
    %379 = vector.shape_cast %378 : vector<16xf32> to vector<16x1xf32>
    %cst_120 = arith.constant 3.200000e+01 : f32
    %380 = vector.broadcast %cst_120 : f32 to vector<16x1xf32>
    %381 = arith.divf %379, %380 : vector<16x1xf32>
    %382 = vector.broadcast %374 : vector<16x1xf32> to vector<16x32xf32>
    %383 = arith.subf %368, %382 : vector<16x32xf32>
    %cst_121 = arith.constant 9.99999974E-6 : f32
    %384 = vector.broadcast %cst_121 : f32 to vector<16x1xf32>
    %385 = arith.addf %381, %384 : vector<16x1xf32>
    %386 = math.rsqrt %385 : vector<16x1xf32>
    %387 = vector.broadcast %386 : vector<16x1xf32> to vector<16x32xf32>
    %388 = arith.mulf %383, %387 : vector<16x32xf32>
    %389 = vector.broadcast %369 : vector<1x32xf32> to vector<16x32xf32>
    %390 = arith.mulf %388, %389 : vector<16x32xf32>
    %391 = vector.broadcast %370 : vector<1x32xf32> to vector<16x32xf32>
    %392 = arith.addf %390, %391 : vector<16x32xf32>
    %c0_122 = arith.constant 0 : index
    %c0_123 = arith.constant 0 : index
    %393 = vector.load %arg24[%c0_122, %c0_123] : memref<16x32xf32, #tpu.memory_space<vmem>>, vector<16x32xf32>
    tpu.vector_store %arg24[%c0_122, %c0_123], %392 {strides = array<i32>} : memref<16x32xf32, #tpu.memory_space<vmem>>, vector<16x32xf32>,
    return
  }
}

</mosaic_0001>

<llo_original>
// kernel: tile.14
$region0: #{tile.14}
  %s0 = inlined_call_operand.vmem [shape: f32[16,8], index: 0, kind: input, shape index: {}]
  %s1 = inlined_call_operand.vmem [shape: f32[1,128], index: 1, kind: output, shape index: {}]
  $region1: #{tile.14} parent=0
    #allocation0 [shape = 'u8[4096]{0}', space=vmem, size = 0x1000, scoped, tag = 'scoped mem for output reshape']
    %v2 = vld [vmem:[%s0] sm:$0x1]
    %vm3 = vcmask 64512
    %4 = vst.msk [vmem:[#allocation0] sm:$0x1] %vm3, %v2
    %s5 = scalar_lea.vmem %s0, 15
    %v6 = vld [vmem:[%s5] sm:$0x1]
    %7 = vrot.lane.b32.xlu0 %v6, 120
    %v8 = vpop.permute.xlu0 %7
    %vm9 = vcmask 1048512
    %10 = vst.msk [vmem:[#allocation0] sm:$0x1] %vm9, %v8
    %s11 = scalar_lea.vmem %s0, 14
    %v12 = vld [vmem:[%s11] sm:$0x1]
    %13 = vrot.lane.b32.xlu0 %v12, 112
    %v14 = vpop.permute.xlu0 %13
    %vm15 = vcmask 982912
    %16 = vst.msk [vmem:[#allocation0] sm:$0x1] %vm15, %v14
    %s17 = scalar_lea.vmem %s0, 13
    %v18 = vld [vmem:[%s17] sm:$0x1]
    %19 = vrot.lane.b32.xlu0 %v18, 104
    %v20 = vpop.permute.xlu0 %19
    %vm21 = vcmask 917312
    %22 = vst.msk [vmem:[#allocation0] sm:$0x1] %vm21, %v20
    %s23 = scalar_lea.vmem %s0, 12
    %v24 = vld [vmem:[%s23] sm:$0x1]
    %25 = vrot.lane.b32.xlu0 %v24, 96
    %v26 = vpop.permute.xlu0 %25
    %vm27 = vcmask 851712
    %28 = vst.msk [vmem:[#allocation0] sm:$0x1] %vm27, %v26
    %s29 = scalar_lea.vmem %s0, 11
    %v30 = vld [vmem:[%s29] sm:$0x1]
    %31 = vrot.lane.b32.xlu0 %v30, 88
    %v32 = vpop.permute.xlu0 %31
    %vm33 = vcmask 786112
    %34 = vst.msk [vmem:[#allocation0] sm:$0x1] %vm33, %v32
    %s35 = scalar_lea.vmem %s0, 10
    %v36 = vld [vmem:[%s35] sm:$0x1]
    %37 = vrot.lane.b32.xlu0 %v36, 80
    %v38 = vpop.permute.xlu0 %37
    %vm39 = vcmask 720512
    %40 = vst.msk [vmem:[#allocation0] sm:$0x1] %vm39, %v38
    %s41 = scalar_lea.vmem %s0, 9
    %v42 = vld [vmem:[%s41] sm:$0x1]
    %43 = vrot.lane.b32.xlu0 %v42, 72
    %v44 = vpop.permute.xlu0 %43
    %vm45 = vcmask 654912
    %46 = vst.msk [vmem:[#allocation0] sm:$0x1] %vm45, %v44
    %s47 = scalar_lea.vmem %s0, 8
    %v48 = vld [vmem:[%s47] sm:$0x1]
    %49 = vrot.lane.b32.xlu0 %v48, 64
    %v50 = vpop.permute.xlu0 %49
    %vm51 = vcmask 589312
    %52 = vst.msk [vmem:[#allocation0] sm:$0x1] %vm51, %v50
    %s53 = scalar_lea.vmem %s0, 7
    %v54 = vld [vmem:[%s53] sm:$0x1]
    %55 = vrot.lane.b32.xlu0 %v54, 56
    %v56 = vpop.permute.xlu0 %55
    %vm57 = vcmask 523712
    %58 = vst.msk [vmem:[#allocation0] sm:$0x1] %vm57, %v56
    %s59 = scalar_lea.vmem %s0, 6
    %v60 = vld [vmem:[%s59] sm:$0x1]
    %61 = vrot.lane.b32.xlu0 %v60, 48
    %v62 = vpop.permute.xlu0 %61
    %vm63 = vcmask 458112
    %64 = vst.msk [vmem:[#allocation0] sm:$0x1] %vm63, %v62
    %s65 = scalar_lea.vmem %s0, 5
    %v66 = vld [vmem:[%s65] sm:$0x1]
    %67 = vrot.lane.b32.xlu0 %v66, 40
    %v68 = vpop.permute.xlu0 %67
    %vm69 = vcmask 392512
    %70 = vst.msk [vmem:[#allocation0] sm:$0x1] %vm69, %v68
    %s71 = scalar_lea.vmem %s0, 4
    %v72 = vld [vmem:[%s71] sm:$0x1]
    %73 = vrot.lane.b32.xlu0 %v72, 32
    %v74 = vpop.permute.xlu0 %73
    %vm75 = vcmask 326912
    %76 = vst.msk [vmem:[#allocation0] sm:$0x1] %vm75, %v74
    %s77 = scalar_lea.vmem %s0, 3
    %v78 = vld [vmem:[%s77] sm:$0x1]
    %79 = vrot.lane.b32.xlu0 %v78, 24
    %v80 = vpop.permute.xlu0 %79
    %vm81 = vcmask 261312
    %82 = vst.msk [vmem:[#allocation0] sm:$0x1] %vm81, %v80
    %s83 = scalar_lea.vmem %s0, 2
    %v84 = vld [vmem:[%s83] sm:$0x1]
    %85 = vrot.lane.b32.xlu0 %v84, 16
    %v86 = vpop.permute.xlu0 %85
    %vm87 = vcmask 195712
    %88 = vst.msk [vmem:[#allocation0] sm:$0x1] %vm87, %v86
    %s89 = scalar_lea.vmem %s0, 1
    %v90 = vld [vmem:[%s89] sm:$0x1]
    %91 = vrot.lane.b32.xlu0 %v90, 8
    %v92 = vpop.permute.xlu0 %91
    %vm93 = vcmask 130112
    %94 = vst.msk [vmem:[#allocation0] sm:$0x1] %vm93, %v92
    %s96 = sshllo.u32 0, 1
    %v98 = vld [vmem:[#allocation0] sm:%s96]
    %s99 = sshllo.u32 0, 1
    %100 = vst [vmem:[%s1] sm:%s99] %v98

// kernel: tile.13
$region0: #{tile.13}
  #allocation2 [shape = 's32[1]{0}', space=sflag, size = 0x4, scoped, tag = 'scoped memory for tile.13']
  %s0 = inlined_call_operand.hbm [shape: f32[8], index: 0, kind: input, shape index: {}]
  %s1 = inlined_call_operand.vmem [shape: f32[16,8], index: 1, kind: output, shape index: {}]
  $region1: #{tile.13} parent=0
    #allocation0 [shape = 'u8[512]{0}', space=vmem, size = 0x400, scoped, tag = 'operand span for operand 0']
    #allocation1 [shape = 's32[1]{0}', space=sflag, size = 0x4, scoped, tag = 'scoped memory for tile.13']
    %2 = vsyncpa [#allocation1], 0
    // Predicated region
    $region2: #{tile.13} parent=1 // pred_check
      _
    $region3: #{tile.13} parent=1 // pred_check_branch
      %4 = sbr.rel (0) target = $region5
    $region4: #{tile.13} parent=1 // pred_region
      %s6 = ssub.s32 16, 16
      %7 = vsyncadd [#allocation1], %s6
      %s9 = sshll.u32 [#allocation0], 4
      %s10 = int_to_ptr.vmem [resolvable:$true] %s9
      %12 = dma.hbm_to_vmem [thread:$0]  %s0, 16, %s10, [#allocation1]
    $region5: #{tile.13} parent=1 // pred_fallthru
      _
    // Predicated region
    $region6: #{tile.13} parent=1 // pred_check
      _
    $region7: #{tile.13} parent=1 // pred_check_branch
      %14 = sbr.rel (0) target = $region9
    $region8: #{tile.13} parent=1 // pred_region
      %15 = dma.done [#allocation1], 16
    $region9: #{tile.13} parent=1 // pred_fallthru
      _
    %v16 = vld [vmem:[#allocation0] ss:$0 sm:$0xff]
    %17 = vst [vmem:[%s1] sm:$0xff] %v16
    %s18 = scalar_lea.vmem %s1, 8
    %19 = vst [vmem:[%s18] sm:$0xff] %v16
    %20 = vsyncpa [#allocation1], 1

// kernel: vggish_transformer_forward.5
$region0: #{vggish_transformer_forward.5}
  #allocation0 [shape = 'u32[]', space=smem, size = 0x4, offset = 0x4, fixed_abs, tag = 'smem constant byte address 0x4 - core index']
  #allocation1 [shape = 'u32[144,128]{1,0:T(1,128)}', space=vmem, size = 0x12000, scoped, tag = 'internal scratch']
  %s0 = inlined_call_operand.vmem [shape: f32[16,18,18], index: 0, kind: input, shape index: {}]
  %s1 = inlined_call_operand.vmem [shape: f32[3,18,128], index: 1, kind: input, shape index: {}]
  %s2 = inlined_call_operand.vmem [shape: f32[1,128], index: 2, kind: input, shape index: {}]
  %s3 = inlined_call_operand.vmem [shape: f32[256,128], index: 3, kind: output, shape index: {}]
  %s4 = sld [smem:[#allocation0]]
  $region45: #{vggish_transformer_forward.5} parent=0
    _
  %s6 = ssub.s32 1, %s4
  %s7 = scalar_select 0, %s6, %s4
  loop: start=0, step=1, limit=4
  $region2: #{vggish_transformer_forward.5} parent=0 // loop_pre_header
    _
  $region3: #{vggish_transformer_forward.5} parent=0 // loop_header
    %s9 = sphi 0, %s13
    %p10 = scmp.ge.s32.totalorder %s9, 4
    %s19 = sphi 0, %s21
    %s22 = sphi 0, %s19
    %s23 = sphi 0, %s22
    %s39 = sphi 0, %s23
    %s43 = sphi 0, %s43
    %s45 = sphi 0, %s43
    %s46 = sphi 0, %s45
    %s60 = sphi 0, %s46
    %s64 = sphi 0, %s64
    %s66 = sphi 0, %s64
    %s67 = sphi 0, %s66
    %s81 = sphi 0, %s67
    %s87 = sphi 0, %s89
    %s90 = sphi 0, %s87
    %s91 = sphi 0, %s90
    %s107 = sphi 0, %s91
  $region4: #{vggish_transformer_forward.5} parent=0 // loop_header_branch
    %12 = sbr.rel (%p10) target = $region8
  $region5: #{vggish_transformer_forward.5} parent=0 // loop_body
    %s14 = ssub.s32 %s9, 1
    %s15 = ssub.s32 %s9, 2
    %s16 = sadd.s32 %s9, 1
    %s17 = ssub.s32 %s9, %s16
    %p18 = scmp.eq.s32.totalorder %s17, 0
    %s20 = sadd.s32 %s19, 1
    %s21 = scalar_select %p18, %s19, %s20
    %p24 = pneg %p18
    %p25 = scmp.eq.s32.totalorder %s9, 1
    %p26 = por %p24, %p25
    %p27 = scmp.ne.s32.totalorder %s19, %s22
    %p28 = scmp.eq.s32.totalorder %s9, 0
    %p29 = por %p27, %p28
    %p30 = scmp.ne.s32.totalorder %s19, %s22
    %p31 = scmp.eq.s32.totalorder %s14, 1
    %p32 = por %p30, %p31
    %p33 = scmp.ne.s32.totalorder %s22, %s23
    %p34 = scmp.eq.s32.totalorder %s14, 0
    %p35 = por %p33, %p34
    %p36 = scmp.ne.s32.totalorder %s22, %s23
    %p37 = scmp.eq.s32.totalorder %s15, 1
    %p38 = por %p36, %p37
    %p40 = scmp.ne.s32.totalorder %s23, %s39
    %p41 = scmp.eq.s32.totalorder %s15, 0
    %p42 = por %p40, %p41
    %s44 = sadd.s32 %s43, 1
    %p47 = scmp.eq.s32.totalorder %s9, 1
    %p48 = scmp.ne.s32.totalorder %s43, %s45
    %p49 = scmp.eq.s32.totalorder %s9, 0
    %p50 = por %p48, %p49
    %p51 = scmp.ne.s32.totalorder %s43, %s45
    %p52 = scmp.eq.s32.totalorder %s14, 1
    %p53 = por %p51, %p52
    %p54 = scmp.ne.s32.totalorder %s45, %s46
    %p55 = scmp.eq.s32.totalorder %s14, 0
    %p56 = por %p54, %p55
    %p57 = scmp.ne.s32.totalorder %s45, %s46
    %p58 = scmp.eq.s32.totalorder %s15, 1
    %p59 = por %p57, %p58
    %p61 = scmp.ne.s32.totalorder %s46, %s60
    %p62 = scmp.eq.s32.totalorder %s15, 0
    %p63 = por %p61, %p62
    %s65 = sadd.s32 %s64, 1
    %p68 = scmp.eq.s32.totalorder %s9, 1
    %p69 = scmp.ne.s32.totalorder %s64, %s66
    %p70 = scmp.eq.s32.totalorder %s9, 0
    %p71 = por %p69, %p70
    %p72 = scmp.ne.s32.totalorder %s64, %s66
    %p73 = scmp.eq.s32.totalorder %s14, 1
    %p74 = por %p72, %p73
    %p75 = scmp.ne.s32.totalorder %s66, %s67
    %p76 = scmp.eq.s32.totalorder %s14, 0
    %p77 = por %p75, %p76
    %p78 = scmp.ne.s32.totalorder %s66, %s67
    %p79 = scmp.eq.s32.totalorder %s15, 1
    %p80 = por %p78, %p79
    %p82 = scmp.ne.s32.totalorder %s67, %s81
    %p83 = scmp.eq.s32.totalorder %s15, 0
    %p84 = por %p82, %p83
    %s85 = ssub.s32 %s9, %s16
    %p86 = scmp.eq.s32.totalorder %s85, 0
    %s88 = sadd.s32 %s87, 1
    %s89 = scalar_select %p86, %s87, %s88
    %p92 = pneg %p86
    %p93 = scmp.eq.s32.totalorder %s9, 1
    %p94 = por %p92, %p93
    %p95 = scmp.ne.s32.totalorder %s87, %s90
    %p96 = scmp.eq.s32.totalorder %s9, 0
    %p97 = por %p95, %p96
    %p98 = scmp.ne.s32.totalorder %s87, %s90
    %p99 = scmp.eq.s32.totalorder %s14, 1
    %p100 = por %p98, %p99
    %p101 = scmp.ne.s32.totalorder %s90, %s91
    %p102 = scmp.eq.s32.totalorder %s14, 0
    %p103 = por %p101, %p102
    %p104 = scmp.ne.s32.totalorder %s90, %s91
    %p105 = scmp.eq.s32.totalorder %s15, 1
    %p106 = por %p104, %p105
    %p108 = scmp.ne.s32.totalorder %s91, %s107
    %p109 = scmp.eq.s32.totalorder %s15, 0
    %p110 = por %p108, %p109
    %p111 = scmp.le.s32.totalorder 1, %s9
    %p112 = scmp.lt.s32.totalorder %s9, 3
    %p113 = pnand %p111, %p112
    %p114 = pneg %p113
    // Predicated region
    $region9: #{vggish_transformer_forward.5} parent=5 // pred_check
      _
    $region10: #{vggish_transformer_forward.5} parent=5 // pred_check_branch
      %116 = sbr.rel (%p113) target = $region12
    $region11: #{vggish_transformer_forward.5} parent=5 // pred_region
      %s117 = ssub.s32 %s9, 1
      // Predicated region
      $region13: #{vggish_transformer_forward.5} parent=11 // pred_check
        %p118 = pneg %p56
      $region14: #{vggish_transformer_forward.5} parent=11 // pred_check_branch
        %120 = sbr.rel (%p118) target = $region16
      $region15: #{vggish_transformer_forward.5} parent=11 // pred_region
        _
      $region16: #{vggish_transformer_forward.5} parent=11 // pred_fallthru
        _
      // Predicated region
      $region17: #{vggish_transformer_forward.5} parent=11 // pred_check
        %p121 = pneg %p77
      $region18: #{vggish_transformer_forward.5} parent=11 // pred_check_branch
        %123 = sbr.rel (%p121) target = $region20
      $region19: #{vggish_transformer_forward.5} parent=11 // pred_region
        _
      $region20: #{vggish_transformer_forward.5} parent=11 // pred_fallthru
        _
    $region12: #{vggish_transformer_forward.5} parent=5 // pred_fallthru
      _
    %p124 = scmp.lt.s32.totalorder %s9, 2
    // Predicated region
    $region21: #{vggish_transformer_forward.5} parent=5 // pred_check
      %p125 = pneg %p124
    $region22: #{vggish_transformer_forward.5} parent=5 // pred_check_branch
      %127 = sbr.rel (%p125) target = $region24
    $region23: #{vggish_transformer_forward.5} parent=5 // pred_region
      // Predicated region
      $region25: #{vggish_transformer_forward.5} parent=23 // pred_check
        %p128 = pneg %p29
      $region26: #{vggish_transformer_forward.5} parent=23 // pred_check_branch
        %130 = sbr.rel (%p128) target = $region28
      $region27: #{vggish_transformer_forward.5} parent=23 // pred_region
        %s131 = smul.u32 8, %s9
        %p132 = scmp.lt.s32.totalorder %s131, 15
        %s133 = scalar_select %p132, %s131, 15
        %s134 = smul.addr %s133, 3
        %s135 = smul.addr %s134, 8
        %s136 = scalar_lea.vmem %s0, %s135
        %s137 = smul.u32 8, %s9
      $region28: #{vggish_transformer_forward.5} parent=23 // pred_fallthru
        _
    $region24: #{vggish_transformer_forward.5} parent=5 // pred_fallthru
      _
    %p138 = scmp.le.s32.totalorder 1, %s9
    %p139 = scmp.lt.s32.totalorder %s9, 3
    %p140 = pnand %p138, %p139
    %p141 = pneg %p140
    // Predicated region
    $region29: #{vggish_transformer_forward.5} parent=5 // pred_check
      _
    $region30: #{vggish_transformer_forward.5} parent=5 // pred_check_branch
      %143 = sbr.rel (%p140) target = $region32
    $region31: #{vggish_transformer_forward.5} parent=5 // pred_region
      %s144 = ssub.s32 %s9, 1
      %s145 = smul.u32 8, %s14
      %p146 = scmp.lt.s32.totalorder %s145, 15
      %s147 = scalar_select %p146, %s145, 15
      %s148 = smul.addr %s147, 3
      %s149 = smul.addr %s148, 8
      %s150 = scalar_lea.vmem %s0, %s149
      %p151 = pneg %p35
      %p152 = pneg %p32
      %p153 = pneg %p56
      %p154 = pneg %p53
      %p155 = pneg %p77
      %p156 = pneg %p74
      %p157 = pneg %p103
      %p158 = pneg %p100
      %s159 = smul.u32 16, %s14
      %p160 = scmp.lt.s32.totalorder %s159, 31
      %s161 = scalar_select %p160, %s159, 31
      %s162 = smul.addr %s161, 8
      %s163 = scalar_lea.vmem %s3, %s162
      %s164 = smul.u32 8, %s14
      %p165 = scmp.lt.s32.totalorder %s164, 15
      %s166 = scalar_select %p165, %s164, 15
      %s167 = smul.addr %s166, 3
      %s168 = smul.addr %s167, 8
      %s169 = scalar_lea.vmem %s0, %s168
      %s170 = smul.u32 8, %s14
      %s171 = smul.u32 16, %s14
      %p172 = scmp.lt.s32.totalorder %s171, 31
      %s173 = scalar_select %p172, %s171, 31
      %s174 = smul.addr %s173, 8
      %s175 = scalar_lea.vmem %s3, %s174
      %s176 = smul.u32 16, %s14
      %v178 = vld [vmem:[%s169] sm:$0xff]
      %v179 = vld [vmem:[%s169 + $0x8] sm:$0xff]
      %v180 = vld [vmem:[%s169 + $0x18] sm:$0xff]
      %v181 = vld [vmem:[%s169 + $0x20] sm:$0xff]
      %v182 = vld [vmem:[%s169 + $0x30] sm:$0xff]
      %v183 = vld [vmem:[%s169 + $0x38] sm:$0xff]
      %v184 = vld [vmem:[%s169 + $0x48] sm:$0xff]
      %v185 = vld [vmem:[%s169 + $0x50] sm:$0xff]
      %v186 = vld [vmem:[%s169 + $0x60] sm:$0xff]
      %v187 = vld [vmem:[%s169 + $0x68] sm:$0xff]
      %v188 = vld [vmem:[%s169 + $0x78] sm:$0xff]
      %v189 = vld [vmem:[%s169 + $0x80] sm:$0xff]
      %v190 = vld [vmem:[%s169 + $0x90] sm:$0xff]
      %v191 = vld [vmem:[%s169 + $0x98] sm:$0xff]
      %v192 = vld [vmem:[%s169 + $0xa8] sm:$0xff]
      %v193 = vld [vmem:[%s169 + $0xb0] sm:$0xff]
      %v194 = vld [vmem:[%s1] sm:$0xff]
      %v195 = vld [vmem:[%s1 + $0x8] sm:$0xff]
      %v196 = vld [vmem:[%s1 + $0x10] sm:$0x3]
      %v197 = vpack.c.bf16 %v179, %v178
      %v198 = vpack.c.bf16 %v181, %v180
      %v199 = vpack.c.bf16 %v183, %v182
      %v200 = vpack.c.bf16 %v185, %v184
      %v201 = vpack.c.bf16 %v187, %v186
      %v202 = vpack.c.bf16 %v189, %v188
      %v203 = vpack.c.bf16 %v191, %v190
      %v204 = vpack.c.bf16 %v193, %v192
      %v205 = vpack.c.bf16 %v195, %v194
      %v206 = vpack.c.bf16 %v196, %v196
      %v207 = vld [vmem:[%s169 + $0x1] sm:$0xff]
      %v208 = vld [vmem:[%s169 + $0x9] sm:$0xff]
      %v209 = vld [vmem:[%s169 + $0x19] sm:$0xff]
      %v210 = vld [vmem:[%s169 + $0x21] sm:$0xff]
      %v211 = vld [vmem:[%s169 + $0x31] sm:$0xff]
      %v212 = vld [vmem:[%s169 + $0x39] sm:$0xff]
      %v213 = vld [vmem:[%s169 + $0x49] sm:$0xff]
      %v214 = vld [vmem:[%s169 + $0x51] sm:$0xff]
      %v215 = vld [vmem:[%s169 + $0x61] sm:$0xff]
      %v216 = vld [vmem:[%s169 + $0x69] sm:$0xff]
      %v217 = vld [vmem:[%s169 + $0x79] sm:$0xff]
      %v218 = vld [vmem:[%s169 + $0x81] sm:$0xff]
      %v219 = vld [vmem:[%s169 + $0x91] sm:$0xff]
      %v220 = vld [vmem:[%s169 + $0x99] sm:$0xff]
      %v221 = vld [vmem:[%s169 + $0xa9] sm:$0xff]
      %v222 = vld [vmem:[%s169 + $0xb1] sm:$0xff]
      %s223 = scalar_lea.vmem %s1, 24
      %v224 = vld [vmem:[%s223] sm:$0xff]
      %v225 = vld [vmem:[%s223 + $0x8] sm:$0xff]
      %v226 = vld [vmem:[%s223 + $0x10] sm:$0x3]
      %v227 = vpack.c.bf16 %v208, %v207
      %v228 = vpack.c.bf16 %v210, %v209
      %v229 = vpack.c.bf16 %v212, %v211
      %v230 = vpack.c.bf16 %v214, %v213
      %v231 = vpack.c.bf16 %v216, %v215
      %v232 = vpack.c.bf16 %v218, %v217
      %v233 = vpack.c.bf16 %v220, %v219
      %v234 = vpack.c.bf16 %v222, %v221
      %v235 = vpack.c.bf16 %v225, %v224
      %v236 = vpack.c.bf16 %v226, %v226
      %vm237 = vcmask 146432
      %v239 = vsel %vm237, %v227, 0
      %v242 = vsel %vm237, %v228, 0
      %v245 = vsel %vm237, %v229, 0
      %v248 = vsel %vm237, %v230, 0
      %v251 = vsel %vm237, %v231, 0
      %v254 = vsel %vm237, %v232, 0
      %v257 = vsel %vm237, %v233, 0
      %v260 = vsel %vm237, %v234, 0
      %vm262 = vcmask 1040384
      %v264 = vsel %vm262, %v236, 0
      %266 = vmatprep.subr.bf16.mxu0 0
      %267 = vmatpush1.bf16.msra.mxu0 %v235
      %268 = vmatprep.subr.bf16.mxu0 0
      %269 = vmatpush1.bf16.msra.mxu0 %v264
      %270 = vmatprep.subr.bf16.mxu0 0
      %271 = vmatpush1.bf16.msra.mxu0 0
      %272 = vmatprep.subr.bf16.mxu0 0
      %273 = vmatpush1.bf16.msra.mxu0 0
      %274 = vmatprep.subr.bf16.mxu0 0
      %275 = vmatpush1.bf16.msra.mxu0 0
      %276 = vmatprep.subr.bf16.mxu0 0
      %277 = vmatpush1.bf16.msra.mxu0 0
      %278 = vmatprep.subr.bf16.mxu0 0
      %279 = vmatpush1.bf16.msra.mxu0 0
      %280 = vmatprep.subr.bf16.mxu0 0
      %281 = vmatpush1.bf16.msra.mxu0 0
      %282 = vmatprep.subr.bf16.mxu0 0
      %283 = vmatpush1.bf16.msra.mxu0 0
      %284 = vmatprep.subr.bf16.mxu0 0
      %285 = vmatpush1.bf16.msra.mxu0 0
      %286 = vmatprep.subr.bf16.mxu0 0
      %287 = vmatpush1.bf16.msra.mxu0 0
      %288 = vmatprep.subr.bf16.mxu0 0
      %289 = vmatpush1.bf16.msra.mxu0 0
      %290 = vmatprep.subr.bf16.mxu0 0
      %291 = vmatpush1.bf16.msra.mxu0 0
      %292 = vmatprep.subr.bf16.mxu0 0
      %293 = vmatpush1.bf16.msra.mxu0 0
      %294 = vmatprep.subr.bf16.mxu0 0
      %295 = vmatpush1.bf16.msra.mxu0 0
      %296 = vmatprep.subr.bf16.mxu0 0
      %297 = vmatpush1.bf16.msra.mxu0 0
      %298 = vmatprep.mubr.bf16.mxu0 0
      %299 = vmatmul.mubr.bf16.gmra.mrb[0].mxu0 %v239
      %v300 = vpop.f32.mrb[0].mxu0
      %v301 = vadd.f32 0.0, %v300
      %v302 = vpop.f32.mrb[0].mxu0
      %v303 = vpop.f32.mrb[0].mxu0
      %v304 = vadd.f32 0.0, %v303
      %v305 = vpop.f32.mrb[0].mxu0
      %306 = vmatprep.mubr.bf16.mxu0 0
      %307 = vmatmul.mubr.bf16.gmra.mrb[0].mxu0 %v242
      %v308 = vpop.f32.mrb[0].mxu0
      %v309 = vadd.f32 0.0, %v308
      %v310 = vpop.f32.mrb[0].mxu0
      %v311 = vpop.f32.mrb[0].mxu0
      %v312 = vadd.f32 0.0, %v311
      %v313 = vpop.f32.mrb[0].mxu0
      %314 = vmatprep.mubr.bf16.mxu0 0
      %315 = vmatmul.mubr.bf16.gmra.mrb[0].mxu0 %v245
      %v316 = vpop.f32.mrb[0].mxu0
      %v317 = vadd.f32 0.0, %v316
      %v318 = vpop.f32.mrb[0].mxu0
      %v319 = vpop.f32.mrb[0].mxu0
      %v320 = vadd.f32 0.0, %v319
      %v321 = vpop.f32.mrb[0].mxu0
      %322 = vmatprep.mubr.bf16.mxu0 0
      %323 = vmatmul.mubr.bf16.gmra.mrb[0].mxu0 %v248
      %v324 = vpop.f32.mrb[0].mxu0
      %v325 = vadd.f32 0.0, %v324
      %v326 = vpop.f32.mrb[0].mxu0
      %v327 = vpop.f32.mrb[0].mxu0
      %v328 = vadd.f32 0.0, %v327
      %v329 = vpop.f32.mrb[0].mxu0
      %330 = vmatprep.mubr.bf16.mxu0 0
      %331 = vmatmul.mubr.bf16.gmra.mrb[0].mxu0 %v251
      %v332 = vpop.f32.mrb[0].mxu0
      %v333 = vadd.f32 0.0, %v332
      %v334 = vpop.f32.mrb[0].mxu0
      %v335 = vpop.f32.mrb[0].mxu0
      %v336 = vadd.f32 0.0, %v335
      %v337 = vpop.f32.mrb[0].mxu0
      %338 = vmatprep.mubr.bf16.mxu0 0
      %339 = vmatmul.mubr.bf16.gmra.mrb[0].mxu0 %v254
      %v340 = vpop.f32.mrb[0].mxu0
      %v341 = vadd.f32 0.0, %v340
      %v342 = vpop.f32.mrb[0].mxu0
      %v343 = vpop.f32.mrb[0].mxu0
      %v344 = vadd.f32 0.0, %v343
      %v345 = vpop.f32.mrb[0].mxu0
      %346 = vmatprep.mubr.bf16.mxu0 0
      %347 = vmatmul.mubr.bf16.gmra.mrb[0].mxu0 %v257
      %v348 = vpop.f32.mrb[0].mxu0
      %v349 = vadd.f32 0.0, %v348
      %v350 = vpop.f32.mrb[0].mxu0
      %v351 = vpop.f32.mrb[0].mxu0
      %v352 = vadd.f32 0.0, %v351
      %v353 = vpop.f32.mrb[0].mxu0
      %354 = vmatprep.mubr.bf16.mxu0 0
      %355 = vmatmul.mubr.bf16.gmra.mrb[0].mxu0 %v260
      %v356 = vpop.f32.mrb[0].mxu0
      %v357 = vadd.f32 0.0, %v356
      %v358 = vpop.f32.mrb[0].mxu0
      %v359 = vpop.f32.mrb[0].mxu0
      %v360 = vadd.f32 0.0, %v359
      %v361 = vpop.f32.mrb[0].mxu0
      %362 = vdwg.mxu0
      %v364 = vsel %vm237, %v197, 0
      %v367 = vsel %vm237, %v198, 0
      %v370 = vsel %vm237, %v199, 0
      %v373 = vsel %vm237, %v200, 0
      %v376 = vsel %vm237, %v201, 0
      %v379 = vsel %vm237, %v202, 0
      %v382 = vsel %vm237, %v203, 0
      %v385 = vsel %vm237, %v204, 0
      %v388 = vsel %vm262, %v206, 0
      %390 = vmatprep.subr.bf16.mxu0 0
      %391 = vmatpush1.bf16.msra.mxu0 %v205
      %392 = vmatprep.subr.bf16.mxu0 0
      %393 = vmatpush1.bf16.msra.mxu0 %v388
      %394 = vmatprep.subr.bf16.mxu0 0
      %395 = vmatpush1.bf16.msra.mxu0 0
      %396 = vmatprep.subr.bf16.mxu0 0
      %397 = vmatpush1.bf16.msra.mxu0 0
      %398 = vmatprep.subr.bf16.mxu0 0
      %399 = vmatpush1.bf16.msra.mxu0 0
      %400 = vmatprep.subr.bf16.mxu0 0
      %401 = vmatpush1.bf16.msra.mxu0 0
      %402 = vmatprep.subr.bf16.mxu0 0
      %403 = vmatpush1.bf16.msra.mxu0 0
      %404 = vmatprep.subr.bf16.mxu0 0
      %405 = vmatpush1.bf16.msra.mxu0 0
      %406 = vmatprep.subr.bf16.mxu0 0
      %407 = vmatpush1.bf16.msra.mxu0 0
      %408 = vmatprep.subr.bf16.mxu0 0
      %409 = vmatpush1.bf16.msra.mxu0 0
      %410 = vmatprep.subr.bf16.mxu0 0
      %411 = vmatpush1.bf16.msra.mxu0 0
      %412 = vmatprep.subr.bf16.mxu0 0
      %413 = vmatpush1.bf16.msra.mxu0 0
      %414 = vmatprep.subr.bf16.mxu0 0
      %415 = vmatpush1.bf16.msra.mxu0 0
      %416 = vmatprep.subr.bf16.mxu0 0
      %417 = vmatpush1.bf16.msra.mxu0 0
      %418 = vmatprep.subr.bf16.mxu0 0
      %419 = vmatpush1.bf16.msra.mxu0 0
      %420 = vmatprep.subr.bf16.mxu0 0
      %421 = vmatpush1.bf16.msra.mxu0 0
      %422 = vmatprep.mubr.bf16.mxu0 0
      %423 = vmatmul.mubr.bf16.gmra.mrb[0].mxu0 %v364
      %v424 = vpop.f32.mrb[0].mxu0
      %v425 = vadd.f32 %v301, %v424
      %v426 = vpop.f32.mrb[0].mxu0
      %v427 = vpop.f32.mrb[0].mxu0
      %v428 = vadd.f32 %v304, %v427
      %v429 = vpop.f32.mrb[0].mxu0
      %430 = vmatprep.mubr.bf16.mxu0 0
      %431 = vmatmul.mubr.bf16.gmra.mrb[0].mxu0 %v367
      %v432 = vpop.f32.mrb[0].mxu0
      %v433 = vadd.f32 %v309, %v432
      %v434 = vpop.f32.mrb[0].mxu0
      %v435 = vpop.f32.mrb[0].mxu0
      %v436 = vadd.f32 %v312, %v435
      %v437 = vpop.f32.mrb[0].mxu0
      %438 = vmatprep.mubr.bf16.mxu0 0
      %439 = vmatmul.mubr.bf16.gmra.mrb[0].mxu0 %v370
      %v440 = vpop.f32.mrb[0].mxu0
      %v441 = vadd.f32 %v317, %v440
      %v442 = vpop.f32.mrb[0].mxu0
      %v443 = vpop.f32.mrb[0].mxu0
      %v444 = vadd.f32 %v320, %v443
      %v445 = vpop.f32.mrb[0].mxu0
      %446 = vmatprep.mubr.bf16.mxu0 0
      %447 = vmatmul.mubr.bf16.gmra.mrb[0].mxu0 %v373
      %v448 = vpop.f32.mrb[0].mxu0
      %v449 = vadd.f32 %v325, %v448
      %v450 = vpop.f32.mrb[0].mxu0
      %v451 = vpop.f32.mrb[0].mxu0
      %v452 = vadd.f32 %v328, %v451
      %v453 = vpop.f32.mrb[0].mxu0
      %454 = vmatprep.mubr.bf16.mxu0 0
      %455 = vmatmul.mubr.bf16.gmra.mrb[0].mxu0 %v376
      %v456 = vpop.f32.mrb[0].mxu0
      %v457 = vadd.f32 %v333, %v456
      %v458 = vpop.f32.mrb[0].mxu0
      %v459 = vpop.f32.mrb[0].mxu0
      %v460 = vadd.f32 %v336, %v459
      %v461 = vpop.f32.mrb[0].mxu0
      %462 = vmatprep.mubr.bf16.mxu0 0
      %463 = vmatmul.mubr.bf16.gmra.mrb[0].mxu0 %v379
      %v464 = vpop.f32.mrb[0].mxu0
      %v465 = vadd.f32 %v341, %v464
      %v466 = vpop.f32.mrb[0].mxu0
      %v467 = vpop.f32.mrb[0].mxu0
      %v468 = vadd.f32 %v344, %v467
      %v469 = vpop.f32.mrb[0].mxu0
      %470 = vmatprep.mubr.bf16.mxu0 0
      %471 = vmatmul.mubr.bf16.gmra.mrb[0].mxu0 %v382
      %v472 = vpop.f32.mrb[0].mxu0
      %v473 = vadd.f32 %v349, %v472
      %v474 = vpop.f32.mrb[0].mxu0
      %v475 = vpop.f32.mrb[0].mxu0
      %v476 = vadd.f32 %v352, %v475
      %v477 = vpop.f32.mrb[0].mxu0
      %478 = vmatprep.mubr.bf16.mxu0 0
      %479 = vmatmul.mubr.bf16.gmra.mrb[0].mxu0 %v385
      %v480 = vpop.f32.mrb[0].mxu0
      %v481 = vadd.f32 %v357, %v480
      %v482 = vpop.f32.mrb[0].mxu0
      %v483 = vpop.f32.mrb[0].mxu0
      %v484 = vadd.f32 %v360, %v483
      %v485 = vpop.f32.mrb[0].mxu0
      %486 = vdwg.mxu0
      %v487 = vld [vmem:[%s169 + $0x2] sm:$0xff]
      %v488 = vld [vmem:[%s169 + $0xa] sm:$0xff]
      %v489 = vld [vmem:[%s169 + $0x1a] sm:$0xff]
      %v490 = vld [vmem:[%s169 + $0x22] sm:$0xff]
      %v491 = vld [vmem:[%s169 + $0x32] sm:$0xff]
      %v492 = vld [vmem:[%s169 + $0x3a] sm:$0xff]
      %v493 = vld [vmem:[%s169 + $0x4a] sm:$0xff]
      %v494 = vld [vmem:[%s169 + $0x52] sm:$0xff]
      %v495 = vld [vmem:[%s169 + $0x62] sm:$0xff]
      %v496 = vld [vmem:[%s169 + $0x6a] sm:$0xff]
      %v497 = vld [vmem:[%s169 + $0x7a] sm:$0xff]
      %v498 = vld [vmem:[%s169 + $0x82] sm:$0xff]
      %v499 = vld [vmem:[%s169 + $0x92] sm:$0xff]
      %v500 = vld [vmem:[%s169 + $0x9a] sm:$0xff]
      %v501 = vld [vmem:[%s169 + $0xaa] sm:$0xff]
      %v502 = vld [vmem:[%s169 + $0xb2] sm:$0xff]
      %s503 = scalar_lea.vmem %s1, 48
      %v504 = vld [vmem:[%s503] sm:$0xff]
      %v505 = vld [vmem:[%s503 + $0x8] sm:$0xff]
      %v506 = vld [vmem:[%s503 + $0x10] sm:$0x3]
      %v507 = vpack.c.bf16 %v488, %v487
      %v508 = vpack.c.bf16 %v490, %v489
      %v509 = vpack.c.bf16 %v492, %v491
      %v510 = vpack.c.bf16 %v494, %v493
      %v511 = vpack.c.bf16 %v496, %v495
      %v512 = vpack.c.bf16 %v498, %v497
      %v513 = vpack.c.bf16 %v500, %v499
      %v514 = vpack.c.bf16 %v502, %v501
      %v515 = vpack.c.bf16 %v505, %v504
      %v516 = vpack.c.bf16 %v506, %v506
      %v518 = vsel %vm237, %v507, 0
      %v521 = vsel %vm237, %v508, 0
      %v524 = vsel %vm237, %v509, 0
      %v527 = vsel %vm237, %v510, 0
      %v530 = vsel %vm237, %v511, 0
      %v533 = vsel %vm237, %v512, 0
      %v536 = vsel %vm237, %v513, 0
      %v539 = vsel %vm237, %v514, 0
      %v542 = vsel %vm262, %v516, 0
      %544 = vmatprep.subr.bf16.mxu0 0
      %545 = vmatpush1.bf16.msra.mxu0 %v515
      %546 = vmatprep.subr.bf16.mxu0 0
      %547 = vmatpush1.bf16.msra.mxu0 %v542
      %548 = vmatprep.subr.bf16.mxu0 0
      %549 = vmatpush1.bf16.msra.mxu0 0
      %550 = vmatprep.subr.bf16.mxu0 0
      %551 = vmatpush1.bf16.msra.mxu0 0
      %552 = vmatprep.subr.bf16.mxu0 0
      %553 = vmatpush1.bf16.msra.mxu0 0
      %554 = vmatprep.subr.bf16.mxu0 0
      %555 = vmatpush1.bf16.msra.mxu0 0
      %556 = vmatprep.subr.bf16.mxu0 0
      %557 = vmatpush1.bf16.msra.mxu0 0
      %558 = vmatprep.subr.bf16.mxu0 0
      %559 = vmatpush1.bf16.msra.mxu0 0
      %560 = vmatprep.subr.bf16.mxu0 0
      %561 = vmatpush1.bf16.msra.mxu0 0
      %562 = vmatprep.subr.bf16.mxu0 0
      %563 = vmatpush1.bf16.msra.mxu0 0
      %564 = vmatprep.subr.bf16.mxu0 0
      %565 = vmatpush1.bf16.msra.mxu0 0
      %566 = vmatprep.subr.bf16.mxu0 0
      %567 = vmatpush1.bf16.msra.mxu0 0
      %568 = vmatprep.subr.bf16.mxu0 0
      %569 = vmatpush1.bf16.msra.mxu0 0
      %570 = vmatprep.subr.bf16.mxu0 0
      %571 = vmatpush1.bf16.msra.mxu0 0
      %572 = vmatprep.subr.bf16.mxu0 0
      %573 = vmatpush1.bf16.msra.mxu0 0
      %574 = vmatprep.subr.bf16.mxu0 0
      %575 = vmatpush1.bf16.msra.mxu0 0
      %576 = vmatprep.mubr.bf16.mxu0 0
      %577 = vmatmul.mubr.bf16.gmra.mrb[0].mxu0 %v518
      %v578 = vpop.f32.mrb[0].mxu0
      %v579 = vadd.f32 0.0, %v578
      %v580 = vpop.f32.mrb[0].mxu0
      %v581 = vpop.f32.mrb[0].mxu0
      %v582 = vadd.f32 0.0, %v581
      %v583 = vpop.f32.mrb[0].mxu0
      %584 = vmatprep.mubr.bf16.mxu0 0
      %585 = vmatmul.mubr.bf16.gmra.mrb[0].mxu0 %v521
      %v586 = vpop.f32.mrb[0].mxu0
      %v587 = vadd.f32 0.0, %v586
      %v588 = vpop.f32.mrb[0].mxu0
      %v589 = vpop.f32.mrb[0].mxu0
      %v590 = vadd.f32 0.0, %v589
      %v591 = vpop.f32.mrb[0].mxu0
      %592 = vmatprep.mubr.bf16.mxu0 0
      %593 = vmatmul.mubr.bf16.gmra.mrb[0].mxu0 %v524
      %v594 = vpop.f32.mrb[0].mxu0
      %v595 = vadd.f32 0.0, %v594
      %v596 = vpop.f32.mrb[0].mxu0
      %v597 = vpop.f32.mrb[0].mxu0
      %v598 = vadd.f32 0.0, %v597
      %v599 = vpop.f32.mrb[0].mxu0
      %600 = vmatprep.mubr.bf16.mxu0 0
      %601 = vmatmul.mubr.bf16.gmra.mrb[0].mxu0 %v527
      %v602 = vpop.f32.mrb[0].mxu0
      %v603 = vadd.f32 0.0, %v602
      %v604 = vpop.f32.mrb[0].mxu0
      %v605 = vpop.f32.mrb[0].mxu0
      %v606 = vadd.f32 0.0, %v605
      %v607 = vpop.f32.mrb[0].mxu0
      %608 = vmatprep.mubr.bf16.mxu0 0
      %609 = vmatmul.mubr.bf16.gmra.mrb[0].mxu0 %v530
      %v610 = vpop.f32.mrb[0].mxu0
      %v611 = vadd.f32 0.0, %v610
      %v612 = vpop.f32.mrb[0].mxu0
      %v613 = vpop.f32.mrb[0].mxu0
      %v614 = vadd.f32 0.0, %v613
      %v615 = vpop.f32.mrb[0].mxu0
      %616 = vmatprep.mubr.bf16.mxu0 0
      %617 = vmatmul.mubr.bf16.gmra.mrb[0].mxu0 %v533
      %v618 = vpop.f32.mrb[0].mxu0
      %v619 = vadd.f32 0.0, %v618
      %v620 = vpop.f32.mrb[0].mxu0
      %v621 = vpop.f32.mrb[0].mxu0
      %v622 = vadd.f32 0.0, %v621
      %v623 = vpop.f32.mrb[0].mxu0
      %624 = vmatprep.mubr.bf16.mxu0 0
      %625 = vmatmul.mubr.bf16.gmra.mrb[0].mxu0 %v536
      %v626 = vpop.f32.mrb[0].mxu0
      %v627 = vadd.f32 0.0, %v626
      %v628 = vpop.f32.mrb[0].mxu0
      %v629 = vpop.f32.mrb[0].mxu0
      %v630 = vadd.f32 0.0, %v629
      %v631 = vpop.f32.mrb[0].mxu0
      %632 = vmatprep.mubr.bf16.mxu0 0
      %633 = vmatmul.mubr.bf16.gmra.mrb[0].mxu0 %v539
      %v634 = vpop.f32.mrb[0].mxu0
      %v635 = vadd.f32 0.0, %v634
      %v636 = vpop.f32.mrb[0].mxu0
      %v637 = vpop.f32.mrb[0].mxu0
      %v638 = vadd.f32 0.0, %v637
      %v639 = vpop.f32.mrb[0].mxu0
      %640 = vdwg.mxu0
      %v641 = vadd.f32 %v425, %v579
      %v642 = vadd.f32 %v428, %v582
      %v643 = vadd.f32 %v433, %v587
      %v644 = vadd.f32 %v436, %v590
      %v645 = vadd.f32 %v441, %v595
      %v646 = vadd.f32 %v444, %v598
      %v647 = vadd.f32 %v449, %v603
      %v648 = vadd.f32 %v452, %v606
      %v649 = vadd.f32 %v457, %v611
      %v650 = vadd.f32 %v460, %v614
      %v651 = vadd.f32 %v465, %v619
      %v652 = vadd.f32 %v468, %v622
      %v653 = vadd.f32 %v473, %v627
      %v654 = vadd.f32 %v476, %v630
      %v655 = vadd.f32 %v481, %v635
      %v656 = vadd.f32 %v484, %v638
      %v657 = vld [vmem:[%s2] sm:$0x1]
      %v659 = vlaneseq
      %v660 = vshrl.u32 %v659, 7
      %v661 = vsub.s32 0, %v660
      %v662 = vrot.slane %v657, %v661
      %v664 = vadd.f32 %v641, %v662
      %v665 = vadd.f32 %v642, %v662
      %v666 = vadd.f32 %v643, %v662
      %v667 = vadd.f32 %v644, %v662
      %v668 = vadd.f32 %v645, %v662
      %v669 = vadd.f32 %v646, %v662
      %v670 = vadd.f32 %v647, %v662
      %v671 = vadd.f32 %v648, %v662
      %v672 = vadd.f32 %v649, %v662
      %v673 = vadd.f32 %v650, %v662
      %v674 = vadd.f32 %v651, %v662
      %v675 = vadd.f32 %v652, %v662
      %v676 = vadd.f32 %v653, %v662
      %v677 = vadd.f32 %v654, %v662
      %v678 = vadd.f32 %v655, %v662
      %v679 = vadd.f32 %v656, %v662
      %v680 = vmax.f32 %v664, 0.0
      %v681 = vmax.f32 %v665, 0.0
      %v682 = vmax.f32 %v666, 0.0
      %v683 = vmax.f32 %v667, 0.0
      %v684 = vmax.f32 %v668, 0.0
      %v685 = vmax.f32 %v669, 0.0
      %v686 = vmax.f32 %v670, 0.0
      %v687 = vmax.f32 %v671, 0.0
      %v688 = vmax.f32 %v672, 0.0
      %v689 = vmax.f32 %v673, 0.0
      %v690 = vmax.f32 %v674, 0.0
      %v691 = vmax.f32 %v675, 0.0
      %v692 = vmax.f32 %v676, 0.0
      %v693 = vmax.f32 %v677, 0.0
      %v694 = vmax.f32 %v678, 0.0
      %v695 = vmax.f32 %v679, 0.0
      %696 = vst [vmem:[%s175] sm:$0xff] %v680
      %697 = vst [vmem:[%s175 + $0x8] sm:$0xff] %v681
      %698 = vst [vmem:[%s175 + $0x10] sm:$0xff] %v682
      %699 = vst [vmem:[%s175 + $0x18] sm:$0xff] %v683
      %700 = vst [vmem:[%s175 + $0x20] sm:$0xff] %v684
      %701 = vst [vmem:[%s175 + $0x28] sm:$0xff] %v685
      %702 = vst [vmem:[%s175 + $0x30] sm:$0xff] %v686
      %703 = vst [vmem:[%s175 + $0x38] sm:$0xff] %v687
      %704 = vst [vmem:[%s175 + $0x40] sm:$0xff] %v688
      %705 = vst [vmem:[%s175 + $0x48] sm:$0xff] %v689
      %706 = vst [vmem:[%s175 + $0x50] sm:$0xff] %v690
      %707 = vst [vmem:[%s175 + $0x58] sm:$0xff] %v691
      %708 = vst [vmem:[%s175 + $0x60] sm:$0xff] %v692
      %709 = vst [vmem:[%s175 + $0x68] sm:$0xff] %v693
      %710 = vst [vmem:[%s175 + $0x70] sm:$0xff] %v694
      %711 = vst [vmem:[%s175 + $0x78] sm:$0xff] %v695
      %s712 = smul.u32 16, %s14
      %p713 = scmp.lt.s32.totalorder %s712, 31
      %s714 = scalar_select %p713, %s712, 31
      %s715 = smul.addr %s714, 8
      %s716 = scalar_lea.vmem %s3, %s715
      // Predicated region
      $region33: #{vggish_transformer_forward.5} parent=31 // pred_check
        %p717 = pneg %p100
      $region34: #{vggish_transformer_forward.5} parent=31 // pred_check_branch
        %719 = sbr.rel (%p717) target = $region36
      $region35: #{vggish_transformer_forward.5} parent=31 // pred_region
        %s720 = smul.u32 16, %s14
      $region36: #{vggish_transformer_forward.5} parent=31 // pred_fallthru
        _
    $region32: #{vggish_transformer_forward.5} parent=5 // pred_fallthru
      _
    %p721 = scmp.le.s32.totalorder 2, %s9
    // Predicated region
    $region37: #{vggish_transformer_forward.5} parent=5 // pred_check
      %p722 = pneg %p721
    $region38: #{vggish_transformer_forward.5} parent=5 // pred_check_branch
      %724 = sbr.rel (%p722) target = $region40
    $region39: #{vggish_transformer_forward.5} parent=5 // pred_region
      %s725 = ssub.s32 %s9, 2
      // Predicated region
      $region41: #{vggish_transformer_forward.5} parent=39 // pred_check
        %p726 = pneg %p106
      $region42: #{vggish_transformer_forward.5} parent=39 // pred_check_branch
        %728 = sbr.rel (%p726) target = $region44
      $region43: #{vggish_transformer_forward.5} parent=39 // pred_region
        %s729 = smul.u32 16, %s15
        %p730 = scmp.lt.s32.totalorder %s729, 31
        %s731 = scalar_select %p730, %s729, 31
        %s732 = smul.addr %s731, 8
        %s733 = scalar_lea.vmem %s3, %s732
      $region44: #{vggish_transformer_forward.5} parent=39 // pred_fallthru
        _
    $region40: #{vggish_transformer_forward.5} parent=5 // pred_fallthru
      _
  $region6: #{vggish_transformer_forward.5} parent=0 // loop_footer
    %s13 = sadd.s32 1, %s9
  $region7: #{vggish_transformer_forward.5} parent=0 // loop_footer_branch
    %8 = sbr.rel target = $region3
  $region8: #{vggish_transformer_forward.5} parent=0 // loop_exit
    _

// kernel: tile.18
$region0: #{tile.18}
  #allocation2 [shape = 's32[1]{0}', space=sflag, size = 0x4, scoped, tag = 'scoped memory for tile.18']
  %s0 = inlined_call_operand.hbm [shape: f32[16], index: 0, kind: input, shape index: {}]
  %s1 = inlined_call_operand.vmem [shape: f32[8,16], index: 1, kind: output, shape index: {}]
  $region1: #{tile.18} parent=0
    #allocation0 [shape = 'u8[512]{0}', space=vmem, size = 0x400, scoped, tag = 'operand span for operand 0']
    #allocation1 [shape = 's32[1]{0}', space=sflag, size = 0x4, scoped, tag = 'scoped memory for tile.18']
    %2 = vsyncpa [#allocation1], 0
    // Predicated region
    $region2: #{tile.18} parent=1 // pred_check
      _
    $region3: #{tile.18} parent=1 // pred_check_branch
      %4 = sbr.rel (0) target = $region5
    $region4: #{tile.18} parent=1 // pred_region
      %s6 = ssub.s32 16, 16
      %7 = vsyncadd [#allocation1], %s6
      %s9 = sshll.u32 [#allocation0], 4
      %s10 = int_to_ptr.vmem [resolvable:$true] %s9
      %12 = dma.hbm_to_vmem [thread:$0]  %s0, 16, %s10, [#allocation1]
    $region5: #{tile.18} parent=1 // pred_fallthru
      _
    // Predicated region
    $region6: #{tile.18} parent=1 // pred_check
      _
    $region7: #{tile.18} parent=1 // pred_check_branch
      %14 = sbr.rel (0) target = $region9
    $region8: #{tile.18} parent=1 // pred_region
      %15 = dma.done [#allocation1], 16
    $region9: #{tile.18} parent=1 // pred_fallthru
      _
    %v16 = vld [vmem:[#allocation0] ss:$0 sm:$0xff]
    %17 = vst [vmem:[%s1] sm:$0xff] %v16
    %18 = vsyncpa [#allocation1], 1

// kernel: tile.19
$region0: #{tile.19}
  %s0 = inlined_call_operand.vmem [shape: f32[8,16], index: 0, kind: input, shape index: {}]
  %s1 = inlined_call_operand.vmem [shape: f32[1,128], index: 1, kind: output, shape index: {}]
  $region1: #{tile.19} parent=0
    #allocation0 [shape = 'u8[4096]{0}', space=vmem, size = 0x1000, scoped, tag = 'scoped mem for output reshape']
    %v2 = vld [vmem:[%s0] sm:$0x1]
    %vm3 = vcmask 130048
    %4 = vst.msk [vmem:[#allocation0] sm:$0x1] %vm3, %v2
    %s5 = scalar_lea.vmem %s0, 7
    %v6 = vld [vmem:[%s5] sm:$0x1]
    %7 = vrot.lane.b32.xlu0 %v6, 112
    %v8 = vpop.permute.xlu0 %7
    %vm9 = vcmask 1048448
    %10 = vst.msk [vmem:[#allocation0] sm:$0x1] %vm9, %v8
    %s11 = scalar_lea.vmem %s0, 6
    %v12 = vld [vmem:[%s11] sm:$0x1]
    %13 = vrot.lane.b32.xlu0 %v12, 96
    %v14 = vpop.permute.xlu0 %13
    %vm15 = vcmask 917248
    %16 = vst.msk [vmem:[#allocation0] sm:$0x1] %vm15, %v14
    %s17 = scalar_lea.vmem %s0, 5
    %v18 = vld [vmem:[%s17] sm:$0x1]
    %19 = vrot.lane.b32.xlu0 %v18, 80
    %v20 = vpop.permute.xlu0 %19
    %vm21 = vcmask 786048
    %22 = vst.msk [vmem:[#allocation0] sm:$0x1] %vm21, %v20
    %s23 = scalar_lea.vmem %s0, 4
    %v24 = vld [vmem:[%s23] sm:$0x1]
    %25 = vrot.lane.b32.xlu0 %v24, 64
    %v26 = vpop.permute.xlu0 %25
    %vm27 = vcmask 654848
    %28 = vst.msk [vmem:[#allocation0] sm:$0x1] %vm27, %v26
    %s29 = scalar_lea.vmem %s0, 3
    %v30 = vld [vmem:[%s29] sm:$0x1]
    %31 = vrot.lane.b32.xlu0 %v30, 48
    %v32 = vpop.permute.xlu0 %31
    %vm33 = vcmask 523648
    %34 = vst.msk [vmem:[#allocation0] sm:$0x1] %vm33, %v32
    %s35 = scalar_lea.vmem %s0, 2
    %v36 = vld [vmem:[%s35] sm:$0x1]
    %37 = vrot.lane.b32.xlu0 %v36, 32
    %v38 = vpop.permute.xlu0 %37
    %vm39 = vcmask 392448
    %40 = vst.msk [vmem:[#allocation0] sm:$0x1] %vm39, %v38
    %s41 = scalar_lea.vmem %s0, 1
    %v42 = vld [vmem:[%s41] sm:$0x1]
    %43 = vrot.lane.b32.xlu0 %v42, 16
    %v44 = vpop.permute.xlu0 %43
    %vm45 = vcmask 261248
    %46 = vst.msk [vmem:[#allocation0] sm:$0x1] %vm45, %v44
    %s48 = sshllo.u32 0, 1
    %v50 = vld [vmem:[#allocation0] sm:%s48]
    %s51 = sshllo.u32 0, 1
    %52 = vst [vmem:[%s1] sm:%s51] %v50

// kernel: vggish_transformer_forward.6
$region0: #{vggish_transformer_forward.6}
  #allocation0 [shape = 'u32[]', space=smem, size = 0x4, offset = 0x4, fixed_abs, tag = 'smem constant byte address 0x4 - core index']
  #allocation1 [shape = 'u32[144,128]{1,0:T(1,128)}', space=vmem, size = 0x12000, scoped, tag = 'internal scratch']
  %s0 = inlined_call_operand.vmem [shape: f32[16,10,80], index: 0, kind: input, shape index: {}]
  %s1 = inlined_call_operand.vmem [shape: f32[3,80,128], index: 1, kind: input, shape index: {}]
  %s2 = inlined_call_operand.vmem [shape: f32[1,128], index: 2, kind: input, shape index: {}]
  %s3 = inlined_call_operand.vmem [shape: f32[128,128], index: 3, kind: output, shape index: {}]
  %s4 = sld [smem:[#allocation0]]
  $region45: #{vggish_transformer_forward.6} parent=0
    _
  %s6 = ssub.s32 1, %s4
  %s7 = scalar_select 0, %s6, %s4
  loop: start=0, step=1, limit=4
  $region2: #{vggish_transformer_forward.6} parent=0 // loop_pre_header
    _
  $region3: #{vggish_transformer_forward.6} parent=0 // loop_header
    %s9 = sphi 0, %s13
    %p10 = scmp.ge.s32.totalorder %s9, 4
    %s19 = sphi 0, %s21
    %s22 = sphi 0, %s19
    %s23 = sphi 0, %s22
    %s39 = sphi 0, %s23
    %s43 = sphi 0, %s43
    %s45 = sphi 0, %s43
    %s46 = sphi 0, %s45
    %s60 = sphi 0, %s46
    %s64 = sphi 0, %s64
    %s66 = sphi 0, %s64
    %s67 = sphi 0, %s66
    %s81 = sphi 0, %s67
    %s87 = sphi 0, %s89
    %s90 = sphi 0, %s87
    %s91 = sphi 0, %s90
    %s107 = sphi 0, %s91
  $region4: #{vggish_transformer_forward.6} parent=0 // loop_header_branch
    %12 = sbr.rel (%p10) target = $region8
  $region5: #{vggish_transformer_forward.6} parent=0 // loop_body
    %s14 = ssub.s32 %s9, 1
    %s15 = ssub.s32 %s9, 2
    %s16 = sadd.s32 %s9, 1
    %s17 = ssub.s32 %s9, %s16
    %p18 = scmp.eq.s32.totalorder %s17, 0
    %s20 = sadd.s32 %s19, 1
    %s21 = scalar_select %p18, %s19, %s20
    %p24 = pneg %p18
    %p25 = scmp.eq.s32.totalorder %s9, 1
    %p26 = por %p24, %p25
    %p27 = scmp.ne.s32.totalorder %s19, %s22
    %p28 = scmp.eq.s32.totalorder %s9, 0
    %p29 = por %p27, %p28
    %p30 = scmp.ne.s32.totalorder %s19, %s22
    %p31 = scmp.eq.s32.totalorder %s14, 1
    %p32 = por %p30, %p31
    %p33 = scmp.ne.s32.totalorder %s22, %s23
    %p34 = scmp.eq.s32.totalorder %s14, 0
    %p35 = por %p33, %p34
    %p36 = scmp.ne.s32.totalorder %s22, %s23
    %p37 = scmp.eq.s32.totalorder %s15, 1
    %p38 = por %p36, %p37
    %p40 = scmp.ne.s32.totalorder %s23, %s39
    %p41 = scmp.eq.s32.totalorder %s15, 0
    %p42 = por %p40, %p41
    %s44 = sadd.s32 %s43, 1
    %p47 = scmp.eq.s32.totalorder %s9, 1
    %p48 = scmp.ne.s32.totalorder %s43, %s45
    %p49 = scmp.eq.s32.totalorder %s9, 0
    %p50 = por %p48, %p49
    %p51 = scmp.ne.s32.totalorder %s43, %s45
    %p52 = scmp.eq.s32.totalorder %s14, 1
    %p53 = por %p51, %p52
    %p54 = scmp.ne.s32.totalorder %s45, %s46
    %p55 = scmp.eq.s32.totalorder %s14, 0
    %p56 = por %p54, %p55
    %p57 = scmp.ne.s32.totalorder %s45, %s46
    %p58 = scmp.eq.s32.totalorder %s15, 1
    %p59 = por %p57, %p58
    %p61 = scmp.ne.s32.totalorder %s46, %s60
    %p62 = scmp.eq.s32.totalorder %s15, 0
    %p63 = por %p61, %p62
    %s65 = sadd.s32 %s64, 1
    %p68 = scmp.eq.s32.totalorder %s9, 1
    %p69 = scmp.ne.s32.totalorder %s64, %s66
    %p70 = scmp.eq.s32.totalorder %s9, 0
    %p71 = por %p69, %p70
    %p72 = scmp.ne.s32.totalorder %s64, %s66
    %p73 = scmp.eq.s32.totalorder %s14, 1
    %p74 = por %p72, %p73
    %p75 = scmp.ne.s32.totalorder %s66, %s67
    %p76 = scmp.eq.s32.totalorder %s14, 0
    %p77 = por %p75, %p76
    %p78 = scmp.ne.s32.totalorder %s66, %s67
    %p79 = scmp.eq.s32.totalorder %s15, 1
    %p80 = por %p78, %p79
    %p82 = scmp.ne.s32.totalorder %s67, %s81
    %p83 = scmp.eq.s32.totalorder %s15, 0
    %p84 = por %p82, %p83
    %s85 = ssub.s32 %s9, %s16
    %p86 = scmp.eq.s32.totalorder %s85, 0
    %s88 = sadd.s32 %s87, 1
    %s89 = scalar_select %p86, %s87, %s88
    %p92 = pneg %p86
    %p93 = scmp.eq.s32.totalorder %s9, 1
    %p94 = por %p92, %p93
    %p95 = scmp.ne.s32.totalorder %s87, %s90
    %p96 = scmp.eq.s32.totalorder %s9, 0
    %p97 = por %p95, %p96
    %p98 = scmp.ne.s32.totalorder %s87, %s90
    %p99 = scmp.eq.s32.totalorder %s14, 1
    %p100 = por %p98, %p99
    %p101 = scmp.ne.s32.totalorder %s90, %s91
    %p102 = scmp.eq.s32.totalorder %s14, 0
    %p103 = por %p101, %p102
    %p104 = scmp.ne.s32.totalorder %s90, %s91
    %p105 = scmp.eq.s32.totalorder %s15, 1
    %p106 = por %p104, %p105
    %p108 = scmp.ne.s32.totalorder %s91, %s107
    %p109 = scmp.eq.s32.totalorder %s15, 0
    %p110 = por %p108, %p109
    %p111 = scmp.le.s32.totalorder 1, %s9
    %p112 = scmp.lt.s32.totalorder %s9, 3
    %p113 = pnand %p111, %p112
    %p114 = pneg %p113
    // Predicated region
    $region9: #{vggish_transformer_forward.6} parent=5 // pred_check
      _
    $region10: #{vggish_transformer_forward.6} parent=5 // pred_check_branch
      %116 = sbr.rel (%p113) target = $region12
    $region11: #{vggish_transformer_forward.6} parent=5 // pred_region
      %s117 = ssub.s32 %s9, 1
      // Predicated region
      $region13: #{vggish_transformer_forward.6} parent=11 // pred_check
        %p118 = pneg %p56
      $region14: #{vggish_transformer_forward.6} parent=11 // pred_check_branch
        %120 = sbr.rel (%p118) target = $region16
      $region15: #{vggish_transformer_forward.6} parent=11 // pred_region
        _
      $region16: #{vggish_transformer_forward.6} parent=11 // pred_fallthru
        _
      // Predicated region
      $region17: #{vggish_transformer_forward.6} parent=11 // pred_check
        %p121 = pneg %p77
      $region18: #{vggish_transformer_forward.6} parent=11 // pred_check_branch
        %123 = sbr.rel (%p121) target = $region20
      $region19: #{vggish_transformer_forward.6} parent=11 // pred_region
        _
      $region20: #{vggish_transformer_forward.6} parent=11 // pred_fallthru
        _
    $region12: #{vggish_transformer_forward.6} parent=5 // pred_fallthru
      _
    %p124 = scmp.lt.s32.totalorder %s9, 2
    // Predicated region
    $region21: #{vggish_transformer_forward.6} parent=5 // pred_check
      %p125 = pneg %p124
    $region22: #{vggish_transformer_forward.6} parent=5 // pred_check_branch
      %127 = sbr.rel (%p125) target = $region24
    $region23: #{vggish_transformer_forward.6} parent=5 // pred_region
      // Predicated region
      $region25: #{vggish_transformer_forward.6} parent=23 // pred_check
        %p128 = pneg %p29
      $region26: #{vggish_transformer_forward.6} parent=23 // pred_check_branch
        %130 = sbr.rel (%p128) target = $region28
      $region27: #{vggish_transformer_forward.6} parent=23 // pred_region
        %s131 = smul.u32 8, %s9
        %p132 = scmp.lt.s32.totalorder %s131, 15
        %s133 = scalar_select %p132, %s131, 15
        %s134 = smul.addr %s133, 2
        %s135 = smul.addr %s134, 8
        %s136 = scalar_lea.vmem %s0, %s135
        %s137 = smul.u32 8, %s9
      $region28: #{vggish_transformer_forward.6} parent=23 // pred_fallthru
        _
    $region24: #{vggish_transformer_forward.6} parent=5 // pred_fallthru
      _
    %p138 = scmp.le.s32.totalorder 1, %s9
    %p139 = scmp.lt.s32.totalorder %s9, 3
    %p140 = pnand %p138, %p139
    %p141 = pneg %p140
    // Predicated region
    $region29: #{vggish_transformer_forward.6} parent=5 // pred_check
      _
    $region30: #{vggish_transformer_forward.6} parent=5 // pred_check_branch
      %143 = sbr.rel (%p140) target = $region32
    $region31: #{vggish_transformer_forward.6} parent=5 // pred_region
      %s144 = ssub.s32 %s9, 1
      %s145 = smul.u32 8, %s14
      %p146 = scmp.lt.s32.totalorder %s145, 15
      %s147 = scalar_select %p146, %s145, 15
      %s148 = smul.addr %s147, 2
      %s149 = smul.addr %s148, 8
      %s150 = scalar_lea.vmem %s0, %s149
      %p151 = pneg %p35
      %p152 = pneg %p32
      %p153 = pneg %p56
      %p154 = pneg %p53
      %p155 = pneg %p77
      %p156 = pneg %p74
      %p157 = pneg %p103
      %p158 = pneg %p100
      %s159 = smul.u32 8, %s14
      %p160 = scmp.lt.s32.totalorder %s159, 15
      %s161 = scalar_select %p160, %s159, 15
      %s162 = smul.addr %s161, 8
      %s163 = scalar_lea.vmem %s3, %s162
      %s164 = smul.u32 8, %s14
      %p165 = scmp.lt.s32.totalorder %s164, 15
      %s166 = scalar_select %p165, %s164, 15
      %s167 = smul.addr %s166, 2
      %s168 = smul.addr %s167, 8
      %s169 = scalar_lea.vmem %s0, %s168
      %s170 = smul.u32 8, %s14
      %s171 = smul.u32 8, %s14
      %p172 = scmp.lt.s32.totalorder %s171, 15
      %s173 = scalar_select %p172, %s171, 15
      %s174 = smul.addr %s173, 8
      %s175 = scalar_lea.vmem %s3, %s174
      %s176 = smul.u32 8, %s14
      %v178 = vld [vmem:[%s169] sm:$0xff]
      %v179 = vld [vmem:[%s169 + $0x10] sm:$0xff]
      %v180 = vld [vmem:[%s169 + $0x20] sm:$0xff]
      %v181 = vld [vmem:[%s169 + $0x30] sm:$0xff]
      %v182 = vld [vmem:[%s169 + $0x40] sm:$0xff]
      %v183 = vld [vmem:[%s169 + $0x50] sm:$0xff]
      %v184 = vld [vmem:[%s169 + $0x60] sm:$0xff]
      %v185 = vld [vmem:[%s169 + $0x70] sm:$0xff]
      %v186 = vld [vmem:[%s1] sm:$0xff]
      %v187 = vld [vmem:[%s1 + $0x8] sm:$0xff]
      %v188 = vld [vmem:[%s1 + $0x10] sm:$0xff]
      %v189 = vld [vmem:[%s1 + $0x18] sm:$0xff]
      %v190 = vld [vmem:[%s1 + $0x20] sm:$0xff]
      %v191 = vld [vmem:[%s1 + $0x28] sm:$0xff]
      %v192 = vld [vmem:[%s1 + $0x30] sm:$0xff]
      %v193 = vld [vmem:[%s1 + $0x38] sm:$0xff]
      %v194 = vld [vmem:[%s1 + $0x40] sm:$0xff]
      %v195 = vld [vmem:[%s1 + $0x48] sm:$0xff]
      %v196 = vpack.c.bf16 %v179, %v178
      %v197 = vpack.c.bf16 %v181, %v180
      %v198 = vpack.c.bf16 %v183, %v182
      %v199 = vpack.c.bf16 %v185, %v184
      %v200 = vpack.c.bf16 %v187, %v186
      %v201 = vpack.c.bf16 %v189, %v188
      %v202 = vpack.c.bf16 %v191, %v190
      %v203 = vpack.c.bf16 %v193, %v192
      %v204 = vpack.c.bf16 %v195, %v194
      %v205 = vld [vmem:[%s169 + $0x1] sm:$0xff]
      %v206 = vld [vmem:[%s169 + $0x11] sm:$0xff]
      %v207 = vld [vmem:[%s169 + $0x21] sm:$0xff]
      %v208 = vld [vmem:[%s169 + $0x31] sm:$0xff]
      %v209 = vld [vmem:[%s169 + $0x41] sm:$0xff]
      %v210 = vld [vmem:[%s169 + $0x51] sm:$0xff]
      %v211 = vld [vmem:[%s169 + $0x61] sm:$0xff]
      %v212 = vld [vmem:[%s169 + $0x71] sm:$0xff]
      %s213 = scalar_lea.vmem %s1, 80
      %v214 = vld [vmem:[%s213] sm:$0xff]
      %v215 = vld [vmem:[%s213 + $0x8] sm:$0xff]
      %v216 = vld [vmem:[%s213 + $0x10] sm:$0xff]
      %v217 = vld [vmem:[%s213 + $0x18] sm:$0xff]
      %v218 = vld [vmem:[%s213 + $0x20] sm:$0xff]
      %v219 = vld [vmem:[%s213 + $0x28] sm:$0xff]
      %v220 = vld [vmem:[%s213 + $0x30] sm:$0xff]
      %v221 = vld [vmem:[%s213 + $0x38] sm:$0xff]
      %v222 = vld [vmem:[%s213 + $0x40] sm:$0xff]
      %v223 = vld [vmem:[%s213 + $0x48] sm:$0xff]
      %v224 = vpack.c.bf16 %v206, %v205
      %v225 = vpack.c.bf16 %v208, %v207
      %v226 = vpack.c.bf16 %v210, %v209
      %v227 = vpack.c.bf16 %v212, %v211
      %v228 = vpack.c.bf16 %v215, %v214
      %v229 = vpack.c.bf16 %v217, %v216
      %v230 = vpack.c.bf16 %v219, %v218
      %v231 = vpack.c.bf16 %v221, %v220
      %v232 = vpack.c.bf16 %v223, %v222
      %vm233 = vcmask 654336
      %v235 = vsel %vm233, %v224, 0
      %v238 = vsel %vm233, %v225, 0
      %v241 = vsel %vm233, %v226, 0
      %v244 = vsel %vm233, %v227, 0
      %246 = vmatprep.subr.bf16.mxu0 0
      %247 = vmatpush1.bf16.msra.mxu0 %v228
      %248 = vmatprep.subr.bf16.mxu0 0
      %249 = vmatpush1.bf16.msra.mxu0 %v229
      %250 = vmatprep.subr.bf16.mxu0 0
      %251 = vmatpush1.bf16.msra.mxu0 %v230
      %252 = vmatprep.subr.bf16.mxu0 0
      %253 = vmatpush1.bf16.msra.mxu0 %v231
      %254 = vmatprep.subr.bf16.mxu0 0
      %255 = vmatpush1.bf16.msra.mxu0 %v232
      %256 = vmatprep.subr.bf16.mxu0 0
      %257 = vmatpush1.bf16.msra.mxu0 0
      %258 = vmatprep.subr.bf16.mxu0 0
      %259 = vmatpush1.bf16.msra.mxu0 0
      %260 = vmatprep.subr.bf16.mxu0 0
      %261 = vmatpush1.bf16.msra.mxu0 0
      %262 = vmatprep.subr.bf16.mxu0 0
      %263 = vmatpush1.bf16.msra.mxu0 0
      %264 = vmatprep.subr.bf16.mxu0 0
      %265 = vmatpush1.bf16.msra.mxu0 0
      %266 = vmatprep.subr.bf16.mxu0 0
      %267 = vmatpush1.bf16.msra.mxu0 0
      %268 = vmatprep.subr.bf16.mxu0 0
      %269 = vmatpush1.bf16.msra.mxu0 0
      %270 = vmatprep.subr.bf16.mxu0 0
      %271 = vmatpush1.bf16.msra.mxu0 0
      %272 = vmatprep.subr.bf16.mxu0 0
      %273 = vmatpush1.bf16.msra.mxu0 0
      %274 = vmatprep.subr.bf16.mxu0 0
      %275 = vmatpush1.bf16.msra.mxu0 0
      %276 = vmatprep.subr.bf16.mxu0 0
      %277 = vmatpush1.bf16.msra.mxu0 0
      %278 = vmatprep.mubr.bf16.mxu0 0
      %279 = vmatmul.mubr.bf16.gmra.mrb[0].mxu0 %v235
      %v280 = vpop.f32.mrb[0].mxu0
      %v281 = vadd.f32 0.0, %v280
      %v282 = vpop.f32.mrb[0].mxu0
      %v283 = vpop.f32.mrb[0].mxu0
      %v284 = vadd.f32 0.0, %v283
      %v285 = vpop.f32.mrb[0].mxu0
      %286 = vmatprep.mubr.bf16.mxu0 0
      %287 = vmatmul.mubr.bf16.gmra.mrb[0].mxu0 %v238
      %v288 = vpop.f32.mrb[0].mxu0
      %v289 = vadd.f32 0.0, %v288
      %v290 = vpop.f32.mrb[0].mxu0
      %v291 = vpop.f32.mrb[0].mxu0
      %v292 = vadd.f32 0.0, %v291
      %v293 = vpop.f32.mrb[0].mxu0
      %294 = vmatprep.mubr.bf16.mxu0 0
      %295 = vmatmul.mubr.bf16.gmra.mrb[0].mxu0 %v241
      %v296 = vpop.f32.mrb[0].mxu0
      %v297 = vadd.f32 0.0, %v296
      %v298 = vpop.f32.mrb[0].mxu0
      %v299 = vpop.f32.mrb[0].mxu0
      %v300 = vadd.f32 0.0, %v299
      %v301 = vpop.f32.mrb[0].mxu0
      %302 = vmatprep.mubr.bf16.mxu0 0
      %303 = vmatmul.mubr.bf16.gmra.mrb[0].mxu0 %v244
      %v304 = vpop.f32.mrb[0].mxu0
      %v305 = vadd.f32 0.0, %v304
      %v306 = vpop.f32.mrb[0].mxu0
      %v307 = vpop.f32.mrb[0].mxu0
      %v308 = vadd.f32 0.0, %v307
      %v309 = vpop.f32.mrb[0].mxu0
      %310 = vdwg.mxu0
      %v312 = vsel %vm233, %v196, 0
      %v315 = vsel %vm233, %v197, 0
      %v318 = vsel %vm233, %v198, 0
      %v321 = vsel %vm233, %v199, 0
      %323 = vmatprep.subr.bf16.mxu0 0
      %324 = vmatpush1.bf16.msra.mxu0 %v200
      %325 = vmatprep.subr.bf16.mxu0 0
      %326 = vmatpush1.bf16.msra.mxu0 %v201
      %327 = vmatprep.subr.bf16.mxu0 0
      %328 = vmatpush1.bf16.msra.mxu0 %v202
      %329 = vmatprep.subr.bf16.mxu0 0
      %330 = vmatpush1.bf16.msra.mxu0 %v203
      %331 = vmatprep.subr.bf16.mxu0 0
      %332 = vmatpush1.bf16.msra.mxu0 %v204
      %333 = vmatprep.subr.bf16.mxu0 0
      %334 = vmatpush1.bf16.msra.mxu0 0
      %335 = vmatprep.subr.bf16.mxu0 0
      %336 = vmatpush1.bf16.msra.mxu0 0
      %337 = vmatprep.subr.bf16.mxu0 0
      %338 = vmatpush1.bf16.msra.mxu0 0
      %339 = vmatprep.subr.bf16.mxu0 0
      %340 = vmatpush1.bf16.msra.mxu0 0
      %341 = vmatprep.subr.bf16.mxu0 0
      %342 = vmatpush1.bf16.msra.mxu0 0
      %343 = vmatprep.subr.bf16.mxu0 0
      %344 = vmatpush1.bf16.msra.mxu0 0
      %345 = vmatprep.subr.bf16.mxu0 0
      %346 = vmatpush1.bf16.msra.mxu0 0
      %347 = vmatprep.subr.bf16.mxu0 0
      %348 = vmatpush1.bf16.msra.mxu0 0
      %349 = vmatprep.subr.bf16.mxu0 0
      %350 = vmatpush1.bf16.msra.mxu0 0
      %351 = vmatprep.subr.bf16.mxu0 0
      %352 = vmatpush1.bf16.msra.mxu0 0
      %353 = vmatprep.subr.bf16.mxu0 0
      %354 = vmatpush1.bf16.msra.mxu0 0
      %355 = vmatprep.mubr.bf16.mxu0 0
      %356 = vmatmul.mubr.bf16.gmra.mrb[0].mxu0 %v312
      %v357 = vpop.f32.mrb[0].mxu0
      %v358 = vadd.f32 %v281, %v357
      %v359 = vpop.f32.mrb[0].mxu0
      %v360 = vpop.f32.mrb[0].mxu0
      %v361 = vadd.f32 %v284, %v360
      %v362 = vpop.f32.mrb[0].mxu0
      %363 = vmatprep.mubr.bf16.mxu0 0
      %364 = vmatmul.mubr.bf16.gmra.mrb[0].mxu0 %v315
      %v365 = vpop.f32.mrb[0].mxu0
      %v366 = vadd.f32 %v289, %v365
      %v367 = vpop.f32.mrb[0].mxu0
      %v368 = vpop.f32.mrb[0].mxu0
      %v369 = vadd.f32 %v292, %v368
      %v370 = vpop.f32.mrb[0].mxu0
      %371 = vmatprep.mubr.bf16.mxu0 0
      %372 = vmatmul.mubr.bf16.gmra.mrb[0].mxu0 %v318
      %v373 = vpop.f32.mrb[0].mxu0
      %v374 = vadd.f32 %v297, %v373
      %v375 = vpop.f32.mrb[0].mxu0
      %v376 = vpop.f32.mrb[0].mxu0
      %v377 = vadd.f32 %v300, %v376
      %v378 = vpop.f32.mrb[0].mxu0
      %379 = vmatprep.mubr.bf16.mxu0 0
      %380 = vmatmul.mubr.bf16.gmra.mrb[0].mxu0 %v321
      %v381 = vpop.f32.mrb[0].mxu0
      %v382 = vadd.f32 %v305, %v381
      %v383 = vpop.f32.mrb[0].mxu0
      %v384 = vpop.f32.mrb[0].mxu0
      %v385 = vadd.f32 %v308, %v384
      %v386 = vpop.f32.mrb[0].mxu0
      %387 = vdwg.mxu0
      %v388 = vld [vmem:[%s169 + $0x2] sm:$0xff]
      %v389 = vld [vmem:[%s169 + $0x12] sm:$0xff]
      %v390 = vld [vmem:[%s169 + $0x22] sm:$0xff]
      %v391 = vld [vmem:[%s169 + $0x32] sm:$0xff]
      %v392 = vld [vmem:[%s169 + $0x42] sm:$0xff]
      %v393 = vld [vmem:[%s169 + $0x52] sm:$0xff]
      %v394 = vld [vmem:[%s169 + $0x62] sm:$0xff]
      %v395 = vld [vmem:[%s169 + $0x72] sm:$0xff]
      %s396 = scalar_lea.vmem %s1, 160
      %v397 = vld [vmem:[%s396] sm:$0xff]
      %v398 = vld [vmem:[%s396 + $0x8] sm:$0xff]
      %v399 = vld [vmem:[%s396 + $0x10] sm:$0xff]
      %v400 = vld [vmem:[%s396 + $0x18] sm:$0xff]
      %v401 = vld [vmem:[%s396 + $0x20] sm:$0xff]
      %v402 = vld [vmem:[%s396 + $0x28] sm:$0xff]
      %v403 = vld [vmem:[%s396 + $0x30] sm:$0xff]
      %v404 = vld [vmem:[%s396 + $0x38] sm:$0xff]
      %v405 = vld [vmem:[%s396 + $0x40] sm:$0xff]
      %v406 = vld [vmem:[%s396 + $0x48] sm:$0xff]
      %v407 = vpack.c.bf16 %v389, %v388
      %v408 = vpack.c.bf16 %v391, %v390
      %v409 = vpack.c.bf16 %v393, %v392
      %v410 = vpack.c.bf16 %v395, %v394
      %v411 = vpack.c.bf16 %v398, %v397
      %v412 = vpack.c.bf16 %v400, %v399
      %v413 = vpack.c.bf16 %v402, %v401
      %v414 = vpack.c.bf16 %v404, %v403
      %v415 = vpack.c.bf16 %v406, %v405
      %v417 = vsel %vm233, %v407, 0
      %v420 = vsel %vm233, %v408, 0
      %v423 = vsel %vm233, %v409, 0
      %v426 = vsel %vm233, %v410, 0
      %428 = vmatprep.subr.bf16.mxu0 0
      %429 = vmatpush1.bf16.msra.mxu0 %v411
      %430 = vmatprep.subr.bf16.mxu0 0
      %431 = vmatpush1.bf16.msra.mxu0 %v412
      %432 = vmatprep.subr.bf16.mxu0 0
      %433 = vmatpush1.bf16.msra.mxu0 %v413
      %434 = vmatprep.subr.bf16.mxu0 0
      %435 = vmatpush1.bf16.msra.mxu0 %v414
      %436 = vmatprep.subr.bf16.mxu0 0
      %437 = vmatpush1.bf16.msra.mxu0 %v415
      %438 = vmatprep.subr.bf16.mxu0 0
      %439 = vmatpush1.bf16.msra.mxu0 0
      %440 = vmatprep.subr.bf16.mxu0 0
      %441 = vmatpush1.bf16.msra.mxu0 0
      %442 = vmatprep.subr.bf16.mxu0 0
      %443 = vmatpush1.bf16.msra.mxu0 0
      %444 = vmatprep.subr.bf16.mxu0 0
      %445 = vmatpush1.bf16.msra.mxu0 0
      %446 = vmatprep.subr.bf16.mxu0 0
      %447 = vmatpush1.bf16.msra.mxu0 0
      %448 = vmatprep.subr.bf16.mxu0 0
      %449 = vmatpush1.bf16.msra.mxu0 0
      %450 = vmatprep.subr.bf16.mxu0 0
      %451 = vmatpush1.bf16.msra.mxu0 0
      %452 = vmatprep.subr.bf16.mxu0 0
      %453 = vmatpush1.bf16.msra.mxu0 0
      %454 = vmatprep.subr.bf16.mxu0 0
      %455 = vmatpush1.bf16.msra.mxu0 0
      %456 = vmatprep.subr.bf16.mxu0 0
      %457 = vmatpush1.bf16.msra.mxu0 0
      %458 = vmatprep.subr.bf16.mxu0 0
      %459 = vmatpush1.bf16.msra.mxu0 0
      %460 = vmatprep.mubr.bf16.mxu0 0
      %461 = vmatmul.mubr.bf16.gmra.mrb[0].mxu0 %v417
      %v462 = vpop.f32.mrb[0].mxu0
      %v463 = vadd.f32 0.0, %v462
      %v464 = vpop.f32.mrb[0].mxu0
      %v465 = vpop.f32.mrb[0].mxu0
      %v466 = vadd.f32 0.0, %v465
      %v467 = vpop.f32.mrb[0].mxu0
      %468 = vmatprep.mubr.bf16.mxu0 0
      %469 = vmatmul.mubr.bf16.gmra.mrb[0].mxu0 %v420
      %v470 = vpop.f32.mrb[0].mxu0
      %v471 = vadd.f32 0.0, %v470
      %v472 = vpop.f32.mrb[0].mxu0
      %v473 = vpop.f32.mrb[0].mxu0
      %v474 = vadd.f32 0.0, %v473
      %v475 = vpop.f32.mrb[0].mxu0
      %476 = vmatprep.mubr.bf16.mxu0 0
      %477 = vmatmul.mubr.bf16.gmra.mrb[0].mxu0 %v423
      %v478 = vpop.f32.mrb[0].mxu0
      %v479 = vadd.f32 0.0, %v478
      %v480 = vpop.f32.mrb[0].mxu0
      %v481 = vpop.f32.mrb[0].mxu0
      %v482 = vadd.f32 0.0, %v481
      %v483 = vpop.f32.mrb[0].mxu0
      %484 = vmatprep.mubr.bf16.mxu0 0
      %485 = vmatmul.mubr.bf16.gmra.mrb[0].mxu0 %v426
      %v486 = vpop.f32.mrb[0].mxu0
      %v487 = vadd.f32 0.0, %v486
      %v488 = vpop.f32.mrb[0].mxu0
      %v489 = vpop.f32.mrb[0].mxu0
      %v490 = vadd.f32 0.0, %v489
      %v491 = vpop.f32.mrb[0].mxu0
      %492 = vdwg.mxu0
      %v493 = vadd.f32 %v358, %v463
      %v494 = vadd.f32 %v361, %v466
      %v495 = vadd.f32 %v366, %v471
      %v496 = vadd.f32 %v369, %v474
      %v497 = vadd.f32 %v374, %v479
      %v498 = vadd.f32 %v377, %v482
      %v499 = vadd.f32 %v382, %v487
      %v500 = vadd.f32 %v385, %v490
      %v501 = vld [vmem:[%s2] sm:$0x1]
      %v503 = vlaneseq
      %v504 = vshrl.u32 %v503, 7
      %v505 = vsub.s32 0, %v504
      %v506 = vrot.slane %v501, %v505
      %v508 = vadd.f32 %v493, %v506
      %v509 = vadd.f32 %v494, %v506
      %v510 = vadd.f32 %v495, %v506
      %v511 = vadd.f32 %v496, %v506
      %v512 = vadd.f32 %v497, %v506
      %v513 = vadd.f32 %v498, %v506
      %v514 = vadd.f32 %v499, %v506
      %v515 = vadd.f32 %v500, %v506
      %v516 = vmax.f32 %v508, 0.0
      %v517 = vmax.f32 %v509, 0.0
      %v518 = vmax.f32 %v510, 0.0
      %v519 = vmax.f32 %v511, 0.0
      %v520 = vmax.f32 %v512, 0.0
      %v521 = vmax.f32 %v513, 0.0
      %v522 = vmax.f32 %v514, 0.0
      %v523 = vmax.f32 %v515, 0.0
      %524 = vst [vmem:[%s175] sm:$0xff] %v516
      %525 = vst [vmem:[%s175 + $0x8] sm:$0xff] %v517
      %526 = vst [vmem:[%s175 + $0x10] sm:$0xff] %v518
      %527 = vst [vmem:[%s175 + $0x18] sm:$0xff] %v519
      %528 = vst [vmem:[%s175 + $0x20] sm:$0xff] %v520
      %529 = vst [vmem:[%s175 + $0x28] sm:$0xff] %v521
      %530 = vst [vmem:[%s175 + $0x30] sm:$0xff] %v522
      %531 = vst [vmem:[%s175 + $0x38] sm:$0xff] %v523
      %s532 = smul.u32 8, %s14
      %p533 = scmp.lt.s32.totalorder %s532, 15
      %s534 = scalar_select %p533, %s532, 15
      %s535 = smul.addr %s534, 8
      %s536 = scalar_lea.vmem %s3, %s535
      // Predicated region
      $region33: #{vggish_transformer_forward.6} parent=31 // pred_check
        %p537 = pneg %p100
      $region34: #{vggish_transformer_forward.6} parent=31 // pred_check_branch
        %539 = sbr.rel (%p537) target = $region36
      $region35: #{vggish_transformer_forward.6} parent=31 // pred_region
        %s540 = smul.u32 8, %s14
      $region36: #{vggish_transformer_forward.6} parent=31 // pred_fallthru
        _
    $region32: #{vggish_transformer_forward.6} parent=5 // pred_fallthru
      _
    %p541 = scmp.le.s32.totalorder 2, %s9
    // Predicated region
    $region37: #{vggish_transformer_forward.6} parent=5 // pred_check
      %p542 = pneg %p541
    $region38: #{vggish_transformer_forward.6} parent=5 // pred_check_branch
      %544 = sbr.rel (%p542) target = $region40
    $region39: #{vggish_transformer_forward.6} parent=5 // pred_region
      %s545 = ssub.s32 %s9, 2
      // Predicated region
      $region41: #{vggish_transformer_forward.6} parent=39 // pred_check
        %p546 = pneg %p106
      $region42: #{vggish_transformer_forward.6} parent=39 // pred_check_branch
        %548 = sbr.rel (%p546) target = $region44
      $region43: #{vggish_transformer_forward.6} parent=39 // pred_region
        %s549 = smul.u32 8, %s15
        %p550 = scmp.lt.s32.totalorder %s549, 15
        %s551 = scalar_select %p550, %s549, 15
        %s552 = smul.addr %s551, 8
        %s553 = scalar_lea.vmem %s3, %s552
      $region44: #{vggish_transformer_forward.6} parent=39 // pred_fallthru
        _
    $region40: #{vggish_transformer_forward.6} parent=5 // pred_fallthru
      _
  $region6: #{vggish_transformer_forward.6} parent=0 // loop_footer
    %s13 = sadd.s32 1, %s9
  $region7: #{vggish_transformer_forward.6} parent=0 // loop_footer_branch
    %8 = sbr.rel target = $region3
  $region8: #{vggish_transformer_forward.6} parent=0 // loop_exit
    _

// kernel: vggish_transformer_forward.7
$region0: #{vggish_transformer_forward.7}
  #allocation0 [shape = 'u32[]', space=smem, size = 0x4, offset = 0x4, fixed_abs, tag = 'smem constant byte address 0x4 - core index']
  #allocation1 [shape = 'u32[144,128]{1,0:T(1,128)}', space=vmem, size = 0x12000, scoped, tag = 'internal scratch']
  %s0 = inlined_call_operand.vmem [shape: f32[16,256], index: 0, kind: input, shape index: {}]
  %s1 = inlined_call_operand.vmem [shape: f32[256,64], index: 1, kind: input, shape index: {}]
  %s2 = inlined_call_operand.vmem [shape: f32[1,64], index: 2, kind: input, shape index: {}]
  %s3 = inlined_call_operand.vmem [shape: f32[64,32], index: 3, kind: input, shape index: {}]
  %s4 = inlined_call_operand.vmem [shape: f32[1,32], index: 4, kind: input, shape index: {}]
  %s5 = inlined_call_operand.vmem [shape: f32[16,32], index: 5, kind: output, shape index: {}]
  %s6 = sld [smem:[#allocation0]]
  $region30: #{vggish_transformer_forward.7} parent=0
    _
  %s8 = ssub.s32 1, %s6
  %s9 = scalar_select 0, %s8, %s6
  // Predicated region
  $region2: #{vggish_transformer_forward.7} parent=0 // pred_check
    _
  $region3: #{vggish_transformer_forward.7} parent=0 // pred_check_branch
    %11 = sbr.rel (0) target = $region5
  $region4: #{vggish_transformer_forward.7} parent=0 // pred_region
    _
  $region5: #{vggish_transformer_forward.7} parent=0 // pred_fallthru
    _
  // Predicated region
  $region6: #{vggish_transformer_forward.7} parent=0 // pred_check
    _
  $region7: #{vggish_transformer_forward.7} parent=0 // pred_check_branch
    %13 = sbr.rel (0) target = $region9
  $region8: #{vggish_transformer_forward.7} parent=0 // pred_region
    _
  $region9: #{vggish_transformer_forward.7} parent=0 // pred_fallthru
    _
  // Predicated region
  $region10: #{vggish_transformer_forward.7} parent=0 // pred_check
    _
  $region11: #{vggish_transformer_forward.7} parent=0 // pred_check_branch
    %15 = sbr.rel (0) target = $region13
  $region12: #{vggish_transformer_forward.7} parent=0 // pred_region
    _
  $region13: #{vggish_transformer_forward.7} parent=0 // pred_fallthru
    _
  // Predicated region
  $region14: #{vggish_transformer_forward.7} parent=0 // pred_check
    _
  $region15: #{vggish_transformer_forward.7} parent=0 // pred_check_branch
    %17 = sbr.rel (0) target = $region17
  $region16: #{vggish_transformer_forward.7} parent=0 // pred_region
    _
  $region17: #{vggish_transformer_forward.7} parent=0 // pred_fallthru
    _
  // Predicated region
  $region18: #{vggish_transformer_forward.7} parent=0 // pred_check
    _
  $region19: #{vggish_transformer_forward.7} parent=0 // pred_check_branch
    %19 = sbr.rel (0) target = $region21
  $region20: #{vggish_transformer_forward.7} parent=0 // pred_region
    _
  $region21: #{vggish_transformer_forward.7} parent=0 // pred_fallthru
    _
  %v21 = vld [vmem:[%s0] sm:$0xff]
  %v22 = vld [vmem:[%s0 + $0x8] sm:$0xff]
  %v23 = vld [vmem:[%s0 + $0x10] sm:$0xff]
  %v24 = vld [vmem:[%s0 + $0x18] sm:$0xff]
  %v25 = vld [vmem:[%s1] sm:$0xff]
  %v26 = vld [vmem:[%s1 + $0x8] sm:$0xff]
  %v27 = vld [vmem:[%s1 + $0x10] sm:$0xff]
  %v28 = vld [vmem:[%s1 + $0x18] sm:$0xff]
  %v29 = vld [vmem:[%s1 + $0x20] sm:$0xff]
  %v30 = vld [vmem:[%s1 + $0x28] sm:$0xff]
  %v31 = vld [vmem:[%s1 + $0x30] sm:$0xff]
  %v32 = vld [vmem:[%s1 + $0x38] sm:$0xff]
  %v33 = vld [vmem:[%s1 + $0x40] sm:$0xff]
  %v34 = vld [vmem:[%s1 + $0x48] sm:$0xff]
  %v35 = vld [vmem:[%s1 + $0x50] sm:$0xff]
  %v36 = vld [vmem:[%s1 + $0x58] sm:$0xff]
  %v37 = vld [vmem:[%s1 + $0x60] sm:$0xff]
  %v38 = vld [vmem:[%s1 + $0x68] sm:$0xff]
  %v39 = vld [vmem:[%s1 + $0x70] sm:$0xff]
  %v40 = vld [vmem:[%s1 + $0x78] sm:$0xff]
  %v41 = vld [vmem:[%s1 + $0x80] sm:$0xff]
  %v42 = vld [vmem:[%s1 + $0x88] sm:$0xff]
  %v43 = vld [vmem:[%s1 + $0x90] sm:$0xff]
  %v44 = vld [vmem:[%s1 + $0x98] sm:$0xff]
  %v45 = vld [vmem:[%s1 + $0xa0] sm:$0xff]
  %v46 = vld [vmem:[%s1 + $0xa8] sm:$0xff]
  %v47 = vld [vmem:[%s1 + $0xb0] sm:$0xff]
  %v48 = vld [vmem:[%s1 + $0xb8] sm:$0xff]
  %v49 = vld [vmem:[%s1 + $0xc0] sm:$0xff]
  %v50 = vld [vmem:[%s1 + $0xc8] sm:$0xff]
  %v51 = vld [vmem:[%s1 + $0xd0] sm:$0xff]
  %v52 = vld [vmem:[%s1 + $0xd8] sm:$0xff]
  %v53 = vld [vmem:[%s1 + $0xe0] sm:$0xff]
  %v54 = vld [vmem:[%s1 + $0xe8] sm:$0xff]
  %v55 = vld [vmem:[%s1 + $0xf0] sm:$0xff]
  %v56 = vld [vmem:[%s1 + $0xf8] sm:$0xff]
  %v57 = vpack.c.bf16 %v23, %v21
  %v58 = vpack.c.bf16 %v24, %v22
  %v59 = vpack.c.bf16 %v26, %v25
  %v60 = vpack.c.bf16 %v28, %v27
  %v61 = vpack.c.bf16 %v30, %v29
  %v62 = vpack.c.bf16 %v32, %v31
  %v63 = vpack.c.bf16 %v34, %v33
  %v64 = vpack.c.bf16 %v36, %v35
  %v65 = vpack.c.bf16 %v38, %v37
  %v66 = vpack.c.bf16 %v40, %v39
  %v67 = vpack.c.bf16 %v42, %v41
  %v68 = vpack.c.bf16 %v44, %v43
  %v69 = vpack.c.bf16 %v46, %v45
  %v70 = vpack.c.bf16 %v48, %v47
  %v71 = vpack.c.bf16 %v50, %v49
  %v72 = vpack.c.bf16 %v52, %v51
  %v73 = vpack.c.bf16 %v54, %v53
  %v74 = vpack.c.bf16 %v56, %v55
  %v75 = vld [vmem:[%s2] sm:$0x1]
  %v77 = vlaneseq
  %v78 = vshrl.u32 %v77, 7
  %v79 = vsub.s32 0, %v78
  %v80 = vrot.slane %v75, %v79
  %82 = vmatprep.subr.bf16.mxu0 0
  %83 = vmatpush1.bf16.msra.mxu0 %v59
  %84 = vmatprep.subr.bf16.mxu0 0
  %85 = vmatpush1.bf16.msra.mxu0 %v60
  %86 = vmatprep.subr.bf16.mxu0 0
  %87 = vmatpush1.bf16.msra.mxu0 %v61
  %88 = vmatprep.subr.bf16.mxu0 0
  %89 = vmatpush1.bf16.msra.mxu0 %v62
  %90 = vmatprep.subr.bf16.mxu0 0
  %91 = vmatpush1.bf16.msra.mxu0 %v63
  %92 = vmatprep.subr.bf16.mxu0 0
  %93 = vmatpush1.bf16.msra.mxu0 %v64
  %94 = vmatprep.subr.bf16.mxu0 0
  %95 = vmatpush1.bf16.msra.mxu0 %v65
  %96 = vmatprep.subr.bf16.mxu0 0
  %97 = vmatpush1.bf16.msra.mxu0 %v66
  %98 = vmatprep.subr.bf16.mxu0 0
  %99 = vmatpush1.bf16.msra.mxu0 %v67
  %100 = vmatprep.subr.bf16.mxu0 0
  %101 = vmatpush1.bf16.msra.mxu0 %v68
  %102 = vmatprep.subr.bf16.mxu0 0
  %103 = vmatpush1.bf16.msra.mxu0 %v69
  %104 = vmatprep.subr.bf16.mxu0 0
  %105 = vmatpush1.bf16.msra.mxu0 %v70
  %106 = vmatprep.subr.bf16.mxu0 0
  %107 = vmatpush1.bf16.msra.mxu0 %v71
  %108 = vmatprep.subr.bf16.mxu0 0
  %109 = vmatpush1.bf16.msra.mxu0 %v72
  %110 = vmatprep.subr.bf16.mxu0 0
  %111 = vmatpush1.bf16.msra.mxu0 %v73
  %112 = vmatprep.subr.bf16.mxu0 0
  %113 = vmatpush1.bf16.msra.mxu0 %v74
  %114 = vmatprep.mubr.bf16.mxu0 %v58
  %115 = vmatmul.mubr.bf16.gmra.mrb[0].mxu0 %v57
  %v116 = vpop.f32.mrb[0].mxu0
  %v117 = vadd.f32 %v80, %v116
  %v118 = vpop.f32.mrb[0].mxu0
  %v119 = vpop.f32.mrb[0].mxu0
  %v120 = vadd.f32 %v80, %v119
  %v121 = vpop.f32.mrb[0].mxu0
  %122 = vdwg.mxu0
  %v123 = vmax.f32 %v117, 0.0
  %v124 = vmax.f32 %v120, 0.0
  %v125 = vld [vmem:[%s3] sm:$0xff]
  %v126 = vld [vmem:[%s3 + $0x8] sm:$0xff]
  %v127 = vld [vmem:[%s3 + $0x10] sm:$0xff]
  %v128 = vld [vmem:[%s3 + $0x18] sm:$0xff]
  %v129 = vld [vmem:[%s3 + $0x20] sm:$0xff]
  %v130 = vld [vmem:[%s3 + $0x28] sm:$0xff]
  %v131 = vld [vmem:[%s3 + $0x30] sm:$0xff]
  %v132 = vld [vmem:[%s3 + $0x38] sm:$0xff]
  %v133 = vpack.c.bf16 %v124, %v123
  %v134 = vpack.c.bf16 %v126, %v125
  %v135 = vpack.c.bf16 %v128, %v127
  %v136 = vpack.c.bf16 %v130, %v129
  %v137 = vpack.c.bf16 %v132, %v131
  %v138 = vld [vmem:[%s4] sm:$0x1]
  %v140 = vlaneseq
  %v141 = vshrl.u32 %v140, 7
  %v142 = vsub.s32 0, %v141
  %v143 = vrot.slane %v138, %v142
  %vm145 = vcmask 523264
  %v147 = vsel %vm145, %v133, 0
  %149 = vmatprep.subr.bf16.mxu0 0
  %150 = vmatpush1.bf16.msra.mxu0 %v134
  %151 = vmatprep.subr.bf16.mxu0 0
  %152 = vmatpush1.bf16.msra.mxu0 %v135
  %153 = vmatprep.subr.bf16.mxu0 0
  %154 = vmatpush1.bf16.msra.mxu0 %v136
  %155 = vmatprep.subr.bf16.mxu0 0
  %156 = vmatpush1.bf16.msra.mxu0 %v137
  %157 = vmatprep.subr.bf16.mxu0 0
  %158 = vmatpush1.bf16.msra.mxu0 0
  %159 = vmatprep.subr.bf16.mxu0 0
  %160 = vmatpush1.bf16.msra.mxu0 0
  %161 = vmatprep.subr.bf16.mxu0 0
  %162 = vmatpush1.bf16.msra.mxu0 0
  %163 = vmatprep.subr.bf16.mxu0 0
  %164 = vmatpush1.bf16.msra.mxu0 0
  %165 = vmatprep.subr.bf16.mxu0 0
  %166 = vmatpush1.bf16.msra.mxu0 0
  %167 = vmatprep.subr.bf16.mxu0 0
  %168 = vmatpush1.bf16.msra.mxu0 0
  %169 = vmatprep.subr.bf16.mxu0 0
  %170 = vmatpush1.bf16.msra.mxu0 0
  %171 = vmatprep.subr.bf16.mxu0 0
  %172 = vmatpush1.bf16.msra.mxu0 0
  %173 = vmatprep.subr.bf16.mxu0 0
  %174 = vmatpush1.bf16.msra.mxu0 0
  %175 = vmatprep.subr.bf16.mxu0 0
  %176 = vmatpush1.bf16.msra.mxu0 0
  %177 = vmatprep.subr.bf16.mxu0 0
  %178 = vmatpush1.bf16.msra.mxu0 0
  %179 = vmatprep.subr.bf16.mxu0 0
  %180 = vmatpush1.bf16.msra.mxu0 0
  %181 = vmatprep.mubr.bf16.mxu0 0
  %182 = vmatmul.mubr.bf16.gmra.mrb[0].mxu0 %v147
  %v183 = vpop.f32.mrb[0].mxu0
  %v184 = vadd.f32 %v143, %v183
  %v185 = vpop.f32.mrb[0].mxu0
  %v186 = vpop.f32.mrb[0].mxu0
  %v187 = vadd.f32 %v143, %v186
  %v188 = vpop.f32.mrb[0].mxu0
  %189 = vdwg.mxu0
  %v190 = vmax.f32 %v184, 0.0
  %v191 = vmax.f32 %v187, 0.0
  %vm192 = vcmask 261120
  %193 = vst.msk [vmem:[%s5] sm:$0xff] %vm192, %v190
  %194 = vst.msk [vmem:[%s5 + $0x8] sm:$0xff] %vm192, %v191
  // Predicated region
  $region22: #{vggish_transformer_forward.7} parent=0 // pred_check
    _
  $region23: #{vggish_transformer_forward.7} parent=0 // pred_check_branch
    %196 = sbr.rel (0) target = $region25
  $region24: #{vggish_transformer_forward.7} parent=0 // pred_region
    _
  $region25: #{vggish_transformer_forward.7} parent=0 // pred_fallthru
    _
  // Predicated region
  $region26: #{vggish_transformer_forward.7} parent=0 // pred_check
    _
  $region27: #{vggish_transformer_forward.7} parent=0 // pred_check_branch
    %198 = sbr.rel (0) target = $region29
  $region28: #{vggish_transformer_forward.7} parent=0 // pred_region
    _
  $region29: #{vggish_transformer_forward.7} parent=0 // pred_fallthru
    _

// kernel: vggish_transformer_forward.8
$region0: #{vggish_transformer_forward.8}
  #allocation0 [shape = 'u32[]', space=smem, size = 0x4, offset = 0x4, fixed_abs, tag = 'smem constant byte address 0x4 - core index']
  #allocation1 [shape = 'u32[144,128]{1,0:T(1,128)}', space=vmem, size = 0x12000, scoped, tag = 'internal scratch']
  %s0 = inlined_call_operand.vmem [shape: f32[16,32], index: 0, kind: input, shape index: {}]
  %s1 = inlined_call_operand.vmem [shape: f32[32,96], index: 1, kind: input, shape index: {}]
  %s2 = inlined_call_operand.vmem [shape: f32[1,96], index: 2, kind: input, shape index: {}]
  %s3 = inlined_call_operand.vmem [shape: f32[32,32], index: 3, kind: input, shape index: {}]
  %s4 = inlined_call_operand.vmem [shape: f32[1,32], index: 4, kind: input, shape index: {}]
  %s5 = inlined_call_operand.vmem [shape: f32[1,32], index: 5, kind: input, shape index: {}]
  %s6 = inlined_call_operand.vmem [shape: f32[1,32], index: 6, kind: input, shape index: {}]
  %s7 = inlined_call_operand.vmem [shape: f32[32,64], index: 7, kind: input, shape index: {}]
  %s8 = inlined_call_operand.vmem [shape: f32[1,64], index: 8, kind: input, shape index: {}]
  %s9 = inlined_call_operand.vmem [shape: f32[64,32], index: 9, kind: input, shape index: {}]
  %s10 = inlined_call_operand.vmem [shape: f32[1,32], index: 10, kind: input, shape index: {}]
  %s11 = inlined_call_operand.vmem [shape: f32[1,32], index: 11, kind: input, shape index: {}]
  %s12 = inlined_call_operand.vmem [shape: f32[1,32], index: 12, kind: input, shape index: {}]
  %s13 = inlined_call_operand.vmem [shape: f32[1,32], index: 13, kind: input, shape index: {}]
  %s14 = inlined_call_operand.vmem [shape: f32[1,32], index: 14, kind: input, shape index: {}]
  %s15 = inlined_call_operand.vmem [shape: f32[16,32], index: 15, kind: output, shape index: {}]
  %s16 = sld [smem:[#allocation0]]
  $region70: #{vggish_transformer_forward.8} parent=0
    _
  %s18 = ssub.s32 1, %s16
  %s19 = scalar_select 0, %s18, %s16
  // Predicated region
  $region2: #{vggish_transformer_forward.8} parent=0 // pred_check
    _
  $region3: #{vggish_transformer_forward.8} parent=0 // pred_check_branch
    %21 = sbr.rel (0) target = $region5
  $region4: #{vggish_transformer_forward.8} parent=0 // pred_region
    _
  $region5: #{vggish_transformer_forward.8} parent=0 // pred_fallthru
    _
  // Predicated region
  $region6: #{vggish_transformer_forward.8} parent=0 // pred_check
    _
  $region7: #{vggish_transformer_forward.8} parent=0 // pred_check_branch
    %23 = sbr.rel (0) target = $region9
  $region8: #{vggish_transformer_forward.8} parent=0 // pred_region
    _
  $region9: #{vggish_transformer_forward.8} parent=0 // pred_fallthru
    _
  // Predicated region
  $region10: #{vggish_transformer_forward.8} parent=0 // pred_check
    _
  $region11: #{vggish_transformer_forward.8} parent=0 // pred_check_branch
    %25 = sbr.rel (0) target = $region13
  $region12: #{vggish_transformer_forward.8} parent=0 // pred_region
    _
  $region13: #{vggish_transformer_forward.8} parent=0 // pred_fallthru
    _
  // Predicated region
  $region14: #{vggish_transformer_forward.8} parent=0 // pred_check
    _
  $region15: #{vggish_transformer_forward.8} parent=0 // pred_check_branch
    %27 = sbr.rel (0) target = $region17
  $region16: #{vggish_transformer_forward.8} parent=0 // pred_region
    _
  $region17: #{vggish_transformer_forward.8} parent=0 // pred_fallthru
    _
  // Predicated region
  $region18: #{vggish_transformer_forward.8} parent=0 // pred_check
    _
  $region19: #{vggish_transformer_forward.8} parent=0 // pred_check_branch
    %29 = sbr.rel (0) target = $region21
  $region20: #{vggish_transformer_forward.8} parent=0 // pred_region
    _
  $region21: #{vggish_transformer_forward.8} parent=0 // pred_fallthru
    _
  // Predicated region
  $region22: #{vggish_transformer_forward.8} parent=0 // pred_check
    _
  $region23: #{vggish_transformer_forward.8} parent=0 // pred_check_branch
    %31 = sbr.rel (0) target = $region25
  $region24: #{vggish_transformer_forward.8} parent=0 // pred_region
    _
  $region25: #{vggish_transformer_forward.8} parent=0 // pred_fallthru
    _
  // Predicated region
  $region26: #{vggish_transformer_forward.8} parent=0 // pred_check
    _
  $region27: #{vggish_transformer_forward.8} parent=0 // pred_check_branch
    %33 = sbr.rel (0) target = $region29
  $region28: #{vggish_transformer_forward.8} parent=0 // pred_region
    _
  $region29: #{vggish_transformer_forward.8} parent=0 // pred_fallthru
    _
  // Predicated region
  $region30: #{vggish_transformer_forward.8} parent=0 // pred_check
    _
  $region31: #{vggish_transformer_forward.8} parent=0 // pred_check_branch
    %35 = sbr.rel (0) target = $region33
  $region32: #{vggish_transformer_forward.8} parent=0 // pred_region
    _
  $region33: #{vggish_transformer_forward.8} parent=0 // pred_fallthru
    _
  // Predicated region
  $region34: #{vggish_transformer_forward.8} parent=0 // pred_check
    _
  $region35: #{vggish_transformer_forward.8} parent=0 // pred_check_branch
    %37 = sbr.rel (0) target = $region37
  $region36: #{vggish_transformer_forward.8} parent=0 // pred_region
    _
  $region37: #{vggish_transformer_forward.8} parent=0 // pred_fallthru
    _
  // Predicated region
  $region38: #{vggish_transformer_forward.8} parent=0 // pred_check
    _
  $region39: #{vggish_transformer_forward.8} parent=0 // pred_check_branch
    %39 = sbr.rel (0) target = $region41
  $region40: #{vggish_transformer_forward.8} parent=0 // pred_region
    _
  $region41: #{vggish_transformer_forward.8} parent=0 // pred_fallthru
    _
  // Predicated region
  $region42: #{vggish_transformer_forward.8} parent=0 // pred_check
    _
  $region43: #{vggish_transformer_forward.8} parent=0 // pred_check_branch
    %41 = sbr.rel (0) target = $region45
  $region44: #{vggish_transformer_forward.8} parent=0 // pred_region
    _
  $region45: #{vggish_transformer_forward.8} parent=0 // pred_fallthru
    _
  // Predicated region
  $region46: #{vggish_transformer_forward.8} parent=0 // pred_check
    _
  $region47: #{vggish_transformer_forward.8} parent=0 // pred_check_branch
    %43 = sbr.rel (0) target = $region49
  $region48: #{vggish_transformer_forward.8} parent=0 // pred_region
    _
  $region49: #{vggish_transformer_forward.8} parent=0 // pred_fallthru
    _
  // Predicated region
  $region50: #{vggish_transformer_forward.8} parent=0 // pred_check
    _
  $region51: #{vggish_transformer_forward.8} parent=0 // pred_check_branch
    %45 = sbr.rel (0) target = $region53
  $region52: #{vggish_transformer_forward.8} parent=0 // pred_region
    _
  $region53: #{vggish_transformer_forward.8} parent=0 // pred_fallthru
    _
  // Predicated region
  $region54: #{vggish_transformer_forward.8} parent=0 // pred_check
    _
  $region55: #{vggish_transformer_forward.8} parent=0 // pred_check_branch
    %47 = sbr.rel (0) target = $region57
  $region56: #{vggish_transformer_forward.8} parent=0 // pred_region
    _
  $region57: #{vggish_transformer_forward.8} parent=0 // pred_fallthru
    _
  // Predicated region
  $region58: #{vggish_transformer_forward.8} parent=0 // pred_check
    _
  $region59: #{vggish_transformer_forward.8} parent=0 // pred_check_branch
    %49 = sbr.rel (0) target = $region61
  $region60: #{vggish_transformer_forward.8} parent=0 // pred_region
    _
  $region61: #{vggish_transformer_forward.8} parent=0 // pred_fallthru
    _
  %v51 = vld [vmem:[%s0] sm:$0xff]
  %v52 = vld [vmem:[%s0 + $0x8] sm:$0xff]
  %v53 = vld [vmem:[%s1] sm:$0xff]
  %v54 = vld [vmem:[%s1 + $0x8] sm:$0xff]
  %v55 = vld [vmem:[%s1 + $0x10] sm:$0xff]
  %v56 = vld [vmem:[%s1 + $0x18] sm:$0xff]
  %v57 = vpack.c.bf16 %v52, %v51
  %v58 = vpack.c.bf16 %v54, %v53
  %v59 = vpack.c.bf16 %v56, %v55
  %v60 = vld [vmem:[%s2] sm:$0x1]
  %v62 = vlaneseq
  %v63 = vshrl.u32 %v62, 7
  %v64 = vsub.s32 0, %v63
  %v65 = vrot.slane %v60, %v64
  %vm67 = vcmask 261120
  %v69 = vsel %vm67, %v57, 0
  %71 = vmatprep.subr.bf16.mxu0 0
  %72 = vmatpush1.bf16.msra.mxu0 %v58
  %73 = vmatprep.subr.bf16.mxu0 0
  %74 = vmatpush1.bf16.msra.mxu0 %v59
  %75 = vmatprep.subr.bf16.mxu0 0
  %76 = vmatpush1.bf16.msra.mxu0 0
  %77 = vmatprep.subr.bf16.mxu0 0
  %78 = vmatpush1.bf16.msra.mxu0 0
  %79 = vmatprep.subr.bf16.mxu0 0
  %80 = vmatpush1.bf16.msra.mxu0 0
  %81 = vmatprep.subr.bf16.mxu0 0
  %82 = vmatpush1.bf16.msra.mxu0 0
  %83 = vmatprep.subr.bf16.mxu0 0
  %84 = vmatpush1.bf16.msra.mxu0 0
  %85 = vmatprep.subr.bf16.mxu0 0
  %86 = vmatpush1.bf16.msra.mxu0 0
  %87 = vmatprep.subr.bf16.mxu0 0
  %88 = vmatpush1.bf16.msra.mxu0 0
  %89 = vmatprep.subr.bf16.mxu0 0
  %90 = vmatpush1.bf16.msra.mxu0 0
  %91 = vmatprep.subr.bf16.mxu0 0
  %92 = vmatpush1.bf16.msra.mxu0 0
  %93 = vmatprep.subr.bf16.mxu0 0
  %94 = vmatpush1.bf16.msra.mxu0 0
  %95 = vmatprep.subr.bf16.mxu0 0
  %96 = vmatpush1.bf16.msra.mxu0 0
  %97 = vmatprep.subr.bf16.mxu0 0
  %98 = vmatpush1.bf16.msra.mxu0 0
  %99 = vmatprep.subr.bf16.mxu0 0
  %100 = vmatpush1.bf16.msra.mxu0 0
  %101 = vmatprep.subr.bf16.mxu0 0
  %102 = vmatpush1.bf16.msra.mxu0 0
  %103 = vmatprep.mubr.bf16.mxu0 0
  %104 = vmatmul.mubr.bf16.gmra.mrb[0].mxu0 %v69
  %v105 = vpop.f32.mrb[0].mxu0
  %v106 = vadd.f32 %v65, %v105
  %v107 = vpop.f32.mrb[0].mxu0
  %v108 = vpop.f32.mrb[0].mxu0
  %v109 = vadd.f32 %v65, %v108
  %v110 = vpop.f32.mrb[0].mxu0
  %111 = vdwg.mxu0
  %v112 = vld [vmem:[%s3] sm:$0xff]
  %v113 = vld [vmem:[%s3 + $0x8] sm:$0xff]
  %v114 = vld [vmem:[%s3 + $0x10] sm:$0xff]
  %v115 = vld [vmem:[%s3 + $0x18] sm:$0xff]
  %v116 = vld [vmem:[%s4] sm:$0x1]
  %v118 = vlaneseq
  %v119 = vshrl.u32 %v118, 7
  %v120 = vsub.s32 0, %v119
  %v121 = vrot.slane %v116, %v120
  %v123 = vadd.f32 %v121, 0.0
  %v124 = vpack.c.bf16 %v106, %v106
  %v125 = vpack.c.bf16 %v109, %v109
  %127 = vrot.lane.b32.xlu0 %v124, 96
  %v128 = vpop.permute.xlu0 %127
  %vm129 = vcmask 64512
  %v131 = vsel %vm129, %v124, 0
  %v134 = vsel %vm129, %v128, 0
  %136 = vmatprep.subr.bf16.mxu0 0
  %137 = vmatpush1.bf16.xpose.msra.mxu0 %v134
  %138 = vmatprep.subr.bf16.mxu0 0
  %139 = vmatpush1.bf16.xpose.msra.mxu0 0
  %140 = vmatprep.subr.bf16.mxu0 0
  %141 = vmatpush1.bf16.xpose.msra.mxu0 0
  %142 = vmatprep.subr.bf16.mxu0 0
  %143 = vmatpush1.bf16.xpose.msra.mxu0 0
  %144 = vmatprep.subr.bf16.mxu0 0
  %145 = vmatpush1.bf16.xpose.msra.mxu0 0
  %146 = vmatprep.subr.bf16.mxu0 0
  %147 = vmatpush1.bf16.xpose.msra.mxu0 0
  %148 = vmatprep.subr.bf16.mxu0 0
  %149 = vmatpush1.bf16.xpose.msra.mxu0 0
  %150 = vmatprep.subr.bf16.mxu0 0
  %151 = vmatpush1.bf16.xpose.msra.mxu0 0
  %152 = vmatprep.subr.bf16.mxu0 0
  %153 = vmatpush1.bf16.xpose.msra.mxu0 0
  %154 = vmatprep.subr.bf16.mxu0 0
  %155 = vmatpush1.bf16.xpose.msra.mxu0 0
  %156 = vmatprep.subr.bf16.mxu0 0
  %157 = vmatpush1.bf16.xpose.msra.mxu0 0
  %158 = vmatprep.subr.bf16.mxu0 0
  %159 = vmatpush1.bf16.xpose.msra.mxu0 0
  %160 = vmatprep.subr.bf16.mxu0 0
  %161 = vmatpush1.bf16.xpose.msra.mxu0 0
  %162 = vmatprep.subr.bf16.mxu0 0
  %163 = vmatpush1.bf16.xpose.msra.mxu0 0
  %164 = vmatprep.subr.bf16.mxu0 0
  %165 = vmatpush1.bf16.xpose.msra.mxu0 0
  %166 = vmatprep.subr.bf16.mxu0 0
  %167 = vmatpush1.bf16.xpose.msra.mxu0 0
  %168 = vmatprep.mubr.bf16.mxu0 0
  %169 = vmatmul.mubr.bf16.gmra.mrb[0].mxu0 %v131
  %v170 = vpop.f32.mrb[0].mxu0
  %v171 = vadd.f32 0.0, %v170
  %v172 = vpop.f32.mrb[0].mxu0
  %v173 = vpop.f32.mrb[0].mxu0
  %v174 = vpop.f32.mrb[0].mxu0
  %175 = vdwg.mxu0
  %177 = vrot.lane.b32.xlu0 %v125, 96
  %v178 = vpop.permute.xlu0 %177
  %v180 = vsel %vm129, %v125, 0
  %v183 = vsel %vm129, %v178, 0
  %185 = vmatprep.subr.bf16.mxu0 0
  %186 = vmatpush1.bf16.xpose.msra.mxu0 %v183
  %187 = vmatprep.subr.bf16.mxu0 0
  %188 = vmatpush1.bf16.xpose.msra.mxu0 0
  %189 = vmatprep.subr.bf16.mxu0 0
  %190 = vmatpush1.bf16.xpose.msra.mxu0 0
  %191 = vmatprep.subr.bf16.mxu0 0
  %192 = vmatpush1.bf16.xpose.msra.mxu0 0
  %193 = vmatprep.subr.bf16.mxu0 0
  %194 = vmatpush1.bf16.xpose.msra.mxu0 0
  %195 = vmatprep.subr.bf16.mxu0 0
  %196 = vmatpush1.bf16.xpose.msra.mxu0 0
  %197 = vmatprep.subr.bf16.mxu0 0
  %198 = vmatpush1.bf16.xpose.msra.mxu0 0
  %199 = vmatprep.subr.bf16.mxu0 0
  %200 = vmatpush1.bf16.xpose.msra.mxu0 0
  %201 = vmatprep.subr.bf16.mxu0 0
  %202 = vmatpush1.bf16.xpose.msra.mxu0 0
  %203 = vmatprep.subr.bf16.mxu0 0
  %204 = vmatpush1.bf16.xpose.msra.mxu0 0
  %205 = vmatprep.subr.bf16.mxu0 0
  %206 = vmatpush1.bf16.xpose.msra.mxu0 0
  %207 = vmatprep.subr.bf16.mxu0 0
  %208 = vmatpush1.bf16.xpose.msra.mxu0 0
  %209 = vmatprep.subr.bf16.mxu0 0
  %210 = vmatpush1.bf16.xpose.msra.mxu0 0
  %211 = vmatprep.subr.bf16.mxu0 0
  %212 = vmatpush1.bf16.xpose.msra.mxu0 0
  %213 = vmatprep.subr.bf16.mxu0 0
  %214 = vmatpush1.bf16.xpose.msra.mxu0 0
  %215 = vmatprep.subr.bf16.mxu0 0
  %216 = vmatpush1.bf16.xpose.msra.mxu0 0
  %217 = vmatprep.mubr.bf16.mxu0 0
  %218 = vmatmul.mubr.bf16.gmra.mrb[0].mxu0 %v180
  %v219 = vpop.f32.mrb[0].mxu0
  %v220 = vadd.f32 0.0, %v219
  %v221 = vpop.f32.mrb[0].mxu0
  %v222 = vpop.f32.mrb[0].mxu0
  %v223 = vpop.f32.mrb[0].mxu0
  %224 = vdwg.mxu0
  %v225 = vmul.f32 %v171, 0.35355338
  %v226 = vmul.f32 %v220, 0.35355338
  %v227 = vsel %vm129, %v225, -inf
  %228 = vmax.xlane.f32.xlu0 %v227
  %v229 = vpop.xlane.xlu0 %228
  %v230 = vsel %vm129, %v226, -inf
  %231 = vmax.xlane.f32.xlu0 %v230
  %v232 = vpop.xlane.xlu0 %231
  %v233 = vsub.f32 %v225, %v229
  %v234 = vsub.f32 %v226, %v232
  %v235 = vmul.f32 %v233, 1.442695
  %v236 = vpow.pop %v235
  %v237 = vmul.f32 %v234, 1.442695
  %v238 = vpow.pop %v237
  %v239 = vsel %vm129, %v236, 0.0
  %240 = vadd.xlane.f32.xlu0 %v239
  %v241 = vpop.xlane.xlu0 %240
  %v242 = vsel %vm129, %v238, 0.0
  %243 = vadd.xlane.f32.xlu0 %v242
  %v244 = vpop.xlane.xlu0 %243
  %v245 = vrcp.pop %v241
  %v246 = vrcp.pop %v244
  %v247 = vmul.f32 %v236, %v245
  %v248 = vmul.f32 %v238, %v246
  %v249 = vpack.c.bf16 %v247, %v247
  %v250 = vpack.c.bf16 %v248, %v248
  %251 = vrot.lane.b32.xlu0 %v124, 64
  %v252 = vpop.permute.xlu0 %251
  %v254 = vsel %vm129, %v249, 0
  %vm256 = vcmask 1043456
  %v258 = vsel %vm256, %v252, 0
  %260 = vmatprep.subr.bf16.mxu0 0
  %261 = vmatpush1.bf16.msra.mxu0 %v258
  %262 = vmatprep.subr.bf16.mxu0 0
  %263 = vmatpush1.bf16.msra.mxu0 0
  %264 = vmatprep.subr.bf16.mxu0 0
  %265 = vmatpush1.bf16.msra.mxu0 0
  %266 = vmatprep.subr.bf16.mxu0 0
  %267 = vmatpush1.bf16.msra.mxu0 0
  %268 = vmatprep.subr.bf16.mxu0 0
  %269 = vmatpush1.bf16.msra.mxu0 0
  %270 = vmatprep.subr.bf16.mxu0 0
  %271 = vmatpush1.bf16.msra.mxu0 0
  %272 = vmatprep.subr.bf16.mxu0 0
  %273 = vmatpush1.bf16.msra.mxu0 0
  %274 = vmatprep.subr.bf16.mxu0 0
  %275 = vmatpush1.bf16.msra.mxu0 0
  %276 = vmatprep.subr.bf16.mxu0 0
  %277 = vmatpush1.bf16.msra.mxu0 0
  %278 = vmatprep.subr.bf16.mxu0 0
  %279 = vmatpush1.bf16.msra.mxu0 0
  %280 = vmatprep.subr.bf16.mxu0 0
  %281 = vmatpush1.bf16.msra.mxu0 0
  %282 = vmatprep.subr.bf16.mxu0 0
  %283 = vmatpush1.bf16.msra.mxu0 0
  %284 = vmatprep.subr.bf16.mxu0 0
  %285 = vmatpush1.bf16.msra.mxu0 0
  %286 = vmatprep.subr.bf16.mxu0 0
  %287 = vmatpush1.bf16.msra.mxu0 0
  %288 = vmatprep.subr.bf16.mxu0 0
  %289 = vmatpush1.bf16.msra.mxu0 0
  %290 = vmatprep.subr.bf16.mxu0 0
  %291 = vmatpush1.bf16.msra.mxu0 0
  %292 = vmatprep.mubr.bf16.mxu0 0
  %293 = vmatmul.mubr.bf16.gmra.mrb[0].mxu0 %v254
  %v294 = vpop.f32.mrb[0].mxu0
  %v295 = vadd.f32 0.0, %v294
  %v296 = vpop.f32.mrb[0].mxu0
  %v297 = vpop.f32.mrb[0].mxu0
  %v298 = vpop.f32.mrb[0].mxu0
  %299 = vdwg.mxu0
  %300 = vrot.lane.b32.xlu0 %v125, 64
  %v301 = vpop.permute.xlu0 %300
  %v303 = vsel %vm129, %v250, 0
  %v306 = vsel %vm256, %v301, 0
  %308 = vmatprep.subr.bf16.mxu0 0
  %309 = vmatpush1.bf16.msra.mxu0 %v306
  %310 = vmatprep.subr.bf16.mxu0 0
  %311 = vmatpush1.bf16.msra.mxu0 0
  %312 = vmatprep.subr.bf16.mxu0 0
  %313 = vmatpush1.bf16.msra.mxu0 0
  %314 = vmatprep.subr.bf16.mxu0 0
  %315 = vmatpush1.bf16.msra.mxu0 0
  %316 = vmatprep.subr.bf16.mxu0 0
  %317 = vmatpush1.bf16.msra.mxu0 0
  %318 = vmatprep.subr.bf16.mxu0 0
  %319 = vmatpush1.bf16.msra.mxu0 0
  %320 = vmatprep.subr.bf16.mxu0 0
  %321 = vmatpush1.bf16.msra.mxu0 0
  %322 = vmatprep.subr.bf16.mxu0 0
  %323 = vmatpush1.bf16.msra.mxu0 0
  %324 = vmatprep.subr.bf16.mxu0 0
  %325 = vmatpush1.bf16.msra.mxu0 0
  %326 = vmatprep.subr.bf16.mxu0 0
  %327 = vmatpush1.bf16.msra.mxu0 0
  %328 = vmatprep.subr.bf16.mxu0 0
  %329 = vmatpush1.bf16.msra.mxu0 0
  %330 = vmatprep.subr.bf16.mxu0 0
  %331 = vmatpush1.bf16.msra.mxu0 0
  %332 = vmatprep.subr.bf16.mxu0 0
  %333 = vmatpush1.bf16.msra.mxu0 0
  %334 = vmatprep.subr.bf16.mxu0 0
  %335 = vmatpush1.bf16.msra.mxu0 0
  %336 = vmatprep.subr.bf16.mxu0 0
  %337 = vmatpush1.bf16.msra.mxu0 0
  %338 = vmatprep.subr.bf16.mxu0 0
  %339 = vmatpush1.bf16.msra.mxu0 0
  %340 = vmatprep.mubr.bf16.mxu0 0
  %341 = vmatmul.mubr.bf16.gmra.mrb[0].mxu0 %v303
  %v342 = vpop.f32.mrb[0].mxu0
  %v343 = vadd.f32 0.0, %v342
  %v344 = vpop.f32.mrb[0].mxu0
  %v345 = vpop.f32.mrb[0].mxu0
  %v346 = vpop.f32.mrb[0].mxu0
  %347 = vdwg.mxu0
  %v348 = vpack.c.bf16 %v343, %v295
  %v349 = vpack.c.bf16 %v112, %v112
  %v351 = vsel %vm129, %v348, 0
  %v354 = vsel %vm256, %v349, 0
  %356 = vmatprep.subr.bf16.mxu0 0
  %357 = vmatpush1.bf16.msra.mxu0 %v354
  %358 = vmatprep.subr.bf16.mxu0 0
  %359 = vmatpush1.bf16.msra.mxu0 0
  %360 = vmatprep.subr.bf16.mxu0 0
  %361 = vmatpush1.bf16.msra.mxu0 0
  %362 = vmatprep.subr.bf16.mxu0 0
  %363 = vmatpush1.bf16.msra.mxu0 0
  %364 = vmatprep.subr.bf16.mxu0 0
  %365 = vmatpush1.bf16.msra.mxu0 0
  %366 = vmatprep.subr.bf16.mxu0 0
  %367 = vmatpush1.bf16.msra.mxu0 0
  %368 = vmatprep.subr.bf16.mxu0 0
  %369 = vmatpush1.bf16.msra.mxu0 0
  %370 = vmatprep.subr.bf16.mxu0 0
  %371 = vmatpush1.bf16.msra.mxu0 0
  %372 = vmatprep.subr.bf16.mxu0 0
  %373 = vmatpush1.bf16.msra.mxu0 0
  %374 = vmatprep.subr.bf16.mxu0 0
  %375 = vmatpush1.bf16.msra.mxu0 0
  %376 = vmatprep.subr.bf16.mxu0 0
  %377 = vmatpush1.bf16.msra.mxu0 0
  %378 = vmatprep.subr.bf16.mxu0 0
  %379 = vmatpush1.bf16.msra.mxu0 0
  %380 = vmatprep.subr.bf16.mxu0 0
  %381 = vmatpush1.bf16.msra.mxu0 0
  %382 = vmatprep.subr.bf16.mxu0 0
  %383 = vmatpush1.bf16.msra.mxu0 0
  %384 = vmatprep.subr.bf16.mxu0 0
  %385 = vmatpush1.bf16.msra.mxu0 0
  %386 = vmatprep.subr.bf16.mxu0 0
  %387 = vmatpush1.bf16.msra.mxu0 0
  %388 = vmatprep.mubr.bf16.mxu0 0
  %389 = vmatmul.mubr.bf16.gmra.mrb[0].mxu0 %v351
  %v390 = vpop.f32.mrb[0].mxu0
  %v391 = vadd.f32 0.0, %v390
  %v392 = vpop.f32.mrb[0].mxu0
  %v393 = vpop.f32.mrb[0].mxu0
  %v394 = vadd.f32 0.0, %v393
  %v395 = vpop.f32.mrb[0].mxu0
  %396 = vdwg.mxu0
  %v397 = vadd.f32 %v123, %v391
  %v398 = vadd.f32 %v123, %v394
  %399 = vrot.lane.b32.xlu0 %v124, 120
  %v400 = vpop.permute.xlu0 %399
  %401 = vrot.lane.b32.xlu0 %v124, 88
  %v402 = vpop.permute.xlu0 %401
  %v404 = vsel %vm129, %v400, 0
  %v407 = vsel %vm129, %v402, 0
  %409 = vmatprep.subr.bf16.mxu0 0
  %410 = vmatpush1.bf16.xpose.msra.mxu0 %v407
  %411 = vmatprep.subr.bf16.mxu0 0
  %412 = vmatpush1.bf16.xpose.msra.mxu0 0
  %413 = vmatprep.subr.bf16.mxu0 0
  %414 = vmatpush1.bf16.xpose.msra.mxu0 0
  %415 = vmatprep.subr.bf16.mxu0 0
  %416 = vmatpush1.bf16.xpose.msra.mxu0 0
  %417 = vmatprep.subr.bf16.mxu0 0
  %418 = vmatpush1.bf16.xpose.msra.mxu0 0
  %419 = vmatprep.subr.bf16.mxu0 0
  %420 = vmatpush1.bf16.xpose.msra.mxu0 0
  %421 = vmatprep.subr.bf16.mxu0 0
  %422 = vmatpush1.bf16.xpose.msra.mxu0 0
  %423 = vmatprep.subr.bf16.mxu0 0
  %424 = vmatpush1.bf16.xpose.msra.mxu0 0
  %425 = vmatprep.subr.bf16.mxu0 0
  %426 = vmatpush1.bf16.xpose.msra.mxu0 0
  %427 = vmatprep.subr.bf16.mxu0 0
  %428 = vmatpush1.bf16.xpose.msra.mxu0 0
  %429 = vmatprep.subr.bf16.mxu0 0
  %430 = vmatpush1.bf16.xpose.msra.mxu0 0
  %431 = vmatprep.subr.bf16.mxu0 0
  %432 = vmatpush1.bf16.xpose.msra.mxu0 0
  %433 = vmatprep.subr.bf16.mxu0 0
  %434 = vmatpush1.bf16.xpose.msra.mxu0 0
  %435 = vmatprep.subr.bf16.mxu0 0
  %436 = vmatpush1.bf16.xpose.msra.mxu0 0
  %437 = vmatprep.subr.bf16.mxu0 0
  %438 = vmatpush1.bf16.xpose.msra.mxu0 0
  %439 = vmatprep.subr.bf16.mxu0 0
  %440 = vmatpush1.bf16.xpose.msra.mxu0 0
  %441 = vmatprep.mubr.bf16.mxu0 0
  %442 = vmatmul.mubr.bf16.gmra.mrb[0].mxu0 %v404
  %v443 = vpop.f32.mrb[0].mxu0
  %v444 = vadd.f32 0.0, %v443
  %v445 = vpop.f32.mrb[0].mxu0
  %v446 = vpop.f32.mrb[0].mxu0
  %v447 = vpop.f32.mrb[0].mxu0
  %448 = vdwg.mxu0
  %449 = vrot.lane.b32.xlu0 %v125, 120
  %v450 = vpop.permute.xlu0 %449
  %451 = vrot.lane.b32.xlu0 %v125, 88
  %v452 = vpop.permute.xlu0 %451
  %v454 = vsel %vm129, %v450, 0
  %v457 = vsel %vm129, %v452, 0
  %459 = vmatprep.subr.bf16.mxu0 0
  %460 = vmatpush1.bf16.xpose.msra.mxu0 %v457
  %461 = vmatprep.subr.bf16.mxu0 0
  %462 = vmatpush1.bf16.xpose.msra.mxu0 0
  %463 = vmatprep.subr.bf16.mxu0 0
  %464 = vmatpush1.bf16.xpose.msra.mxu0 0
  %465 = vmatprep.subr.bf16.mxu0 0
  %466 = vmatpush1.bf16.xpose.msra.mxu0 0
  %467 = vmatprep.subr.bf16.mxu0 0
  %468 = vmatpush1.bf16.xpose.msra.mxu0 0
  %469 = vmatprep.subr.bf16.mxu0 0
  %470 = vmatpush1.bf16.xpose.msra.mxu0 0
  %471 = vmatprep.subr.bf16.mxu0 0
  %472 = vmatpush1.bf16.xpose.msra.mxu0 0
  %473 = vmatprep.subr.bf16.mxu0 0
  %474 = vmatpush1.bf16.xpose.msra.mxu0 0
  %475 = vmatprep.subr.bf16.mxu0 0
  %476 = vmatpush1.bf16.xpose.msra.mxu0 0
  %477 = vmatprep.subr.bf16.mxu0 0
  %478 = vmatpush1.bf16.xpose.msra.mxu0 0
  %479 = vmatprep.subr.bf16.mxu0 0
  %480 = vmatpush1.bf16.xpose.msra.mxu0 0
  %481 = vmatprep.subr.bf16.mxu0 0
  %482 = vmatpush1.bf16.xpose.msra.mxu0 0
  %483 = vmatprep.subr.bf16.mxu0 0
  %484 = vmatpush1.bf16.xpose.msra.mxu0 0
  %485 = vmatprep.subr.bf16.mxu0 0
  %486 = vmatpush1.bf16.xpose.msra.mxu0 0
  %487 = vmatprep.subr.bf16.mxu0 0
  %488 = vmatpush1.bf16.xpose.msra.mxu0 0
  %489 = vmatprep.subr.bf16.mxu0 0
  %490 = vmatpush1.bf16.xpose.msra.mxu0 0
  %491 = vmatprep.mubr.bf16.mxu0 0
  %492 = vmatmul.mubr.bf16.gmra.mrb[0].mxu0 %v454
  %v493 = vpop.f32.mrb[0].mxu0
  %v494 = vadd.f32 0.0, %v493
  %v495 = vpop.f32.mrb[0].mxu0
  %v496 = vpop.f32.mrb[0].mxu0
  %v497 = vpop.f32.mrb[0].mxu0
  %498 = vdwg.mxu0
  %v499 = vmul.f32 %v444, 0.35355338
  %v500 = vmul.f32 %v494, 0.35355338
  %v501 = vsel %vm129, %v499, -inf
  %502 = vmax.xlane.f32.xlu0 %v501
  %v503 = vpop.xlane.xlu0 %502
  %v504 = vsel %vm129, %v500, -inf
  %505 = vmax.xlane.f32.xlu0 %v504
  %v506 = vpop.xlane.xlu0 %505
  %v507 = vsub.f32 %v499, %v503
  %v508 = vsub.f32 %v500, %v506
  %v509 = vmul.f32 %v507, 1.442695
  %v510 = vpow.pop %v509
  %v511 = vmul.f32 %v508, 1.442695
  %v512 = vpow.pop %v511
  %v513 = vsel %vm129, %v510, 0.0
  %514 = vadd.xlane.f32.xlu0 %v513
  %v515 = vpop.xlane.xlu0 %514
  %v516 = vsel %vm129, %v512, 0.0
  %517 = vadd.xlane.f32.xlu0 %v516
  %v518 = vpop.xlane.xlu0 %517
  %v519 = vrcp.pop %v515
  %v520 = vrcp.pop %v518
  %v521 = vmul.f32 %v510, %v519
  %v522 = vmul.f32 %v512, %v520
  %v523 = vpack.c.bf16 %v521, %v521
  %v524 = vpack.c.bf16 %v522, %v522
  %525 = vrot.lane.b32.xlu0 %v124, 56
  %v526 = vpop.permute.xlu0 %525
  %v528 = vsel %vm129, %v523, 0
  %v531 = vsel %vm256, %v526, 0
  %533 = vmatprep.subr.bf16.mxu0 0
  %534 = vmatpush1.bf16.msra.mxu0 %v531
  %535 = vmatprep.subr.bf16.mxu0 0
  %536 = vmatpush1.bf16.msra.mxu0 0
  %537 = vmatprep.subr.bf16.mxu0 0
  %538 = vmatpush1.bf16.msra.mxu0 0
  %539 = vmatprep.subr.bf16.mxu0 0
  %540 = vmatpush1.bf16.msra.mxu0 0
  %541 = vmatprep.subr.bf16.mxu0 0
  %542 = vmatpush1.bf16.msra.mxu0 0
  %543 = vmatprep.subr.bf16.mxu0 0
  %544 = vmatpush1.bf16.msra.mxu0 0
  %545 = vmatprep.subr.bf16.mxu0 0
  %546 = vmatpush1.bf16.msra.mxu0 0
  %547 = vmatprep.subr.bf16.mxu0 0
  %548 = vmatpush1.bf16.msra.mxu0 0
  %549 = vmatprep.subr.bf16.mxu0 0
  %550 = vmatpush1.bf16.msra.mxu0 0
  %551 = vmatprep.subr.bf16.mxu0 0
  %552 = vmatpush1.bf16.msra.mxu0 0
  %553 = vmatprep.subr.bf16.mxu0 0
  %554 = vmatpush1.bf16.msra.mxu0 0
  %555 = vmatprep.subr.bf16.mxu0 0
  %556 = vmatpush1.bf16.msra.mxu0 0
  %557 = vmatprep.subr.bf16.mxu0 0
  %558 = vmatpush1.bf16.msra.mxu0 0
  %559 = vmatprep.subr.bf16.mxu0 0
  %560 = vmatpush1.bf16.msra.mxu0 0
  %561 = vmatprep.subr.bf16.mxu0 0
  %562 = vmatpush1.bf16.msra.mxu0 0
  %563 = vmatprep.subr.bf16.mxu0 0
  %564 = vmatpush1.bf16.msra.mxu0 0
  %565 = vmatprep.mubr.bf16.mxu0 0
  %566 = vmatmul.mubr.bf16.gmra.mrb[0].mxu0 %v528
  %v567 = vpop.f32.mrb[0].mxu0
  %v568 = vadd.f32 0.0, %v567
  %v569 = vpop.f32.mrb[0].mxu0
  %v570 = vpop.f32.mrb[0].mxu0
  %v571 = vpop.f32.mrb[0].mxu0
  %572 = vdwg.mxu0
  %573 = vrot.lane.b32.xlu0 %v125, 56
  %v574 = vpop.permute.xlu0 %573
  %v576 = vsel %vm129, %v524, 0
  %v579 = vsel %vm256, %v574, 0
  %581 = vmatprep.subr.bf16.mxu0 0
  %582 = vmatpush1.bf16.msra.mxu0 %v579
  %583 = vmatprep.subr.bf16.mxu0 0
  %584 = vmatpush1.bf16.msra.mxu0 0
  %585 = vmatprep.subr.bf16.mxu0 0
  %586 = vmatpush1.bf16.msra.mxu0 0
  %587 = vmatprep.subr.bf16.mxu0 0
  %588 = vmatpush1.bf16.msra.mxu0 0
  %589 = vmatprep.subr.bf16.mxu0 0
  %590 = vmatpush1.bf16.msra.mxu0 0
  %591 = vmatprep.subr.bf16.mxu0 0
  %592 = vmatpush1.bf16.msra.mxu0 0
  %593 = vmatprep.subr.bf16.mxu0 0
  %594 = vmatpush1.bf16.msra.mxu0 0
  %595 = vmatprep.subr.bf16.mxu0 0
  %596 = vmatpush1.bf16.msra.mxu0 0
  %597 = vmatprep.subr.bf16.mxu0 0
  %598 = vmatpush1.bf16.msra.mxu0 0
  %599 = vmatprep.subr.bf16.mxu0 0
  %600 = vmatpush1.bf16.msra.mxu0 0
  %601 = vmatprep.subr.bf16.mxu0 0
  %602 = vmatpush1.bf16.msra.mxu0 0
  %603 = vmatprep.subr.bf16.mxu0 0
  %604 = vmatpush1.bf16.msra.mxu0 0
  %605 = vmatprep.subr.bf16.mxu0 0
  %606 = vmatpush1.bf16.msra.mxu0 0
  %607 = vmatprep.subr.bf16.mxu0 0
  %608 = vmatpush1.bf16.msra.mxu0 0
  %609 = vmatprep.subr.bf16.mxu0 0
  %610 = vmatpush1.bf16.msra.mxu0 0
  %611 = vmatprep.subr.bf16.mxu0 0
  %612 = vmatpush1.bf16.msra.mxu0 0
  %613 = vmatprep.mubr.bf16.mxu0 0
  %614 = vmatmul.mubr.bf16.gmra.mrb[0].mxu0 %v576
  %v615 = vpop.f32.mrb[0].mxu0
  %v616 = vadd.f32 0.0, %v615
  %v617 = vpop.f32.mrb[0].mxu0
  %v618 = vpop.f32.mrb[0].mxu0
  %v619 = vpop.f32.mrb[0].mxu0
  %620 = vdwg.mxu0
  %v621 = vpack.c.bf16 %v616, %v568
  %v622 = vpack.c.bf16 %v113, %v113
  %v624 = vsel %vm129, %v621, 0
  %v627 = vsel %vm256, %v622, 0
  %629 = vmatprep.subr.bf16.mxu0 0
  %630 = vmatpush1.bf16.msra.mxu0 %v627
  %631 = vmatprep.subr.bf16.mxu0 0
  %632 = vmatpush1.bf16.msra.mxu0 0
  %633 = vmatprep.subr.bf16.mxu0 0
  %634 = vmatpush1.bf16.msra.mxu0 0
  %635 = vmatprep.subr.bf16.mxu0 0
  %636 = vmatpush1.bf16.msra.mxu0 0
  %637 = vmatprep.subr.bf16.mxu0 0
  %638 = vmatpush1.bf16.msra.mxu0 0
  %639 = vmatprep.subr.bf16.mxu0 0
  %640 = vmatpush1.bf16.msra.mxu0 0
  %641 = vmatprep.subr.bf16.mxu0 0
  %642 = vmatpush1.bf16.msra.mxu0 0
  %643 = vmatprep.subr.bf16.mxu0 0
  %644 = vmatpush1.bf16.msra.mxu0 0
  %645 = vmatprep.subr.bf16.mxu0 0
  %646 = vmatpush1.bf16.msra.mxu0 0
  %647 = vmatprep.subr.bf16.mxu0 0
  %648 = vmatpush1.bf16.msra.mxu0 0
  %649 = vmatprep.subr.bf16.mxu0 0
  %650 = vmatpush1.bf16.msra.mxu0 0
  %651 = vmatprep.subr.bf16.mxu0 0
  %652 = vmatpush1.bf16.msra.mxu0 0
  %653 = vmatprep.subr.bf16.mxu0 0
  %654 = vmatpush1.bf16.msra.mxu0 0
  %655 = vmatprep.subr.bf16.mxu0 0
  %656 = vmatpush1.bf16.msra.mxu0 0
  %657 = vmatprep.subr.bf16.mxu0 0
  %658 = vmatpush1.bf16.msra.mxu0 0
  %659 = vmatprep.subr.bf16.mxu0 0
  %660 = vmatpush1.bf16.msra.mxu0 0
  %661 = vmatprep.mubr.bf16.mxu0 0
  %662 = vmatmul.mubr.bf16.gmra.mrb[0].mxu0 %v624
  %v663 = vpop.f32.mrb[0].mxu0
  %v664 = vadd.f32 0.0, %v663
  %v665 = vpop.f32.mrb[0].mxu0
  %v666 = vpop.f32.mrb[0].mxu0
  %v667 = vadd.f32 0.0, %v666
  %v668 = vpop.f32.mrb[0].mxu0
  %669 = vdwg.mxu0
  %v670 = vadd.f32 %v397, %v664
  %v671 = vadd.f32 %v398, %v667
  %672 = vrot.lane.b32.xlu0 %v124, 112
  %v673 = vpop.permute.xlu0 %672
  %674 = vrot.lane.b32.xlu0 %v124, 80
  %v675 = vpop.permute.xlu0 %674
  %v677 = vsel %vm129, %v673, 0
  %v680 = vsel %vm129, %v675, 0
  %682 = vmatprep.subr.bf16.mxu0 0
  %683 = vmatpush1.bf16.xpose.msra.mxu0 %v680
  %684 = vmatprep.subr.bf16.mxu0 0
  %685 = vmatpush1.bf16.xpose.msra.mxu0 0
  %686 = vmatprep.subr.bf16.mxu0 0
  %687 = vmatpush1.bf16.xpose.msra.mxu0 0
  %688 = vmatprep.subr.bf16.mxu0 0
  %689 = vmatpush1.bf16.xpose.msra.mxu0 0
  %690 = vmatprep.subr.bf16.mxu0 0
  %691 = vmatpush1.bf16.xpose.msra.mxu0 0
  %692 = vmatprep.subr.bf16.mxu0 0
  %693 = vmatpush1.bf16.xpose.msra.mxu0 0
  %694 = vmatprep.subr.bf16.mxu0 0
  %695 = vmatpush1.bf16.xpose.msra.mxu0 0
  %696 = vmatprep.subr.bf16.mxu0 0
  %697 = vmatpush1.bf16.xpose.msra.mxu0 0
  %698 = vmatprep.subr.bf16.mxu0 0
  %699 = vmatpush1.bf16.xpose.msra.mxu0 0
  %700 = vmatprep.subr.bf16.mxu0 0
  %701 = vmatpush1.bf16.xpose.msra.mxu0 0
  %702 = vmatprep.subr.bf16.mxu0 0
  %703 = vmatpush1.bf16.xpose.msra.mxu0 0
  %704 = vmatprep.subr.bf16.mxu0 0
  %705 = vmatpush1.bf16.xpose.msra.mxu0 0
  %706 = vmatprep.subr.bf16.mxu0 0
  %707 = vmatpush1.bf16.xpose.msra.mxu0 0
  %708 = vmatprep.subr.bf16.mxu0 0
  %709 = vmatpush1.bf16.xpose.msra.mxu0 0
  %710 = vmatprep.subr.bf16.mxu0 0
  %711 = vmatpush1.bf16.xpose.msra.mxu0 0
  %712 = vmatprep.subr.bf16.mxu0 0
  %713 = vmatpush1.bf16.xpose.msra.mxu0 0
  %714 = vmatprep.mubr.bf16.mxu0 0
  %715 = vmatmul.mubr.bf16.gmra.mrb[0].mxu0 %v677
  %v716 = vpop.f32.mrb[0].mxu0
  %v717 = vadd.f32 0.0, %v716
  %v718 = vpop.f32.mrb[0].mxu0
  %v719 = vpop.f32.mrb[0].mxu0
  %v720 = vpop.f32.mrb[0].mxu0
  %721 = vdwg.mxu0
  %722 = vrot.lane.b32.xlu0 %v125, 112
  %v723 = vpop.permute.xlu0 %722
  %724 = vrot.lane.b32.xlu0 %v125, 80
  %v725 = vpop.permute.xlu0 %724
  %v727 = vsel %vm129, %v723, 0
  %v730 = vsel %vm129, %v725, 0
  %732 = vmatprep.subr.bf16.mxu0 0
  %733 = vmatpush1.bf16.xpose.msra.mxu0 %v730
  %734 = vmatprep.subr.bf16.mxu0 0
  %735 = vmatpush1.bf16.xpose.msra.mxu0 0
  %736 = vmatprep.subr.bf16.mxu0 0
  %737 = vmatpush1.bf16.xpose.msra.mxu0 0
  %738 = vmatprep.subr.bf16.mxu0 0
  %739 = vmatpush1.bf16.xpose.msra.mxu0 0
  %740 = vmatprep.subr.bf16.mxu0 0
  %741 = vmatpush1.bf16.xpose.msra.mxu0 0
  %742 = vmatprep.subr.bf16.mxu0 0
  %743 = vmatpush1.bf16.xpose.msra.mxu0 0
  %744 = vmatprep.subr.bf16.mxu0 0
  %745 = vmatpush1.bf16.xpose.msra.mxu0 0
  %746 = vmatprep.subr.bf16.mxu0 0
  %747 = vmatpush1.bf16.xpose.msra.mxu0 0
  %748 = vmatprep.subr.bf16.mxu0 0
  %749 = vmatpush1.bf16.xpose.msra.mxu0 0
  %750 = vmatprep.subr.bf16.mxu0 0
  %751 = vmatpush1.bf16.xpose.msra.mxu0 0
  %752 = vmatprep.subr.bf16.mxu0 0
  %753 = vmatpush1.bf16.xpose.msra.mxu0 0
  %754 = vmatprep.subr.bf16.mxu0 0
  %755 = vmatpush1.bf16.xpose.msra.mxu0 0
  %756 = vmatprep.subr.bf16.mxu0 0
  %757 = vmatpush1.bf16.xpose.msra.mxu0 0
  %758 = vmatprep.subr.bf16.mxu0 0
  %759 = vmatpush1.bf16.xpose.msra.mxu0 0
  %760 = vmatprep.subr.bf16.mxu0 0
  %761 = vmatpush1.bf16.xpose.msra.mxu0 0
  %762 = vmatprep.subr.bf16.mxu0 0
  %763 = vmatpush1.bf16.xpose.msra.mxu0 0
  %764 = vmatprep.mubr.bf16.mxu0 0
  %765 = vmatmul.mubr.bf16.gmra.mrb[0].mxu0 %v727
  %v766 = vpop.f32.mrb[0].mxu0
  %v767 = vadd.f32 0.0, %v766
  %v768 = vpop.f32.mrb[0].mxu0
  %v769 = vpop.f32.mrb[0].mxu0
  %v770 = vpop.f32.mrb[0].mxu0
  %771 = vdwg.mxu0
  %v772 = vmul.f32 %v717, 0.35355338
  %v773 = vmul.f32 %v767, 0.35355338
  %v774 = vsel %vm129, %v772, -inf
  %775 = vmax.xlane.f32.xlu0 %v774
  %v776 = vpop.xlane.xlu0 %775
  %v777 = vsel %vm129, %v773, -inf
  %778 = vmax.xlane.f32.xlu0 %v777
  %v779 = vpop.xlane.xlu0 %778
  %v780 = vsub.f32 %v772, %v776
  %v781 = vsub.f32 %v773, %v779
  %v782 = vmul.f32 %v780, 1.442695
  %v783 = vpow.pop %v782
  %v784 = vmul.f32 %v781, 1.442695
  %v785 = vpow.pop %v784
  %v786 = vsel %vm129, %v783, 0.0
  %787 = vadd.xlane.f32.xlu0 %v786
  %v788 = vpop.xlane.xlu0 %787
  %v789 = vsel %vm129, %v785, 0.0
  %790 = vadd.xlane.f32.xlu0 %v789
  %v791 = vpop.xlane.xlu0 %790
  %v792 = vrcp.pop %v788
  %v793 = vrcp.pop %v791
  %v794 = vmul.f32 %v783, %v792
  %v795 = vmul.f32 %v785, %v793
  %v796 = vpack.c.bf16 %v794, %v794
  %v797 = vpack.c.bf16 %v795, %v795
  %798 = vrot.lane.b32.xlu0 %v124, 48
  %v799 = vpop.permute.xlu0 %798
  %v801 = vsel %vm129, %v796, 0
  %v804 = vsel %vm256, %v799, 0
  %806 = vmatprep.subr.bf16.mxu0 0
  %807 = vmatpush1.bf16.msra.mxu0 %v804
  %808 = vmatprep.subr.bf16.mxu0 0
  %809 = vmatpush1.bf16.msra.mxu0 0
  %810 = vmatprep.subr.bf16.mxu0 0
  %811 = vmatpush1.bf16.msra.mxu0 0
  %812 = vmatprep.subr.bf16.mxu0 0
  %813 = vmatpush1.bf16.msra.mxu0 0
  %814 = vmatprep.subr.bf16.mxu0 0
  %815 = vmatpush1.bf16.msra.mxu0 0
  %816 = vmatprep.subr.bf16.mxu0 0
  %817 = vmatpush1.bf16.msra.mxu0 0
  %818 = vmatprep.subr.bf16.mxu0 0
  %819 = vmatpush1.bf16.msra.mxu0 0
  %820 = vmatprep.subr.bf16.mxu0 0
  %821 = vmatpush1.bf16.msra.mxu0 0
  %822 = vmatprep.subr.bf16.mxu0 0
  %823 = vmatpush1.bf16.msra.mxu0 0
  %824 = vmatprep.subr.bf16.mxu0 0
  %825 = vmatpush1.bf16.msra.mxu0 0
  %826 = vmatprep.subr.bf16.mxu0 0
  %827 = vmatpush1.bf16.msra.mxu0 0
  %828 = vmatprep.subr.bf16.mxu0 0
  %829 = vmatpush1.bf16.msra.mxu0 0
  %830 = vmatprep.subr.bf16.mxu0 0
  %831 = vmatpush1.bf16.msra.mxu0 0
  %832 = vmatprep.subr.bf16.mxu0 0
  %833 = vmatpush1.bf16.msra.mxu0 0
  %834 = vmatprep.subr.bf16.mxu0 0
  %835 = vmatpush1.bf16.msra.mxu0 0
  %836 = vmatprep.subr.bf16.mxu0 0
  %837 = vmatpush1.bf16.msra.mxu0 0
  %838 = vmatprep.mubr.bf16.mxu0 0
  %839 = vmatmul.mubr.bf16.gmra.mrb[0].mxu0 %v801
  %v840 = vpop.f32.mrb[0].mxu0
  %v841 = vadd.f32 0.0, %v840
  %v842 = vpop.f32.mrb[0].mxu0
  %v843 = vpop.f32.mrb[0].mxu0
  %v844 = vpop.f32.mrb[0].mxu0
  %845 = vdwg.mxu0
  %846 = vrot.lane.b32.xlu0 %v125, 48
  %v847 = vpop.permute.xlu0 %846
  %v849 = vsel %vm129, %v797, 0
  %v852 = vsel %vm256, %v847, 0
  %854 = vmatprep.subr.bf16.mxu0 0
  %855 = vmatpush1.bf16.msra.mxu0 %v852
  %856 = vmatprep.subr.bf16.mxu0 0
  %857 = vmatpush1.bf16.msra.mxu0 0
  %858 = vmatprep.subr.bf16.mxu0 0
  %859 = vmatpush1.bf16.msra.mxu0 0
  %860 = vmatprep.subr.bf16.mxu0 0
  %861 = vmatpush1.bf16.msra.mxu0 0
  %862 = vmatprep.subr.bf16.mxu0 0
  %863 = vmatpush1.bf16.msra.mxu0 0
  %864 = vmatprep.subr.bf16.mxu0 0
  %865 = vmatpush1.bf16.msra.mxu0 0
  %866 = vmatprep.subr.bf16.mxu0 0
  %867 = vmatpush1.bf16.msra.mxu0 0
  %868 = vmatprep.subr.bf16.mxu0 0
  %869 = vmatpush1.bf16.msra.mxu0 0
  %870 = vmatprep.subr.bf16.mxu0 0
  %871 = vmatpush1.bf16.msra.mxu0 0
  %872 = vmatprep.subr.bf16.mxu0 0
  %873 = vmatpush1.bf16.msra.mxu0 0
  %874 = vmatprep.subr.bf16.mxu0 0
  %875 = vmatpush1.bf16.msra.mxu0 0
  %876 = vmatprep.subr.bf16.mxu0 0
  %877 = vmatpush1.bf16.msra.mxu0 0
  %878 = vmatprep.subr.bf16.mxu0 0
  %879 = vmatpush1.bf16.msra.mxu0 0
  %880 = vmatprep.subr.bf16.mxu0 0
  %881 = vmatpush1.bf16.msra.mxu0 0
  %882 = vmatprep.subr.bf16.mxu0 0
  %883 = vmatpush1.bf16.msra.mxu0 0
  %884 = vmatprep.subr.bf16.mxu0 0
  %885 = vmatpush1.bf16.msra.mxu0 0
  %886 = vmatprep.mubr.bf16.mxu0 0
  %887 = vmatmul.mubr.bf16.gmra.mrb[0].mxu0 %v849
  %v888 = vpop.f32.mrb[0].mxu0
  %v889 = vadd.f32 0.0, %v888
  %v890 = vpop.f32.mrb[0].mxu0
  %v891 = vpop.f32.mrb[0].mxu0
  %v892 = vpop.f32.mrb[0].mxu0
  %893 = vdwg.mxu0
  %v894 = vpack.c.bf16 %v889, %v841
  %v895 = vpack.c.bf16 %v114, %v114
  %v897 = vsel %vm129, %v894, 0
  %v900 = vsel %vm256, %v895, 0
  %902 = vmatprep.subr.bf16.mxu0 0
  %903 = vmatpush1.bf16.msra.mxu0 %v900
  %904 = vmatprep.subr.bf16.mxu0 0
  %905 = vmatpush1.bf16.msra.mxu0 0
  %906 = vmatprep.subr.bf16.mxu0 0
  %907 = vmatpush1.bf16.msra.mxu0 0
  %908 = vmatprep.subr.bf16.mxu0 0
  %909 = vmatpush1.bf16.msra.mxu0 0
  %910 = vmatprep.subr.bf16.mxu0 0
  %911 = vmatpush1.bf16.msra.mxu0 0
  %912 = vmatprep.subr.bf16.mxu0 0
  %913 = vmatpush1.bf16.msra.mxu0 0
  %914 = vmatprep.subr.bf16.mxu0 0
  %915 = vmatpush1.bf16.msra.mxu0 0
  %916 = vmatprep.subr.bf16.mxu0 0
  %917 = vmatpush1.bf16.msra.mxu0 0
  %918 = vmatprep.subr.bf16.mxu0 0
  %919 = vmatpush1.bf16.msra.mxu0 0
  %920 = vmatprep.subr.bf16.mxu0 0
  %921 = vmatpush1.bf16.msra.mxu0 0
  %922 = vmatprep.subr.bf16.mxu0 0
  %923 = vmatpush1.bf16.msra.mxu0 0
  %924 = vmatprep.subr.bf16.mxu0 0
  %925 = vmatpush1.bf16.msra.mxu0 0
  %926 = vmatprep.subr.bf16.mxu0 0
  %927 = vmatpush1.bf16.msra.mxu0 0
  %928 = vmatprep.subr.bf16.mxu0 0
  %929 = vmatpush1.bf16.msra.mxu0 0
  %930 = vmatprep.subr.bf16.mxu0 0
  %931 = vmatpush1.bf16.msra.mxu0 0
  %932 = vmatprep.subr.bf16.mxu0 0
  %933 = vmatpush1.bf16.msra.mxu0 0
  %934 = vmatprep.mubr.bf16.mxu0 0
  %935 = vmatmul.mubr.bf16.gmra.mrb[0].mxu0 %v897
  %v936 = vpop.f32.mrb[0].mxu0
  %v937 = vadd.f32 0.0, %v936
  %v938 = vpop.f32.mrb[0].mxu0
  %v939 = vpop.f32.mrb[0].mxu0
  %v940 = vadd.f32 0.0, %v939
  %v941 = vpop.f32.mrb[0].mxu0
  %942 = vdwg.mxu0
  %v943 = vadd.f32 %v670, %v937
  %v944 = vadd.f32 %v671, %v940
  %945 = vrot.lane.b32.xlu0 %v124, 104
  %v946 = vpop.permute.xlu0 %945
  %947 = vrot.lane.b32.xlu0 %v124, 72
  %v948 = vpop.permute.xlu0 %947
  %v950 = vsel %vm129, %v946, 0
  %v953 = vsel %vm129, %v948, 0
  %955 = vmatprep.subr.bf16.mxu0 0
  %956 = vmatpush1.bf16.xpose.msra.mxu0 %v953
  %957 = vmatprep.subr.bf16.mxu0 0
  %958 = vmatpush1.bf16.xpose.msra.mxu0 0
  %959 = vmatprep.subr.bf16.mxu0 0
  %960 = vmatpush1.bf16.xpose.msra.mxu0 0
  %961 = vmatprep.subr.bf16.mxu0 0
  %962 = vmatpush1.bf16.xpose.msra.mxu0 0
  %963 = vmatprep.subr.bf16.mxu0 0
  %964 = vmatpush1.bf16.xpose.msra.mxu0 0
  %965 = vmatprep.subr.bf16.mxu0 0
  %966 = vmatpush1.bf16.xpose.msra.mxu0 0
  %967 = vmatprep.subr.bf16.mxu0 0
  %968 = vmatpush1.bf16.xpose.msra.mxu0 0
  %969 = vmatprep.subr.bf16.mxu0 0
  %970 = vmatpush1.bf16.xpose.msra.mxu0 0
  %971 = vmatprep.subr.bf16.mxu0 0
  %972 = vmatpush1.bf16.xpose.msra.mxu0 0
  %973 = vmatprep.subr.bf16.mxu0 0
  %974 = vmatpush1.bf16.xpose.msra.mxu0 0
  %975 = vmatprep.subr.bf16.mxu0 0
  %976 = vmatpush1.bf16.xpose.msra.mxu0 0
  %977 = vmatprep.subr.bf16.mxu0 0
  %978 = vmatpush1.bf16.xpose.msra.mxu0 0
  %979 = vmatprep.subr.bf16.mxu0 0
  %980 = vmatpush1.bf16.xpose.msra.mxu0 0
  %981 = vmatprep.subr.bf16.mxu0 0
  %982 = vmatpush1.bf16.xpose.msra.mxu0 0
  %983 = vmatprep.subr.bf16.mxu0 0
  %984 = vmatpush1.bf16.xpose.msra.mxu0 0
  %985 = vmatprep.subr.bf16.mxu0 0
  %986 = vmatpush1.bf16.xpose.msra.mxu0 0
  %987 = vmatprep.mubr.bf16.mxu0 0
  %988 = vmatmul.mubr.bf16.gmra.mrb[0].mxu0 %v950
  %v989 = vpop.f32.mrb[0].mxu0
  %v990 = vadd.f32 0.0, %v989
  %v991 = vpop.f32.mrb[0].mxu0
  %v992 = vpop.f32.mrb[0].mxu0
  %v993 = vpop.f32.mrb[0].mxu0
  %994 = vdwg.mxu0
  %995 = vrot.lane.b32.xlu0 %v125, 104
  %v996 = vpop.permute.xlu0 %995
  %997 = vrot.lane.b32.xlu0 %v125, 72
  %v998 = vpop.permute.xlu0 %997
  %v1000 = vsel %vm129, %v996, 0
  %v1003 = vsel %vm129, %v998, 0
  %1005 = vmatprep.subr.bf16.mxu0 0
  %1006 = vmatpush1.bf16.xpose.msra.mxu0 %v1003
  %1007 = vmatprep.subr.bf16.mxu0 0
  %1008 = vmatpush1.bf16.xpose.msra.mxu0 0
  %1009 = vmatprep.subr.bf16.mxu0 0
  %1010 = vmatpush1.bf16.xpose.msra.mxu0 0
  %1011 = vmatprep.subr.bf16.mxu0 0
  %1012 = vmatpush1.bf16.xpose.msra.mxu0 0
  %1013 = vmatprep.subr.bf16.mxu0 0
  %1014 = vmatpush1.bf16.xpose.msra.mxu0 0
  %1015 = vmatprep.subr.bf16.mxu0 0
  %1016 = vmatpush1.bf16.xpose.msra.mxu0 0
  %1017 = vmatprep.subr.bf16.mxu0 0
  %1018 = vmatpush1.bf16.xpose.msra.mxu0 0
  %1019 = vmatprep.subr.bf16.mxu0 0
  %1020 = vmatpush1.bf16.xpose.msra.mxu0 0
  %1021 = vmatprep.subr.bf16.mxu0 0
  %1022 = vmatpush1.bf16.xpose.msra.mxu0 0
  %1023 = vmatprep.subr.bf16.mxu0 0
  %1024 = vmatpush1.bf16.xpose.msra.mxu0 0
  %1025 = vmatprep.subr.bf16.mxu0 0
  %1026 = vmatpush1.bf16.xpose.msra.mxu0 0
  %1027 = vmatprep.subr.bf16.mxu0 0
  %1028 = vmatpush1.bf16.xpose.msra.mxu0 0
  %1029 = vmatprep.subr.bf16.mxu0 0
  %1030 = vmatpush1.bf16.xpose.msra.mxu0 0
  %1031 = vmatprep.subr.bf16.mxu0 0
  %1032 = vmatpush1.bf16.xpose.msra.mxu0 0
  %1033 = vmatprep.subr.bf16.mxu0 0
  %1034 = vmatpush1.bf16.xpose.msra.mxu0 0
  %1035 = vmatprep.subr.bf16.mxu0 0
  %1036 = vmatpush1.bf16.xpose.msra.mxu0 0
  %1037 = vmatprep.mubr.bf16.mxu0 0
  %1038 = vmatmul.mubr.bf16.gmra.mrb[0].mxu0 %v1000
  %v1039 = vpop.f32.mrb[0].mxu0
  %v1040 = vadd.f32 0.0, %v1039
  %v1041 = vpop.f32.mrb[0].mxu0
  %v1042 = vpop.f32.mrb[0].mxu0
  %v1043 = vpop.f32.mrb[0].mxu0
  %1044 = vdwg.mxu0
  %v1045 = vmul.f32 %v990, 0.35355338
  %v1046 = vmul.f32 %v1040, 0.35355338
  %v1047 = vsel %vm129, %v1045, -inf
  %1048 = vmax.xlane.f32.xlu0 %v1047
  %v1049 = vpop.xlane.xlu0 %1048
  %v1050 = vsel %vm129, %v1046, -inf
  %1051 = vmax.xlane.f32.xlu0 %v1050
  %v1052 = vpop.xlane.xlu0 %1051
  %v1053 = vsub.f32 %v1045, %v1049
  %v1054 = vsub.f32 %v1046, %v1052
  %v1055 = vmul.f32 %v1053, 1.442695
  %v1056 = vpow.pop %v1055
  %v1057 = vmul.f32 %v1054, 1.442695
  %v1058 = vpow.pop %v1057
  %v1059 = vsel %vm129, %v1056, 0.0
  %1060 = vadd.xlane.f32.xlu0 %v1059
  %v1061 = vpop.xlane.xlu0 %1060
  %v1062 = vsel %vm129, %v1058, 0.0
  %1063 = vadd.xlane.f32.xlu0 %v1062
  %v1064 = vpop.xlane.xlu0 %1063
  %v1065 = vrcp.pop %v1061
  %v1066 = vrcp.pop %v1064
  %v1067 = vmul.f32 %v1056, %v1065
  %v1068 = vmul.f32 %v1058, %v1066
  %v1069 = vpack.c.bf16 %v1067, %v1067
  %v1070 = vpack.c.bf16 %v1068, %v1068
  %1071 = vrot.lane.b32.xlu0 %v124, 40
  %v1072 = vpop.permute.xlu0 %1071
  %v1074 = vsel %vm129, %v1069, 0
  %v1077 = vsel %vm256, %v1072, 0
  %1079 = vmatprep.subr.bf16.mxu0 0
  %1080 = vmatpush1.bf16.msra.mxu0 %v1077
  %1081 = vmatprep.subr.bf16.mxu0 0
  %1082 = vmatpush1.bf16.msra.mxu0 0
  %1083 = vmatprep.subr.bf16.mxu0 0
  %1084 = vmatpush1.bf16.msra.mxu0 0
  %1085 = vmatprep.subr.bf16.mxu0 0
  %1086 = vmatpush1.bf16.msra.mxu0 0
  %1087 = vmatprep.subr.bf16.mxu0 0
  %1088 = vmatpush1.bf16.msra.mxu0 0
  %1089 = vmatprep.subr.bf16.mxu0 0
  %1090 = vmatpush1.bf16.msra.mxu0 0
  %1091 = vmatprep.subr.bf16.mxu0 0
  %1092 = vmatpush1.bf16.msra.mxu0 0
  %1093 = vmatprep.subr.bf16.mxu0 0
  %1094 = vmatpush1.bf16.msra.mxu0 0
  %1095 = vmatprep.subr.bf16.mxu0 0
  %1096 = vmatpush1.bf16.msra.mxu0 0
  %1097 = vmatprep.subr.bf16.mxu0 0
  %1098 = vmatpush1.bf16.msra.mxu0 0
  %1099 = vmatprep.subr.bf16.mxu0 0
  %1100 = vmatpush1.bf16.msra.mxu0 0
  %1101 = vmatprep.subr.bf16.mxu0 0
  %1102 = vmatpush1.bf16.msra.mxu0 0
  %1103 = vmatprep.subr.bf16.mxu0 0
  %1104 = vmatpush1.bf16.msra.mxu0 0
  %1105 = vmatprep.subr.bf16.mxu0 0
  %1106 = vmatpush1.bf16.msra.mxu0 0
  %1107 = vmatprep.subr.bf16.mxu0 0
  %1108 = vmatpush1.bf16.msra.mxu0 0
  %1109 = vmatprep.subr.bf16.mxu0 0
  %1110 = vmatpush1.bf16.msra.mxu0 0
  %1111 = vmatprep.mubr.bf16.mxu0 0
  %1112 = vmatmul.mubr.bf16.gmra.mrb[0].mxu0 %v1074
  %v1113 = vpop.f32.mrb[0].mxu0
  %v1114 = vadd.f32 0.0, %v1113
  %v1115 = vpop.f32.mrb[0].mxu0
  %v1116 = vpop.f32.mrb[0].mxu0
  %v1117 = vpop.f32.mrb[0].mxu0
  %1118 = vdwg.mxu0
  %1119 = vrot.lane.b32.xlu0 %v125, 40
  %v1120 = vpop.permute.xlu0 %1119
  %v1122 = vsel %vm129, %v1070, 0
  %v1125 = vsel %vm256, %v1120, 0
  %1127 = vmatprep.subr.bf16.mxu0 0
  %1128 = vmatpush1.bf16.msra.mxu0 %v1125
  %1129 = vmatprep.subr.bf16.mxu0 0
  %1130 = vmatpush1.bf16.msra.mxu0 0
  %1131 = vmatprep.subr.bf16.mxu0 0
  %1132 = vmatpush1.bf16.msra.mxu0 0
  %1133 = vmatprep.subr.bf16.mxu0 0
  %1134 = vmatpush1.bf16.msra.mxu0 0
  %1135 = vmatprep.subr.bf16.mxu0 0
  %1136 = vmatpush1.bf16.msra.mxu0 0
  %1137 = vmatprep.subr.bf16.mxu0 0
  %1138 = vmatpush1.bf16.msra.mxu0 0
  %1139 = vmatprep.subr.bf16.mxu0 0
  %1140 = vmatpush1.bf16.msra.mxu0 0
  %1141 = vmatprep.subr.bf16.mxu0 0
  %1142 = vmatpush1.bf16.msra.mxu0 0
  %1143 = vmatprep.subr.bf16.mxu0 0
  %1144 = vmatpush1.bf16.msra.mxu0 0
  %1145 = vmatprep.subr.bf16.mxu0 0
  %1146 = vmatpush1.bf16.msra.mxu0 0
  %1147 = vmatprep.subr.bf16.mxu0 0
  %1148 = vmatpush1.bf16.msra.mxu0 0
  %1149 = vmatprep.subr.bf16.mxu0 0
  %1150 = vmatpush1.bf16.msra.mxu0 0
  %1151 = vmatprep.subr.bf16.mxu0 0
  %1152 = vmatpush1.bf16.msra.mxu0 0
  %1153 = vmatprep.subr.bf16.mxu0 0
  %1154 = vmatpush1.bf16.msra.mxu0 0
  %1155 = vmatprep.subr.bf16.mxu0 0
  %1156 = vmatpush1.bf16.msra.mxu0 0
  %1157 = vmatprep.subr.bf16.mxu0 0
  %1158 = vmatpush1.bf16.msra.mxu0 0
  %1159 = vmatprep.mubr.bf16.mxu0 0
  %1160 = vmatmul.mubr.bf16.gmra.mrb[0].mxu0 %v1122
  %v1161 = vpop.f32.mrb[0].mxu0
  %v1162 = vadd.f32 0.0, %v1161
  %v1163 = vpop.f32.mrb[0].mxu0
  %v1164 = vpop.f32.mrb[0].mxu0
  %v1165 = vpop.f32.mrb[0].mxu0
  %1166 = vdwg.mxu0
  %v1167 = vpack.c.bf16 %v1162, %v1114
  %v1168 = vpack.c.bf16 %v115, %v115
  %v1170 = vsel %vm129, %v1167, 0
  %v1173 = vsel %vm256, %v1168, 0
  %1175 = vmatprep.subr.bf16.mxu0 0
  %1176 = vmatpush1.bf16.msra.mxu0 %v1173
  %1177 = vmatprep.subr.bf16.mxu0 0
  %1178 = vmatpush1.bf16.msra.mxu0 0
  %1179 = vmatprep.subr.bf16.mxu0 0
  %1180 = vmatpush1.bf16.msra.mxu0 0
  %1181 = vmatprep.subr.bf16.mxu0 0
  %1182 = vmatpush1.bf16.msra.mxu0 0
  %1183 = vmatprep.subr.bf16.mxu0 0
  %1184 = vmatpush1.bf16.msra.mxu0 0
  %1185 = vmatprep.subr.bf16.mxu0 0
  %1186 = vmatpush1.bf16.msra.mxu0 0
  %1187 = vmatprep.subr.bf16.mxu0 0
  %1188 = vmatpush1.bf16.msra.mxu0 0
  %1189 = vmatprep.subr.bf16.mxu0 0
  %1190 = vmatpush1.bf16.msra.mxu0 0
  %1191 = vmatprep.subr.bf16.mxu0 0
  %1192 = vmatpush1.bf16.msra.mxu0 0
  %1193 = vmatprep.subr.bf16.mxu0 0
  %1194 = vmatpush1.bf16.msra.mxu0 0
  %1195 = vmatprep.subr.bf16.mxu0 0
  %1196 = vmatpush1.bf16.msra.mxu0 0
  %1197 = vmatprep.subr.bf16.mxu0 0
  %1198 = vmatpush1.bf16.msra.mxu0 0
  %1199 = vmatprep.subr.bf16.mxu0 0
  %1200 = vmatpush1.bf16.msra.mxu0 0
  %1201 = vmatprep.subr.bf16.mxu0 0
  %1202 = vmatpush1.bf16.msra.mxu0 0
  %1203 = vmatprep.subr.bf16.mxu0 0
  %1204 = vmatpush1.bf16.msra.mxu0 0
  %1205 = vmatprep.subr.bf16.mxu0 0
  %1206 = vmatpush1.bf16.msra.mxu0 0
  %1207 = vmatprep.mubr.bf16.mxu0 0
  %1208 = vmatmul.mubr.bf16.gmra.mrb[0].mxu0 %v1170
  %v1209 = vpop.f32.mrb[0].mxu0
  %v1210 = vadd.f32 0.0, %v1209
  %v1211 = vpop.f32.mrb[0].mxu0
  %v1212 = vpop.f32.mrb[0].mxu0
  %v1213 = vadd.f32 0.0, %v1212
  %v1214 = vpop.f32.mrb[0].mxu0
  %1215 = vdwg.mxu0
  %v1216 = vadd.f32 %v943, %v1210
  %v1217 = vadd.f32 %v944, %v1213
  %v1218 = vadd.f32 %v51, %v1216
  %v1219 = vadd.f32 %v52, %v1217
  %v1220 = vld [vmem:[%s5] sm:$0x1]
  %v1221 = vld [vmem:[%s6] sm:$0x1]
  %v1222 = vsel %vm67, %v1218, 0.0
  %1223 = vadd.xlane.f32.xlu0 %v1222
  %v1224 = vpop.xlane.xlu0 %1223
  %v1225 = vsel %vm67, %v1219, 0.0
  %1226 = vadd.xlane.f32.xlu0 %v1225
  %v1227 = vpop.xlane.xlu0 %1226
  %v1228 = vrcp.pop 32.0
  %v1229 = vmul.f32 %v1224, %v1228
  %v1230 = vmul.f32 %v1227, %v1228
  %v1231 = vsub.f32 %v1218, %v1229
  %v1232 = vsub.f32 %v1219, %v1230
  %v1233 = vmul.f32 %v1231, %v1231
  %v1234 = vmul.f32 %v1232, %v1232
  %v1235 = vsel %vm67, %v1233, 0.0
  %1236 = vadd.xlane.f32.xlu0 %v1235
  %v1237 = vpop.xlane.xlu0 %1236
  %v1238 = vsel %vm67, %v1234, 0.0
  %1239 = vadd.xlane.f32.xlu0 %v1238
  %v1240 = vpop.xlane.xlu0 %1239
  %v1241 = vmul.f32 %v1237, %v1228
  %v1242 = vmul.f32 %v1240, %v1228
  %v1243 = vadd.f32 %v1241, 1e-05
  %v1244 = vadd.f32 %v1242, 1e-05
  %v1245 = vrsqrt.pop %v1243
  %v1246 = vrsqrt.pop %v1244
  %v1247 = vmul.f32 %v1231, %v1245
  %v1248 = vmul.f32 %v1232, %v1246
  %v1250 = vlaneseq
  %v1251 = vshrl.u32 %v1250, 7
  %v1252 = vsub.s32 0, %v1251
  %v1253 = vrot.slane %v1220, %v1252
  %v1255 = vmul.f32 %v1247, %v1253
  %v1256 = vmul.f32 %v1248, %v1253
  %v1258 = vlaneseq
  %v1259 = vshrl.u32 %v1258, 7
  %v1260 = vsub.s32 0, %v1259
  %v1261 = vrot.slane %v1221, %v1260
  %v1263 = vadd.f32 %v1255, %v1261
  %v1264 = vadd.f32 %v1256, %v1261
  %v1265 = vld [vmem:[%s7] sm:$0xff]
  %v1266 = vld [vmem:[%s7 + $0x8] sm:$0xff]
  %v1267 = vld [vmem:[%s7 + $0x10] sm:$0xff]
  %v1268 = vld [vmem:[%s7 + $0x18] sm:$0xff]
  %v1269 = vpack.c.bf16 %v1264, %v1263
  %v1270 = vpack.c.bf16 %v1266, %v1265
  %v1271 = vpack.c.bf16 %v1268, %v1267
  %v1272 = vld [vmem:[%s8] sm:$0x1]
  %v1274 = vlaneseq
  %v1275 = vshrl.u32 %v1274, 7
  %v1276 = vsub.s32 0, %v1275
  %v1277 = vrot.slane %v1272, %v1276
  %v1280 = vsel %vm67, %v1269, 0
  %1282 = vmatprep.subr.bf16.mxu0 0
  %1283 = vmatpush1.bf16.msra.mxu0 %v1270
  %1284 = vmatprep.subr.bf16.mxu0 0
  %1285 = vmatpush1.bf16.msra.mxu0 %v1271
  %1286 = vmatprep.subr.bf16.mxu0 0
  %1287 = vmatpush1.bf16.msra.mxu0 0
  %1288 = vmatprep.subr.bf16.mxu0 0
  %1289 = vmatpush1.bf16.msra.mxu0 0
  %1290 = vmatprep.subr.bf16.mxu0 0
  %1291 = vmatpush1.bf16.msra.mxu0 0
  %1292 = vmatprep.subr.bf16.mxu0 0
  %1293 = vmatpush1.bf16.msra.mxu0 0
  %1294 = vmatprep.subr.bf16.mxu0 0
  %1295 = vmatpush1.bf16.msra.mxu0 0
  %1296 = vmatprep.subr.bf16.mxu0 0
  %1297 = vmatpush1.bf16.msra.mxu0 0
  %1298 = vmatprep.subr.bf16.mxu0 0
  %1299 = vmatpush1.bf16.msra.mxu0 0
  %1300 = vmatprep.subr.bf16.mxu0 0
  %1301 = vmatpush1.bf16.msra.mxu0 0
  %1302 = vmatprep.subr.bf16.mxu0 0
  %1303 = vmatpush1.bf16.msra.mxu0 0
  %1304 = vmatprep.subr.bf16.mxu0 0
  %1305 = vmatpush1.bf16.msra.mxu0 0
  %1306 = vmatprep.subr.bf16.mxu0 0
  %1307 = vmatpush1.bf16.msra.mxu0 0
  %1308 = vmatprep.subr.bf16.mxu0 0
  %1309 = vmatpush1.bf16.msra.mxu0 0
  %1310 = vmatprep.subr.bf16.mxu0 0
  %1311 = vmatpush1.bf16.msra.mxu0 0
  %1312 = vmatprep.subr.bf16.mxu0 0
  %1313 = vmatpush1.bf16.msra.mxu0 0
  %1314 = vmatprep.mubr.bf16.mxu0 0
  %1315 = vmatmul.mubr.bf16.gmra.mrb[0].mxu0 %v1280
  %v1316 = vpop.f32.mrb[0].mxu0
  %v1317 = vadd.f32 %v1277, %v1316
  %v1318 = vpop.f32.mrb[0].mxu0
  %v1319 = vpop.f32.mrb[0].mxu0
  %v1320 = vadd.f32 %v1277, %v1319
  %v1321 = vpop.f32.mrb[0].mxu0
  %1322 = vdwg.mxu0
  %v1323 = vmax.f32 %v1317, 0.0
  %v1324 = vmax.f32 %v1320, 0.0
  %v1325 = vld [vmem:[%s9] sm:$0xff]
  %v1326 = vld [vmem:[%s9 + $0x8] sm:$0xff]
  %v1327 = vld [vmem:[%s9 + $0x10] sm:$0xff]
  %v1328 = vld [vmem:[%s9 + $0x18] sm:$0xff]
  %v1329 = vld [vmem:[%s9 + $0x20] sm:$0xff]
  %v1330 = vld [vmem:[%s9 + $0x28] sm:$0xff]
  %v1331 = vld [vmem:[%s9 + $0x30] sm:$0xff]
  %v1332 = vld [vmem:[%s9 + $0x38] sm:$0xff]
  %v1333 = vpack.c.bf16 %v1324, %v1323
  %v1334 = vpack.c.bf16 %v1326, %v1325
  %v1335 = vpack.c.bf16 %v1328, %v1327
  %v1336 = vpack.c.bf16 %v1330, %v1329
  %v1337 = vpack.c.bf16 %v1332, %v1331
  %v1338 = vld [vmem:[%s10] sm:$0x1]
  %v1340 = vlaneseq
  %v1341 = vshrl.u32 %v1340, 7
  %v1342 = vsub.s32 0, %v1341
  %v1343 = vrot.slane %v1338, %v1342
  %vm1345 = vcmask 523264
  %v1347 = vsel %vm1345, %v1333, 0
  %1349 = vmatprep.subr.bf16.mxu0 0
  %1350 = vmatpush1.bf16.msra.mxu0 %v1334
  %1351 = vmatprep.subr.bf16.mxu0 0
  %1352 = vmatpush1.bf16.msra.mxu0 %v1335
  %1353 = vmatprep.subr.bf16.mxu0 0
  %1354 = vmatpush1.bf16.msra.mxu0 %v1336
  %1355 = vmatprep.subr.bf16.mxu0 0
  %1356 = vmatpush1.bf16.msra.mxu0 %v1337
  %1357 = vmatprep.subr.bf16.mxu0 0
  %1358 = vmatpush1.bf16.msra.mxu0 0
  %1359 = vmatprep.subr.bf16.mxu0 0
  %1360 = vmatpush1.bf16.msra.mxu0 0
  %1361 = vmatprep.subr.bf16.mxu0 0
  %1362 = vmatpush1.bf16.msra.mxu0 0
  %1363 = vmatprep.subr.bf16.mxu0 0
  %1364 = vmatpush1.bf16.msra.mxu0 0
  %1365 = vmatprep.subr.bf16.mxu0 0
  %1366 = vmatpush1.bf16.msra.mxu0 0
  %1367 = vmatprep.subr.bf16.mxu0 0
  %1368 = vmatpush1.bf16.msra.mxu0 0
  %1369 = vmatprep.subr.bf16.mxu0 0
  %1370 = vmatpush1.bf16.msra.mxu0 0
  %1371 = vmatprep.subr.bf16.mxu0 0
  %1372 = vmatpush1.bf16.msra.mxu0 0
  %1373 = vmatprep.subr.bf16.mxu0 0
  %1374 = vmatpush1.bf16.msra.mxu0 0
  %1375 = vmatprep.subr.bf16.mxu0 0
  %1376 = vmatpush1.bf16.msra.mxu0 0
  %1377 = vmatprep.subr.bf16.mxu0 0
  %1378 = vmatpush1.bf16.msra.mxu0 0
  %1379 = vmatprep.subr.bf16.mxu0 0
  %1380 = vmatpush1.bf16.msra.mxu0 0
  %1381 = vmatprep.mubr.bf16.mxu0 0
  %1382 = vmatmul.mubr.bf16.gmra.mrb[0].mxu0 %v1347
  %v1383 = vpop.f32.mrb[0].mxu0
  %v1384 = vadd.f32 %v1343, %v1383
  %v1385 = vpop.f32.mrb[0].mxu0
  %v1386 = vpop.f32.mrb[0].mxu0
  %v1387 = vadd.f32 %v1343, %v1386
  %v1388 = vpop.f32.mrb[0].mxu0
  %1389 = vdwg.mxu0
  %v1390 = vadd.f32 %v1263, %v1384
  %v1391 = vadd.f32 %v1264, %v1387
  %v1392 = vld [vmem:[%s11] sm:$0x1]
  %v1393 = vld [vmem:[%s12] sm:$0x1]
  %v1394 = vsel %vm67, %v1390, 0.0
  %1395 = vadd.xlane.f32.xlu0 %v1394
  %v1396 = vpop.xlane.xlu0 %1395
  %v1397 = vsel %vm67, %v1391, 0.0
  %1398 = vadd.xlane.f32.xlu0 %v1397
  %v1399 = vpop.xlane.xlu0 %1398
  %v1400 = vmul.f32 %v1396, %v1228
  %v1401 = vmul.f32 %v1399, %v1228
  %v1402 = vsub.f32 %v1390, %v1400
  %v1403 = vsub.f32 %v1391, %v1401
  %v1404 = vmul.f32 %v1402, %v1402
  %v1405 = vmul.f32 %v1403, %v1403
  %v1406 = vsel %vm67, %v1404, 0.0
  %1407 = vadd.xlane.f32.xlu0 %v1406
  %v1408 = vpop.xlane.xlu0 %1407
  %v1409 = vsel %vm67, %v1405, 0.0
  %1410 = vadd.xlane.f32.xlu0 %v1409
  %v1411 = vpop.xlane.xlu0 %1410
  %v1412 = vmul.f32 %v1408, %v1228
  %v1413 = vmul.f32 %v1411, %v1228
  %v1414 = vadd.f32 %v1412, 1e-05
  %v1415 = vadd.f32 %v1413, 1e-05
  %v1416 = vrsqrt.pop %v1414
  %v1417 = vrsqrt.pop %v1415
  %v1418 = vmul.f32 %v1402, %v1416
  %v1419 = vmul.f32 %v1403, %v1417
  %v1421 = vlaneseq
  %v1422 = vshrl.u32 %v1421, 7
  %v1423 = vsub.s32 0, %v1422
  %v1424 = vrot.slane %v1392, %v1423
  %v1426 = vmul.f32 %v1418, %v1424
  %v1427 = vmul.f32 %v1419, %v1424
  %v1429 = vlaneseq
  %v1430 = vshrl.u32 %v1429, 7
  %v1431 = vsub.s32 0, %v1430
  %v1432 = vrot.slane %v1393, %v1431
  %v1434 = vadd.f32 %v1426, %v1432
  %v1435 = vadd.f32 %v1427, %v1432
  %v1436 = vld [vmem:[%s13] sm:$0x1]
  %v1437 = vld [vmem:[%s14] sm:$0x1]
  %v1438 = vsel %vm67, %v1434, 0.0
  %1439 = vadd.xlane.f32.xlu0 %v1438
  %v1440 = vpop.xlane.xlu0 %1439
  %v1441 = vsel %vm67, %v1435, 0.0
  %1442 = vadd.xlane.f32.xlu0 %v1441
  %v1443 = vpop.xlane.xlu0 %1442
  %v1444 = vmul.f32 %v1440, %v1228
  %v1445 = vmul.f32 %v1443, %v1228
  %v1446 = vsub.f32 %v1434, %v1444
  %v1447 = vsub.f32 %v1435, %v1445
  %v1448 = vmul.f32 %v1446, %v1446
  %v1449 = vmul.f32 %v1447, %v1447
  %v1450 = vsel %vm67, %v1448, 0.0
  %1451 = vadd.xlane.f32.xlu0 %v1450
  %v1452 = vpop.xlane.xlu0 %1451
  %v1453 = vsel %vm67, %v1449, 0.0
  %1454 = vadd.xlane.f32.xlu0 %v1453
  %v1455 = vpop.xlane.xlu0 %1454
  %v1456 = vmul.f32 %v1452, %v1228
  %v1457 = vmul.f32 %v1455, %v1228
  %v1458 = vadd.f32 %v1456, 1e-05
  %v1459 = vadd.f32 %v1457, 1e-05
  %v1460 = vrsqrt.pop %v1458
  %v1461 = vrsqrt.pop %v1459
  %v1462 = vmul.f32 %v1446, %v1460
  %v1463 = vmul.f32 %v1447, %v1461
  %v1465 = vlaneseq
  %v1466 = vshrl.u32 %v1465, 7
  %v1467 = vsub.s32 0, %v1466
  %v1468 = vrot.slane %v1436, %v1467
  %v1470 = vmul.f32 %v1462, %v1468
  %v1471 = vmul.f32 %v1463, %v1468
  %v1473 = vlaneseq
  %v1474 = vshrl.u32 %v1473, 7
  %v1475 = vsub.s32 0, %v1474
  %v1476 = vrot.slane %v1437, %v1475
  %v1478 = vadd.f32 %v1470, %v1476
  %v1479 = vadd.f32 %v1471, %v1476
  %1480 = vst.msk [vmem:[%s15] sm:$0xff] %vm67, %v1478
  %1481 = vst.msk [vmem:[%s15 + $0x8] sm:$0xff] %vm67, %v1479
  // Predicated region
  $region62: #{vggish_transformer_forward.8} parent=0 // pred_check
    _
  $region63: #{vggish_transformer_forward.8} parent=0 // pred_check_branch
    %1483 = sbr.rel (0) target = $region65
  $region64: #{vggish_transformer_forward.8} parent=0 // pred_region
    _
  $region65: #{vggish_transformer_forward.8} parent=0 // pred_fallthru
    _
  // Predicated region
  $region66: #{vggish_transformer_forward.8} parent=0 // pred_check
    _
  $region67: #{vggish_transformer_forward.8} parent=0 // pred_check_branch
    %1485 = sbr.rel (0) target = $region69
  $region68: #{vggish_transformer_forward.8} parent=0 // pred_region
    _
  $region69: #{vggish_transformer_forward.8} parent=0 // pred_fallthru
    _

// kernel: vggish_transformer_forward.9
$region0: #{vggish_transformer_forward.9}
  #allocation0 [shape = 'u32[]', space=smem, size = 0x4, offset = 0x4, fixed_abs, tag = 'smem constant byte address 0x4 - core index']
  #allocation1 [shape = 'u32[144,128]{1,0:T(1,128)}', space=vmem, size = 0x12000, scoped, tag = 'internal scratch']
  %s0 = inlined_call_operand.vmem [shape: f32[16,32], index: 0, kind: input, shape index: {}]
  %s1 = inlined_call_operand.vmem [shape: f32[16,32], index: 1, kind: input, shape index: {}]
  %s2 = inlined_call_operand.vmem [shape: f32[32,96], index: 2, kind: input, shape index: {}]
  %s3 = inlined_call_operand.vmem [shape: f32[1,96], index: 3, kind: input, shape index: {}]
  %s4 = inlined_call_operand.vmem [shape: f32[32,32], index: 4, kind: input, shape index: {}]
  %s5 = inlined_call_operand.vmem [shape: f32[1,32], index: 5, kind: input, shape index: {}]
  %s6 = inlined_call_operand.vmem [shape: f32[1,32], index: 6, kind: input, shape index: {}]
  %s7 = inlined_call_operand.vmem [shape: f32[1,32], index: 7, kind: input, shape index: {}]
  %s8 = inlined_call_operand.vmem [shape: f32[32,32], index: 8, kind: input, shape index: {}]
  %s9 = inlined_call_operand.vmem [shape: f32[1,32], index: 9, kind: input, shape index: {}]
  %s10 = inlined_call_operand.vmem [shape: f32[32,64], index: 10, kind: input, shape index: {}]
  %s11 = inlined_call_operand.vmem [shape: f32[1,64], index: 11, kind: input, shape index: {}]
  %s12 = inlined_call_operand.vmem [shape: f32[32,32], index: 12, kind: input, shape index: {}]
  %s13 = inlined_call_operand.vmem [shape: f32[1,32], index: 13, kind: input, shape index: {}]
  %s14 = inlined_call_operand.vmem [shape: f32[1,32], index: 14, kind: input, shape index: {}]
  %s15 = inlined_call_operand.vmem [shape: f32[1,32], index: 15, kind: input, shape index: {}]
  %s16 = inlined_call_operand.vmem [shape: f32[32,64], index: 16, kind: input, shape index: {}]
  %s17 = inlined_call_operand.vmem [shape: f32[1,64], index: 17, kind: input, shape index: {}]
  %s18 = inlined_call_operand.vmem [shape: f32[64,32], index: 18, kind: input, shape index: {}]
  %s19 = inlined_call_operand.vmem [shape: f32[1,32], index: 19, kind: input, shape index: {}]
  %s20 = inlined_call_operand.vmem [shape: f32[1,32], index: 20, kind: input, shape index: {}]
  %s21 = inlined_call_operand.vmem [shape: f32[1,32], index: 21, kind: input, shape index: {}]
  %s22 = inlined_call_operand.vmem [shape: f32[1,32], index: 22, kind: input, shape index: {}]
  %s23 = inlined_call_operand.vmem [shape: f32[1,32], index: 23, kind: input, shape index: {}]
  %s24 = inlined_call_operand.vmem [shape: f32[16,32], index: 24, kind: output, shape index: {}]
  %s25 = sld [smem:[#allocation0]]
  $region106: #{vggish_transformer_forward.9} parent=0
    _
  %s27 = ssub.s32 1, %s25
  %s28 = scalar_select 0, %s27, %s25
  // Predicated region
  $region2: #{vggish_transformer_forward.9} parent=0 // pred_check
    _
  $region3: #{vggish_transformer_forward.9} parent=0 // pred_check_branch
    %30 = sbr.rel (0) target = $region5
  $region4: #{vggish_transformer_forward.9} parent=0 // pred_region
    _
  $region5: #{vggish_transformer_forward.9} parent=0 // pred_fallthru
    _
  // Predicated region
  $region6: #{vggish_transformer_forward.9} parent=0 // pred_check
    _
  $region7: #{vggish_transformer_forward.9} parent=0 // pred_check_branch
    %32 = sbr.rel (0) target = $region9
  $region8: #{vggish_transformer_forward.9} parent=0 // pred_region
    _
  $region9: #{vggish_transformer_forward.9} parent=0 // pred_fallthru
    _
  // Predicated region
  $region10: #{vggish_transformer_forward.9} parent=0 // pred_check
    _
  $region11: #{vggish_transformer_forward.9} parent=0 // pred_check_branch
    %34 = sbr.rel (0) target = $region13
  $region12: #{vggish_transformer_forward.9} parent=0 // pred_region
    _
  $region13: #{vggish_transformer_forward.9} parent=0 // pred_fallthru
    _
  // Predicated region
  $region14: #{vggish_transformer_forward.9} parent=0 // pred_check
    _
  $region15: #{vggish_transformer_forward.9} parent=0 // pred_check_branch
    %36 = sbr.rel (0) target = $region17
  $region16: #{vggish_transformer_forward.9} parent=0 // pred_region
    _
  $region17: #{vggish_transformer_forward.9} parent=0 // pred_fallthru
    _
  // Predicated region
  $region18: #{vggish_transformer_forward.9} parent=0 // pred_check
    _
  $region19: #{vggish_transformer_forward.9} parent=0 // pred_check_branch
    %38 = sbr.rel (0) target = $region21
  $region20: #{vggish_transformer_forward.9} parent=0 // pred_region
    _
  $region21: #{vggish_transformer_forward.9} parent=0 // pred_fallthru
    _
  // Predicated region
  $region22: #{vggish_transformer_forward.9} parent=0 // pred_check
    _
  $region23: #{vggish_transformer_forward.9} parent=0 // pred_check_branch
    %40 = sbr.rel (0) target = $region25
  $region24: #{vggish_transformer_forward.9} parent=0 // pred_region
    _
  $region25: #{vggish_transformer_forward.9} parent=0 // pred_fallthru
    _
  // Predicated region
  $region26: #{vggish_transformer_forward.9} parent=0 // pred_check
    _
  $region27: #{vggish_transformer_forward.9} parent=0 // pred_check_branch
    %42 = sbr.rel (0) target = $region29
  $region28: #{vggish_transformer_forward.9} parent=0 // pred_region
    _
  $region29: #{vggish_transformer_forward.9} parent=0 // pred_fallthru
    _
  // Predicated region
  $region30: #{vggish_transformer_forward.9} parent=0 // pred_check
    _
  $region31: #{vggish_transformer_forward.9} parent=0 // pred_check_branch
    %44 = sbr.rel (0) target = $region33
  $region32: #{vggish_transformer_forward.9} parent=0 // pred_region
    _
  $region33: #{vggish_transformer_forward.9} parent=0 // pred_fallthru
    _
  // Predicated region
  $region34: #{vggish_transformer_forward.9} parent=0 // pred_check
    _
  $region35: #{vggish_transformer_forward.9} parent=0 // pred_check_branch
    %46 = sbr.rel (0) target = $region37
  $region36: #{vggish_transformer_forward.9} parent=0 // pred_region
    _
  $region37: #{vggish_transformer_forward.9} parent=0 // pred_fallthru
    _
  // Predicated region
  $region38: #{vggish_transformer_forward.9} parent=0 // pred_check
    _
  $region39: #{vggish_transformer_forward.9} parent=0 // pred_check_branch
    %48 = sbr.rel (0) target = $region41
  $region40: #{vggish_transformer_forward.9} parent=0 // pred_region
    _
  $region41: #{vggish_transformer_forward.9} parent=0 // pred_fallthru
    _
  // Predicated region
  $region42: #{vggish_transformer_forward.9} parent=0 // pred_check
    _
  $region43: #{vggish_transformer_forward.9} parent=0 // pred_check_branch
    %50 = sbr.rel (0) target = $region45
  $region44: #{vggish_transformer_forward.9} parent=0 // pred_region
    _
  $region45: #{vggish_transformer_forward.9} parent=0 // pred_fallthru
    _
  // Predicated region
  $region46: #{vggish_transformer_forward.9} parent=0 // pred_check
    _
  $region47: #{vggish_transformer_forward.9} parent=0 // pred_check_branch
    %52 = sbr.rel (0) target = $region49
  $region48: #{vggish_transformer_forward.9} parent=0 // pred_region
    _
  $region49: #{vggish_transformer_forward.9} parent=0 // pred_fallthru
    _
  // Predicated region
  $region50: #{vggish_transformer_forward.9} parent=0 // pred_check
    _
  $region51: #{vggish_transformer_forward.9} parent=0 // pred_check_branch
    %54 = sbr.rel (0) target = $region53
  $region52: #{vggish_transformer_forward.9} parent=0 // pred_region
    _
  $region53: #{vggish_transformer_forward.9} parent=0 // pred_fallthru
    _
  // Predicated region
  $region54: #{vggish_transformer_forward.9} parent=0 // pred_check
    _
  $region55: #{vggish_transformer_forward.9} parent=0 // pred_check_branch
    %56 = sbr.rel (0) target = $region57
  $region56: #{vggish_transformer_forward.9} parent=0 // pred_region
    _
  $region57: #{vggish_transformer_forward.9} parent=0 // pred_fallthru
    _
  // Predicated region
  $region58: #{vggish_transformer_forward.9} parent=0 // pred_check
    _
  $region59: #{vggish_transformer_forward.9} parent=0 // pred_check_branch
    %58 = sbr.rel (0) target = $region61
  $region60: #{vggish_transformer_forward.9} parent=0 // pred_region
    _
  $region61: #{vggish_transformer_forward.9} parent=0 // pred_fallthru
    _
  // Predicated region
  $region62: #{vggish_transformer_forward.9} parent=0 // pred_check
    _
  $region63: #{vggish_transformer_forward.9} parent=0 // pred_check_branch
    %60 = sbr.rel (0) target = $region65
  $region64: #{vggish_transformer_forward.9} parent=0 // pred_region
    _
  $region65: #{vggish_transformer_forward.9} parent=0 // pred_fallthru
    _
  // Predicated region
  $region66: #{vggish_transformer_forward.9} parent=0 // pred_check
    _
  $region67: #{vggish_transformer_forward.9} parent=0 // pred_check_branch
    %62 = sbr.rel (0) target = $region69
  $region68: #{vggish_transformer_forward.9} parent=0 // pred_region
    _
  $region69: #{vggish_transformer_forward.9} parent=0 // pred_fallthru
    _
  // Predicated region
  $region70: #{vggish_transformer_forward.9} parent=0 // pred_check
    _
  $region71: #{vggish_transformer_forward.9} parent=0 // pred_check_branch
    %64 = sbr.rel (0) target = $region73
  $region72: #{vggish_transformer_forward.9} parent=0 // pred_region
    _
  $region73: #{vggish_transformer_forward.9} parent=0 // pred_fallthru
    _
  // Predicated region
  $region74: #{vggish_transformer_forward.9} parent=0 // pred_check
    _
  $region75: #{vggish_transformer_forward.9} parent=0 // pred_check_branch
    %66 = sbr.rel (0) target = $region77
  $region76: #{vggish_transformer_forward.9} parent=0 // pred_region
    _
  $region77: #{vggish_transformer_forward.9} parent=0 // pred_fallthru
    _
  // Predicated region
  $region78: #{vggish_transformer_forward.9} parent=0 // pred_check
    _
  $region79: #{vggish_transformer_forward.9} parent=0 // pred_check_branch
    %68 = sbr.rel (0) target = $region81
  $region80: #{vggish_transformer_forward.9} parent=0 // pred_region
    _
  $region81: #{vggish_transformer_forward.9} parent=0 // pred_fallthru
    _
  // Predicated region
  $region82: #{vggish_transformer_forward.9} parent=0 // pred_check
    _
  $region83: #{vggish_transformer_forward.9} parent=0 // pred_check_branch
    %70 = sbr.rel (0) target = $region85
  $region84: #{vggish_transformer_forward.9} parent=0 // pred_region
    _
  $region85: #{vggish_transformer_forward.9} parent=0 // pred_fallthru
    _
  // Predicated region
  $region86: #{vggish_transformer_forward.9} parent=0 // pred_check
    _
  $region87: #{vggish_transformer_forward.9} parent=0 // pred_check_branch
    %72 = sbr.rel (0) target = $region89
  $region88: #{vggish_transformer_forward.9} parent=0 // pred_region
    _
  $region89: #{vggish_transformer_forward.9} parent=0 // pred_fallthru
    _
  // Predicated region
  $region90: #{vggish_transformer_forward.9} parent=0 // pred_check
    _
  $region91: #{vggish_transformer_forward.9} parent=0 // pred_check_branch
    %74 = sbr.rel (0) target = $region93
  $region92: #{vggish_transformer_forward.9} parent=0 // pred_region
    _
  $region93: #{vggish_transformer_forward.9} parent=0 // pred_fallthru
    _
  // Predicated region
  $region94: #{vggish_transformer_forward.9} parent=0 // pred_check
    _
  $region95: #{vggish_transformer_forward.9} parent=0 // pred_check_branch
    %76 = sbr.rel (0) target = $region97
  $region96: #{vggish_transformer_forward.9} parent=0 // pred_region
    _
  $region97: #{vggish_transformer_forward.9} parent=0 // pred_fallthru
    _
  %v78 = vld [vmem:[%s0] sm:$0xff]
  %v79 = vld [vmem:[%s0 + $0x8] sm:$0xff]
  %v80 = vld [vmem:[%s1] sm:$0xff]
  %v81 = vld [vmem:[%s1 + $0x8] sm:$0xff]
  %v82 = vld [vmem:[%s2] sm:$0xff]
  %v83 = vld [vmem:[%s2 + $0x8] sm:$0xff]
  %v84 = vld [vmem:[%s2 + $0x10] sm:$0xff]
  %v85 = vld [vmem:[%s2 + $0x18] sm:$0xff]
  %v86 = vpack.c.bf16 %v79, %v78
  %v87 = vpack.c.bf16 %v83, %v82
  %v88 = vpack.c.bf16 %v85, %v84
  %v89 = vld [vmem:[%s3] sm:$0x1]
  %v91 = vlaneseq
  %v92 = vshrl.u32 %v91, 7
  %v93 = vsub.s32 0, %v92
  %v94 = vrot.slane %v89, %v93
  %vm96 = vcmask 261120
  %v98 = vsel %vm96, %v86, 0
  %100 = vmatprep.subr.bf16.mxu0 0
  %101 = vmatpush1.bf16.msra.mxu0 %v87
  %102 = vmatprep.subr.bf16.mxu0 0
  %103 = vmatpush1.bf16.msra.mxu0 %v88
  %104 = vmatprep.subr.bf16.mxu0 0
  %105 = vmatpush1.bf16.msra.mxu0 0
  %106 = vmatprep.subr.bf16.mxu0 0
  %107 = vmatpush1.bf16.msra.mxu0 0
  %108 = vmatprep.subr.bf16.mxu0 0
  %109 = vmatpush1.bf16.msra.mxu0 0
  %110 = vmatprep.subr.bf16.mxu0 0
  %111 = vmatpush1.bf16.msra.mxu0 0
  %112 = vmatprep.subr.bf16.mxu0 0
  %113 = vmatpush1.bf16.msra.mxu0 0
  %114 = vmatprep.subr.bf16.mxu0 0
  %115 = vmatpush1.bf16.msra.mxu0 0
  %116 = vmatprep.subr.bf16.mxu0 0
  %117 = vmatpush1.bf16.msra.mxu0 0
  %118 = vmatprep.subr.bf16.mxu0 0
  %119 = vmatpush1.bf16.msra.mxu0 0
  %120 = vmatprep.subr.bf16.mxu0 0
  %121 = vmatpush1.bf16.msra.mxu0 0
  %122 = vmatprep.subr.bf16.mxu0 0
  %123 = vmatpush1.bf16.msra.mxu0 0
  %124 = vmatprep.subr.bf16.mxu0 0
  %125 = vmatpush1.bf16.msra.mxu0 0
  %126 = vmatprep.subr.bf16.mxu0 0
  %127 = vmatpush1.bf16.msra.mxu0 0
  %128 = vmatprep.subr.bf16.mxu0 0
  %129 = vmatpush1.bf16.msra.mxu0 0
  %130 = vmatprep.subr.bf16.mxu0 0
  %131 = vmatpush1.bf16.msra.mxu0 0
  %132 = vmatprep.mubr.bf16.mxu0 0
  %133 = vmatmul.mubr.bf16.gmra.mrb[0].mxu0 %v98
  %v134 = vpop.f32.mrb[0].mxu0
  %v135 = vadd.f32 %v94, %v134
  %v136 = vpop.f32.mrb[0].mxu0
  %v137 = vpop.f32.mrb[0].mxu0
  %v138 = vadd.f32 %v94, %v137
  %v139 = vpop.f32.mrb[0].mxu0
  %140 = vdwg.mxu0
  %v141 = vld [vmem:[%s4] sm:$0xff]
  %v142 = vld [vmem:[%s4 + $0x8] sm:$0xff]
  %v143 = vld [vmem:[%s4 + $0x10] sm:$0xff]
  %v144 = vld [vmem:[%s4 + $0x18] sm:$0xff]
  %v145 = vld [vmem:[%s5] sm:$0x1]
  %v147 = vlaneseq
  %v148 = vshrl.u32 %v147, 7
  %v149 = vsub.s32 0, %v148
  %v150 = vrot.slane %v145, %v149
  %v152 = vadd.f32 %v150, 0.0
  %v153 = vpack.c.bf16 %v135, %v135
  %v154 = vpack.c.bf16 %v138, %v138
  %156 = vrot.lane.b32.xlu0 %v153, 96
  %v157 = vpop.permute.xlu0 %156
  %vm158 = vcmask 64512
  %v160 = vsel %vm158, %v153, 0
  %v163 = vsel %vm158, %v157, 0
  %165 = vmatprep.subr.bf16.mxu0 0
  %166 = vmatpush1.bf16.xpose.msra.mxu0 %v163
  %167 = vmatprep.subr.bf16.mxu0 0
  %168 = vmatpush1.bf16.xpose.msra.mxu0 0
  %169 = vmatprep.subr.bf16.mxu0 0
  %170 = vmatpush1.bf16.xpose.msra.mxu0 0
  %171 = vmatprep.subr.bf16.mxu0 0
  %172 = vmatpush1.bf16.xpose.msra.mxu0 0
  %173 = vmatprep.subr.bf16.mxu0 0
  %174 = vmatpush1.bf16.xpose.msra.mxu0 0
  %175 = vmatprep.subr.bf16.mxu0 0
  %176 = vmatpush1.bf16.xpose.msra.mxu0 0
  %177 = vmatprep.subr.bf16.mxu0 0
  %178 = vmatpush1.bf16.xpose.msra.mxu0 0
  %179 = vmatprep.subr.bf16.mxu0 0
  %180 = vmatpush1.bf16.xpose.msra.mxu0 0
  %181 = vmatprep.subr.bf16.mxu0 0
  %182 = vmatpush1.bf16.xpose.msra.mxu0 0
  %183 = vmatprep.subr.bf16.mxu0 0
  %184 = vmatpush1.bf16.xpose.msra.mxu0 0
  %185 = vmatprep.subr.bf16.mxu0 0
  %186 = vmatpush1.bf16.xpose.msra.mxu0 0
  %187 = vmatprep.subr.bf16.mxu0 0
  %188 = vmatpush1.bf16.xpose.msra.mxu0 0
  %189 = vmatprep.subr.bf16.mxu0 0
  %190 = vmatpush1.bf16.xpose.msra.mxu0 0
  %191 = vmatprep.subr.bf16.mxu0 0
  %192 = vmatpush1.bf16.xpose.msra.mxu0 0
  %193 = vmatprep.subr.bf16.mxu0 0
  %194 = vmatpush1.bf16.xpose.msra.mxu0 0
  %195 = vmatprep.subr.bf16.mxu0 0
  %196 = vmatpush1.bf16.xpose.msra.mxu0 0
  %197 = vmatprep.mubr.bf16.mxu0 0
  %198 = vmatmul.mubr.bf16.gmra.mrb[0].mxu0 %v160
  %v199 = vpop.f32.mrb[0].mxu0
  %v200 = vadd.f32 0.0, %v199
  %v201 = vpop.f32.mrb[0].mxu0
  %v202 = vpop.f32.mrb[0].mxu0
  %v203 = vpop.f32.mrb[0].mxu0
  %204 = vdwg.mxu0
  %206 = vrot.lane.b32.xlu0 %v154, 96
  %v207 = vpop.permute.xlu0 %206
  %v209 = vsel %vm158, %v154, 0
  %v212 = vsel %vm158, %v207, 0
  %214 = vmatprep.subr.bf16.mxu0 0
  %215 = vmatpush1.bf16.xpose.msra.mxu0 %v212
  %216 = vmatprep.subr.bf16.mxu0 0
  %217 = vmatpush1.bf16.xpose.msra.mxu0 0
  %218 = vmatprep.subr.bf16.mxu0 0
  %219 = vmatpush1.bf16.xpose.msra.mxu0 0
  %220 = vmatprep.subr.bf16.mxu0 0
  %221 = vmatpush1.bf16.xpose.msra.mxu0 0
  %222 = vmatprep.subr.bf16.mxu0 0
  %223 = vmatpush1.bf16.xpose.msra.mxu0 0
  %224 = vmatprep.subr.bf16.mxu0 0
  %225 = vmatpush1.bf16.xpose.msra.mxu0 0
  %226 = vmatprep.subr.bf16.mxu0 0
  %227 = vmatpush1.bf16.xpose.msra.mxu0 0
  %228 = vmatprep.subr.bf16.mxu0 0
  %229 = vmatpush1.bf16.xpose.msra.mxu0 0
  %230 = vmatprep.subr.bf16.mxu0 0
  %231 = vmatpush1.bf16.xpose.msra.mxu0 0
  %232 = vmatprep.subr.bf16.mxu0 0
  %233 = vmatpush1.bf16.xpose.msra.mxu0 0
  %234 = vmatprep.subr.bf16.mxu0 0
  %235 = vmatpush1.bf16.xpose.msra.mxu0 0
  %236 = vmatprep.subr.bf16.mxu0 0
  %237 = vmatpush1.bf16.xpose.msra.mxu0 0
  %238 = vmatprep.subr.bf16.mxu0 0
  %239 = vmatpush1.bf16.xpose.msra.mxu0 0
  %240 = vmatprep.subr.bf16.mxu0 0
  %241 = vmatpush1.bf16.xpose.msra.mxu0 0
  %242 = vmatprep.subr.bf16.mxu0 0
  %243 = vmatpush1.bf16.xpose.msra.mxu0 0
  %244 = vmatprep.subr.bf16.mxu0 0
  %245 = vmatpush1.bf16.xpose.msra.mxu0 0
  %246 = vmatprep.mubr.bf16.mxu0 0
  %247 = vmatmul.mubr.bf16.gmra.mrb[0].mxu0 %v209
  %v248 = vpop.f32.mrb[0].mxu0
  %v249 = vadd.f32 0.0, %v248
  %v250 = vpop.f32.mrb[0].mxu0
  %v251 = vpop.f32.mrb[0].mxu0
  %v252 = vpop.f32.mrb[0].mxu0
  %253 = vdwg.mxu0
  %v254 = vmul.f32 %v200, 0.35355338
  %v255 = vmul.f32 %v249, 0.35355338
  %v256 = vsel %vm158, %v254, -inf
  %257 = vmax.xlane.f32.xlu0 %v256
  %v258 = vpop.xlane.xlu0 %257
  %v259 = vsel %vm158, %v255, -inf
  %260 = vmax.xlane.f32.xlu0 %v259
  %v261 = vpop.xlane.xlu0 %260
  %v262 = vsub.f32 %v254, %v258
  %v263 = vsub.f32 %v255, %v261
  %v264 = vmul.f32 %v262, 1.442695
  %v265 = vpow.pop %v264
  %v266 = vmul.f32 %v263, 1.442695
  %v267 = vpow.pop %v266
  %v268 = vsel %vm158, %v265, 0.0
  %269 = vadd.xlane.f32.xlu0 %v268
  %v270 = vpop.xlane.xlu0 %269
  %v271 = vsel %vm158, %v267, 0.0
  %272 = vadd.xlane.f32.xlu0 %v271
  %v273 = vpop.xlane.xlu0 %272
  %v274 = vrcp.pop %v270
  %v275 = vrcp.pop %v273
  %v276 = vmul.f32 %v265, %v274
  %v277 = vmul.f32 %v267, %v275
  %v278 = vpack.c.bf16 %v276, %v276
  %v279 = vpack.c.bf16 %v277, %v277
  %280 = vrot.lane.b32.xlu0 %v153, 64
  %v281 = vpop.permute.xlu0 %280
  %v283 = vsel %vm158, %v278, 0
  %vm285 = vcmask 1043456
  %v287 = vsel %vm285, %v281, 0
  %289 = vmatprep.subr.bf16.mxu0 0
  %290 = vmatpush1.bf16.msra.mxu0 %v287
  %291 = vmatprep.subr.bf16.mxu0 0
  %292 = vmatpush1.bf16.msra.mxu0 0
  %293 = vmatprep.subr.bf16.mxu0 0
  %294 = vmatpush1.bf16.msra.mxu0 0
  %295 = vmatprep.subr.bf16.mxu0 0
  %296 = vmatpush1.bf16.msra.mxu0 0
  %297 = vmatprep.subr.bf16.mxu0 0
  %298 = vmatpush1.bf16.msra.mxu0 0
  %299 = vmatprep.subr.bf16.mxu0 0
  %300 = vmatpush1.bf16.msra.mxu0 0
  %301 = vmatprep.subr.bf16.mxu0 0
  %302 = vmatpush1.bf16.msra.mxu0 0
  %303 = vmatprep.subr.bf16.mxu0 0
  %304 = vmatpush1.bf16.msra.mxu0 0
  %305 = vmatprep.subr.bf16.mxu0 0
  %306 = vmatpush1.bf16.msra.mxu0 0
  %307 = vmatprep.subr.bf16.mxu0 0
  %308 = vmatpush1.bf16.msra.mxu0 0
  %309 = vmatprep.subr.bf16.mxu0 0
  %310 = vmatpush1.bf16.msra.mxu0 0
  %311 = vmatprep.subr.bf16.mxu0 0
  %312 = vmatpush1.bf16.msra.mxu0 0
  %313 = vmatprep.subr.bf16.mxu0 0
  %314 = vmatpush1.bf16.msra.mxu0 0
  %315 = vmatprep.subr.bf16.mxu0 0
  %316 = vmatpush1.bf16.msra.mxu0 0
  %317 = vmatprep.subr.bf16.mxu0 0
  %318 = vmatpush1.bf16.msra.mxu0 0
  %319 = vmatprep.subr.bf16.mxu0 0
  %320 = vmatpush1.bf16.msra.mxu0 0
  %321 = vmatprep.mubr.bf16.mxu0 0
  %322 = vmatmul.mubr.bf16.gmra.mrb[0].mxu0 %v283
  %v323 = vpop.f32.mrb[0].mxu0
  %v324 = vadd.f32 0.0, %v323
  %v325 = vpop.f32.mrb[0].mxu0
  %v326 = vpop.f32.mrb[0].mxu0
  %v327 = vpop.f32.mrb[0].mxu0
  %328 = vdwg.mxu0
  %329 = vrot.lane.b32.xlu0 %v154, 64
  %v330 = vpop.permute.xlu0 %329
  %v332 = vsel %vm158, %v279, 0
  %v335 = vsel %vm285, %v330, 0
  %337 = vmatprep.subr.bf16.mxu0 0
  %338 = vmatpush1.bf16.msra.mxu0 %v335
  %339 = vmatprep.subr.bf16.mxu0 0
  %340 = vmatpush1.bf16.msra.mxu0 0
  %341 = vmatprep.subr.bf16.mxu0 0
  %342 = vmatpush1.bf16.msra.mxu0 0
  %343 = vmatprep.subr.bf16.mxu0 0
  %344 = vmatpush1.bf16.msra.mxu0 0
  %345 = vmatprep.subr.bf16.mxu0 0
  %346 = vmatpush1.bf16.msra.mxu0 0
  %347 = vmatprep.subr.bf16.mxu0 0
  %348 = vmatpush1.bf16.msra.mxu0 0
  %349 = vmatprep.subr.bf16.mxu0 0
  %350 = vmatpush1.bf16.msra.mxu0 0
  %351 = vmatprep.subr.bf16.mxu0 0
  %352 = vmatpush1.bf16.msra.mxu0 0
  %353 = vmatprep.subr.bf16.mxu0 0
  %354 = vmatpush1.bf16.msra.mxu0 0
  %355 = vmatprep.subr.bf16.mxu0 0
  %356 = vmatpush1.bf16.msra.mxu0 0
  %357 = vmatprep.subr.bf16.mxu0 0
  %358 = vmatpush1.bf16.msra.mxu0 0
  %359 = vmatprep.subr.bf16.mxu0 0
  %360 = vmatpush1.bf16.msra.mxu0 0
  %361 = vmatprep.subr.bf16.mxu0 0
  %362 = vmatpush1.bf16.msra.mxu0 0
  %363 = vmatprep.subr.bf16.mxu0 0
  %364 = vmatpush1.bf16.msra.mxu0 0
  %365 = vmatprep.subr.bf16.mxu0 0
  %366 = vmatpush1.bf16.msra.mxu0 0
  %367 = vmatprep.subr.bf16.mxu0 0
  %368 = vmatpush1.bf16.msra.mxu0 0
  %369 = vmatprep.mubr.bf16.mxu0 0
  %370 = vmatmul.mubr.bf16.gmra.mrb[0].mxu0 %v332
  %v371 = vpop.f32.mrb[0].mxu0
  %v372 = vadd.f32 0.0, %v371
  %v373 = vpop.f32.mrb[0].mxu0
  %v374 = vpop.f32.mrb[0].mxu0
  %v375 = vpop.f32.mrb[0].mxu0
  %376 = vdwg.mxu0
  %v377 = vpack.c.bf16 %v372, %v324
  %v378 = vpack.c.bf16 %v141, %v141
  %v380 = vsel %vm158, %v377, 0
  %v383 = vsel %vm285, %v378, 0
  %385 = vmatprep.subr.bf16.mxu0 0
  %386 = vmatpush1.bf16.msra.mxu0 %v383
  %387 = vmatprep.subr.bf16.mxu0 0
  %388 = vmatpush1.bf16.msra.mxu0 0
  %389 = vmatprep.subr.bf16.mxu0 0
  %390 = vmatpush1.bf16.msra.mxu0 0
  %391 = vmatprep.subr.bf16.mxu0 0
  %392 = vmatpush1.bf16.msra.mxu0 0
  %393 = vmatprep.subr.bf16.mxu0 0
  %394 = vmatpush1.bf16.msra.mxu0 0
  %395 = vmatprep.subr.bf16.mxu0 0
  %396 = vmatpush1.bf16.msra.mxu0 0
  %397 = vmatprep.subr.bf16.mxu0 0
  %398 = vmatpush1.bf16.msra.mxu0 0
  %399 = vmatprep.subr.bf16.mxu0 0
  %400 = vmatpush1.bf16.msra.mxu0 0
  %401 = vmatprep.subr.bf16.mxu0 0
  %402 = vmatpush1.bf16.msra.mxu0 0
  %403 = vmatprep.subr.bf16.mxu0 0
  %404 = vmatpush1.bf16.msra.mxu0 0
  %405 = vmatprep.subr.bf16.mxu0 0
  %406 = vmatpush1.bf16.msra.mxu0 0
  %407 = vmatprep.subr.bf16.mxu0 0
  %408 = vmatpush1.bf16.msra.mxu0 0
  %409 = vmatprep.subr.bf16.mxu0 0
  %410 = vmatpush1.bf16.msra.mxu0 0
  %411 = vmatprep.subr.bf16.mxu0 0
  %412 = vmatpush1.bf16.msra.mxu0 0
  %413 = vmatprep.subr.bf16.mxu0 0
  %414 = vmatpush1.bf16.msra.mxu0 0
  %415 = vmatprep.subr.bf16.mxu0 0
  %416 = vmatpush1.bf16.msra.mxu0 0
  %417 = vmatprep.mubr.bf16.mxu0 0
  %418 = vmatmul.mubr.bf16.gmra.mrb[0].mxu0 %v380
  %v419 = vpop.f32.mrb[0].mxu0
  %v420 = vadd.f32 0.0, %v419
  %v421 = vpop.f32.mrb[0].mxu0
  %v422 = vpop.f32.mrb[0].mxu0
  %v423 = vadd.f32 0.0, %v422
  %v424 = vpop.f32.mrb[0].mxu0
  %425 = vdwg.mxu0
  %v426 = vadd.f32 %v152, %v420
  %v427 = vadd.f32 %v152, %v423
  %428 = vrot.lane.b32.xlu0 %v153, 120
  %v429 = vpop.permute.xlu0 %428
  %430 = vrot.lane.b32.xlu0 %v153, 88
  %v431 = vpop.permute.xlu0 %430
  %v433 = vsel %vm158, %v429, 0
  %v436 = vsel %vm158, %v431, 0
  %438 = vmatprep.subr.bf16.mxu0 0
  %439 = vmatpush1.bf16.xpose.msra.mxu0 %v436
  %440 = vmatprep.subr.bf16.mxu0 0
  %441 = vmatpush1.bf16.xpose.msra.mxu0 0
  %442 = vmatprep.subr.bf16.mxu0 0
  %443 = vmatpush1.bf16.xpose.msra.mxu0 0
  %444 = vmatprep.subr.bf16.mxu0 0
  %445 = vmatpush1.bf16.xpose.msra.mxu0 0
  %446 = vmatprep.subr.bf16.mxu0 0
  %447 = vmatpush1.bf16.xpose.msra.mxu0 0
  %448 = vmatprep.subr.bf16.mxu0 0
  %449 = vmatpush1.bf16.xpose.msra.mxu0 0
  %450 = vmatprep.subr.bf16.mxu0 0
  %451 = vmatpush1.bf16.xpose.msra.mxu0 0
  %452 = vmatprep.subr.bf16.mxu0 0
  %453 = vmatpush1.bf16.xpose.msra.mxu0 0
  %454 = vmatprep.subr.bf16.mxu0 0
  %455 = vmatpush1.bf16.xpose.msra.mxu0 0
  %456 = vmatprep.subr.bf16.mxu0 0
  %457 = vmatpush1.bf16.xpose.msra.mxu0 0
  %458 = vmatprep.subr.bf16.mxu0 0
  %459 = vmatpush1.bf16.xpose.msra.mxu0 0
  %460 = vmatprep.subr.bf16.mxu0 0
  %461 = vmatpush1.bf16.xpose.msra.mxu0 0
  %462 = vmatprep.subr.bf16.mxu0 0
  %463 = vmatpush1.bf16.xpose.msra.mxu0 0
  %464 = vmatprep.subr.bf16.mxu0 0
  %465 = vmatpush1.bf16.xpose.msra.mxu0 0
  %466 = vmatprep.subr.bf16.mxu0 0
  %467 = vmatpush1.bf16.xpose.msra.mxu0 0
  %468 = vmatprep.subr.bf16.mxu0 0
  %469 = vmatpush1.bf16.xpose.msra.mxu0 0
  %470 = vmatprep.mubr.bf16.mxu0 0
  %471 = vmatmul.mubr.bf16.gmra.mrb[0].mxu0 %v433
  %v472 = vpop.f32.mrb[0].mxu0
  %v473 = vadd.f32 0.0, %v472
  %v474 = vpop.f32.mrb[0].mxu0
  %v475 = vpop.f32.mrb[0].mxu0
  %v476 = vpop.f32.mrb[0].mxu0
  %477 = vdwg.mxu0
  %478 = vrot.lane.b32.xlu0 %v154, 120
  %v479 = vpop.permute.xlu0 %478
  %480 = vrot.lane.b32.xlu0 %v154, 88
  %v481 = vpop.permute.xlu0 %480
  %v483 = vsel %vm158, %v479, 0
  %v486 = vsel %vm158, %v481, 0
  %488 = vmatprep.subr.bf16.mxu0 0
  %489 = vmatpush1.bf16.xpose.msra.mxu0 %v486
  %490 = vmatprep.subr.bf16.mxu0 0
  %491 = vmatpush1.bf16.xpose.msra.mxu0 0
  %492 = vmatprep.subr.bf16.mxu0 0
  %493 = vmatpush1.bf16.xpose.msra.mxu0 0
  %494 = vmatprep.subr.bf16.mxu0 0
  %495 = vmatpush1.bf16.xpose.msra.mxu0 0
  %496 = vmatprep.subr.bf16.mxu0 0
  %497 = vmatpush1.bf16.xpose.msra.mxu0 0
  %498 = vmatprep.subr.bf16.mxu0 0
  %499 = vmatpush1.bf16.xpose.msra.mxu0 0
  %500 = vmatprep.subr.bf16.mxu0 0
  %501 = vmatpush1.bf16.xpose.msra.mxu0 0
  %502 = vmatprep.subr.bf16.mxu0 0
  %503 = vmatpush1.bf16.xpose.msra.mxu0 0
  %504 = vmatprep.subr.bf16.mxu0 0
  %505 = vmatpush1.bf16.xpose.msra.mxu0 0
  %506 = vmatprep.subr.bf16.mxu0 0
  %507 = vmatpush1.bf16.xpose.msra.mxu0 0
  %508 = vmatprep.subr.bf16.mxu0 0
  %509 = vmatpush1.bf16.xpose.msra.mxu0 0
  %510 = vmatprep.subr.bf16.mxu0 0
  %511 = vmatpush1.bf16.xpose.msra.mxu0 0
  %512 = vmatprep.subr.bf16.mxu0 0
  %513 = vmatpush1.bf16.xpose.msra.mxu0 0
  %514 = vmatprep.subr.bf16.mxu0 0
  %515 = vmatpush1.bf16.xpose.msra.mxu0 0
  %516 = vmatprep.subr.bf16.mxu0 0
  %517 = vmatpush1.bf16.xpose.msra.mxu0 0
  %518 = vmatprep.subr.bf16.mxu0 0
  %519 = vmatpush1.bf16.xpose.msra.mxu0 0
  %520 = vmatprep.mubr.bf16.mxu0 0
  %521 = vmatmul.mubr.bf16.gmra.mrb[0].mxu0 %v483
  %v522 = vpop.f32.mrb[0].mxu0
  %v523 = vadd.f32 0.0, %v522
  %v524 = vpop.f32.mrb[0].mxu0
  %v525 = vpop.f32.mrb[0].mxu0
  %v526 = vpop.f32.mrb[0].mxu0
  %527 = vdwg.mxu0
  %v528 = vmul.f32 %v473, 0.35355338
  %v529 = vmul.f32 %v523, 0.35355338
  %v530 = vsel %vm158, %v528, -inf
  %531 = vmax.xlane.f32.xlu0 %v530
  %v532 = vpop.xlane.xlu0 %531
  %v533 = vsel %vm158, %v529, -inf
  %534 = vmax.xlane.f32.xlu0 %v533
  %v535 = vpop.xlane.xlu0 %534
  %v536 = vsub.f32 %v528, %v532
  %v537 = vsub.f32 %v529, %v535
  %v538 = vmul.f32 %v536, 1.442695
  %v539 = vpow.pop %v538
  %v540 = vmul.f32 %v537, 1.442695
  %v541 = vpow.pop %v540
  %v542 = vsel %vm158, %v539, 0.0
  %543 = vadd.xlane.f32.xlu0 %v542
  %v544 = vpop.xlane.xlu0 %543
  %v545 = vsel %vm158, %v541, 0.0
  %546 = vadd.xlane.f32.xlu0 %v545
  %v547 = vpop.xlane.xlu0 %546
  %v548 = vrcp.pop %v544
  %v549 = vrcp.pop %v547
  %v550 = vmul.f32 %v539, %v548
  %v551 = vmul.f32 %v541, %v549
  %v552 = vpack.c.bf16 %v550, %v550
  %v553 = vpack.c.bf16 %v551, %v551
  %554 = vrot.lane.b32.xlu0 %v153, 56
  %v555 = vpop.permute.xlu0 %554
  %v557 = vsel %vm158, %v552, 0
  %v560 = vsel %vm285, %v555, 0
  %562 = vmatprep.subr.bf16.mxu0 0
  %563 = vmatpush1.bf16.msra.mxu0 %v560
  %564 = vmatprep.subr.bf16.mxu0 0
  %565 = vmatpush1.bf16.msra.mxu0 0
  %566 = vmatprep.subr.bf16.mxu0 0
  %567 = vmatpush1.bf16.msra.mxu0 0
  %568 = vmatprep.subr.bf16.mxu0 0
  %569 = vmatpush1.bf16.msra.mxu0 0
  %570 = vmatprep.subr.bf16.mxu0 0
  %571 = vmatpush1.bf16.msra.mxu0 0
  %572 = vmatprep.subr.bf16.mxu0 0
  %573 = vmatpush1.bf16.msra.mxu0 0
  %574 = vmatprep.subr.bf16.mxu0 0
  %575 = vmatpush1.bf16.msra.mxu0 0
  %576 = vmatprep.subr.bf16.mxu0 0
  %577 = vmatpush1.bf16.msra.mxu0 0
  %578 = vmatprep.subr.bf16.mxu0 0
  %579 = vmatpush1.bf16.msra.mxu0 0
  %580 = vmatprep.subr.bf16.mxu0 0
  %581 = vmatpush1.bf16.msra.mxu0 0
  %582 = vmatprep.subr.bf16.mxu0 0
  %583 = vmatpush1.bf16.msra.mxu0 0
  %584 = vmatprep.subr.bf16.mxu0 0
  %585 = vmatpush1.bf16.msra.mxu0 0
  %586 = vmatprep.subr.bf16.mxu0 0
  %587 = vmatpush1.bf16.msra.mxu0 0
  %588 = vmatprep.subr.bf16.mxu0 0
  %589 = vmatpush1.bf16.msra.mxu0 0
  %590 = vmatprep.subr.bf16.mxu0 0
  %591 = vmatpush1.bf16.msra.mxu0 0
  %592 = vmatprep.subr.bf16.mxu0 0
  %593 = vmatpush1.bf16.msra.mxu0 0
  %594 = vmatprep.mubr.bf16.mxu0 0
  %595 = vmatmul.mubr.bf16.gmra.mrb[0].mxu0 %v557
  %v596 = vpop.f32.mrb[0].mxu0
  %v597 = vadd.f32 0.0, %v596
  %v598 = vpop.f32.mrb[0].mxu0
  %v599 = vpop.f32.mrb[0].mxu0
  %v600 = vpop.f32.mrb[0].mxu0
  %601 = vdwg.mxu0
  %602 = vrot.lane.b32.xlu0 %v154, 56
  %v603 = vpop.permute.xlu0 %602
  %v605 = vsel %vm158, %v553, 0
  %v608 = vsel %vm285, %v603, 0
  %610 = vmatprep.subr.bf16.mxu0 0
  %611 = vmatpush1.bf16.msra.mxu0 %v608
  %612 = vmatprep.subr.bf16.mxu0 0
  %613 = vmatpush1.bf16.msra.mxu0 0
  %614 = vmatprep.subr.bf16.mxu0 0
  %615 = vmatpush1.bf16.msra.mxu0 0
  %616 = vmatprep.subr.bf16.mxu0 0
  %617 = vmatpush1.bf16.msra.mxu0 0
  %618 = vmatprep.subr.bf16.mxu0 0
  %619 = vmatpush1.bf16.msra.mxu0 0
  %620 = vmatprep.subr.bf16.mxu0 0
  %621 = vmatpush1.bf16.msra.mxu0 0
  %622 = vmatprep.subr.bf16.mxu0 0
  %623 = vmatpush1.bf16.msra.mxu0 0
  %624 = vmatprep.subr.bf16.mxu0 0
  %625 = vmatpush1.bf16.msra.mxu0 0
  %626 = vmatprep.subr.bf16.mxu0 0
  %627 = vmatpush1.bf16.msra.mxu0 0
  %628 = vmatprep.subr.bf16.mxu0 0
  %629 = vmatpush1.bf16.msra.mxu0 0
  %630 = vmatprep.subr.bf16.mxu0 0
  %631 = vmatpush1.bf16.msra.mxu0 0
  %632 = vmatprep.subr.bf16.mxu0 0
  %633 = vmatpush1.bf16.msra.mxu0 0
  %634 = vmatprep.subr.bf16.mxu0 0
  %635 = vmatpush1.bf16.msra.mxu0 0
  %636 = vmatprep.subr.bf16.mxu0 0
  %637 = vmatpush1.bf16.msra.mxu0 0
  %638 = vmatprep.subr.bf16.mxu0 0
  %639 = vmatpush1.bf16.msra.mxu0 0
  %640 = vmatprep.subr.bf16.mxu0 0
  %641 = vmatpush1.bf16.msra.mxu0 0
  %642 = vmatprep.mubr.bf16.mxu0 0
  %643 = vmatmul.mubr.bf16.gmra.mrb[0].mxu0 %v605
  %v644 = vpop.f32.mrb[0].mxu0
  %v645 = vadd.f32 0.0, %v644
  %v646 = vpop.f32.mrb[0].mxu0
  %v647 = vpop.f32.mrb[0].mxu0
  %v648 = vpop.f32.mrb[0].mxu0
  %649 = vdwg.mxu0
  %v650 = vpack.c.bf16 %v645, %v597
  %v651 = vpack.c.bf16 %v142, %v142
  %v653 = vsel %vm158, %v650, 0
  %v656 = vsel %vm285, %v651, 0
  %658 = vmatprep.subr.bf16.mxu0 0
  %659 = vmatpush1.bf16.msra.mxu0 %v656
  %660 = vmatprep.subr.bf16.mxu0 0
  %661 = vmatpush1.bf16.msra.mxu0 0
  %662 = vmatprep.subr.bf16.mxu0 0
  %663 = vmatpush1.bf16.msra.mxu0 0
  %664 = vmatprep.subr.bf16.mxu0 0
  %665 = vmatpush1.bf16.msra.mxu0 0
  %666 = vmatprep.subr.bf16.mxu0 0
  %667 = vmatpush1.bf16.msra.mxu0 0
  %668 = vmatprep.subr.bf16.mxu0 0
  %669 = vmatpush1.bf16.msra.mxu0 0
  %670 = vmatprep.subr.bf16.mxu0 0
  %671 = vmatpush1.bf16.msra.mxu0 0
  %672 = vmatprep.subr.bf16.mxu0 0
  %673 = vmatpush1.bf16.msra.mxu0 0
  %674 = vmatprep.subr.bf16.mxu0 0
  %675 = vmatpush1.bf16.msra.mxu0 0
  %676 = vmatprep.subr.bf16.mxu0 0
  %677 = vmatpush1.bf16.msra.mxu0 0
  %678 = vmatprep.subr.bf16.mxu0 0
  %679 = vmatpush1.bf16.msra.mxu0 0
  %680 = vmatprep.subr.bf16.mxu0 0
  %681 = vmatpush1.bf16.msra.mxu0 0
  %682 = vmatprep.subr.bf16.mxu0 0
  %683 = vmatpush1.bf16.msra.mxu0 0
  %684 = vmatprep.subr.bf16.mxu0 0
  %685 = vmatpush1.bf16.msra.mxu0 0
  %686 = vmatprep.subr.bf16.mxu0 0
  %687 = vmatpush1.bf16.msra.mxu0 0
  %688 = vmatprep.subr.bf16.mxu0 0
  %689 = vmatpush1.bf16.msra.mxu0 0
  %690 = vmatprep.mubr.bf16.mxu0 0
  %691 = vmatmul.mubr.bf16.gmra.mrb[0].mxu0 %v653
  %v692 = vpop.f32.mrb[0].mxu0
  %v693 = vadd.f32 0.0, %v692
  %v694 = vpop.f32.mrb[0].mxu0
  %v695 = vpop.f32.mrb[0].mxu0
  %v696 = vadd.f32 0.0, %v695
  %v697 = vpop.f32.mrb[0].mxu0
  %698 = vdwg.mxu0
  %v699 = vadd.f32 %v426, %v693
  %v700 = vadd.f32 %v427, %v696
  %701 = vrot.lane.b32.xlu0 %v153, 112
  %v702 = vpop.permute.xlu0 %701
  %703 = vrot.lane.b32.xlu0 %v153, 80
  %v704 = vpop.permute.xlu0 %703
  %v706 = vsel %vm158, %v702, 0
  %v709 = vsel %vm158, %v704, 0
  %711 = vmatprep.subr.bf16.mxu0 0
  %712 = vmatpush1.bf16.xpose.msra.mxu0 %v709
  %713 = vmatprep.subr.bf16.mxu0 0
  %714 = vmatpush1.bf16.xpose.msra.mxu0 0
  %715 = vmatprep.subr.bf16.mxu0 0
  %716 = vmatpush1.bf16.xpose.msra.mxu0 0
  %717 = vmatprep.subr.bf16.mxu0 0
  %718 = vmatpush1.bf16.xpose.msra.mxu0 0
  %719 = vmatprep.subr.bf16.mxu0 0
  %720 = vmatpush1.bf16.xpose.msra.mxu0 0
  %721 = vmatprep.subr.bf16.mxu0 0
  %722 = vmatpush1.bf16.xpose.msra.mxu0 0
  %723 = vmatprep.subr.bf16.mxu0 0
  %724 = vmatpush1.bf16.xpose.msra.mxu0 0
  %725 = vmatprep.subr.bf16.mxu0 0
  %726 = vmatpush1.bf16.xpose.msra.mxu0 0
  %727 = vmatprep.subr.bf16.mxu0 0
  %728 = vmatpush1.bf16.xpose.msra.mxu0 0
  %729 = vmatprep.subr.bf16.mxu0 0
  %730 = vmatpush1.bf16.xpose.msra.mxu0 0
  %731 = vmatprep.subr.bf16.mxu0 0
  %732 = vmatpush1.bf16.xpose.msra.mxu0 0
  %733 = vmatprep.subr.bf16.mxu0 0
  %734 = vmatpush1.bf16.xpose.msra.mxu0 0
  %735 = vmatprep.subr.bf16.mxu0 0
  %736 = vmatpush1.bf16.xpose.msra.mxu0 0
  %737 = vmatprep.subr.bf16.mxu0 0
  %738 = vmatpush1.bf16.xpose.msra.mxu0 0
  %739 = vmatprep.subr.bf16.mxu0 0
  %740 = vmatpush1.bf16.xpose.msra.mxu0 0
  %741 = vmatprep.subr.bf16.mxu0 0
  %742 = vmatpush1.bf16.xpose.msra.mxu0 0
  %743 = vmatprep.mubr.bf16.mxu0 0
  %744 = vmatmul.mubr.bf16.gmra.mrb[0].mxu0 %v706
  %v745 = vpop.f32.mrb[0].mxu0
  %v746 = vadd.f32 0.0, %v745
  %v747 = vpop.f32.mrb[0].mxu0
  %v748 = vpop.f32.mrb[0].mxu0
  %v749 = vpop.f32.mrb[0].mxu0
  %750 = vdwg.mxu0
  %751 = vrot.lane.b32.xlu0 %v154, 112
  %v752 = vpop.permute.xlu0 %751
  %753 = vrot.lane.b32.xlu0 %v154, 80
  %v754 = vpop.permute.xlu0 %753
  %v756 = vsel %vm158, %v752, 0
  %v759 = vsel %vm158, %v754, 0
  %761 = vmatprep.subr.bf16.mxu0 0
  %762 = vmatpush1.bf16.xpose.msra.mxu0 %v759
  %763 = vmatprep.subr.bf16.mxu0 0
  %764 = vmatpush1.bf16.xpose.msra.mxu0 0
  %765 = vmatprep.subr.bf16.mxu0 0
  %766 = vmatpush1.bf16.xpose.msra.mxu0 0
  %767 = vmatprep.subr.bf16.mxu0 0
  %768 = vmatpush1.bf16.xpose.msra.mxu0 0
  %769 = vmatprep.subr.bf16.mxu0 0
  %770 = vmatpush1.bf16.xpose.msra.mxu0 0
  %771 = vmatprep.subr.bf16.mxu0 0
  %772 = vmatpush1.bf16.xpose.msra.mxu0 0
  %773 = vmatprep.subr.bf16.mxu0 0
  %774 = vmatpush1.bf16.xpose.msra.mxu0 0
  %775 = vmatprep.subr.bf16.mxu0 0
  %776 = vmatpush1.bf16.xpose.msra.mxu0 0
  %777 = vmatprep.subr.bf16.mxu0 0
  %778 = vmatpush1.bf16.xpose.msra.mxu0 0
  %779 = vmatprep.subr.bf16.mxu0 0
  %780 = vmatpush1.bf16.xpose.msra.mxu0 0
  %781 = vmatprep.subr.bf16.mxu0 0
  %782 = vmatpush1.bf16.xpose.msra.mxu0 0
  %783 = vmatprep.subr.bf16.mxu0 0
  %784 = vmatpush1.bf16.xpose.msra.mxu0 0
  %785 = vmatprep.subr.bf16.mxu0 0
  %786 = vmatpush1.bf16.xpose.msra.mxu0 0
  %787 = vmatprep.subr.bf16.mxu0 0
  %788 = vmatpush1.bf16.xpose.msra.mxu0 0
  %789 = vmatprep.subr.bf16.mxu0 0
  %790 = vmatpush1.bf16.xpose.msra.mxu0 0
  %791 = vmatprep.subr.bf16.mxu0 0
  %792 = vmatpush1.bf16.xpose.msra.mxu0 0
  %793 = vmatprep.mubr.bf16.mxu0 0
  %794 = vmatmul.mubr.bf16.gmra.mrb[0].mxu0 %v756
  %v795 = vpop.f32.mrb[0].mxu0
  %v796 = vadd.f32 0.0, %v795
  %v797 = vpop.f32.mrb[0].mxu0
  %v798 = vpop.f32.mrb[0].mxu0
  %v799 = vpop.f32.mrb[0].mxu0
  %800 = vdwg.mxu0
  %v801 = vmul.f32 %v746, 0.35355338
  %v802 = vmul.f32 %v796, 0.35355338
  %v803 = vsel %vm158, %v801, -inf
  %804 = vmax.xlane.f32.xlu0 %v803
  %v805 = vpop.xlane.xlu0 %804
  %v806 = vsel %vm158, %v802, -inf
  %807 = vmax.xlane.f32.xlu0 %v806
  %v808 = vpop.xlane.xlu0 %807
  %v809 = vsub.f32 %v801, %v805
  %v810 = vsub.f32 %v802, %v808
  %v811 = vmul.f32 %v809, 1.442695
  %v812 = vpow.pop %v811
  %v813 = vmul.f32 %v810, 1.442695
  %v814 = vpow.pop %v813
  %v815 = vsel %vm158, %v812, 0.0
  %816 = vadd.xlane.f32.xlu0 %v815
  %v817 = vpop.xlane.xlu0 %816
  %v818 = vsel %vm158, %v814, 0.0
  %819 = vadd.xlane.f32.xlu0 %v818
  %v820 = vpop.xlane.xlu0 %819
  %v821 = vrcp.pop %v817
  %v822 = vrcp.pop %v820
  %v823 = vmul.f32 %v812, %v821
  %v824 = vmul.f32 %v814, %v822
  %v825 = vpack.c.bf16 %v823, %v823
  %v826 = vpack.c.bf16 %v824, %v824
  %827 = vrot.lane.b32.xlu0 %v153, 48
  %v828 = vpop.permute.xlu0 %827
  %v830 = vsel %vm158, %v825, 0
  %v833 = vsel %vm285, %v828, 0
  %835 = vmatprep.subr.bf16.mxu0 0
  %836 = vmatpush1.bf16.msra.mxu0 %v833
  %837 = vmatprep.subr.bf16.mxu0 0
  %838 = vmatpush1.bf16.msra.mxu0 0
  %839 = vmatprep.subr.bf16.mxu0 0
  %840 = vmatpush1.bf16.msra.mxu0 0
  %841 = vmatprep.subr.bf16.mxu0 0
  %842 = vmatpush1.bf16.msra.mxu0 0
  %843 = vmatprep.subr.bf16.mxu0 0
  %844 = vmatpush1.bf16.msra.mxu0 0
  %845 = vmatprep.subr.bf16.mxu0 0
  %846 = vmatpush1.bf16.msra.mxu0 0
  %847 = vmatprep.subr.bf16.mxu0 0
  %848 = vmatpush1.bf16.msra.mxu0 0
  %849 = vmatprep.subr.bf16.mxu0 0
  %850 = vmatpush1.bf16.msra.mxu0 0
  %851 = vmatprep.subr.bf16.mxu0 0
  %852 = vmatpush1.bf16.msra.mxu0 0
  %853 = vmatprep.subr.bf16.mxu0 0
  %854 = vmatpush1.bf16.msra.mxu0 0
  %855 = vmatprep.subr.bf16.mxu0 0
  %856 = vmatpush1.bf16.msra.mxu0 0
  %857 = vmatprep.subr.bf16.mxu0 0
  %858 = vmatpush1.bf16.msra.mxu0 0
  %859 = vmatprep.subr.bf16.mxu0 0
  %860 = vmatpush1.bf16.msra.mxu0 0
  %861 = vmatprep.subr.bf16.mxu0 0
  %862 = vmatpush1.bf16.msra.mxu0 0
  %863 = vmatprep.subr.bf16.mxu0 0
  %864 = vmatpush1.bf16.msra.mxu0 0
  %865 = vmatprep.subr.bf16.mxu0 0
  %866 = vmatpush1.bf16.msra.mxu0 0
  %867 = vmatprep.mubr.bf16.mxu0 0
  %868 = vmatmul.mubr.bf16.gmra.mrb[0].mxu0 %v830
  %v869 = vpop.f32.mrb[0].mxu0
  %v870 = vadd.f32 0.0, %v869
  %v871 = vpop.f32.mrb[0].mxu0
  %v872 = vpop.f32.mrb[0].mxu0
  %v873 = vpop.f32.mrb[0].mxu0
  %874 = vdwg.mxu0
  %875 = vrot.lane.b32.xlu0 %v154, 48
  %v876 = vpop.permute.xlu0 %875
  %v878 = vsel %vm158, %v826, 0
  %v881 = vsel %vm285, %v876, 0
  %883 = vmatprep.subr.bf16.mxu0 0
  %884 = vmatpush1.bf16.msra.mxu0 %v881
  %885 = vmatprep.subr.bf16.mxu0 0
  %886 = vmatpush1.bf16.msra.mxu0 0
  %887 = vmatprep.subr.bf16.mxu0 0
  %888 = vmatpush1.bf16.msra.mxu0 0
  %889 = vmatprep.subr.bf16.mxu0 0
  %890 = vmatpush1.bf16.msra.mxu0 0
  %891 = vmatprep.subr.bf16.mxu0 0
  %892 = vmatpush1.bf16.msra.mxu0 0
  %893 = vmatprep.subr.bf16.mxu0 0
  %894 = vmatpush1.bf16.msra.mxu0 0
  %895 = vmatprep.subr.bf16.mxu0 0
  %896 = vmatpush1.bf16.msra.mxu0 0
  %897 = vmatprep.subr.bf16.mxu0 0
  %898 = vmatpush1.bf16.msra.mxu0 0
  %899 = vmatprep.subr.bf16.mxu0 0
  %900 = vmatpush1.bf16.msra.mxu0 0
  %901 = vmatprep.subr.bf16.mxu0 0
  %902 = vmatpush1.bf16.msra.mxu0 0
  %903 = vmatprep.subr.bf16.mxu0 0
  %904 = vmatpush1.bf16.msra.mxu0 0
  %905 = vmatprep.subr.bf16.mxu0 0
  %906 = vmatpush1.bf16.msra.mxu0 0
  %907 = vmatprep.subr.bf16.mxu0 0
  %908 = vmatpush1.bf16.msra.mxu0 0
  %909 = vmatprep.subr.bf16.mxu0 0
  %910 = vmatpush1.bf16.msra.mxu0 0
  %911 = vmatprep.subr.bf16.mxu0 0
  %912 = vmatpush1.bf16.msra.mxu0 0
  %913 = vmatprep.subr.bf16.mxu0 0
  %914 = vmatpush1.bf16.msra.mxu0 0
  %915 = vmatprep.mubr.bf16.mxu0 0
  %916 = vmatmul.mubr.bf16.gmra.mrb[0].mxu0 %v878
  %v917 = vpop.f32.mrb[0].mxu0
  %v918 = vadd.f32 0.0, %v917
  %v919 = vpop.f32.mrb[0].mxu0
  %v920 = vpop.f32.mrb[0].mxu0
  %v921 = vpop.f32.mrb[0].mxu0
  %922 = vdwg.mxu0
  %v923 = vpack.c.bf16 %v918, %v870
  %v924 = vpack.c.bf16 %v143, %v143
  %v926 = vsel %vm158, %v923, 0
  %v929 = vsel %vm285, %v924, 0
  %931 = vmatprep.subr.bf16.mxu0 0
  %932 = vmatpush1.bf16.msra.mxu0 %v929
  %933 = vmatprep.subr.bf16.mxu0 0
  %934 = vmatpush1.bf16.msra.mxu0 0
  %935 = vmatprep.subr.bf16.mxu0 0
  %936 = vmatpush1.bf16.msra.mxu0 0
  %937 = vmatprep.subr.bf16.mxu0 0
  %938 = vmatpush1.bf16.msra.mxu0 0
  %939 = vmatprep.subr.bf16.mxu0 0
  %940 = vmatpush1.bf16.msra.mxu0 0
  %941 = vmatprep.subr.bf16.mxu0 0
  %942 = vmatpush1.bf16.msra.mxu0 0
  %943 = vmatprep.subr.bf16.mxu0 0
  %944 = vmatpush1.bf16.msra.mxu0 0
  %945 = vmatprep.subr.bf16.mxu0 0
  %946 = vmatpush1.bf16.msra.mxu0 0
  %947 = vmatprep.subr.bf16.mxu0 0
  %948 = vmatpush1.bf16.msra.mxu0 0
  %949 = vmatprep.subr.bf16.mxu0 0
  %950 = vmatpush1.bf16.msra.mxu0 0
  %951 = vmatprep.subr.bf16.mxu0 0
  %952 = vmatpush1.bf16.msra.mxu0 0
  %953 = vmatprep.subr.bf16.mxu0 0
  %954 = vmatpush1.bf16.msra.mxu0 0
  %955 = vmatprep.subr.bf16.mxu0 0
  %956 = vmatpush1.bf16.msra.mxu0 0
  %957 = vmatprep.subr.bf16.mxu0 0
  %958 = vmatpush1.bf16.msra.mxu0 0
  %959 = vmatprep.subr.bf16.mxu0 0
  %960 = vmatpush1.bf16.msra.mxu0 0
  %961 = vmatprep.subr.bf16.mxu0 0
  %962 = vmatpush1.bf16.msra.mxu0 0
  %963 = vmatprep.mubr.bf16.mxu0 0
  %964 = vmatmul.mubr.bf16.gmra.mrb[0].mxu0 %v926
  %v965 = vpop.f32.mrb[0].mxu0
  %v966 = vadd.f32 0.0, %v965
  %v967 = vpop.f32.mrb[0].mxu0
  %v968 = vpop.f32.mrb[0].mxu0
  %v969 = vadd.f32 0.0, %v968
  %v970 = vpop.f32.mrb[0].mxu0
  %971 = vdwg.mxu0
  %v972 = vadd.f32 %v699, %v966
  %v973 = vadd.f32 %v700, %v969
  %974 = vrot.lane.b32.xlu0 %v153, 104
  %v975 = vpop.permute.xlu0 %974
  %976 = vrot.lane.b32.xlu0 %v153, 72
  %v977 = vpop.permute.xlu0 %976
  %v979 = vsel %vm158, %v975, 0
  %v982 = vsel %vm158, %v977, 0
  %984 = vmatprep.subr.bf16.mxu0 0
  %985 = vmatpush1.bf16.xpose.msra.mxu0 %v982
  %986 = vmatprep.subr.bf16.mxu0 0
  %987 = vmatpush1.bf16.xpose.msra.mxu0 0
  %988 = vmatprep.subr.bf16.mxu0 0
  %989 = vmatpush1.bf16.xpose.msra.mxu0 0
  %990 = vmatprep.subr.bf16.mxu0 0
  %991 = vmatpush1.bf16.xpose.msra.mxu0 0
  %992 = vmatprep.subr.bf16.mxu0 0
  %993 = vmatpush1.bf16.xpose.msra.mxu0 0
  %994 = vmatprep.subr.bf16.mxu0 0
  %995 = vmatpush1.bf16.xpose.msra.mxu0 0
  %996 = vmatprep.subr.bf16.mxu0 0
  %997 = vmatpush1.bf16.xpose.msra.mxu0 0
  %998 = vmatprep.subr.bf16.mxu0 0
  %999 = vmatpush1.bf16.xpose.msra.mxu0 0
  %1000 = vmatprep.subr.bf16.mxu0 0
  %1001 = vmatpush1.bf16.xpose.msra.mxu0 0
  %1002 = vmatprep.subr.bf16.mxu0 0
  %1003 = vmatpush1.bf16.xpose.msra.mxu0 0
  %1004 = vmatprep.subr.bf16.mxu0 0
  %1005 = vmatpush1.bf16.xpose.msra.mxu0 0
  %1006 = vmatprep.subr.bf16.mxu0 0
  %1007 = vmatpush1.bf16.xpose.msra.mxu0 0
  %1008 = vmatprep.subr.bf16.mxu0 0
  %1009 = vmatpush1.bf16.xpose.msra.mxu0 0
  %1010 = vmatprep.subr.bf16.mxu0 0
  %1011 = vmatpush1.bf16.xpose.msra.mxu0 0
  %1012 = vmatprep.subr.bf16.mxu0 0
  %1013 = vmatpush1.bf16.xpose.msra.mxu0 0
  %1014 = vmatprep.subr.bf16.mxu0 0
  %1015 = vmatpush1.bf16.xpose.msra.mxu0 0
  %1016 = vmatprep.mubr.bf16.mxu0 0
  %1017 = vmatmul.mubr.bf16.gmra.mrb[0].mxu0 %v979
  %v1018 = vpop.f32.mrb[0].mxu0
  %v1019 = vadd.f32 0.0, %v1018
  %v1020 = vpop.f32.mrb[0].mxu0
  %v1021 = vpop.f32.mrb[0].mxu0
  %v1022 = vpop.f32.mrb[0].mxu0
  %1023 = vdwg.mxu0
  %1024 = vrot.lane.b32.xlu0 %v154, 104
  %v1025 = vpop.permute.xlu0 %1024
  %1026 = vrot.lane.b32.xlu0 %v154, 72
  %v1027 = vpop.permute.xlu0 %1026
  %v1029 = vsel %vm158, %v1025, 0
  %v1032 = vsel %vm158, %v1027, 0
  %1034 = vmatprep.subr.bf16.mxu0 0
  %1035 = vmatpush1.bf16.xpose.msra.mxu0 %v1032
  %1036 = vmatprep.subr.bf16.mxu0 0
  %1037 = vmatpush1.bf16.xpose.msra.mxu0 0
  %1038 = vmatprep.subr.bf16.mxu0 0
  %1039 = vmatpush1.bf16.xpose.msra.mxu0 0
  %1040 = vmatprep.subr.bf16.mxu0 0
  %1041 = vmatpush1.bf16.xpose.msra.mxu0 0
  %1042 = vmatprep.subr.bf16.mxu0 0
  %1043 = vmatpush1.bf16.xpose.msra.mxu0 0
  %1044 = vmatprep.subr.bf16.mxu0 0
  %1045 = vmatpush1.bf16.xpose.msra.mxu0 0
  %1046 = vmatprep.subr.bf16.mxu0 0
  %1047 = vmatpush1.bf16.xpose.msra.mxu0 0
  %1048 = vmatprep.subr.bf16.mxu0 0
  %1049 = vmatpush1.bf16.xpose.msra.mxu0 0
  %1050 = vmatprep.subr.bf16.mxu0 0
  %1051 = vmatpush1.bf16.xpose.msra.mxu0 0
  %1052 = vmatprep.subr.bf16.mxu0 0
  %1053 = vmatpush1.bf16.xpose.msra.mxu0 0
  %1054 = vmatprep.subr.bf16.mxu0 0
  %1055 = vmatpush1.bf16.xpose.msra.mxu0 0
  %1056 = vmatprep.subr.bf16.mxu0 0
  %1057 = vmatpush1.bf16.xpose.msra.mxu0 0
  %1058 = vmatprep.subr.bf16.mxu0 0
  %1059 = vmatpush1.bf16.xpose.msra.mxu0 0
  %1060 = vmatprep.subr.bf16.mxu0 0
  %1061 = vmatpush1.bf16.xpose.msra.mxu0 0
  %1062 = vmatprep.subr.bf16.mxu0 0
  %1063 = vmatpush1.bf16.xpose.msra.mxu0 0
  %1064 = vmatprep.subr.bf16.mxu0 0
  %1065 = vmatpush1.bf16.xpose.msra.mxu0 0
  %1066 = vmatprep.mubr.bf16.mxu0 0
  %1067 = vmatmul.mubr.bf16.gmra.mrb[0].mxu0 %v1029
  %v1068 = vpop.f32.mrb[0].mxu0
  %v1069 = vadd.f32 0.0, %v1068
  %v1070 = vpop.f32.mrb[0].mxu0
  %v1071 = vpop.f32.mrb[0].mxu0
  %v1072 = vpop.f32.mrb[0].mxu0
  %1073 = vdwg.mxu0
  %v1074 = vmul.f32 %v1019, 0.35355338
  %v1075 = vmul.f32 %v1069, 0.35355338
  %v1076 = vsel %vm158, %v1074, -inf
  %1077 = vmax.xlane.f32.xlu0 %v1076
  %v1078 = vpop.xlane.xlu0 %1077
  %v1079 = vsel %vm158, %v1075, -inf
  %1080 = vmax.xlane.f32.xlu0 %v1079
  %v1081 = vpop.xlane.xlu0 %1080
  %v1082 = vsub.f32 %v1074, %v1078
  %v1083 = vsub.f32 %v1075, %v1081
  %v1084 = vmul.f32 %v1082, 1.442695
  %v1085 = vpow.pop %v1084
  %v1086 = vmul.f32 %v1083, 1.442695
  %v1087 = vpow.pop %v1086
  %v1088 = vsel %vm158, %v1085, 0.0
  %1089 = vadd.xlane.f32.xlu0 %v1088
  %v1090 = vpop.xlane.xlu0 %1089
  %v1091 = vsel %vm158, %v1087, 0.0
  %1092 = vadd.xlane.f32.xlu0 %v1091
  %v1093 = vpop.xlane.xlu0 %1092
  %v1094 = vrcp.pop %v1090
  %v1095 = vrcp.pop %v1093
  %v1096 = vmul.f32 %v1085, %v1094
  %v1097 = vmul.f32 %v1087, %v1095
  %v1098 = vpack.c.bf16 %v1096, %v1096
  %v1099 = vpack.c.bf16 %v1097, %v1097
  %1100 = vrot.lane.b32.xlu0 %v153, 40
  %v1101 = vpop.permute.xlu0 %1100
  %v1103 = vsel %vm158, %v1098, 0
  %v1106 = vsel %vm285, %v1101, 0
  %1108 = vmatprep.subr.bf16.mxu0 0
  %1109 = vmatpush1.bf16.msra.mxu0 %v1106
  %1110 = vmatprep.subr.bf16.mxu0 0
  %1111 = vmatpush1.bf16.msra.mxu0 0
  %1112 = vmatprep.subr.bf16.mxu0 0
  %1113 = vmatpush1.bf16.msra.mxu0 0
  %1114 = vmatprep.subr.bf16.mxu0 0
  %1115 = vmatpush1.bf16.msra.mxu0 0
  %1116 = vmatprep.subr.bf16.mxu0 0
  %1117 = vmatpush1.bf16.msra.mxu0 0
  %1118 = vmatprep.subr.bf16.mxu0 0
  %1119 = vmatpush1.bf16.msra.mxu0 0
  %1120 = vmatprep.subr.bf16.mxu0 0
  %1121 = vmatpush1.bf16.msra.mxu0 0
  %1122 = vmatprep.subr.bf16.mxu0 0
  %1123 = vmatpush1.bf16.msra.mxu0 0
  %1124 = vmatprep.subr.bf16.mxu0 0
  %1125 = vmatpush1.bf16.msra.mxu0 0
  %1126 = vmatprep.subr.bf16.mxu0 0
  %1127 = vmatpush1.bf16.msra.mxu0 0
  %1128 = vmatprep.subr.bf16.mxu0 0
  %1129 = vmatpush1.bf16.msra.mxu0 0
  %1130 = vmatprep.subr.bf16.mxu0 0
  %1131 = vmatpush1.bf16.msra.mxu0 0
  %1132 = vmatprep.subr.bf16.mxu0 0
  %1133 = vmatpush1.bf16.msra.mxu0 0
  %1134 = vmatprep.subr.bf16.mxu0 0
  %1135 = vmatpush1.bf16.msra.mxu0 0
  %1136 = vmatprep.subr.bf16.mxu0 0
  %1137 = vmatpush1.bf16.msra.mxu0 0
  %1138 = vmatprep.subr.bf16.mxu0 0
  %1139 = vmatpush1.bf16.msra.mxu0 0
  %1140 = vmatprep.mubr.bf16.mxu0 0
  %1141 = vmatmul.mubr.bf16.gmra.mrb[0].mxu0 %v1103
  %v1142 = vpop.f32.mrb[0].mxu0
  %v1143 = vadd.f32 0.0, %v1142
  %v1144 = vpop.f32.mrb[0].mxu0
  %v1145 = vpop.f32.mrb[0].mxu0
  %v1146 = vpop.f32.mrb[0].mxu0
  %1147 = vdwg.mxu0
  %1148 = vrot.lane.b32.xlu0 %v154, 40
  %v1149 = vpop.permute.xlu0 %1148
  %v1151 = vsel %vm158, %v1099, 0
  %v1154 = vsel %vm285, %v1149, 0
  %1156 = vmatprep.subr.bf16.mxu0 0
  %1157 = vmatpush1.bf16.msra.mxu0 %v1154
  %1158 = vmatprep.subr.bf16.mxu0 0
  %1159 = vmatpush1.bf16.msra.mxu0 0
  %1160 = vmatprep.subr.bf16.mxu0 0
  %1161 = vmatpush1.bf16.msra.mxu0 0
  %1162 = vmatprep.subr.bf16.mxu0 0
  %1163 = vmatpush1.bf16.msra.mxu0 0
  %1164 = vmatprep.subr.bf16.mxu0 0
  %1165 = vmatpush1.bf16.msra.mxu0 0
  %1166 = vmatprep.subr.bf16.mxu0 0
  %1167 = vmatpush1.bf16.msra.mxu0 0
  %1168 = vmatprep.subr.bf16.mxu0 0
  %1169 = vmatpush1.bf16.msra.mxu0 0
  %1170 = vmatprep.subr.bf16.mxu0 0
  %1171 = vmatpush1.bf16.msra.mxu0 0
  %1172 = vmatprep.subr.bf16.mxu0 0
  %1173 = vmatpush1.bf16.msra.mxu0 0
  %1174 = vmatprep.subr.bf16.mxu0 0
  %1175 = vmatpush1.bf16.msra.mxu0 0
  %1176 = vmatprep.subr.bf16.mxu0 0
  %1177 = vmatpush1.bf16.msra.mxu0 0
  %1178 = vmatprep.subr.bf16.mxu0 0
  %1179 = vmatpush1.bf16.msra.mxu0 0
  %1180 = vmatprep.subr.bf16.mxu0 0
  %1181 = vmatpush1.bf16.msra.mxu0 0
  %1182 = vmatprep.subr.bf16.mxu0 0
  %1183 = vmatpush1.bf16.msra.mxu0 0
  %1184 = vmatprep.subr.bf16.mxu0 0
  %1185 = vmatpush1.bf16.msra.mxu0 0
  %1186 = vmatprep.subr.bf16.mxu0 0
  %1187 = vmatpush1.bf16.msra.mxu0 0
  %1188 = vmatprep.mubr.bf16.mxu0 0
  %1189 = vmatmul.mubr.bf16.gmra.mrb[0].mxu0 %v1151
  %v1190 = vpop.f32.mrb[0].mxu0
  %v1191 = vadd.f32 0.0, %v1190
  %v1192 = vpop.f32.mrb[0].mxu0
  %v1193 = vpop.f32.mrb[0].mxu0
  %v1194 = vpop.f32.mrb[0].mxu0
  %1195 = vdwg.mxu0
  %v1196 = vpack.c.bf16 %v1191, %v1143
  %v1197 = vpack.c.bf16 %v144, %v144
  %v1199 = vsel %vm158, %v1196, 0
  %v1202 = vsel %vm285, %v1197, 0
  %1204 = vmatprep.subr.bf16.mxu0 0
  %1205 = vmatpush1.bf16.msra.mxu0 %v1202
  %1206 = vmatprep.subr.bf16.mxu0 0
  %1207 = vmatpush1.bf16.msra.mxu0 0
  %1208 = vmatprep.subr.bf16.mxu0 0
  %1209 = vmatpush1.bf16.msra.mxu0 0
  %1210 = vmatprep.subr.bf16.mxu0 0
  %1211 = vmatpush1.bf16.msra.mxu0 0
  %1212 = vmatprep.subr.bf16.mxu0 0
  %1213 = vmatpush1.bf16.msra.mxu0 0
  %1214 = vmatprep.subr.bf16.mxu0 0
  %1215 = vmatpush1.bf16.msra.mxu0 0
  %1216 = vmatprep.subr.bf16.mxu0 0
  %1217 = vmatpush1.bf16.msra.mxu0 0
  %1218 = vmatprep.subr.bf16.mxu0 0
  %1219 = vmatpush1.bf16.msra.mxu0 0
  %1220 = vmatprep.subr.bf16.mxu0 0
  %1221 = vmatpush1.bf16.msra.mxu0 0
  %1222 = vmatprep.subr.bf16.mxu0 0
  %1223 = vmatpush1.bf16.msra.mxu0 0
  %1224 = vmatprep.subr.bf16.mxu0 0
  %1225 = vmatpush1.bf16.msra.mxu0 0
  %1226 = vmatprep.subr.bf16.mxu0 0
  %1227 = vmatpush1.bf16.msra.mxu0 0
  %1228 = vmatprep.subr.bf16.mxu0 0
  %1229 = vmatpush1.bf16.msra.mxu0 0
  %1230 = vmatprep.subr.bf16.mxu0 0
  %1231 = vmatpush1.bf16.msra.mxu0 0
  %1232 = vmatprep.subr.bf16.mxu0 0
  %1233 = vmatpush1.bf16.msra.mxu0 0
  %1234 = vmatprep.subr.bf16.mxu0 0
  %1235 = vmatpush1.bf16.msra.mxu0 0
  %1236 = vmatprep.mubr.bf16.mxu0 0
  %1237 = vmatmul.mubr.bf16.gmra.mrb[0].mxu0 %v1199
  %v1238 = vpop.f32.mrb[0].mxu0
  %v1239 = vadd.f32 0.0, %v1238
  %v1240 = vpop.f32.mrb[0].mxu0
  %v1241 = vpop.f32.mrb[0].mxu0
  %v1242 = vadd.f32 0.0, %v1241
  %v1243 = vpop.f32.mrb[0].mxu0
  %1244 = vdwg.mxu0
  %v1245 = vadd.f32 %v972, %v1239
  %v1246 = vadd.f32 %v973, %v1242
  %v1247 = vadd.f32 %v78, %v1245
  %v1248 = vadd.f32 %v79, %v1246
  %v1249 = vld [vmem:[%s6] sm:$0x1]
  %v1250 = vld [vmem:[%s7] sm:$0x1]
  %v1251 = vsel %vm96, %v1247, 0.0
  %1252 = vadd.xlane.f32.xlu0 %v1251
  %v1253 = vpop.xlane.xlu0 %1252
  %v1254 = vsel %vm96, %v1248, 0.0
  %1255 = vadd.xlane.f32.xlu0 %v1254
  %v1256 = vpop.xlane.xlu0 %1255
  %v1257 = vrcp.pop 32.0
  %v1258 = vmul.f32 %v1253, %v1257
  %v1259 = vmul.f32 %v1256, %v1257
  %v1260 = vsub.f32 %v1247, %v1258
  %v1261 = vsub.f32 %v1248, %v1259
  %v1262 = vmul.f32 %v1260, %v1260
  %v1263 = vmul.f32 %v1261, %v1261
  %v1264 = vsel %vm96, %v1262, 0.0
  %1265 = vadd.xlane.f32.xlu0 %v1264
  %v1266 = vpop.xlane.xlu0 %1265
  %v1267 = vsel %vm96, %v1263, 0.0
  %1268 = vadd.xlane.f32.xlu0 %v1267
  %v1269 = vpop.xlane.xlu0 %1268
  %v1270 = vmul.f32 %v1266, %v1257
  %v1271 = vmul.f32 %v1269, %v1257
  %v1272 = vadd.f32 %v1270, 1e-05
  %v1273 = vadd.f32 %v1271, 1e-05
  %v1274 = vrsqrt.pop %v1272
  %v1275 = vrsqrt.pop %v1273
  %v1276 = vmul.f32 %v1260, %v1274
  %v1277 = vmul.f32 %v1261, %v1275
  %v1279 = vlaneseq
  %v1280 = vshrl.u32 %v1279, 7
  %v1281 = vsub.s32 0, %v1280
  %v1282 = vrot.slane %v1249, %v1281
  %v1284 = vmul.f32 %v1276, %v1282
  %v1285 = vmul.f32 %v1277, %v1282
  %v1287 = vlaneseq
  %v1288 = vshrl.u32 %v1287, 7
  %v1289 = vsub.s32 0, %v1288
  %v1290 = vrot.slane %v1250, %v1289
  %v1292 = vadd.f32 %v1284, %v1290
  %v1293 = vadd.f32 %v1285, %v1290
  %v1294 = vld [vmem:[%s8] sm:$0xff]
  %v1295 = vld [vmem:[%s8 + $0x8] sm:$0xff]
  %v1296 = vld [vmem:[%s8 + $0x10] sm:$0xff]
  %v1297 = vld [vmem:[%s8 + $0x18] sm:$0xff]
  %v1298 = vpack.c.bf16 %v1293, %v1292
  %v1299 = vpack.c.bf16 %v1295, %v1294
  %v1300 = vpack.c.bf16 %v1297, %v1296
  %v1301 = vld [vmem:[%s9] sm:$0x1]
  %v1303 = vlaneseq
  %v1304 = vshrl.u32 %v1303, 7
  %v1305 = vsub.s32 0, %v1304
  %v1306 = vrot.slane %v1301, %v1305
  %v1309 = vsel %vm96, %v1298, 0
  %1311 = vmatprep.subr.bf16.mxu0 0
  %1312 = vmatpush1.bf16.msra.mxu0 %v1299
  %1313 = vmatprep.subr.bf16.mxu0 0
  %1314 = vmatpush1.bf16.msra.mxu0 %v1300
  %1315 = vmatprep.subr.bf16.mxu0 0
  %1316 = vmatpush1.bf16.msra.mxu0 0
  %1317 = vmatprep.subr.bf16.mxu0 0
  %1318 = vmatpush1.bf16.msra.mxu0 0
  %1319 = vmatprep.subr.bf16.mxu0 0
  %1320 = vmatpush1.bf16.msra.mxu0 0
  %1321 = vmatprep.subr.bf16.mxu0 0
  %1322 = vmatpush1.bf16.msra.mxu0 0
  %1323 = vmatprep.subr.bf16.mxu0 0
  %1324 = vmatpush1.bf16.msra.mxu0 0
  %1325 = vmatprep.subr.bf16.mxu0 0
  %1326 = vmatpush1.bf16.msra.mxu0 0
  %1327 = vmatprep.subr.bf16.mxu0 0
  %1328 = vmatpush1.bf16.msra.mxu0 0
  %1329 = vmatprep.subr.bf16.mxu0 0
  %1330 = vmatpush1.bf16.msra.mxu0 0
  %1331 = vmatprep.subr.bf16.mxu0 0
  %1332 = vmatpush1.bf16.msra.mxu0 0
  %1333 = vmatprep.subr.bf16.mxu0 0
  %1334 = vmatpush1.bf16.msra.mxu0 0
  %1335 = vmatprep.subr.bf16.mxu0 0
  %1336 = vmatpush1.bf16.msra.mxu0 0
  %1337 = vmatprep.subr.bf16.mxu0 0
  %1338 = vmatpush1.bf16.msra.mxu0 0
  %1339 = vmatprep.subr.bf16.mxu0 0
  %1340 = vmatpush1.bf16.msra.mxu0 0
  %1341 = vmatprep.subr.bf16.mxu0 0
  %1342 = vmatpush1.bf16.msra.mxu0 0
  %1343 = vmatprep.mubr.bf16.mxu0 0
  %1344 = vmatmul.mubr.bf16.gmra.mrb[0].mxu0 %v1309
  %v1345 = vpop.f32.mrb[0].mxu0
  %v1346 = vadd.f32 %v1306, %v1345
  %v1347 = vpop.f32.mrb[0].mxu0
  %v1348 = vpop.f32.mrb[0].mxu0
  %v1349 = vadd.f32 %v1306, %v1348
  %v1350 = vpop.f32.mrb[0].mxu0
  %1351 = vdwg.mxu0
  %v1352 = vld [vmem:[%s10] sm:$0xff]
  %v1353 = vld [vmem:[%s10 + $0x8] sm:$0xff]
  %v1354 = vld [vmem:[%s10 + $0x10] sm:$0xff]
  %v1355 = vld [vmem:[%s10 + $0x18] sm:$0xff]
  %v1356 = vpack.c.bf16 %v81, %v80
  %v1357 = vpack.c.bf16 %v1353, %v1352
  %v1358 = vpack.c.bf16 %v1355, %v1354
  %v1359 = vld [vmem:[%s11] sm:$0x1]
  %v1361 = vlaneseq
  %v1362 = vshrl.u32 %v1361, 7
  %v1363 = vsub.s32 0, %v1362
  %v1364 = vrot.slane %v1359, %v1363
  %v1367 = vsel %vm96, %v1356, 0
  %1369 = vmatprep.subr.bf16.mxu0 0
  %1370 = vmatpush1.bf16.msra.mxu0 %v1357
  %1371 = vmatprep.subr.bf16.mxu0 0
  %1372 = vmatpush1.bf16.msra.mxu0 %v1358
  %1373 = vmatprep.subr.bf16.mxu0 0
  %1374 = vmatpush1.bf16.msra.mxu0 0
  %1375 = vmatprep.subr.bf16.mxu0 0
  %1376 = vmatpush1.bf16.msra.mxu0 0
  %1377 = vmatprep.subr.bf16.mxu0 0
  %1378 = vmatpush1.bf16.msra.mxu0 0
  %1379 = vmatprep.subr.bf16.mxu0 0
  %1380 = vmatpush1.bf16.msra.mxu0 0
  %1381 = vmatprep.subr.bf16.mxu0 0
  %1382 = vmatpush1.bf16.msra.mxu0 0
  %1383 = vmatprep.subr.bf16.mxu0 0
  %1384 = vmatpush1.bf16.msra.mxu0 0
  %1385 = vmatprep.subr.bf16.mxu0 0
  %1386 = vmatpush1.bf16.msra.mxu0 0
  %1387 = vmatprep.subr.bf16.mxu0 0
  %1388 = vmatpush1.bf16.msra.mxu0 0
  %1389 = vmatprep.subr.bf16.mxu0 0
  %1390 = vmatpush1.bf16.msra.mxu0 0
  %1391 = vmatprep.subr.bf16.mxu0 0
  %1392 = vmatpush1.bf16.msra.mxu0 0
  %1393 = vmatprep.subr.bf16.mxu0 0
  %1394 = vmatpush1.bf16.msra.mxu0 0
  %1395 = vmatprep.subr.bf16.mxu0 0
  %1396 = vmatpush1.bf16.msra.mxu0 0
  %1397 = vmatprep.subr.bf16.mxu0 0
  %1398 = vmatpush1.bf16.msra.mxu0 0
  %1399 = vmatprep.subr.bf16.mxu0 0
  %1400 = vmatpush1.bf16.msra.mxu0 0
  %1401 = vmatprep.mubr.bf16.mxu0 0
  %1402 = vmatmul.mubr.bf16.gmra.mrb[0].mxu0 %v1367
  %v1403 = vpop.f32.mrb[0].mxu0
  %v1404 = vadd.f32 %v1364, %v1403
  %v1405 = vpop.f32.mrb[0].mxu0
  %v1406 = vpop.f32.mrb[0].mxu0
  %v1407 = vadd.f32 %v1364, %v1406
  %v1408 = vpop.f32.mrb[0].mxu0
  %1409 = vdwg.mxu0
  %v1410 = vld [vmem:[%s12] sm:$0xff]
  %v1411 = vld [vmem:[%s12 + $0x8] sm:$0xff]
  %v1412 = vld [vmem:[%s12 + $0x10] sm:$0xff]
  %v1413 = vld [vmem:[%s12 + $0x18] sm:$0xff]
  %v1414 = vld [vmem:[%s13] sm:$0x1]
  %v1416 = vlaneseq
  %v1417 = vshrl.u32 %v1416, 7
  %v1418 = vsub.s32 0, %v1417
  %v1419 = vrot.slane %v1414, %v1418
  %v1421 = vadd.f32 %v1419, 0.0
  %v1422 = vpack.c.bf16 %v1346, %v1346
  %v1423 = vpack.c.bf16 %v1349, %v1349
  %v1424 = vpack.c.bf16 %v1404, %v1404
  %v1425 = vpack.c.bf16 %v1407, %v1407
  %v1427 = vsel %vm158, %v1422, 0
  %v1430 = vsel %vm158, %v1424, 0
  %1432 = vmatprep.subr.bf16.mxu0 0
  %1433 = vmatpush1.bf16.xpose.msra.mxu0 %v1430
  %1434 = vmatprep.subr.bf16.mxu0 0
  %1435 = vmatpush1.bf16.xpose.msra.mxu0 0
  %1436 = vmatprep.subr.bf16.mxu0 0
  %1437 = vmatpush1.bf16.xpose.msra.mxu0 0
  %1438 = vmatprep.subr.bf16.mxu0 0
  %1439 = vmatpush1.bf16.xpose.msra.mxu0 0
  %1440 = vmatprep.subr.bf16.mxu0 0
  %1441 = vmatpush1.bf16.xpose.msra.mxu0 0
  %1442 = vmatprep.subr.bf16.mxu0 0
  %1443 = vmatpush1.bf16.xpose.msra.mxu0 0
  %1444 = vmatprep.subr.bf16.mxu0 0
  %1445 = vmatpush1.bf16.xpose.msra.mxu0 0
  %1446 = vmatprep.subr.bf16.mxu0 0
  %1447 = vmatpush1.bf16.xpose.msra.mxu0 0
  %1448 = vmatprep.subr.bf16.mxu0 0
  %1449 = vmatpush1.bf16.xpose.msra.mxu0 0
  %1450 = vmatprep.subr.bf16.mxu0 0
  %1451 = vmatpush1.bf16.xpose.msra.mxu0 0
  %1452 = vmatprep.subr.bf16.mxu0 0
  %1453 = vmatpush1.bf16.xpose.msra.mxu0 0
  %1454 = vmatprep.subr.bf16.mxu0 0
  %1455 = vmatpush1.bf16.xpose.msra.mxu0 0
  %1456 = vmatprep.subr.bf16.mxu0 0
  %1457 = vmatpush1.bf16.xpose.msra.mxu0 0
  %1458 = vmatprep.subr.bf16.mxu0 0
  %1459 = vmatpush1.bf16.xpose.msra.mxu0 0
  %1460 = vmatprep.subr.bf16.mxu0 0
  %1461 = vmatpush1.bf16.xpose.msra.mxu0 0
  %1462 = vmatprep.subr.bf16.mxu0 0
  %1463 = vmatpush1.bf16.xpose.msra.mxu0 0
  %1464 = vmatprep.mubr.bf16.mxu0 0
  %1465 = vmatmul.mubr.bf16.gmra.mrb[0].mxu0 %v1427
  %v1466 = vpop.f32.mrb[0].mxu0
  %v1467 = vadd.f32 0.0, %v1466
  %v1468 = vpop.f32.mrb[0].mxu0
  %v1469 = vpop.f32.mrb[0].mxu0
  %v1470 = vpop.f32.mrb[0].mxu0
  %1471 = vdwg.mxu0
  %v1473 = vsel %vm158, %v1423, 0
  %v1476 = vsel %vm158, %v1425, 0
  %1478 = vmatprep.subr.bf16.mxu0 0
  %1479 = vmatpush1.bf16.xpose.msra.mxu0 %v1476
  %1480 = vmatprep.subr.bf16.mxu0 0
  %1481 = vmatpush1.bf16.xpose.msra.mxu0 0
  %1482 = vmatprep.subr.bf16.mxu0 0
  %1483 = vmatpush1.bf16.xpose.msra.mxu0 0
  %1484 = vmatprep.subr.bf16.mxu0 0
  %1485 = vmatpush1.bf16.xpose.msra.mxu0 0
  %1486 = vmatprep.subr.bf16.mxu0 0
  %1487 = vmatpush1.bf16.xpose.msra.mxu0 0
  %1488 = vmatprep.subr.bf16.mxu0 0
  %1489 = vmatpush1.bf16.xpose.msra.mxu0 0
  %1490 = vmatprep.subr.bf16.mxu0 0
  %1491 = vmatpush1.bf16.xpose.msra.mxu0 0
  %1492 = vmatprep.subr.bf16.mxu0 0
  %1493 = vmatpush1.bf16.xpose.msra.mxu0 0
  %1494 = vmatprep.subr.bf16.mxu0 0
  %1495 = vmatpush1.bf16.xpose.msra.mxu0 0
  %1496 = vmatprep.subr.bf16.mxu0 0
  %1497 = vmatpush1.bf16.xpose.msra.mxu0 0
  %1498 = vmatprep.subr.bf16.mxu0 0
  %1499 = vmatpush1.bf16.xpose.msra.mxu0 0
  %1500 = vmatprep.subr.bf16.mxu0 0
  %1501 = vmatpush1.bf16.xpose.msra.mxu0 0
  %1502 = vmatprep.subr.bf16.mxu0 0
  %1503 = vmatpush1.bf16.xpose.msra.mxu0 0
  %1504 = vmatprep.subr.bf16.mxu0 0
  %1505 = vmatpush1.bf16.xpose.msra.mxu0 0
  %1506 = vmatprep.subr.bf16.mxu0 0
  %1507 = vmatpush1.bf16.xpose.msra.mxu0 0
  %1508 = vmatprep.subr.bf16.mxu0 0
  %1509 = vmatpush1.bf16.xpose.msra.mxu0 0
  %1510 = vmatprep.mubr.bf16.mxu0 0
  %1511 = vmatmul.mubr.bf16.gmra.mrb[0].mxu0 %v1473
  %v1512 = vpop.f32.mrb[0].mxu0
  %v1513 = vadd.f32 0.0, %v1512
  %v1514 = vpop.f32.mrb[0].mxu0
  %v1515 = vpop.f32.mrb[0].mxu0
  %v1516 = vpop.f32.mrb[0].mxu0
  %1517 = vdwg.mxu0
  %v1518 = vmul.f32 %v1467, 0.35355338
  %v1519 = vmul.f32 %v1513, 0.35355338
  %v1520 = vsel %vm158, %v1518, -inf
  %1521 = vmax.xlane.f32.xlu0 %v1520
  %v1522 = vpop.xlane.xlu0 %1521
  %v1523 = vsel %vm158, %v1519, -inf
  %1524 = vmax.xlane.f32.xlu0 %v1523
  %v1525 = vpop.xlane.xlu0 %1524
  %v1526 = vsub.f32 %v1518, %v1522
  %v1527 = vsub.f32 %v1519, %v1525
  %v1528 = vmul.f32 %v1526, 1.442695
  %v1529 = vpow.pop %v1528
  %v1530 = vmul.f32 %v1527, 1.442695
  %v1531 = vpow.pop %v1530
  %v1532 = vsel %vm158, %v1529, 0.0
  %1533 = vadd.xlane.f32.xlu0 %v1532
  %v1534 = vpop.xlane.xlu0 %1533
  %v1535 = vsel %vm158, %v1531, 0.0
  %1536 = vadd.xlane.f32.xlu0 %v1535
  %v1537 = vpop.xlane.xlu0 %1536
  %v1538 = vrcp.pop %v1534
  %v1539 = vrcp.pop %v1537
  %v1540 = vmul.f32 %v1529, %v1538
  %v1541 = vmul.f32 %v1531, %v1539
  %v1542 = vpack.c.bf16 %v1540, %v1540
  %v1543 = vpack.c.bf16 %v1541, %v1541
  %1545 = vrot.lane.b32.xlu0 %v1424, 96
  %v1546 = vpop.permute.xlu0 %1545
  %v1548 = vsel %vm158, %v1542, 0
  %v1551 = vsel %vm285, %v1546, 0
  %1553 = vmatprep.subr.bf16.mxu0 0
  %1554 = vmatpush1.bf16.msra.mxu0 %v1551
  %1555 = vmatprep.subr.bf16.mxu0 0
  %1556 = vmatpush1.bf16.msra.mxu0 0
  %1557 = vmatprep.subr.bf16.mxu0 0
  %1558 = vmatpush1.bf16.msra.mxu0 0
  %1559 = vmatprep.subr.bf16.mxu0 0
  %1560 = vmatpush1.bf16.msra.mxu0 0
  %1561 = vmatprep.subr.bf16.mxu0 0
  %1562 = vmatpush1.bf16.msra.mxu0 0
  %1563 = vmatprep.subr.bf16.mxu0 0
  %1564 = vmatpush1.bf16.msra.mxu0 0
  %1565 = vmatprep.subr.bf16.mxu0 0
  %1566 = vmatpush1.bf16.msra.mxu0 0
  %1567 = vmatprep.subr.bf16.mxu0 0
  %1568 = vmatpush1.bf16.msra.mxu0 0
  %1569 = vmatprep.subr.bf16.mxu0 0
  %1570 = vmatpush1.bf16.msra.mxu0 0
  %1571 = vmatprep.subr.bf16.mxu0 0
  %1572 = vmatpush1.bf16.msra.mxu0 0
  %1573 = vmatprep.subr.bf16.mxu0 0
  %1574 = vmatpush1.bf16.msra.mxu0 0
  %1575 = vmatprep.subr.bf16.mxu0 0
  %1576 = vmatpush1.bf16.msra.mxu0 0
  %1577 = vmatprep.subr.bf16.mxu0 0
  %1578 = vmatpush1.bf16.msra.mxu0 0
  %1579 = vmatprep.subr.bf16.mxu0 0
  %1580 = vmatpush1.bf16.msra.mxu0 0
  %1581 = vmatprep.subr.bf16.mxu0 0
  %1582 = vmatpush1.bf16.msra.mxu0 0
  %1583 = vmatprep.subr.bf16.mxu0 0
  %1584 = vmatpush1.bf16.msra.mxu0 0
  %1585 = vmatprep.mubr.bf16.mxu0 0
  %1586 = vmatmul.mubr.bf16.gmra.mrb[0].mxu0 %v1548
  %v1587 = vpop.f32.mrb[0].mxu0
  %v1588 = vadd.f32 0.0, %v1587
  %v1589 = vpop.f32.mrb[0].mxu0
  %v1590 = vpop.f32.mrb[0].mxu0
  %v1591 = vpop.f32.mrb[0].mxu0
  %1592 = vdwg.mxu0
  %1594 = vrot.lane.b32.xlu0 %v1425, 96
  %v1595 = vpop.permute.xlu0 %1594
  %v1597 = vsel %vm158, %v1543, 0
  %v1600 = vsel %vm285, %v1595, 0
  %1602 = vmatprep.subr.bf16.mxu0 0
  %1603 = vmatpush1.bf16.msra.mxu0 %v1600
  %1604 = vmatprep.subr.bf16.mxu0 0
  %1605 = vmatpush1.bf16.msra.mxu0 0
  %1606 = vmatprep.subr.bf16.mxu0 0
  %1607 = vmatpush1.bf16.msra.mxu0 0
  %1608 = vmatprep.subr.bf16.mxu0 0
  %1609 = vmatpush1.bf16.msra.mxu0 0
  %1610 = vmatprep.subr.bf16.mxu0 0
  %1611 = vmatpush1.bf16.msra.mxu0 0
  %1612 = vmatprep.subr.bf16.mxu0 0
  %1613 = vmatpush1.bf16.msra.mxu0 0
  %1614 = vmatprep.subr.bf16.mxu0 0
  %1615 = vmatpush1.bf16.msra.mxu0 0
  %1616 = vmatprep.subr.bf16.mxu0 0
  %1617 = vmatpush1.bf16.msra.mxu0 0
  %1618 = vmatprep.subr.bf16.mxu0 0
  %1619 = vmatpush1.bf16.msra.mxu0 0
  %1620 = vmatprep.subr.bf16.mxu0 0
  %1621 = vmatpush1.bf16.msra.mxu0 0
  %1622 = vmatprep.subr.bf16.mxu0 0
  %1623 = vmatpush1.bf16.msra.mxu0 0
  %1624 = vmatprep.subr.bf16.mxu0 0
  %1625 = vmatpush1.bf16.msra.mxu0 0
  %1626 = vmatprep.subr.bf16.mxu0 0
  %1627 = vmatpush1.bf16.msra.mxu0 0
  %1628 = vmatprep.subr.bf16.mxu0 0
  %1629 = vmatpush1.bf16.msra.mxu0 0
  %1630 = vmatprep.subr.bf16.mxu0 0
  %1631 = vmatpush1.bf16.msra.mxu0 0
  %1632 = vmatprep.subr.bf16.mxu0 0
  %1633 = vmatpush1.bf16.msra.mxu0 0
  %1634 = vmatprep.mubr.bf16.mxu0 0
  %1635 = vmatmul.mubr.bf16.gmra.mrb[0].mxu0 %v1597
  %v1636 = vpop.f32.mrb[0].mxu0
  %v1637 = vadd.f32 0.0, %v1636
  %v1638 = vpop.f32.mrb[0].mxu0
  %v1639 = vpop.f32.mrb[0].mxu0
  %v1640 = vpop.f32.mrb[0].mxu0
  %1641 = vdwg.mxu0
  %v1642 = vpack.c.bf16 %v1637, %v1588
  %v1643 = vpack.c.bf16 %v1410, %v1410
  %v1645 = vsel %vm158, %v1642, 0
  %v1648 = vsel %vm285, %v1643, 0
  %1650 = vmatprep.subr.bf16.mxu0 0
  %1651 = vmatpush1.bf16.msra.mxu0 %v1648
  %1652 = vmatprep.subr.bf16.mxu0 0
  %1653 = vmatpush1.bf16.msra.mxu0 0
  %1654 = vmatprep.subr.bf16.mxu0 0
  %1655 = vmatpush1.bf16.msra.mxu0 0
  %1656 = vmatprep.subr.bf16.mxu0 0
  %1657 = vmatpush1.bf16.msra.mxu0 0
  %1658 = vmatprep.subr.bf16.mxu0 0
  %1659 = vmatpush1.bf16.msra.mxu0 0
  %1660 = vmatprep.subr.bf16.mxu0 0
  %1661 = vmatpush1.bf16.msra.mxu0 0
  %1662 = vmatprep.subr.bf16.mxu0 0
  %1663 = vmatpush1.bf16.msra.mxu0 0
  %1664 = vmatprep.subr.bf16.mxu0 0
  %1665 = vmatpush1.bf16.msra.mxu0 0
  %1666 = vmatprep.subr.bf16.mxu0 0
  %1667 = vmatpush1.bf16.msra.mxu0 0
  %1668 = vmatprep.subr.bf16.mxu0 0
  %1669 = vmatpush1.bf16.msra.mxu0 0
  %1670 = vmatprep.subr.bf16.mxu0 0
  %1671 = vmatpush1.bf16.msra.mxu0 0
  %1672 = vmatprep.subr.bf16.mxu0 0
  %1673 = vmatpush1.bf16.msra.mxu0 0
  %1674 = vmatprep.subr.bf16.mxu0 0
  %1675 = vmatpush1.bf16.msra.mxu0 0
  %1676 = vmatprep.subr.bf16.mxu0 0
  %1677 = vmatpush1.bf16.msra.mxu0 0
  %1678 = vmatprep.subr.bf16.mxu0 0
  %1679 = vmatpush1.bf16.msra.mxu0 0
  %1680 = vmatprep.subr.bf16.mxu0 0
  %1681 = vmatpush1.bf16.msra.mxu0 0
  %1682 = vmatprep.mubr.bf16.mxu0 0
  %1683 = vmatmul.mubr.bf16.gmra.mrb[0].mxu0 %v1645
  %v1684 = vpop.f32.mrb[0].mxu0
  %v1685 = vadd.f32 0.0, %v1684
  %v1686 = vpop.f32.mrb[0].mxu0
  %v1687 = vpop.f32.mrb[0].mxu0
  %v1688 = vadd.f32 0.0, %v1687
  %v1689 = vpop.f32.mrb[0].mxu0
  %1690 = vdwg.mxu0
  %v1691 = vadd.f32 %v1421, %v1685
  %v1692 = vadd.f32 %v1421, %v1688
  %1694 = vrot.lane.b32.xlu0 %v1422, 120
  %v1695 = vpop.permute.xlu0 %1694
  %1696 = vrot.lane.b32.xlu0 %v1424, 120
  %v1697 = vpop.permute.xlu0 %1696
  %v1699 = vsel %vm158, %v1695, 0
  %v1702 = vsel %vm158, %v1697, 0
  %1704 = vmatprep.subr.bf16.mxu0 0
  %1705 = vmatpush1.bf16.xpose.msra.mxu0 %v1702
  %1706 = vmatprep.subr.bf16.mxu0 0
  %1707 = vmatpush1.bf16.xpose.msra.mxu0 0
  %1708 = vmatprep.subr.bf16.mxu0 0
  %1709 = vmatpush1.bf16.xpose.msra.mxu0 0
  %1710 = vmatprep.subr.bf16.mxu0 0
  %1711 = vmatpush1.bf16.xpose.msra.mxu0 0
  %1712 = vmatprep.subr.bf16.mxu0 0
  %1713 = vmatpush1.bf16.xpose.msra.mxu0 0
  %1714 = vmatprep.subr.bf16.mxu0 0
  %1715 = vmatpush1.bf16.xpose.msra.mxu0 0
  %1716 = vmatprep.subr.bf16.mxu0 0
  %1717 = vmatpush1.bf16.xpose.msra.mxu0 0
  %1718 = vmatprep.subr.bf16.mxu0 0
  %1719 = vmatpush1.bf16.xpose.msra.mxu0 0
  %1720 = vmatprep.subr.bf16.mxu0 0
  %1721 = vmatpush1.bf16.xpose.msra.mxu0 0
  %1722 = vmatprep.subr.bf16.mxu0 0
  %1723 = vmatpush1.bf16.xpose.msra.mxu0 0
  %1724 = vmatprep.subr.bf16.mxu0 0
  %1725 = vmatpush1.bf16.xpose.msra.mxu0 0
  %1726 = vmatprep.subr.bf16.mxu0 0
  %1727 = vmatpush1.bf16.xpose.msra.mxu0 0
  %1728 = vmatprep.subr.bf16.mxu0 0
  %1729 = vmatpush1.bf16.xpose.msra.mxu0 0
  %1730 = vmatprep.subr.bf16.mxu0 0
  %1731 = vmatpush1.bf16.xpose.msra.mxu0 0
  %1732 = vmatprep.subr.bf16.mxu0 0
  %1733 = vmatpush1.bf16.xpose.msra.mxu0 0
  %1734 = vmatprep.subr.bf16.mxu0 0
  %1735 = vmatpush1.bf16.xpose.msra.mxu0 0
  %1736 = vmatprep.mubr.bf16.mxu0 0
  %1737 = vmatmul.mubr.bf16.gmra.mrb[0].mxu0 %v1699
  %v1738 = vpop.f32.mrb[0].mxu0
  %v1739 = vadd.f32 0.0, %v1738
  %v1740 = vpop.f32.mrb[0].mxu0
  %v1741 = vpop.f32.mrb[0].mxu0
  %v1742 = vpop.f32.mrb[0].mxu0
  %1743 = vdwg.mxu0
  %1745 = vrot.lane.b32.xlu0 %v1423, 120
  %v1746 = vpop.permute.xlu0 %1745
  %1747 = vrot.lane.b32.xlu0 %v1425, 120
  %v1748 = vpop.permute.xlu0 %1747
  %v1750 = vsel %vm158, %v1746, 0
  %v1753 = vsel %vm158, %v1748, 0
  %1755 = vmatprep.subr.bf16.mxu0 0
  %1756 = vmatpush1.bf16.xpose.msra.mxu0 %v1753
  %1757 = vmatprep.subr.bf16.mxu0 0
  %1758 = vmatpush1.bf16.xpose.msra.mxu0 0
  %1759 = vmatprep.subr.bf16.mxu0 0
  %1760 = vmatpush1.bf16.xpose.msra.mxu0 0
  %1761 = vmatprep.subr.bf16.mxu0 0
  %1762 = vmatpush1.bf16.xpose.msra.mxu0 0
  %1763 = vmatprep.subr.bf16.mxu0 0
  %1764 = vmatpush1.bf16.xpose.msra.mxu0 0
  %1765 = vmatprep.subr.bf16.mxu0 0
  %1766 = vmatpush1.bf16.xpose.msra.mxu0 0
  %1767 = vmatprep.subr.bf16.mxu0 0
  %1768 = vmatpush1.bf16.xpose.msra.mxu0 0
  %1769 = vmatprep.subr.bf16.mxu0 0
  %1770 = vmatpush1.bf16.xpose.msra.mxu0 0
  %1771 = vmatprep.subr.bf16.mxu0 0
  %1772 = vmatpush1.bf16.xpose.msra.mxu0 0
  %1773 = vmatprep.subr.bf16.mxu0 0
  %1774 = vmatpush1.bf16.xpose.msra.mxu0 0
  %1775 = vmatprep.subr.bf16.mxu0 0
  %1776 = vmatpush1.bf16.xpose.msra.mxu0 0
  %1777 = vmatprep.subr.bf16.mxu0 0
  %1778 = vmatpush1.bf16.xpose.msra.mxu0 0
  %1779 = vmatprep.subr.bf16.mxu0 0
  %1780 = vmatpush1.bf16.xpose.msra.mxu0 0
  %1781 = vmatprep.subr.bf16.mxu0 0
  %1782 = vmatpush1.bf16.xpose.msra.mxu0 0
  %1783 = vmatprep.subr.bf16.mxu0 0
  %1784 = vmatpush1.bf16.xpose.msra.mxu0 0
  %1785 = vmatprep.subr.bf16.mxu0 0
  %1786 = vmatpush1.bf16.xpose.msra.mxu0 0
  %1787 = vmatprep.mubr.bf16.mxu0 0
  %1788 = vmatmul.mubr.bf16.gmra.mrb[0].mxu0 %v1750
  %v1789 = vpop.f32.mrb[0].mxu0
  %v1790 = vadd.f32 0.0, %v1789
  %v1791 = vpop.f32.mrb[0].mxu0
  %v1792 = vpop.f32.mrb[0].mxu0
  %v1793 = vpop.f32.mrb[0].mxu0
  %1794 = vdwg.mxu0
  %v1795 = vmul.f32 %v1739, 0.35355338
  %v1796 = vmul.f32 %v1790, 0.35355338
  %v1797 = vsel %vm158, %v1795, -inf
  %1798 = vmax.xlane.f32.xlu0 %v1797
  %v1799 = vpop.xlane.xlu0 %1798
  %v1800 = vsel %vm158, %v1796, -inf
  %1801 = vmax.xlane.f32.xlu0 %v1800
  %v1802 = vpop.xlane.xlu0 %1801
  %v1803 = vsub.f32 %v1795, %v1799
  %v1804 = vsub.f32 %v1796, %v1802
  %v1805 = vmul.f32 %v1803, 1.442695
  %v1806 = vpow.pop %v1805
  %v1807 = vmul.f32 %v1804, 1.442695
  %v1808 = vpow.pop %v1807
  %v1809 = vsel %vm158, %v1806, 0.0
  %1810 = vadd.xlane.f32.xlu0 %v1809
  %v1811 = vpop.xlane.xlu0 %1810
  %v1812 = vsel %vm158, %v1808, 0.0
  %1813 = vadd.xlane.f32.xlu0 %v1812
  %v1814 = vpop.xlane.xlu0 %1813
  %v1815 = vrcp.pop %v1811
  %v1816 = vrcp.pop %v1814
  %v1817 = vmul.f32 %v1806, %v1815
  %v1818 = vmul.f32 %v1808, %v1816
  %v1819 = vpack.c.bf16 %v1817, %v1817
  %v1820 = vpack.c.bf16 %v1818, %v1818
  %1821 = vrot.lane.b32.xlu0 %v1424, 88
  %v1822 = vpop.permute.xlu0 %1821
  %v1824 = vsel %vm158, %v1819, 0
  %v1827 = vsel %vm285, %v1822, 0
  %1829 = vmatprep.subr.bf16.mxu0 0
  %1830 = vmatpush1.bf16.msra.mxu0 %v1827
  %1831 = vmatprep.subr.bf16.mxu0 0
  %1832 = vmatpush1.bf16.msra.mxu0 0
  %1833 = vmatprep.subr.bf16.mxu0 0
  %1834 = vmatpush1.bf16.msra.mxu0 0
  %1835 = vmatprep.subr.bf16.mxu0 0
  %1836 = vmatpush1.bf16.msra.mxu0 0
  %1837 = vmatprep.subr.bf16.mxu0 0
  %1838 = vmatpush1.bf16.msra.mxu0 0
  %1839 = vmatprep.subr.bf16.mxu0 0
  %1840 = vmatpush1.bf16.msra.mxu0 0
  %1841 = vmatprep.subr.bf16.mxu0 0
  %1842 = vmatpush1.bf16.msra.mxu0 0
  %1843 = vmatprep.subr.bf16.mxu0 0
  %1844 = vmatpush1.bf16.msra.mxu0 0
  %1845 = vmatprep.subr.bf16.mxu0 0
  %1846 = vmatpush1.bf16.msra.mxu0 0
  %1847 = vmatprep.subr.bf16.mxu0 0
  %1848 = vmatpush1.bf16.msra.mxu0 0
  %1849 = vmatprep.subr.bf16.mxu0 0
  %1850 = vmatpush1.bf16.msra.mxu0 0
  %1851 = vmatprep.subr.bf16.mxu0 0
  %1852 = vmatpush1.bf16.msra.mxu0 0
  %1853 = vmatprep.subr.bf16.mxu0 0
  %1854 = vmatpush1.bf16.msra.mxu0 0
  %1855 = vmatprep.subr.bf16.mxu0 0
  %1856 = vmatpush1.bf16.msra.mxu0 0
  %1857 = vmatprep.subr.bf16.mxu0 0
  %1858 = vmatpush1.bf16.msra.mxu0 0
  %1859 = vmatprep.subr.bf16.mxu0 0
  %1860 = vmatpush1.bf16.msra.mxu0 0
  %1861 = vmatprep.mubr.bf16.mxu0 0
  %1862 = vmatmul.mubr.bf16.gmra.mrb[0].mxu0 %v1824
  %v1863 = vpop.f32.mrb[0].mxu0
  %v1864 = vadd.f32 0.0, %v1863
  %v1865 = vpop.f32.mrb[0].mxu0
  %v1866 = vpop.f32.mrb[0].mxu0
  %v1867 = vpop.f32.mrb[0].mxu0
  %1868 = vdwg.mxu0
  %1869 = vrot.lane.b32.xlu0 %v1425, 88
  %v1870 = vpop.permute.xlu0 %1869
  %v1872 = vsel %vm158, %v1820, 0
  %v1875 = vsel %vm285, %v1870, 0
  %1877 = vmatprep.subr.bf16.mxu0 0
  %1878 = vmatpush1.bf16.msra.mxu0 %v1875
  %1879 = vmatprep.subr.bf16.mxu0 0
  %1880 = vmatpush1.bf16.msra.mxu0 0
  %1881 = vmatprep.subr.bf16.mxu0 0
  %1882 = vmatpush1.bf16.msra.mxu0 0
  %1883 = vmatprep.subr.bf16.mxu0 0
  %1884 = vmatpush1.bf16.msra.mxu0 0
  %1885 = vmatprep.subr.bf16.mxu0 0
  %1886 = vmatpush1.bf16.msra.mxu0 0
  %1887 = vmatprep.subr.bf16.mxu0 0
  %1888 = vmatpush1.bf16.msra.mxu0 0
  %1889 = vmatprep.subr.bf16.mxu0 0
  %1890 = vmatpush1.bf16.msra.mxu0 0
  %1891 = vmatprep.subr.bf16.mxu0 0
  %1892 = vmatpush1.bf16.msra.mxu0 0
  %1893 = vmatprep.subr.bf16.mxu0 0
  %1894 = vmatpush1.bf16.msra.mxu0 0
  %1895 = vmatprep.subr.bf16.mxu0 0
  %1896 = vmatpush1.bf16.msra.mxu0 0
  %1897 = vmatprep.subr.bf16.mxu0 0
  %1898 = vmatpush1.bf16.msra.mxu0 0
  %1899 = vmatprep.subr.bf16.mxu0 0
  %1900 = vmatpush1.bf16.msra.mxu0 0
  %1901 = vmatprep.subr.bf16.mxu0 0
  %1902 = vmatpush1.bf16.msra.mxu0 0
  %1903 = vmatprep.subr.bf16.mxu0 0
  %1904 = vmatpush1.bf16.msra.mxu0 0
  %1905 = vmatprep.subr.bf16.mxu0 0
  %1906 = vmatpush1.bf16.msra.mxu0 0
  %1907 = vmatprep.subr.bf16.mxu0 0
  %1908 = vmatpush1.bf16.msra.mxu0 0
  %1909 = vmatprep.mubr.bf16.mxu0 0
  %1910 = vmatmul.mubr.bf16.gmra.mrb[0].mxu0 %v1872
  %v1911 = vpop.f32.mrb[0].mxu0
  %v1912 = vadd.f32 0.0, %v1911
  %v1913 = vpop.f32.mrb[0].mxu0
  %v1914 = vpop.f32.mrb[0].mxu0
  %v1915 = vpop.f32.mrb[0].mxu0
  %1916 = vdwg.mxu0
  %v1917 = vpack.c.bf16 %v1912, %v1864
  %v1918 = vpack.c.bf16 %v1411, %v1411
  %v1920 = vsel %vm158, %v1917, 0
  %v1923 = vsel %vm285, %v1918, 0
  %1925 = vmatprep.subr.bf16.mxu0 0
  %1926 = vmatpush1.bf16.msra.mxu0 %v1923
  %1927 = vmatprep.subr.bf16.mxu0 0
  %1928 = vmatpush1.bf16.msra.mxu0 0
  %1929 = vmatprep.subr.bf16.mxu0 0
  %1930 = vmatpush1.bf16.msra.mxu0 0
  %1931 = vmatprep.subr.bf16.mxu0 0
  %1932 = vmatpush1.bf16.msra.mxu0 0
  %1933 = vmatprep.subr.bf16.mxu0 0
  %1934 = vmatpush1.bf16.msra.mxu0 0
  %1935 = vmatprep.subr.bf16.mxu0 0
  %1936 = vmatpush1.bf16.msra.mxu0 0
  %1937 = vmatprep.subr.bf16.mxu0 0
  %1938 = vmatpush1.bf16.msra.mxu0 0
  %1939 = vmatprep.subr.bf16.mxu0 0
  %1940 = vmatpush1.bf16.msra.mxu0 0
  %1941 = vmatprep.subr.bf16.mxu0 0
  %1942 = vmatpush1.bf16.msra.mxu0 0
  %1943 = vmatprep.subr.bf16.mxu0 0
  %1944 = vmatpush1.bf16.msra.mxu0 0
  %1945 = vmatprep.subr.bf16.mxu0 0
  %1946 = vmatpush1.bf16.msra.mxu0 0
  %1947 = vmatprep.subr.bf16.mxu0 0
  %1948 = vmatpush1.bf16.msra.mxu0 0
  %1949 = vmatprep.subr.bf16.mxu0 0
  %1950 = vmatpush1.bf16.msra.mxu0 0
  %1951 = vmatprep.subr.bf16.mxu0 0
  %1952 = vmatpush1.bf16.msra.mxu0 0
  %1953 = vmatprep.subr.bf16.mxu0 0
  %1954 = vmatpush1.bf16.msra.mxu0 0
  %1955 = vmatprep.subr.bf16.mxu0 0
  %1956 = vmatpush1.bf16.msra.mxu0 0
  %1957 = vmatprep.mubr.bf16.mxu0 0
  %1958 = vmatmul.mubr.bf16.gmra.mrb[0].mxu0 %v1920
  %v1959 = vpop.f32.mrb[0].mxu0
  %v1960 = vadd.f32 0.0, %v1959
  %v1961 = vpop.f32.mrb[0].mxu0
  %v1962 = vpop.f32.mrb[0].mxu0
  %v1963 = vadd.f32 0.0, %v1962
  %v1964 = vpop.f32.mrb[0].mxu0
  %1965 = vdwg.mxu0
  %v1966 = vadd.f32 %v1691, %v1960
  %v1967 = vadd.f32 %v1692, %v1963
  %1968 = vrot.lane.b32.xlu0 %v1422, 112
  %v1969 = vpop.permute.xlu0 %1968
  %1970 = vrot.lane.b32.xlu0 %v1424, 112
  %v1971 = vpop.permute.xlu0 %1970
  %v1973 = vsel %vm158, %v1969, 0
  %v1976 = vsel %vm158, %v1971, 0
  %1978 = vmatprep.subr.bf16.mxu0 0
  %1979 = vmatpush1.bf16.xpose.msra.mxu0 %v1976
  %1980 = vmatprep.subr.bf16.mxu0 0
  %1981 = vmatpush1.bf16.xpose.msra.mxu0 0
  %1982 = vmatprep.subr.bf16.mxu0 0
  %1983 = vmatpush1.bf16.xpose.msra.mxu0 0
  %1984 = vmatprep.subr.bf16.mxu0 0
  %1985 = vmatpush1.bf16.xpose.msra.mxu0 0
  %1986 = vmatprep.subr.bf16.mxu0 0
  %1987 = vmatpush1.bf16.xpose.msra.mxu0 0
  %1988 = vmatprep.subr.bf16.mxu0 0
  %1989 = vmatpush1.bf16.xpose.msra.mxu0 0
  %1990 = vmatprep.subr.bf16.mxu0 0
  %1991 = vmatpush1.bf16.xpose.msra.mxu0 0
  %1992 = vmatprep.subr.bf16.mxu0 0
  %1993 = vmatpush1.bf16.xpose.msra.mxu0 0
  %1994 = vmatprep.subr.bf16.mxu0 0
  %1995 = vmatpush1.bf16.xpose.msra.mxu0 0
  %1996 = vmatprep.subr.bf16.mxu0 0
  %1997 = vmatpush1.bf16.xpose.msra.mxu0 0
  %1998 = vmatprep.subr.bf16.mxu0 0
  %1999 = vmatpush1.bf16.xpose.msra.mxu0 0
  %2000 = vmatprep.subr.bf16.mxu0 0
  %2001 = vmatpush1.bf16.xpose.msra.mxu0 0
  %2002 = vmatprep.subr.bf16.mxu0 0
  %2003 = vmatpush1.bf16.xpose.msra.mxu0 0
  %2004 = vmatprep.subr.bf16.mxu0 0
  %2005 = vmatpush1.bf16.xpose.msra.mxu0 0
  %2006 = vmatprep.subr.bf16.mxu0 0
  %2007 = vmatpush1.bf16.xpose.msra.mxu0 0
  %2008 = vmatprep.subr.bf16.mxu0 0
  %2009 = vmatpush1.bf16.xpose.msra.mxu0 0
  %2010 = vmatprep.mubr.bf16.mxu0 0
  %2011 = vmatmul.mubr.bf16.gmra.mrb[0].mxu0 %v1973
  %v2012 = vpop.f32.mrb[0].mxu0
  %v2013 = vadd.f32 0.0, %v2012
  %v2014 = vpop.f32.mrb[0].mxu0
  %v2015 = vpop.f32.mrb[0].mxu0
  %v2016 = vpop.f32.mrb[0].mxu0
  %2017 = vdwg.mxu0
  %2018 = vrot.lane.b32.xlu0 %v1423, 112
  %v2019 = vpop.permute.xlu0 %2018
  %2020 = vrot.lane.b32.xlu0 %v1425, 112
  %v2021 = vpop.permute.xlu0 %2020
  %v2023 = vsel %vm158, %v2019, 0
  %v2026 = vsel %vm158, %v2021, 0
  %2028 = vmatprep.subr.bf16.mxu0 0
  %2029 = vmatpush1.bf16.xpose.msra.mxu0 %v2026
  %2030 = vmatprep.subr.bf16.mxu0 0
  %2031 = vmatpush1.bf16.xpose.msra.mxu0 0
  %2032 = vmatprep.subr.bf16.mxu0 0
  %2033 = vmatpush1.bf16.xpose.msra.mxu0 0
  %2034 = vmatprep.subr.bf16.mxu0 0
  %2035 = vmatpush1.bf16.xpose.msra.mxu0 0
  %2036 = vmatprep.subr.bf16.mxu0 0
  %2037 = vmatpush1.bf16.xpose.msra.mxu0 0
  %2038 = vmatprep.subr.bf16.mxu0 0
  %2039 = vmatpush1.bf16.xpose.msra.mxu0 0
  %2040 = vmatprep.subr.bf16.mxu0 0
  %2041 = vmatpush1.bf16.xpose.msra.mxu0 0
  %2042 = vmatprep.subr.bf16.mxu0 0
  %2043 = vmatpush1.bf16.xpose.msra.mxu0 0
  %2044 = vmatprep.subr.bf16.mxu0 0
  %2045 = vmatpush1.bf16.xpose.msra.mxu0 0
  %2046 = vmatprep.subr.bf16.mxu0 0
  %2047 = vmatpush1.bf16.xpose.msra.mxu0 0
  %2048 = vmatprep.subr.bf16.mxu0 0
  %2049 = vmatpush1.bf16.xpose.msra.mxu0 0
  %2050 = vmatprep.subr.bf16.mxu0 0
  %2051 = vmatpush1.bf16.xpose.msra.mxu0 0
  %2052 = vmatprep.subr.bf16.mxu0 0
  %2053 = vmatpush1.bf16.xpose.msra.mxu0 0
  %2054 = vmatprep.subr.bf16.mxu0 0
  %2055 = vmatpush1.bf16.xpose.msra.mxu0 0
  %2056 = vmatprep.subr.bf16.mxu0 0
  %2057 = vmatpush1.bf16.xpose.msra.mxu0 0
  %2058 = vmatprep.subr.bf16.mxu0 0
  %2059 = vmatpush1.bf16.xpose.msra.mxu0 0
  %2060 = vmatprep.mubr.bf16.mxu0 0
  %2061 = vmatmul.mubr.bf16.gmra.mrb[0].mxu0 %v2023
  %v2062 = vpop.f32.mrb[0].mxu0
  %v2063 = vadd.f32 0.0, %v2062
  %v2064 = vpop.f32.mrb[0].mxu0
  %v2065 = vpop.f32.mrb[0].mxu0
  %v2066 = vpop.f32.mrb[0].mxu0
  %2067 = vdwg.mxu0
  %v2068 = vmul.f32 %v2013, 0.35355338
  %v2069 = vmul.f32 %v2063, 0.35355338
  %v2070 = vsel %vm158, %v2068, -inf
  %2071 = vmax.xlane.f32.xlu0 %v2070
  %v2072 = vpop.xlane.xlu0 %2071
  %v2073 = vsel %vm158, %v2069, -inf
  %2074 = vmax.xlane.f32.xlu0 %v2073
  %v2075 = vpop.xlane.xlu0 %2074
  %v2076 = vsub.f32 %v2068, %v2072
  %v2077 = vsub.f32 %v2069, %v2075
  %v2078 = vmul.f32 %v2076, 1.442695
  %v2079 = vpow.pop %v2078
  %v2080 = vmul.f32 %v2077, 1.442695
  %v2081 = vpow.pop %v2080
  %v2082 = vsel %vm158, %v2079, 0.0
  %2083 = vadd.xlane.f32.xlu0 %v2082
  %v2084 = vpop.xlane.xlu0 %2083
  %v2085 = vsel %vm158, %v2081, 0.0
  %2086 = vadd.xlane.f32.xlu0 %v2085
  %v2087 = vpop.xlane.xlu0 %2086
  %v2088 = vrcp.pop %v2084
  %v2089 = vrcp.pop %v2087
  %v2090 = vmul.f32 %v2079, %v2088
  %v2091 = vmul.f32 %v2081, %v2089
  %v2092 = vpack.c.bf16 %v2090, %v2090
  %v2093 = vpack.c.bf16 %v2091, %v2091
  %2094 = vrot.lane.b32.xlu0 %v1424, 80
  %v2095 = vpop.permute.xlu0 %2094
  %v2097 = vsel %vm158, %v2092, 0
  %v2100 = vsel %vm285, %v2095, 0
  %2102 = vmatprep.subr.bf16.mxu0 0
  %2103 = vmatpush1.bf16.msra.mxu0 %v2100
  %2104 = vmatprep.subr.bf16.mxu0 0
  %2105 = vmatpush1.bf16.msra.mxu0 0
  %2106 = vmatprep.subr.bf16.mxu0 0
  %2107 = vmatpush1.bf16.msra.mxu0 0
  %2108 = vmatprep.subr.bf16.mxu0 0
  %2109 = vmatpush1.bf16.msra.mxu0 0
  %2110 = vmatprep.subr.bf16.mxu0 0
  %2111 = vmatpush1.bf16.msra.mxu0 0
  %2112 = vmatprep.subr.bf16.mxu0 0
  %2113 = vmatpush1.bf16.msra.mxu0 0
  %2114 = vmatprep.subr.bf16.mxu0 0
  %2115 = vmatpush1.bf16.msra.mxu0 0
  %2116 = vmatprep.subr.bf16.mxu0 0
  %2117 = vmatpush1.bf16.msra.mxu0 0
  %2118 = vmatprep.subr.bf16.mxu0 0
  %2119 = vmatpush1.bf16.msra.mxu0 0
  %2120 = vmatprep.subr.bf16.mxu0 0
  %2121 = vmatpush1.bf16.msra.mxu0 0
  %2122 = vmatprep.subr.bf16.mxu0 0
  %2123 = vmatpush1.bf16.msra.mxu0 0
  %2124 = vmatprep.subr.bf16.mxu0 0
  %2125 = vmatpush1.bf16.msra.mxu0 0
  %2126 = vmatprep.subr.bf16.mxu0 0
  %2127 = vmatpush1.bf16.msra.mxu0 0
  %2128 = vmatprep.subr.bf16.mxu0 0
  %2129 = vmatpush1.bf16.msra.mxu0 0
  %2130 = vmatprep.subr.bf16.mxu0 0
  %2131 = vmatpush1.bf16.msra.mxu0 0
  %2132 = vmatprep.subr.bf16.mxu0 0
  %2133 = vmatpush1.bf16.msra.mxu0 0
  %2134 = vmatprep.mubr.bf16.mxu0 0
  %2135 = vmatmul.mubr.bf16.gmra.mrb[0].mxu0 %v2097
  %v2136 = vpop.f32.mrb[0].mxu0
  %v2137 = vadd.f32 0.0, %v2136
  %v2138 = vpop.f32.mrb[0].mxu0
  %v2139 = vpop.f32.mrb[0].mxu0
  %v2140 = vpop.f32.mrb[0].mxu0
  %2141 = vdwg.mxu0
  %2142 = vrot.lane.b32.xlu0 %v1425, 80
  %v2143 = vpop.permute.xlu0 %2142
  %v2145 = vsel %vm158, %v2093, 0
  %v2148 = vsel %vm285, %v2143, 0
  %2150 = vmatprep.subr.bf16.mxu0 0
  %2151 = vmatpush1.bf16.msra.mxu0 %v2148
  %2152 = vmatprep.subr.bf16.mxu0 0
  %2153 = vmatpush1.bf16.msra.mxu0 0
  %2154 = vmatprep.subr.bf16.mxu0 0
  %2155 = vmatpush1.bf16.msra.mxu0 0
  %2156 = vmatprep.subr.bf16.mxu0 0
  %2157 = vmatpush1.bf16.msra.mxu0 0
  %2158 = vmatprep.subr.bf16.mxu0 0
  %2159 = vmatpush1.bf16.msra.mxu0 0
  %2160 = vmatprep.subr.bf16.mxu0 0
  %2161 = vmatpush1.bf16.msra.mxu0 0
  %2162 = vmatprep.subr.bf16.mxu0 0
  %2163 = vmatpush1.bf16.msra.mxu0 0
  %2164 = vmatprep.subr.bf16.mxu0 0
  %2165 = vmatpush1.bf16.msra.mxu0 0
  %2166 = vmatprep.subr.bf16.mxu0 0
  %2167 = vmatpush1.bf16.msra.mxu0 0
  %2168 = vmatprep.subr.bf16.mxu0 0
  %2169 = vmatpush1.bf16.msra.mxu0 0
  %2170 = vmatprep.subr.bf16.mxu0 0
  %2171 = vmatpush1.bf16.msra.mxu0 0
  %2172 = vmatprep.subr.bf16.mxu0 0
  %2173 = vmatpush1.bf16.msra.mxu0 0
  %2174 = vmatprep.subr.bf16.mxu0 0
  %2175 = vmatpush1.bf16.msra.mxu0 0
  %2176 = vmatprep.subr.bf16.mxu0 0
  %2177 = vmatpush1.bf16.msra.mxu0 0
  %2178 = vmatprep.subr.bf16.mxu0 0
  %2179 = vmatpush1.bf16.msra.mxu0 0
  %2180 = vmatprep.subr.bf16.mxu0 0
  %2181 = vmatpush1.bf16.msra.mxu0 0
  %2182 = vmatprep.mubr.bf16.mxu0 0
  %2183 = vmatmul.mubr.bf16.gmra.mrb[0].mxu0 %v2145
  %v2184 = vpop.f32.mrb[0].mxu0
  %v2185 = vadd.f32 0.0, %v2184
  %v2186 = vpop.f32.mrb[0].mxu0
  %v2187 = vpop.f32.mrb[0].mxu0
  %v2188 = vpop.f32.mrb[0].mxu0
  %2189 = vdwg.mxu0
  %v2190 = vpack.c.bf16 %v2185, %v2137
  %v2191 = vpack.c.bf16 %v1412, %v1412
  %v2193 = vsel %vm158, %v2190, 0
  %v2196 = vsel %vm285, %v2191, 0
  %2198 = vmatprep.subr.bf16.mxu0 0
  %2199 = vmatpush1.bf16.msra.mxu0 %v2196
  %2200 = vmatprep.subr.bf16.mxu0 0
  %2201 = vmatpush1.bf16.msra.mxu0 0
  %2202 = vmatprep.subr.bf16.mxu0 0
  %2203 = vmatpush1.bf16.msra.mxu0 0
  %2204 = vmatprep.subr.bf16.mxu0 0
  %2205 = vmatpush1.bf16.msra.mxu0 0
  %2206 = vmatprep.subr.bf16.mxu0 0
  %2207 = vmatpush1.bf16.msra.mxu0 0
  %2208 = vmatprep.subr.bf16.mxu0 0
  %2209 = vmatpush1.bf16.msra.mxu0 0
  %2210 = vmatprep.subr.bf16.mxu0 0
  %2211 = vmatpush1.bf16.msra.mxu0 0
  %2212 = vmatprep.subr.bf16.mxu0 0
  %2213 = vmatpush1.bf16.msra.mxu0 0
  %2214 = vmatprep.subr.bf16.mxu0 0
  %2215 = vmatpush1.bf16.msra.mxu0 0
  %2216 = vmatprep.subr.bf16.mxu0 0
  %2217 = vmatpush1.bf16.msra.mxu0 0
  %2218 = vmatprep.subr.bf16.mxu0 0
  %2219 = vmatpush1.bf16.msra.mxu0 0
  %2220 = vmatprep.subr.bf16.mxu0 0
  %2221 = vmatpush1.bf16.msra.mxu0 0
  %2222 = vmatprep.subr.bf16.mxu0 0
  %2223 = vmatpush1.bf16.msra.mxu0 0
  %2224 = vmatprep.subr.bf16.mxu0 0
  %2225 = vmatpush1.bf16.msra.mxu0 0
  %2226 = vmatprep.subr.bf16.mxu0 0
  %2227 = vmatpush1.bf16.msra.mxu0 0
  %2228 = vmatprep.subr.bf16.mxu0 0
  %2229 = vmatpush1.bf16.msra.mxu0 0
  %2230 = vmatprep.mubr.bf16.mxu0 0
  %2231 = vmatmul.mubr.bf16.gmra.mrb[0].mxu0 %v2193
  %v2232 = vpop.f32.mrb[0].mxu0
  %v2233 = vadd.f32 0.0, %v2232
  %v2234 = vpop.f32.mrb[0].mxu0
  %v2235 = vpop.f32.mrb[0].mxu0
  %v2236 = vadd.f32 0.0, %v2235
  %v2237 = vpop.f32.mrb[0].mxu0
  %2238 = vdwg.mxu0
  %v2239 = vadd.f32 %v1966, %v2233
  %v2240 = vadd.f32 %v1967, %v2236
  %2241 = vrot.lane.b32.xlu0 %v1422, 104
  %v2242 = vpop.permute.xlu0 %2241
  %2243 = vrot.lane.b32.xlu0 %v1424, 104
  %v2244 = vpop.permute.xlu0 %2243
  %v2246 = vsel %vm158, %v2242, 0
  %v2249 = vsel %vm158, %v2244, 0
  %2251 = vmatprep.subr.bf16.mxu0 0
  %2252 = vmatpush1.bf16.xpose.msra.mxu0 %v2249
  %2253 = vmatprep.subr.bf16.mxu0 0
  %2254 = vmatpush1.bf16.xpose.msra.mxu0 0
  %2255 = vmatprep.subr.bf16.mxu0 0
  %2256 = vmatpush1.bf16.xpose.msra.mxu0 0
  %2257 = vmatprep.subr.bf16.mxu0 0
  %2258 = vmatpush1.bf16.xpose.msra.mxu0 0
  %2259 = vmatprep.subr.bf16.mxu0 0
  %2260 = vmatpush1.bf16.xpose.msra.mxu0 0
  %2261 = vmatprep.subr.bf16.mxu0 0
  %2262 = vmatpush1.bf16.xpose.msra.mxu0 0
  %2263 = vmatprep.subr.bf16.mxu0 0
  %2264 = vmatpush1.bf16.xpose.msra.mxu0 0
  %2265 = vmatprep.subr.bf16.mxu0 0
  %2266 = vmatpush1.bf16.xpose.msra.mxu0 0
  %2267 = vmatprep.subr.bf16.mxu0 0
  %2268 = vmatpush1.bf16.xpose.msra.mxu0 0
  %2269 = vmatprep.subr.bf16.mxu0 0
  %2270 = vmatpush1.bf16.xpose.msra.mxu0 0
  %2271 = vmatprep.subr.bf16.mxu0 0
  %2272 = vmatpush1.bf16.xpose.msra.mxu0 0
  %2273 = vmatprep.subr.bf16.mxu0 0
  %2274 = vmatpush1.bf16.xpose.msra.mxu0 0
  %2275 = vmatprep.subr.bf16.mxu0 0
  %2276 = vmatpush1.bf16.xpose.msra.mxu0 0
  %2277 = vmatprep.subr.bf16.mxu0 0
  %2278 = vmatpush1.bf16.xpose.msra.mxu0 0
  %2279 = vmatprep.subr.bf16.mxu0 0
  %2280 = vmatpush1.bf16.xpose.msra.mxu0 0
  %2281 = vmatprep.subr.bf16.mxu0 0
  %2282 = vmatpush1.bf16.xpose.msra.mxu0 0
  %2283 = vmatprep.mubr.bf16.mxu0 0
  %2284 = vmatmul.mubr.bf16.gmra.mrb[0].mxu0 %v2246
  %v2285 = vpop.f32.mrb[0].mxu0
  %v2286 = vadd.f32 0.0, %v2285
  %v2287 = vpop.f32.mrb[0].mxu0
  %v2288 = vpop.f32.mrb[0].mxu0
  %v2289 = vpop.f32.mrb[0].mxu0
  %2290 = vdwg.mxu0
  %2291 = vrot.lane.b32.xlu0 %v1423, 104
  %v2292 = vpop.permute.xlu0 %2291
  %2293 = vrot.lane.b32.xlu0 %v1425, 104
  %v2294 = vpop.permute.xlu0 %2293
  %v2296 = vsel %vm158, %v2292, 0
  %v2299 = vsel %vm158, %v2294, 0
  %2301 = vmatprep.subr.bf16.mxu0 0
  %2302 = vmatpush1.bf16.xpose.msra.mxu0 %v2299
  %2303 = vmatprep.subr.bf16.mxu0 0
  %2304 = vmatpush1.bf16.xpose.msra.mxu0 0
  %2305 = vmatprep.subr.bf16.mxu0 0
  %2306 = vmatpush1.bf16.xpose.msra.mxu0 0
  %2307 = vmatprep.subr.bf16.mxu0 0
  %2308 = vmatpush1.bf16.xpose.msra.mxu0 0
  %2309 = vmatprep.subr.bf16.mxu0 0
  %2310 = vmatpush1.bf16.xpose.msra.mxu0 0
  %2311 = vmatprep.subr.bf16.mxu0 0
  %2312 = vmatpush1.bf16.xpose.msra.mxu0 0
  %2313 = vmatprep.subr.bf16.mxu0 0
  %2314 = vmatpush1.bf16.xpose.msra.mxu0 0
  %2315 = vmatprep.subr.bf16.mxu0 0
  %2316 = vmatpush1.bf16.xpose.msra.mxu0 0
  %2317 = vmatprep.subr.bf16.mxu0 0
  %2318 = vmatpush1.bf16.xpose.msra.mxu0 0
  %2319 = vmatprep.subr.bf16.mxu0 0
  %2320 = vmatpush1.bf16.xpose.msra.mxu0 0
  %2321 = vmatprep.subr.bf16.mxu0 0
  %2322 = vmatpush1.bf16.xpose.msra.mxu0 0
  %2323 = vmatprep.subr.bf16.mxu0 0
  %2324 = vmatpush1.bf16.xpose.msra.mxu0 0
  %2325 = vmatprep.subr.bf16.mxu0 0
  %2326 = vmatpush1.bf16.xpose.msra.mxu0 0
  %2327 = vmatprep.subr.bf16.mxu0 0
  %2328 = vmatpush1.bf16.xpose.msra.mxu0 0
  %2329 = vmatprep.subr.bf16.mxu0 0
  %2330 = vmatpush1.bf16.xpose.msra.mxu0 0
  %2331 = vmatprep.subr.bf16.mxu0 0
  %2332 = vmatpush1.bf16.xpose.msra.mxu0 0
  %2333 = vmatprep.mubr.bf16.mxu0 0
  %2334 = vmatmul.mubr.bf16.gmra.mrb[0].mxu0 %v2296
  %v2335 = vpop.f32.mrb[0].mxu0
  %v2336 = vadd.f32 0.0, %v2335
  %v2337 = vpop.f32.mrb[0].mxu0
  %v2338 = vpop.f32.mrb[0].mxu0
  %v2339 = vpop.f32.mrb[0].mxu0
  %2340 = vdwg.mxu0
  %v2341 = vmul.f32 %v2286, 0.35355338
  %v2342 = vmul.f32 %v2336, 0.35355338
  %v2343 = vsel %vm158, %v2341, -inf
  %2344 = vmax.xlane.f32.xlu0 %v2343
  %v2345 = vpop.xlane.xlu0 %2344
  %v2346 = vsel %vm158, %v2342, -inf
  %2347 = vmax.xlane.f32.xlu0 %v2346
  %v2348 = vpop.xlane.xlu0 %2347
  %v2349 = vsub.f32 %v2341, %v2345
  %v2350 = vsub.f32 %v2342, %v2348
  %v2351 = vmul.f32 %v2349, 1.442695
  %v2352 = vpow.pop %v2351
  %v2353 = vmul.f32 %v2350, 1.442695
  %v2354 = vpow.pop %v2353
  %v2355 = vsel %vm158, %v2352, 0.0
  %2356 = vadd.xlane.f32.xlu0 %v2355
  %v2357 = vpop.xlane.xlu0 %2356
  %v2358 = vsel %vm158, %v2354, 0.0
  %2359 = vadd.xlane.f32.xlu0 %v2358
  %v2360 = vpop.xlane.xlu0 %2359
  %v2361 = vrcp.pop %v2357
  %v2362 = vrcp.pop %v2360
  %v2363 = vmul.f32 %v2352, %v2361
  %v2364 = vmul.f32 %v2354, %v2362
  %v2365 = vpack.c.bf16 %v2363, %v2363
  %v2366 = vpack.c.bf16 %v2364, %v2364
  %2367 = vrot.lane.b32.xlu0 %v1424, 72
  %v2368 = vpop.permute.xlu0 %2367
  %v2370 = vsel %vm158, %v2365, 0
  %v2373 = vsel %vm285, %v2368, 0
  %2375 = vmatprep.subr.bf16.mxu0 0
  %2376 = vmatpush1.bf16.msra.mxu0 %v2373
  %2377 = vmatprep.subr.bf16.mxu0 0
  %2378 = vmatpush1.bf16.msra.mxu0 0
  %2379 = vmatprep.subr.bf16.mxu0 0
  %2380 = vmatpush1.bf16.msra.mxu0 0
  %2381 = vmatprep.subr.bf16.mxu0 0
  %2382 = vmatpush1.bf16.msra.mxu0 0
  %2383 = vmatprep.subr.bf16.mxu0 0
  %2384 = vmatpush1.bf16.msra.mxu0 0
  %2385 = vmatprep.subr.bf16.mxu0 0
  %2386 = vmatpush1.bf16.msra.mxu0 0
  %2387 = vmatprep.subr.bf16.mxu0 0
  %2388 = vmatpush1.bf16.msra.mxu0 0
  %2389 = vmatprep.subr.bf16.mxu0 0
  %2390 = vmatpush1.bf16.msra.mxu0 0
  %2391 = vmatprep.subr.bf16.mxu0 0
  %2392 = vmatpush1.bf16.msra.mxu0 0
  %2393 = vmatprep.subr.bf16.mxu0 0
  %2394 = vmatpush1.bf16.msra.mxu0 0
  %2395 = vmatprep.subr.bf16.mxu0 0
  %2396 = vmatpush1.bf16.msra.mxu0 0
  %2397 = vmatprep.subr.bf16.mxu0 0
  %2398 = vmatpush1.bf16.msra.mxu0 0
  %2399 = vmatprep.subr.bf16.mxu0 0
  %2400 = vmatpush1.bf16.msra.mxu0 0
  %2401 = vmatprep.subr.bf16.mxu0 0
  %2402 = vmatpush1.bf16.msra.mxu0 0
  %2403 = vmatprep.subr.bf16.mxu0 0
  %2404 = vmatpush1.bf16.msra.mxu0 0
  %2405 = vmatprep.subr.bf16.mxu0 0
  %2406 = vmatpush1.bf16.msra.mxu0 0
  %2407 = vmatprep.mubr.bf16.mxu0 0
  %2408 = vmatmul.mubr.bf16.gmra.mrb[0].mxu0 %v2370
  %v2409 = vpop.f32.mrb[0].mxu0
  %v2410 = vadd.f32 0.0, %v2409
  %v2411 = vpop.f32.mrb[0].mxu0
  %v2412 = vpop.f32.mrb[0].mxu0
  %v2413 = vpop.f32.mrb[0].mxu0
  %2414 = vdwg.mxu0
  %2415 = vrot.lane.b32.xlu0 %v1425, 72
  %v2416 = vpop.permute.xlu0 %2415
  %v2418 = vsel %vm158, %v2366, 0
  %v2421 = vsel %vm285, %v2416, 0
  %2423 = vmatprep.subr.bf16.mxu0 0
  %2424 = vmatpush1.bf16.msra.mxu0 %v2421
  %2425 = vmatprep.subr.bf16.mxu0 0
  %2426 = vmatpush1.bf16.msra.mxu0 0
  %2427 = vmatprep.subr.bf16.mxu0 0
  %2428 = vmatpush1.bf16.msra.mxu0 0
  %2429 = vmatprep.subr.bf16.mxu0 0
  %2430 = vmatpush1.bf16.msra.mxu0 0
  %2431 = vmatprep.subr.bf16.mxu0 0
  %2432 = vmatpush1.bf16.msra.mxu0 0
  %2433 = vmatprep.subr.bf16.mxu0 0
  %2434 = vmatpush1.bf16.msra.mxu0 0
  %2435 = vmatprep.subr.bf16.mxu0 0
  %2436 = vmatpush1.bf16.msra.mxu0 0
  %2437 = vmatprep.subr.bf16.mxu0 0
  %2438 = vmatpush1.bf16.msra.mxu0 0
  %2439 = vmatprep.subr.bf16.mxu0 0
  %2440 = vmatpush1.bf16.msra.mxu0 0
  %2441 = vmatprep.subr.bf16.mxu0 0
  %2442 = vmatpush1.bf16.msra.mxu0 0
  %2443 = vmatprep.subr.bf16.mxu0 0
  %2444 = vmatpush1.bf16.msra.mxu0 0
  %2445 = vmatprep.subr.bf16.mxu0 0
  %2446 = vmatpush1.bf16.msra.mxu0 0
  %2447 = vmatprep.subr.bf16.mxu0 0
  %2448 = vmatpush1.bf16.msra.mxu0 0
  %2449 = vmatprep.subr.bf16.mxu0 0
  %2450 = vmatpush1.bf16.msra.mxu0 0
  %2451 = vmatprep.subr.bf16.mxu0 0
  %2452 = vmatpush1.bf16.msra.mxu0 0
  %2453 = vmatprep.subr.bf16.mxu0 0
  %2454 = vmatpush1.bf16.msra.mxu0 0
  %2455 = vmatprep.mubr.bf16.mxu0 0
  %2456 = vmatmul.mubr.bf16.gmra.mrb[0].mxu0 %v2418
  %v2457 = vpop.f32.mrb[0].mxu0
  %v2458 = vadd.f32 0.0, %v2457
  %v2459 = vpop.f32.mrb[0].mxu0
  %v2460 = vpop.f32.mrb[0].mxu0
  %v2461 = vpop.f32.mrb[0].mxu0
  %2462 = vdwg.mxu0
  %v2463 = vpack.c.bf16 %v2458, %v2410
  %v2464 = vpack.c.bf16 %v1413, %v1413
  %v2466 = vsel %vm158, %v2463, 0
  %v2469 = vsel %vm285, %v2464, 0
  %2471 = vmatprep.subr.bf16.mxu0 0
  %2472 = vmatpush1.bf16.msra.mxu0 %v2469
  %2473 = vmatprep.subr.bf16.mxu0 0
  %2474 = vmatpush1.bf16.msra.mxu0 0
  %2475 = vmatprep.subr.bf16.mxu0 0
  %2476 = vmatpush1.bf16.msra.mxu0 0
  %2477 = vmatprep.subr.bf16.mxu0 0
  %2478 = vmatpush1.bf16.msra.mxu0 0
  %2479 = vmatprep.subr.bf16.mxu0 0
  %2480 = vmatpush1.bf16.msra.mxu0 0
  %2481 = vmatprep.subr.bf16.mxu0 0
  %2482 = vmatpush1.bf16.msra.mxu0 0
  %2483 = vmatprep.subr.bf16.mxu0 0
  %2484 = vmatpush1.bf16.msra.mxu0 0
  %2485 = vmatprep.subr.bf16.mxu0 0
  %2486 = vmatpush1.bf16.msra.mxu0 0
  %2487 = vmatprep.subr.bf16.mxu0 0
  %2488 = vmatpush1.bf16.msra.mxu0 0
  %2489 = vmatprep.subr.bf16.mxu0 0
  %2490 = vmatpush1.bf16.msra.mxu0 0
  %2491 = vmatprep.subr.bf16.mxu0 0
  %2492 = vmatpush1.bf16.msra.mxu0 0
  %2493 = vmatprep.subr.bf16.mxu0 0
  %2494 = vmatpush1.bf16.msra.mxu0 0
  %2495 = vmatprep.subr.bf16.mxu0 0
  %2496 = vmatpush1.bf16.msra.mxu0 0
  %2497 = vmatprep.subr.bf16.mxu0 0
  %2498 = vmatpush1.bf16.msra.mxu0 0
  %2499 = vmatprep.subr.bf16.mxu0 0
  %2500 = vmatpush1.bf16.msra.mxu0 0
  %2501 = vmatprep.subr.bf16.mxu0 0
  %2502 = vmatpush1.bf16.msra.mxu0 0
  %2503 = vmatprep.mubr.bf16.mxu0 0
  %2504 = vmatmul.mubr.bf16.gmra.mrb[0].mxu0 %v2466
  %v2505 = vpop.f32.mrb[0].mxu0
  %v2506 = vadd.f32 0.0, %v2505
  %v2507 = vpop.f32.mrb[0].mxu0
  %v2508 = vpop.f32.mrb[0].mxu0
  %v2509 = vadd.f32 0.0, %v2508
  %v2510 = vpop.f32.mrb[0].mxu0
  %2511 = vdwg.mxu0
  %v2512 = vadd.f32 %v2239, %v2506
  %v2513 = vadd.f32 %v2240, %v2509
  %v2514 = vadd.f32 %v1292, %v2512
  %v2515 = vadd.f32 %v1293, %v2513
  %v2516 = vld [vmem:[%s14] sm:$0x1]
  %v2517 = vld [vmem:[%s15] sm:$0x1]
  %v2518 = vsel %vm96, %v2514, 0.0
  %2519 = vadd.xlane.f32.xlu0 %v2518
  %v2520 = vpop.xlane.xlu0 %2519
  %v2521 = vsel %vm96, %v2515, 0.0
  %2522 = vadd.xlane.f32.xlu0 %v2521
  %v2523 = vpop.xlane.xlu0 %2522
  %v2524 = vmul.f32 %v2520, %v1257
  %v2525 = vmul.f32 %v2523, %v1257
  %v2526 = vsub.f32 %v2514, %v2524
  %v2527 = vsub.f32 %v2515, %v2525
  %v2528 = vmul.f32 %v2526, %v2526
  %v2529 = vmul.f32 %v2527, %v2527
  %v2530 = vsel %vm96, %v2528, 0.0
  %2531 = vadd.xlane.f32.xlu0 %v2530
  %v2532 = vpop.xlane.xlu0 %2531
  %v2533 = vsel %vm96, %v2529, 0.0
  %2534 = vadd.xlane.f32.xlu0 %v2533
  %v2535 = vpop.xlane.xlu0 %2534
  %v2536 = vmul.f32 %v2532, %v1257
  %v2537 = vmul.f32 %v2535, %v1257
  %v2538 = vadd.f32 %v2536, 1e-05
  %v2539 = vadd.f32 %v2537, 1e-05
  %v2540 = vrsqrt.pop %v2538
  %v2541 = vrsqrt.pop %v2539
  %v2542 = vmul.f32 %v2526, %v2540
  %v2543 = vmul.f32 %v2527, %v2541
  %v2545 = vlaneseq
  %v2546 = vshrl.u32 %v2545, 7
  %v2547 = vsub.s32 0, %v2546
  %v2548 = vrot.slane %v2516, %v2547
  %v2550 = vmul.f32 %v2542, %v2548
  %v2551 = vmul.f32 %v2543, %v2548
  %v2553 = vlaneseq
  %v2554 = vshrl.u32 %v2553, 7
  %v2555 = vsub.s32 0, %v2554
  %v2556 = vrot.slane %v2517, %v2555
  %v2558 = vadd.f32 %v2550, %v2556
  %v2559 = vadd.f32 %v2551, %v2556
  %v2560 = vld [vmem:[%s16] sm:$0xff]
  %v2561 = vld [vmem:[%s16 + $0x8] sm:$0xff]
  %v2562 = vld [vmem:[%s16 + $0x10] sm:$0xff]
  %v2563 = vld [vmem:[%s16 + $0x18] sm:$0xff]
  %v2564 = vpack.c.bf16 %v2559, %v2558
  %v2565 = vpack.c.bf16 %v2561, %v2560
  %v2566 = vpack.c.bf16 %v2563, %v2562
  %v2567 = vld [vmem:[%s17] sm:$0x1]
  %v2569 = vlaneseq
  %v2570 = vshrl.u32 %v2569, 7
  %v2571 = vsub.s32 0, %v2570
  %v2572 = vrot.slane %v2567, %v2571
  %v2575 = vsel %vm96, %v2564, 0
  %2577 = vmatprep.subr.bf16.mxu0 0
  %2578 = vmatpush1.bf16.msra.mxu0 %v2565
  %2579 = vmatprep.subr.bf16.mxu0 0
  %2580 = vmatpush1.bf16.msra.mxu0 %v2566
  %2581 = vmatprep.subr.bf16.mxu0 0
  %2582 = vmatpush1.bf16.msra.mxu0 0
  %2583 = vmatprep.subr.bf16.mxu0 0
  %2584 = vmatpush1.bf16.msra.mxu0 0
  %2585 = vmatprep.subr.bf16.mxu0 0
  %2586 = vmatpush1.bf16.msra.mxu0 0
  %2587 = vmatprep.subr.bf16.mxu0 0
  %2588 = vmatpush1.bf16.msra.mxu0 0
  %2589 = vmatprep.subr.bf16.mxu0 0
  %2590 = vmatpush1.bf16.msra.mxu0 0
  %2591 = vmatprep.subr.bf16.mxu0 0
  %2592 = vmatpush1.bf16.msra.mxu0 0
  %2593 = vmatprep.subr.bf16.mxu0 0
  %2594 = vmatpush1.bf16.msra.mxu0 0
  %2595 = vmatprep.subr.bf16.mxu0 0
  %2596 = vmatpush1.bf16.msra.mxu0 0
  %2597 = vmatprep.subr.bf16.mxu0 0
  %2598 = vmatpush1.bf16.msra.mxu0 0
  %2599 = vmatprep.subr.bf16.mxu0 0
  %2600 = vmatpush1.bf16.msra.mxu0 0
  %2601 = vmatprep.subr.bf16.mxu0 0
  %2602 = vmatpush1.bf16.msra.mxu0 0
  %2603 = vmatprep.subr.bf16.mxu0 0
  %2604 = vmatpush1.bf16.msra.mxu0 0
  %2605 = vmatprep.subr.bf16.mxu0 0
  %2606 = vmatpush1.bf16.msra.mxu0 0
  %2607 = vmatprep.subr.bf16.mxu0 0
  %2608 = vmatpush1.bf16.msra.mxu0 0
  %2609 = vmatprep.mubr.bf16.mxu0 0
  %2610 = vmatmul.mubr.bf16.gmra.mrb[0].mxu0 %v2575
  %v2611 = vpop.f32.mrb[0].mxu0
  %v2612 = vadd.f32 %v2572, %v2611
  %v2613 = vpop.f32.mrb[0].mxu0
  %v2614 = vpop.f32.mrb[0].mxu0
  %v2615 = vadd.f32 %v2572, %v2614
  %v2616 = vpop.f32.mrb[0].mxu0
  %2617 = vdwg.mxu0
  %v2618 = vmax.f32 %v2612, 0.0
  %v2619 = vmax.f32 %v2615, 0.0
  %v2620 = vld [vmem:[%s18] sm:$0xff]
  %v2621 = vld [vmem:[%s18 + $0x8] sm:$0xff]
  %v2622 = vld [vmem:[%s18 + $0x10] sm:$0xff]
  %v2623 = vld [vmem:[%s18 + $0x18] sm:$0xff]
  %v2624 = vld [vmem:[%s18 + $0x20] sm:$0xff]
  %v2625 = vld [vmem:[%s18 + $0x28] sm:$0xff]
  %v2626 = vld [vmem:[%s18 + $0x30] sm:$0xff]
  %v2627 = vld [vmem:[%s18 + $0x38] sm:$0xff]
  %v2628 = vpack.c.bf16 %v2619, %v2618
  %v2629 = vpack.c.bf16 %v2621, %v2620
  %v2630 = vpack.c.bf16 %v2623, %v2622
  %v2631 = vpack.c.bf16 %v2625, %v2624
  %v2632 = vpack.c.bf16 %v2627, %v2626
  %v2633 = vld [vmem:[%s19] sm:$0x1]
  %v2635 = vlaneseq
  %v2636 = vshrl.u32 %v2635, 7
  %v2637 = vsub.s32 0, %v2636
  %v2638 = vrot.slane %v2633, %v2637
  %vm2640 = vcmask 523264
  %v2642 = vsel %vm2640, %v2628, 0
  %2644 = vmatprep.subr.bf16.mxu0 0
  %2645 = vmatpush1.bf16.msra.mxu0 %v2629
  %2646 = vmatprep.subr.bf16.mxu0 0
  %2647 = vmatpush1.bf16.msra.mxu0 %v2630
  %2648 = vmatprep.subr.bf16.mxu0 0
  %2649 = vmatpush1.bf16.msra.mxu0 %v2631
  %2650 = vmatprep.subr.bf16.mxu0 0
  %2651 = vmatpush1.bf16.msra.mxu0 %v2632
  %2652 = vmatprep.subr.bf16.mxu0 0
  %2653 = vmatpush1.bf16.msra.mxu0 0
  %2654 = vmatprep.subr.bf16.mxu0 0
  %2655 = vmatpush1.bf16.msra.mxu0 0
  %2656 = vmatprep.subr.bf16.mxu0 0
  %2657 = vmatpush1.bf16.msra.mxu0 0
  %2658 = vmatprep.subr.bf16.mxu0 0
  %2659 = vmatpush1.bf16.msra.mxu0 0
  %2660 = vmatprep.subr.bf16.mxu0 0
  %2661 = vmatpush1.bf16.msra.mxu0 0
  %2662 = vmatprep.subr.bf16.mxu0 0
  %2663 = vmatpush1.bf16.msra.mxu0 0
  %2664 = vmatprep.subr.bf16.mxu0 0
  %2665 = vmatpush1.bf16.msra.mxu0 0
  %2666 = vmatprep.subr.bf16.mxu0 0
  %2667 = vmatpush1.bf16.msra.mxu0 0
  %2668 = vmatprep.subr.bf16.mxu0 0
  %2669 = vmatpush1.bf16.msra.mxu0 0
  %2670 = vmatprep.subr.bf16.mxu0 0
  %2671 = vmatpush1.bf16.msra.mxu0 0
  %2672 = vmatprep.subr.bf16.mxu0 0
  %2673 = vmatpush1.bf16.msra.mxu0 0
  %2674 = vmatprep.subr.bf16.mxu0 0
  %2675 = vmatpush1.bf16.msra.mxu0 0
  %2676 = vmatprep.mubr.bf16.mxu0 0
  %2677 = vmatmul.mubr.bf16.gmra.mrb[0].mxu0 %v2642
  %v2678 = vpop.f32.mrb[0].mxu0
  %v2679 = vadd.f32 %v2638, %v2678
  %v2680 = vpop.f32.mrb[0].mxu0
  %v2681 = vpop.f32.mrb[0].mxu0
  %v2682 = vadd.f32 %v2638, %v2681
  %v2683 = vpop.f32.mrb[0].mxu0
  %2684 = vdwg.mxu0
  %v2685 = vadd.f32 %v2558, %v2679
  %v2686 = vadd.f32 %v2559, %v2682
  %v2687 = vld [vmem:[%s20] sm:$0x1]
  %v2688 = vld [vmem:[%s21] sm:$0x1]
  %v2689 = vsel %vm96, %v2685, 0.0
  %2690 = vadd.xlane.f32.xlu0 %v2689
  %v2691 = vpop.xlane.xlu0 %2690
  %v2692 = vsel %vm96, %v2686, 0.0
  %2693 = vadd.xlane.f32.xlu0 %v2692
  %v2694 = vpop.xlane.xlu0 %2693
  %v2695 = vmul.f32 %v2691, %v1257
  %v2696 = vmul.f32 %v2694, %v1257
  %v2697 = vsub.f32 %v2685, %v2695
  %v2698 = vsub.f32 %v2686, %v2696
  %v2699 = vmul.f32 %v2697, %v2697
  %v2700 = vmul.f32 %v2698, %v2698
  %v2701 = vsel %vm96, %v2699, 0.0
  %2702 = vadd.xlane.f32.xlu0 %v2701
  %v2703 = vpop.xlane.xlu0 %2702
  %v2704 = vsel %vm96, %v2700, 0.0
  %2705 = vadd.xlane.f32.xlu0 %v2704
  %v2706 = vpop.xlane.xlu0 %2705
  %v2707 = vmul.f32 %v2703, %v1257
  %v2708 = vmul.f32 %v2706, %v1257
  %v2709 = vadd.f32 %v2707, 1e-05
  %v2710 = vadd.f32 %v2708, 1e-05
  %v2711 = vrsqrt.pop %v2709
  %v2712 = vrsqrt.pop %v2710
  %v2713 = vmul.f32 %v2697, %v2711
  %v2714 = vmul.f32 %v2698, %v2712
  %v2716 = vlaneseq
  %v2717 = vshrl.u32 %v2716, 7
  %v2718 = vsub.s32 0, %v2717
  %v2719 = vrot.slane %v2687, %v2718
  %v2721 = vmul.f32 %v2713, %v2719
  %v2722 = vmul.f32 %v2714, %v2719
  %v2724 = vlaneseq
  %v2725 = vshrl.u32 %v2724, 7
  %v2726 = vsub.s32 0, %v2725
  %v2727 = vrot.slane %v2688, %v2726
  %v2729 = vadd.f32 %v2721, %v2727
  %v2730 = vadd.f32 %v2722, %v2727
  %v2731 = vld [vmem:[%s22] sm:$0x1]
  %v2732 = vld [vmem:[%s23] sm:$0x1]
  %v2733 = vsel %vm96, %v2729, 0.0
  %2734 = vadd.xlane.f32.xlu0 %v2733
  %v2735 = vpop.xlane.xlu0 %2734
  %v2736 = vsel %vm96, %v2730, 0.0
  %2737 = vadd.xlane.f32.xlu0 %v2736
  %v2738 = vpop.xlane.xlu0 %2737
  %v2739 = vmul.f32 %v2735, %v1257
  %v2740 = vmul.f32 %v2738, %v1257
  %v2741 = vsub.f32 %v2729, %v2739
  %v2742 = vsub.f32 %v2730, %v2740
  %v2743 = vmul.f32 %v2741, %v2741
  %v2744 = vmul.f32 %v2742, %v2742
  %v2745 = vsel %vm96, %v2743, 0.0
  %2746 = vadd.xlane.f32.xlu0 %v2745
  %v2747 = vpop.xlane.xlu0 %2746
  %v2748 = vsel %vm96, %v2744, 0.0
  %2749 = vadd.xlane.f32.xlu0 %v2748
  %v2750 = vpop.xlane.xlu0 %2749
  %v2751 = vmul.f32 %v2747, %v1257
  %v2752 = vmul.f32 %v2750, %v1257
  %v2753 = vadd.f32 %v2751, 1e-05
  %v2754 = vadd.f32 %v2752, 1e-05
  %v2755 = vrsqrt.pop %v2753
  %v2756 = vrsqrt.pop %v2754
  %v2757 = vmul.f32 %v2741, %v2755
  %v2758 = vmul.f32 %v2742, %v2756
  %v2760 = vlaneseq
  %v2761 = vshrl.u32 %v2760, 7
  %v2762 = vsub.s32 0, %v2761
  %v2763 = vrot.slane %v2731, %v2762
  %v2765 = vmul.f32 %v2757, %v2763
  %v2766 = vmul.f32 %v2758, %v2763
  %v2768 = vlaneseq
  %v2769 = vshrl.u32 %v2768, 7
  %v2770 = vsub.s32 0, %v2769
  %v2771 = vrot.slane %v2732, %v2770
  %v2773 = vadd.f32 %v2765, %v2771
  %v2774 = vadd.f32 %v2766, %v2771
  %2775 = vst.msk [vmem:[%s24] sm:$0xff] %vm96, %v2773
  %2776 = vst.msk [vmem:[%s24 + $0x8] sm:$0xff] %vm96, %v2774
  // Predicated region
  $region98: #{vggish_transformer_forward.9} parent=0 // pred_check
    _
  $region99: #{vggish_transformer_forward.9} parent=0 // pred_check_branch
    %2778 = sbr.rel (0) target = $region101
  $region100: #{vggish_transformer_forward.9} parent=0 // pred_region
    _
  $region101: #{vggish_transformer_forward.9} parent=0 // pred_fallthru
    _
  // Predicated region
  $region102: #{vggish_transformer_forward.9} parent=0 // pred_check
    _
  $region103: #{vggish_transformer_forward.9} parent=0 // pred_check_branch
    %2780 = sbr.rel (0) target = $region105
  $region104: #{vggish_transformer_forward.9} parent=0 // pred_region
    _
  $region105: #{vggish_transformer_forward.9} parent=0 // pred_fallthru
    _

</llo_original>
